<compile_context>
chip_gen: v5e
topology: v5e:2x2
jax: 0.10.0
libtpu: 0.0.40
codegen_flags: <defaults>
</compile_context>

<pallas_src>
import functools
import math

import jax
import jax.numpy as jnp
from jax import lax
from jax.experimental import pallas as pl
from jax.experimental.pallas import tpu as pltpu


# ---------------------------------------------------------------------------
# helpers
# ---------------------------------------------------------------------------
def _round_up(n, m):
  return ((n + m - 1) // m) * m


def _pad_to(x, shape):
  return jnp.pad(x, [(0, s - d) for d, s in zip(x.shape, shape)])


_TILE_T_CAP = 64  # multiple of 8 -> multi-tile time blocks stay (8,128)-legal


def _plan_time_tiling(seq_len, cap=_TILE_T_CAP):
  """Returns (tile_t, padded_T).  Never degenerates to tile_t == 1."""
  if seq_len <= cap:
    return seq_len, seq_len            # single grid step, block == full dim
  return cap, _round_up(seq_len, cap)  # pad T; encoder masks the tail steps


# ---------------------------------------------------------------------------
# kernels
# ---------------------------------------------------------------------------
def _encoder_lstm_kernel(x_ref, wih_ref, whh_ref, b_ref,
                         h_out_ref, c_out_ref, h_sc, c_sc,
                         *, tile_t, seq_len, mask_tail):
  """Encoder LSTM (zero init).  Emits only the final (h, c).

  x_ref:   (bp, tile_t, Dp)  native batch-major input tile
  wih_ref: (Dp, 4*Hp)        input->gate weights (per-gate lane-aligned)
  whh_ref: (Hp, 4*Hp)        hidden->gate weights
  b_ref:   (1, 4*Hp)         b_ih + b_hh
  h_out_ref / c_out_ref: (bp, Hp) final states
  h_sc / c_sc: persistent VMEM scratch carrying the state across grid steps.
  """
  bp = x_ref.shape[0]
  hp = whh_ref.shape[0]
  t_idx = pl.program_id(0)

  @pl.when(t_idx == 0)
  def _():
    h_sc[...] = jnp.zeros_like(h_sc)
    c_sc[...] = jnp.zeros_like(c_sc)

  # Hoisted input projection for the whole tile: one well-shaped MXU matmul
  # (bp*tile_t rows), bias folded in.  No transpose needed: rows are
  # independent for the contraction over D.
  x_flat = x_ref[...].reshape(bp * tile_t, -1)
  xp = jnp.dot(x_flat.astype(wih_ref.dtype), wih_ref[...],
               preferred_element_type=jnp.float32) + b_ref[...]
  xp3 = xp.reshape(bp, tile_t, 4 * hp)

  h = h_sc[...]
  c = c_sc[...]
  # Fully-unrolled static loop: only h @ W_hh + elementwise on the serial path.
  for t in range(tile_t):
    gates = xp3[:, t, :] + jnp.dot(h.astype(whh_ref.dtype), whh_ref[...],
                                   preferred_element_type=jnp.float32)
    i_g = jax.nn.sigmoid(gates[:, 0 * hp:1 * hp])   # lane-aligned slices
    f_g = jax.nn.sigmoid(gates[:, 1 * hp:2 * hp])
    g_g = jnp.tanh(gates[:, 2 * hp:3 * hp])
    o_g = jax.nn.sigmoid(gates[:, 3 * hp:4 * hp])
    c_new = f_g * c + i_g * g_g
    h_new = o_g * jnp.tanh(c_new)
    if mask_tail:   # only emitted when T was padded to a multiple of tile_t
      valid = (t_idx * tile_t + t) < seq_len
      h = jnp.where(valid, h_new, h)
      c = jnp.where(valid, c_new, c)
    else:
      h, c = h_new, c_new

  h_sc[...] = h
  c_sc[...] = c

  @pl.when(t_idx == pl.num_programs(0) - 1)
  def _():
    h_out_ref[...] = h.astype(h_out_ref.dtype)
    c_out_ref[...] = c.astype(c_out_ref.dtype)


def _decoder_head_kernel(h_enc_ref, c_enc_ref, eps_ref,
                         wmu_ref, bmu_ref, wlv_ref, blv_ref, wz_ref, bz_ref,
                         wih_ref, whh_ref, b_ref, wfc_ref, bfc_ref,
                         pred_ref, mu_ref, logvar_ref,
                         h_sc, c_sc, xp_sc, hall_sc, *, tile_t):
  """Fused VAE head + decoder LSTM + output fc.

  Step 0 (pl.when): mu / logvar / reparametrize / fc_z, decoder state init,
  and the time-invariant decoder input projection z @ W_ih + b into xp_sc.
  Every step: tile_t LSTM steps (h stored per step into hall_sc), then ONE
  batched fc matmul over the whole tile written to pred_ref.
  pred_ref: (tile_t, bp, Op); mu_ref / logvar_ref: (bp, Lp), written on step 0
  and held resident (constant-index output blocks) until final writeback.
  """
  bp = h_enc_ref.shape[0]
  hp = whh_ref.shape[0]
  t_idx = pl.program_id(0)

  @pl.when(t_idx == 0)
  def _():
    h_enc = h_enc_ref[...].astype(jnp.float32)
    mu = jnp.dot(h_enc, wmu_ref[...],
                 preferred_element_type=jnp.float32) + bmu_ref[...]
    logvar = jnp.dot(h_enc, wlv_ref[...],
                     preferred_element_type=jnp.float32) + blv_ref[...]
    z = mu + eps_ref[...] * jnp.exp(0.5 * logvar)
    mu_ref[...] = mu
    logvar_ref[...] = logvar
    # decoder initial hidden = fc_z(z), initial cell = encoder's final cell
    h_sc[...] = jnp.dot(z, wz_ref[...],
                        preferred_element_type=jnp.float32) + bz_ref[...]
    c_sc[...] = c_enc_ref[...].astype(jnp.float32)
    # decoder input is the SAME z every timestep -> project exactly once
    xp_sc[...] = jnp.dot(z.astype(wih_ref.dtype), wih_ref[...],
                         preferred_element_type=jnp.float32) + b_ref[...]

  xp = xp_sc[...]
  h = h_sc[...]
  c = c_sc[...]
  for t in range(tile_t):
    gates = xp + jnp.dot(h.astype(whh_ref.dtype), whh_ref[...],
                         preferred_element_type=jnp.float32)
    i_g = jax.nn.sigmoid(gates[:, 0 * hp:1 * hp])
    f_g = jax.nn.sigmoid(gates[:, 1 * hp:2 * hp])
    g_g = jnp.tanh(gates[:, 2 * hp:3 * hp])
    o_g = jax.nn.sigmoid(gates[:, 3 * hp:4 * hp])
    c = f_g * c + i_g * g_g
    h = o_g * jnp.tanh(c)
    hall_sc[t] = h                       # contiguous (bp, Hp) slab store

  h_sc[...] = h
  c_sc[...] = c

  # Output fc hoisted out of the recurrence: one big MXU matmul per tile.
  h_all = hall_sc[...].reshape(tile_t * bp, hp)
  pred = jnp.dot(h_all.astype(wfc_ref.dtype), wfc_ref[...],
                 preferred_element_type=jnp.float32) + bfc_ref[...]
  pred_ref[...] = pred.reshape(pred_ref.shape).astype(pred_ref.dtype)


# ---------------------------------------------------------------------------
# pallas_call wrappers
# ---------------------------------------------------------------------------
_VMEM_LIMIT = 48 * 1024 * 1024  # fits v7x's 64 MiB physical VMEM with headroom


def _encoder_lstm(x_p, wih_t, whh_t, bias, tile_t, seq_len):
  bp, t_pad, dp = x_p.shape
  hp = whh_t.shape[0]
  grid = (t_pad // tile_t,)
  kernel = functools.partial(_encoder_lstm_kernel, tile_t=tile_t,
                             seq_len=seq_len, mask_tail=(t_pad != seq_len))
  return pl.pallas_call(
      kernel,
      out_shape=(jax.ShapeDtypeStruct((bp, hp), jnp.float32),
                 jax.ShapeDtypeStruct((bp, hp), jnp.float32)),
      grid=grid,
      in_specs=[
          pl.BlockSpec((bp, tile_t, dp), lambda t: (0, t, 0)),
          pl.BlockSpec((dp, 4 * hp), lambda t: (0, 0)),
          pl.BlockSpec((hp, 4 * hp), lambda t: (0, 0)),
          pl.BlockSpec((1, 4 * hp), lambda t: (0, 0)),
      ],
      out_specs=(pl.BlockSpec((bp, hp), lambda t: (0, 0)),
                 pl.BlockSpec((bp, hp), lambda t: (0, 0))),
      scratch_shapes=[pltpu.VMEM((bp, hp), jnp.float32),
                      pltpu.VMEM((bp, hp), jnp.float32)],
      compiler_params=pltpu.CompilerParams(
          dimension_semantics=("arbitrary",),
          vmem_limit_bytes=_VMEM_LIMIT),
  )(x_p, wih_t, whh_t, bias)


def _decoder_with_head(h_enc, c_enc, eps_p, prep, t_pad, tile_t):
  bp, hp = h_enc.shape
  lp = prep["w_mu"].shape[1]
  op = prep["w_fc"].shape[1]
  grid = (t_pad // tile_t,)

  def const(shape):
    return pl.BlockSpec(shape, lambda t: (0, 0))

  kernel = functools.partial(_decoder_head_kernel, tile_t=tile_t)
  pred, mu, logvar = pl.pallas_call(
      kernel,
      out_shape=(jax.ShapeDtypeStruct((t_pad, bp, op), jnp.float32),
                 jax.ShapeDtypeStruct((bp, lp), jnp.float32),
                 jax.ShapeDtypeStruct((bp, lp), jnp.float32)),
      grid=grid,
      in_specs=[
          const((bp, hp)),                       # h_enc (encoder final hidden)
          const((bp, hp)),                       # c_enc (encoder final cell)
          const((bp, lp)),                       # eps
          const((hp, lp)), const((1, lp)),       # fc_mu
          const((hp, lp)), const((1, lp)),       # fc_logvar
          const((lp, hp)), const((1, hp)),       # fc_z
          const((lp, 4 * hp)),                   # decoder W_ih
          const((hp, 4 * hp)),                   # decoder W_hh
          const((1, 4 * hp)),                    # decoder bias
          const((hp, op)), const((1, op)),       # output fc
      ],
      out_specs=(pl.BlockSpec((tile_t, bp, op), lambda t: (t, 0, 0)),
                 const((bp, lp)),
                 const((bp, lp))),
      scratch_shapes=[pltpu.VMEM((bp, hp), jnp.float32),          # h state
                      pltpu.VMEM((bp, hp), jnp.float32),          # c state
                      pltpu.VMEM((bp, 4 * hp), jnp.float32),      # z @ W_ih + b
                      pltpu.VMEM((tile_t, bp, hp), jnp.float32)], # per-step h
      compiler_params=pltpu.CompilerParams(
          dimension_semantics=("arbitrary",),
          vmem_limit_bytes=_VMEM_LIMIT),
  )(h_enc, c_enc, eps_p,
    prep["w_mu"], prep["b_mu"], prep["w_lv"], prep["b_lv"],
    prep["w_z"], prep["b_z"],
    prep["dec_wih"], prep["dec_whh"], prep["dec_b"],
    prep["w_fc"], prep["b_fc"])
  return pred, mu, logvar


# ---------------------------------------------------------------------------
# parameters (PyTorch-shaped raw params -> padded / transposed kernel params)
# ---------------------------------------------------------------------------
def init_lstmvae_params(key, input_size, hidden_size, latent_size):
  D, H, L = input_size, hidden_size, latent_size
  ks = jax.random.split(key, 16)

  def u(k, shape, fan_in):
    b = 1.0 / math.sqrt(fan_in)
    return jax.random.uniform(k, shape, jnp.float32, -b, b)

  return {
      "enc": {"w_ih": u(ks[0], (4 * H, D), H), "w_hh": u(ks[1], (4 * H, H), H),
              "b_ih": u(ks[2], (4 * H,), H), "b_hh": u(ks[3], (4 * H,), H)},
      "dec": {"w_ih": u(ks[4], (4 * H, L), H), "w_hh": u(ks[5], (4 * H, H), H),
              "b_ih": u(ks[6], (4 * H,), H), "b_hh": u(ks[7], (4 * H,), H)},
      "fc_mu": {"w": u(ks[8], (L, H), H), "b": u(ks[9], (L,), H)},
      "fc_logvar": {"w": u(ks[10], (L, H), H), "b": u(ks[11], (L,), H)},
      "fc_z": {"w": u(ks[12], (H, L), L), "b": u(ks[13], (H,), L)},
      "fc": {"w": u(ks[14], (D, H), H), "b": u(ks[15], (D,), H)},
  }


def _prep_lstm_weights(w_ih, w_hh, b_ih, b_hh, in_p, hp):
  """Transpose to (in, 4H); pad per-gate so each gate block is hp lanes wide."""
  four_h, in_dim = w_ih.shape
  h = four_h // 4
  wih_t = _pad_to(w_ih.T.reshape(in_dim, 4, h), (in_p, 4, hp)).reshape(in_p, 4 * hp)
  whh_t = _pad_to(w_hh.T.reshape(h, 4, h), (hp, 4, hp)).reshape(hp, 4 * hp)
  bias = _pad_to((b_ih + b_hh).reshape(4, h), (4, hp)).reshape(1, 4 * hp)
  return wih_t, whh_t, bias


def _prep_linear(w, b, in_p, out_p):
  return _pad_to(w.T, (in_p, out_p)), _pad_to(b.reshape(1, -1), (1, out_p))


def prepare_params(raw, input_size, hidden_size, latent_size,
                   matmul_dtype=jnp.float32):
  """`matmul_dtype=jnp.bfloat16` is a drop-in ~2x MXU win on v6e/v7x (LSTM and
  output-fc weights only; the VAE head stays f32, accumulation stays f32)."""
  hp = _round_up(hidden_size, 128)
  dp = _round_up(input_size, 128)
  lp = _round_up(latent_size, 128)
  op = dp  # decoder fc output size == input_size
  prep = {}
  prep["enc_wih"], prep["enc_whh"], prep["enc_b"] = _prep_lstm_weights(
      raw["enc"]["w_ih"], raw["enc"]["w_hh"], raw["enc"]["b_ih"],
      raw["enc"]["b_hh"], dp, hp)
  prep["dec_wih"], prep["dec_whh"], prep["dec_b"] = _prep_lstm_weights(
      raw["dec"]["w_ih"], raw["dec"]["w_hh"], raw["dec"]["b_ih"],
      raw["dec"]["b_hh"], lp, hp)
  prep["w_mu"], prep["b_mu"] = _prep_linear(raw["fc_mu"]["w"], raw["fc_mu"]["b"], hp, lp)
  prep["w_lv"], prep["b_lv"] = _prep_linear(raw["fc_logvar"]["w"], raw["fc_logvar"]["b"], hp, lp)
  prep["w_z"], prep["b_z"] = _prep_linear(raw["fc_z"]["w"], raw["fc_z"]["b"], lp, hp)
  prep["w_fc"], prep["b_fc"] = _prep_linear(raw["fc"]["w"], raw["fc"]["b"], hp, op)
  for k in ("enc_wih", "enc_whh", "dec_wih", "dec_whh", "w_fc"):
    prep[k] = prep[k].astype(matmul_dtype)
  return prep


# ---------------------------------------------------------------------------
# full LSTMVAE forward
# ---------------------------------------------------------------------------
@functools.partial(jax.jit, static_argnames=("latent_size",))
def lstmvae_forward(x, eps, prep, *, latent_size):
  """x: (B, T, input_size), eps: (B, latent_size) standard-normal noise.
  Returns (x_hat, mu, logvar), matching LSTMVAE.forward."""
  B, T, D = x.shape
  L = latent_size
  bp = _round_up(max(B, 8), 8)
  dp = prep["enc_wih"].shape[0]
  lp = prep["dec_wih"].shape[0]
  tile_t, t_pad = _plan_time_tiling(T)

  # ---- Encoder LSTM (zero init), only final h/c needed; x kept batch-major ----
  x_p = _pad_to(x.astype(jnp.float32), (bp, t_pad, dp))
  h_enc, c_enc = _encoder_lstm(x_p, prep["enc_wih"], prep["enc_whh"],
                               prep["enc_b"], tile_t, T)

  # ---- Fused: VAE head + decoder LSTM + output fc (single pallas_call) ----
  eps_p = _pad_to(eps.astype(jnp.float32), (bp, lp))
  pred_p, mu_p, logvar_p = _decoder_with_head(h_enc, c_enc, eps_p, prep,
                                              t_pad, tile_t)   # (t_pad, bp, op)

  x_hat = jnp.transpose(pred_p[:T, :B, :D], (1, 0, 2))
  return x_hat, mu_p[:B, :L], logvar_p[:B, :L]


# ---------------------------------------------------------------------------
# pure-JAX reference (same math, unpadded) for correctness checking
# ---------------------------------------------------------------------------
def _reference_forward(x, eps, raw, hidden_size, latent_size):
  B, T, _ = x.shape
  H, L = hidden_size, latent_size

  def lstm_scan(x_tm, p, h0, c0):
    wih_t, whh_t = p["w_ih"].T, p["w_hh"].T
    bias = (p["b_ih"] + p["b_hh"])[None, :]

    def step(carry, x_t):
      h, c = carry
      gates = x_t @ wih_t + h @ whh_t + bias
      i = jax.nn.sigmoid(gates[:, 0 * H:1 * H])
      f = jax.nn.sigmoid(gates[:, 1 * H:2 * H])
      g = jnp.tanh(gates[:, 2 * H:3 * H])
      o = jax.nn.sigmoid(gates[:, 3 * H:4 * H])
      c_new = f * c + i * g
      h_new = o * jnp.tanh(c_new)
      return (h_new, c_new), h_new

    (h_fin, c_fin), ys = lax.scan(step, (h0, c0), x_tm)
    return ys, h_fin, c_fin

  x_tm = jnp.transpose(x, (1, 0, 2)).astype(jnp.float32)
  zeros = jnp.zeros((B, H), jnp.float32)
  _, h_enc, c_enc = lstm_scan(x_tm, raw["enc"], zeros, zeros)

  mu = h_enc @ raw["fc_mu"]["w"].T + raw["fc_mu"]["b"]
  logvar = h_enc @ raw["fc_logvar"]["w"].T + raw["fc_logvar"]["b"]
  z = mu + eps * jnp.exp(0.5 * logvar)
  h_dec = z @ raw["fc_z"]["w"].T + raw["fc_z"]["b"]

  z_seq = jnp.broadcast_to(z[None, :, :], (T, B, L))
  ys, _, _ = lstm_scan(z_seq, raw["dec"], h_dec, c_enc)
  pred = ys @ raw["fc"]["w"].T + raw["fc"]["b"]
  return jnp.transpose(pred, (1, 0, 2)), mu, logvar


# ---------------------------------------------------------------------------
if __name__ == "__main__":
  batch, seq, input_size, hidden_size, latent_size = 2, 8, 16, 32, 16

  key = jax.random.PRNGKey(0)
  kx, kp, ke = jax.random.split(key, 3)
  x = jax.random.normal(kx, (batch, seq, input_size), jnp.float32)
  eps = jax.random.normal(ke, (batch, latent_size), jnp.float32)
  raw = init_lstmvae_params(kp, input_size, hidden_size, latent_size)
  prep = prepare_params(raw, input_size, hidden_size, latent_size)

  x_hat, mu, logvar = lstmvae_forward(x, eps, prep, latent_size=latent_size)
  jax.block_until_ready((x_hat, mu, logvar))

  ref_x_hat, ref_mu, ref_logvar = _reference_forward(
      x, eps, raw, hidden_size, latent_size)

  assert x_hat.shape == (batch, seq, input_size)
  assert mu.shape == (batch, latent_size)
  assert logvar.shape == (batch, latent_size)
  assert jnp.allclose(mu, ref_mu, atol=1e-4, rtol=1e-4)
  assert jnp.allclose(logvar, ref_logvar, atol=1e-4, rtol=1e-4)
  assert jnp.allclose(x_hat, ref_x_hat, atol=1e-4, rtol=1e-4)

  print("KERNEL_OK")
</pallas_src>

<mosaic_0001>
module attributes {stable_mosaic.version = 11 : i64} {
  func.func @_encoder_lstm_kernel(%arg0: i32, %arg1: memref<8x8x128xf32, #tpu.memory_space<vmem>>, %arg2: memref<128x512xf32, #tpu.memory_space<vmem>>, %arg3: memref<128x512xf32, #tpu.memory_space<vmem>>, %arg4: memref<1x512xf32, #tpu.memory_space<vmem>>, %arg5: memref<8x128xf32, #tpu.memory_space<vmem>>, %arg6: memref<8x128xf32, #tpu.memory_space<vmem>>, %arg7: memref<8x128xf32, #tpu.memory_space<vmem>>, %arg8: memref<8x128xf32, #tpu.memory_space<vmem>>) attributes {dimension_semantics = [#tpu.dimension_semantics<arbitrary>], iteration_bounds = array<i64: 1>, scalar_prefetch = 0 : i64, scratch_operands = 2 : i64, tpu.core_type = #tpu.core_type<tc>, window_params = [{transform_indices = @transform_0, window_bounds = array<i64: 8, 8, 128>}, {pipeline_mode = #tpu.pipeline_mode<synchronous>, transform_indices = @transform_1, window_bounds = array<i64: 128, 512>}, {pipeline_mode = #tpu.pipeline_mode<synchronous>, transform_indices = @transform_2, window_bounds = array<i64: 128, 512>}, {pipeline_mode = #tpu.pipeline_mode<synchronous>, transform_indices = @transform_3, window_bounds = array<i64: 1, 512>}, {pipeline_mode = #tpu.pipeline_mode<synchronous>, transform_indices = @transform_4, window_bounds = array<i64: 8, 128>}, {pipeline_mode = #tpu.pipeline_mode<synchronous>, transform_indices = @transform_5, window_bounds = array<i64: 8, 128>}]} {
    %c0_i32 = arith.constant 0 : i32
    %0 = arith.cmpi eq, %arg0, %c0_i32 : i32
    %1 = arith.extui %0 : i1 to i32
    %c0_i32_0 = arith.constant 0 : i32
    %2 = arith.cmpi ne, %1, %c0_i32_0 : i32
    scf.if %2 {
      %cst_65 = arith.constant 0.000000e+00 : f32
      %258 = vector.broadcast %cst_65 : f32 to vector<8x128xf32>
      %c0_66 = arith.constant 0 : index
      %c0_67 = arith.constant 0 : index
      %259 = vector.load %arg7[%c0_66, %c0_67] : memref<8x128xf32, #tpu.memory_space<vmem>>, vector<8x128xf32>
      tpu.vector_store %arg7[%c0_66, %c0_67], %258 {strides = array<i32>} : memref<8x128xf32, #tpu.memory_space<vmem>>, vector<8x128xf32>,
      %cst_68 = arith.constant 0.000000e+00 : f32
      %260 = vector.broadcast %cst_68 : f32 to vector<8x128xf32>
      %c0_69 = arith.constant 0 : index
      %c0_70 = arith.constant 0 : index
      %261 = vector.load %arg8[%c0_69, %c0_70] : memref<8x128xf32, #tpu.memory_space<vmem>>, vector<8x128xf32>
      tpu.vector_store %arg8[%c0_69, %c0_70], %260 {strides = array<i32>} : memref<8x128xf32, #tpu.memory_space<vmem>>, vector<8x128xf32>,
    } else {
    }
    %c0 = arith.constant 0 : index
    %c0_1 = arith.constant 0 : index
    %c0_2 = arith.constant 0 : index
    %3 = vector.load %arg1[%c0, %c0_1, %c0_2] : memref<8x8x128xf32, #tpu.memory_space<vmem>>, vector<8x8x128xf32>
    %4 = vector.shape_cast %3 : vector<8x8x128xf32> to vector<64x128xf32>
    %c0_3 = arith.constant 0 : index
    %c0_4 = arith.constant 0 : index
    %5 = vector.load %arg2[%c0_3, %c0_4] : memref<128x512xf32, #tpu.memory_space<vmem>>, vector<128x512xf32>
    %cst = arith.constant dense<0.000000e+00> : vector<64x512xf32>
    %6 = tpu.matmul %4, %5, %cst {dimension_numbers = #tpu.dot_dimension_numbers<[1], [0], [0], [1], [0, 0, 1, 1], [], []>} : vector<64x128xf32>, vector<128x512xf32>, vector<64x512xf32> -> vector<64x512xf32>
    %c0_5 = arith.constant 0 : index
    %c0_6 = arith.constant 0 : index
    %7 = vector.load %arg4[%c0_5, %c0_6] : memref<1x512xf32, #tpu.memory_space<vmem>>, vector<1x512xf32>
    %8 = vector.broadcast %7 : vector<1x512xf32> to vector<64x512xf32>
    %9 = arith.addf %6, %8 : vector<64x512xf32>
    %10 = vector.shape_cast %9 : vector<64x512xf32> to vector<8x8x512xf32>
    %c0_7 = arith.constant 0 : index
    %c0_8 = arith.constant 0 : index
    %11 = vector.load %arg7[%c0_7, %c0_8] : memref<8x128xf32, #tpu.memory_space<vmem>>, vector<8x128xf32>
    %c0_9 = arith.constant 0 : index
    %c0_10 = arith.constant 0 : index
    %12 = vector.load %arg8[%c0_9, %c0_10] : memref<8x128xf32, #tpu.memory_space<vmem>>, vector<8x128xf32>
    %13 = vector.extract_strided_slice %10 {offsets = [0, 0, 0], sizes = [8, 1, 512], strides = [1, 1, 1]} : vector<8x8x512xf32> to vector<8x1x512xf32>
    %14 = vector.shape_cast %13 : vector<8x1x512xf32> to vector<8x512xf32>
    %c0_11 = arith.constant 0 : index
    %c0_12 = arith.constant 0 : index
    %15 = vector.load %arg3[%c0_11, %c0_12] : memref<128x512xf32, #tpu.memory_space<vmem>>, vector<128x512xf32>
    %cst_13 = arith.constant dense<0.000000e+00> : vector<8x512xf32>
    %16 = tpu.matmul %11, %15, %cst_13 {dimension_numbers = #tpu.dot_dimension_numbers<[1], [0], [0], [1], [0, 0, 1, 1], [], []>} : vector<8x128xf32>, vector<128x512xf32>, vector<8x512xf32> -> vector<8x512xf32>
    %17 = arith.addf %14, %16 : vector<8x512xf32>
    %18 = vector.extract_strided_slice %17 {offsets = [0, 0], sizes = [8, 128], strides = [1, 1]} : vector<8x512xf32> to vector<8x128xf32>
    %19 = arith.negf %18 : vector<8x128xf32>
    %20 = math.exp %19 : vector<8x128xf32>
    %cst_14 = arith.constant 1.000000e+00 : f32
    %21 = vector.broadcast %cst_14 : f32 to vector<8x128xf32>
    %22 = arith.addf %21, %20 : vector<8x128xf32>
    %23 = arith.divf %21, %22 : vector<8x128xf32>
    %24 = vector.extract_strided_slice %17 {offsets = [0, 128], sizes = [8, 128], strides = [1, 1]} : vector<8x512xf32> to vector<8x128xf32>
    %25 = arith.negf %24 : vector<8x128xf32>
    %26 = math.exp %25 : vector<8x128xf32>
    %cst_15 = arith.constant 1.000000e+00 : f32
    %27 = vector.broadcast %cst_15 : f32 to vector<8x128xf32>
    %28 = arith.addf %27, %26 : vector<8x128xf32>
    %29 = arith.divf %27, %28 : vector<8x128xf32>
    %30 = vector.extract_strided_slice %17 {offsets = [0, 256], sizes = [8, 128], strides = [1, 1]} : vector<8x512xf32> to vector<8x128xf32>
    %31 = math.tanh %30 : vector<8x128xf32>
    %32 = vector.extract_strided_slice %17 {offsets = [0, 384], sizes = [8, 128], strides = [1, 1]} : vector<8x512xf32> to vector<8x128xf32>
    %33 = arith.negf %32 : vector<8x128xf32>
    %34 = math.exp %33 : vector<8x128xf32>
    %cst_16 = arith.constant 1.000000e+00 : f32
    %35 = vector.broadcast %cst_16 : f32 to vector<8x128xf32>
    %36 = arith.addf %35, %34 : vector<8x128xf32>
    %37 = arith.divf %35, %36 : vector<8x128xf32>
    %38 = arith.mulf %29, %12 : vector<8x128xf32>
    %39 = arith.mulf %23, %31 : vector<8x128xf32>
    %40 = arith.addf %38, %39 : vector<8x128xf32>
    %41 = math.tanh %40 : vector<8x128xf32>
    %42 = arith.mulf %37, %41 : vector<8x128xf32>
    %43 = vector.extract_strided_slice %10 {offsets = [0, 1, 0], sizes = [8, 1, 512], strides = [1, 1, 1]} : vector<8x8x512xf32> to vector<8x1x512xf32>
    %44 = vector.shape_cast %43 : vector<8x1x512xf32> to vector<8x512xf32>
    %c0_17 = arith.constant 0 : index
    %c0_18 = arith.constant 0 : index
    %45 = vector.load %arg3[%c0_17, %c0_18] : memref<128x512xf32, #tpu.memory_space<vmem>>, vector<128x512xf32>
    %cst_19 = arith.constant dense<0.000000e+00> : vector<8x512xf32>
    %46 = tpu.matmul %42, %45, %cst_19 {dimension_numbers = #tpu.dot_dimension_numbers<[1], [0], [0], [1], [0, 0, 1, 1], [], []>} : vector<8x128xf32>, vector<128x512xf32>, vector<8x512xf32> -> vector<8x512xf32>
    %47 = arith.addf %44, %46 : vector<8x512xf32>
    %48 = vector.extract_strided_slice %47 {offsets = [0, 0], sizes = [8, 128], strides = [1, 1]} : vector<8x512xf32> to vector<8x128xf32>
    %49 = arith.negf %48 : vector<8x128xf32>
    %50 = math.exp %49 : vector<8x128xf32>
    %cst_20 = arith.constant 1.000000e+00 : f32
    %51 = vector.broadcast %cst_20 : f32 to vector<8x128xf32>
    %52 = arith.addf %51, %50 : vector<8x128xf32>
    %53 = arith.divf %51, %52 : vector<8x128xf32>
    %54 = vector.extract_strided_slice %47 {offsets = [0, 128], sizes = [8, 128], strides = [1, 1]} : vector<8x512xf32> to vector<8x128xf32>
    %55 = arith.negf %54 : vector<8x128xf32>
    %56 = math.exp %55 : vector<8x128xf32>
    %cst_21 = arith.constant 1.000000e+00 : f32
    %57 = vector.broadcast %cst_21 : f32 to vector<8x128xf32>
    %58 = arith.addf %57, %56 : vector<8x128xf32>
    %59 = arith.divf %57, %58 : vector<8x128xf32>
    %60 = vector.extract_strided_slice %47 {offsets = [0, 256], sizes = [8, 128], strides = [1, 1]} : vector<8x512xf32> to vector<8x128xf32>
    %61 = math.tanh %60 : vector<8x128xf32>
    %62 = vector.extract_strided_slice %47 {offsets = [0, 384], sizes = [8, 128], strides = [1, 1]} : vector<8x512xf32> to vector<8x128xf32>
    %63 = arith.negf %62 : vector<8x128xf32>
    %64 = math.exp %63 : vector<8x128xf32>
    %cst_22 = arith.constant 1.000000e+00 : f32
    %65 = vector.broadcast %cst_22 : f32 to vector<8x128xf32>
    %66 = arith.addf %65, %64 : vector<8x128xf32>
    %67 = arith.divf %65, %66 : vector<8x128xf32>
    %68 = arith.mulf %59, %40 : vector<8x128xf32>
    %69 = arith.mulf %53, %61 : vector<8x128xf32>
    %70 = arith.addf %68, %69 : vector<8x128xf32>
    %71 = math.tanh %70 : vector<8x128xf32>
    %72 = arith.mulf %67, %71 : vector<8x128xf32>
    %73 = vector.extract_strided_slice %10 {offsets = [0, 2, 0], sizes = [8, 1, 512], strides = [1, 1, 1]} : vector<8x8x512xf32> to vector<8x1x512xf32>
    %74 = vector.shape_cast %73 : vector<8x1x512xf32> to vector<8x512xf32>
    %c0_23 = arith.constant 0 : index
    %c0_24 = arith.constant 0 : index
    %75 = vector.load %arg3[%c0_23, %c0_24] : memref<128x512xf32, #tpu.memory_space<vmem>>, vector<128x512xf32>
    %cst_25 = arith.constant dense<0.000000e+00> : vector<8x512xf32>
    %76 = tpu.matmul %72, %75, %cst_25 {dimension_numbers = #tpu.dot_dimension_numbers<[1], [0], [0], [1], [0, 0, 1, 1], [], []>} : vector<8x128xf32>, vector<128x512xf32>, vector<8x512xf32> -> vector<8x512xf32>
    %77 = arith.addf %74, %76 : vector<8x512xf32>
    %78 = vector.extract_strided_slice %77 {offsets = [0, 0], sizes = [8, 128], strides = [1, 1]} : vector<8x512xf32> to vector<8x128xf32>
    %79 = arith.negf %78 : vector<8x128xf32>
    %80 = math.exp %79 : vector<8x128xf32>
    %cst_26 = arith.constant 1.000000e+00 : f32
    %81 = vector.broadcast %cst_26 : f32 to vector<8x128xf32>
    %82 = arith.addf %81, %80 : vector<8x128xf32>
    %83 = arith.divf %81, %82 : vector<8x128xf32>
    %84 = vector.extract_strided_slice %77 {offsets = [0, 128], sizes = [8, 128], strides = [1, 1]} : vector<8x512xf32> to vector<8x128xf32>
    %85 = arith.negf %84 : vector<8x128xf32>
    %86 = math.exp %85 : vector<8x128xf32>
    %cst_27 = arith.constant 1.000000e+00 : f32
    %87 = vector.broadcast %cst_27 : f32 to vector<8x128xf32>
    %88 = arith.addf %87, %86 : vector<8x128xf32>
    %89 = arith.divf %87, %88 : vector<8x128xf32>
    %90 = vector.extract_strided_slice %77 {offsets = [0, 256], sizes = [8, 128], strides = [1, 1]} : vector<8x512xf32> to vector<8x128xf32>
    %91 = math.tanh %90 : vector<8x128xf32>
    %92 = vector.extract_strided_slice %77 {offsets = [0, 384], sizes = [8, 128], strides = [1, 1]} : vector<8x512xf32> to vector<8x128xf32>
    %93 = arith.negf %92 : vector<8x128xf32>
    %94 = math.exp %93 : vector<8x128xf32>
    %cst_28 = arith.constant 1.000000e+00 : f32
    %95 = vector.broadcast %cst_28 : f32 to vector<8x128xf32>
    %96 = arith.addf %95, %94 : vector<8x128xf32>
    %97 = arith.divf %95, %96 : vector<8x128xf32>
    %98 = arith.mulf %89, %70 : vector<8x128xf32>
    %99 = arith.mulf %83, %91 : vector<8x128xf32>
    %100 = arith.addf %98, %99 : vector<8x128xf32>
    %101 = math.tanh %100 : vector<8x128xf32>
    %102 = arith.mulf %97, %101 : vector<8x128xf32>
    %103 = vector.extract_strided_slice %10 {offsets = [0, 3, 0], sizes = [8, 1, 512], strides = [1, 1, 1]} : vector<8x8x512xf32> to vector<8x1x512xf32>
    %104 = vector.shape_cast %103 : vector<8x1x512xf32> to vector<8x512xf32>
    %c0_29 = arith.constant 0 : index
    %c0_30 = arith.constant 0 : index
    %105 = vector.load %arg3[%c0_29, %c0_30] : memref<128x512xf32, #tpu.memory_space<vmem>>, vector<128x512xf32>
    %cst_31 = arith.constant dense<0.000000e+00> : vector<8x512xf32>
    %106 = tpu.matmul %102, %105, %cst_31 {dimension_numbers = #tpu.dot_dimension_numbers<[1], [0], [0], [1], [0, 0, 1, 1], [], []>} : vector<8x128xf32>, vector<128x512xf32>, vector<8x512xf32> -> vector<8x512xf32>
    %107 = arith.addf %104, %106 : vector<8x512xf32>
    %108 = vector.extract_strided_slice %107 {offsets = [0, 0], sizes = [8, 128], strides = [1, 1]} : vector<8x512xf32> to vector<8x128xf32>
    %109 = arith.negf %108 : vector<8x128xf32>
    %110 = math.exp %109 : vector<8x128xf32>
    %cst_32 = arith.constant 1.000000e+00 : f32
    %111 = vector.broadcast %cst_32 : f32 to vector<8x128xf32>
    %112 = arith.addf %111, %110 : vector<8x128xf32>
    %113 = arith.divf %111, %112 : vector<8x128xf32>
    %114 = vector.extract_strided_slice %107 {offsets = [0, 128], sizes = [8, 128], strides = [1, 1]} : vector<8x512xf32> to vector<8x128xf32>
    %115 = arith.negf %114 : vector<8x128xf32>
    %116 = math.exp %115 : vector<8x128xf32>
    %cst_33 = arith.constant 1.000000e+00 : f32
    %117 = vector.broadcast %cst_33 : f32 to vector<8x128xf32>
    %118 = arith.addf %117, %116 : vector<8x128xf32>
    %119 = arith.divf %117, %118 : vector<8x128xf32>
    %120 = vector.extract_strided_slice %107 {offsets = [0, 256], sizes = [8, 128], strides = [1, 1]} : vector<8x512xf32> to vector<8x128xf32>
    %121 = math.tanh %120 : vector<8x128xf32>
    %122 = vector.extract_strided_slice %107 {offsets = [0, 384], sizes = [8, 128], strides = [1, 1]} : vector<8x512xf32> to vector<8x128xf32>
    %123 = arith.negf %122 : vector<8x128xf32>
    %124 = math.exp %123 : vector<8x128xf32>
    %cst_34 = arith.constant 1.000000e+00 : f32
    %125 = vector.broadcast %cst_34 : f32 to vector<8x128xf32>
    %126 = arith.addf %125, %124 : vector<8x128xf32>
    %127 = arith.divf %125, %126 : vector<8x128xf32>
    %128 = arith.mulf %119, %100 : vector<8x128xf32>
    %129 = arith.mulf %113, %121 : vector<8x128xf32>
    %130 = arith.addf %128, %129 : vector<8x128xf32>
    %131 = math.tanh %130 : vector<8x128xf32>
    %132 = arith.mulf %127, %131 : vector<8x128xf32>
    %133 = vector.extract_strided_slice %10 {offsets = [0, 4, 0], sizes = [8, 1, 512], strides = [1, 1, 1]} : vector<8x8x512xf32> to vector<8x1x512xf32>
    %134 = vector.shape_cast %133 : vector<8x1x512xf32> to vector<8x512xf32>
    %c0_35 = arith.constant 0 : index
    %c0_36 = arith.constant 0 : index
    %135 = vector.load %arg3[%c0_35, %c0_36] : memref<128x512xf32, #tpu.memory_space<vmem>>, vector<128x512xf32>
    %cst_37 = arith.constant dense<0.000000e+00> : vector<8x512xf32>
    %136 = tpu.matmul %132, %135, %cst_37 {dimension_numbers = #tpu.dot_dimension_numbers<[1], [0], [0], [1], [0, 0, 1, 1], [], []>} : vector<8x128xf32>, vector<128x512xf32>, vector<8x512xf32> -> vector<8x512xf32>
    %137 = arith.addf %134, %136 : vector<8x512xf32>
    %138 = vector.extract_strided_slice %137 {offsets = [0, 0], sizes = [8, 128], strides = [1, 1]} : vector<8x512xf32> to vector<8x128xf32>
    %139 = arith.negf %138 : vector<8x128xf32>
    %140 = math.exp %139 : vector<8x128xf32>
    %cst_38 = arith.constant 1.000000e+00 : f32
    %141 = vector.broadcast %cst_38 : f32 to vector<8x128xf32>
    %142 = arith.addf %141, %140 : vector<8x128xf32>
    %143 = arith.divf %141, %142 : vector<8x128xf32>
    %144 = vector.extract_strided_slice %137 {offsets = [0, 128], sizes = [8, 128], strides = [1, 1]} : vector<8x512xf32> to vector<8x128xf32>
    %145 = arith.negf %144 : vector<8x128xf32>
    %146 = math.exp %145 : vector<8x128xf32>
    %cst_39 = arith.constant 1.000000e+00 : f32
    %147 = vector.broadcast %cst_39 : f32 to vector<8x128xf32>
    %148 = arith.addf %147, %146 : vector<8x128xf32>
    %149 = arith.divf %147, %148 : vector<8x128xf32>
    %150 = vector.extract_strided_slice %137 {offsets = [0, 256], sizes = [8, 128], strides = [1, 1]} : vector<8x512xf32> to vector<8x128xf32>
    %151 = math.tanh %150 : vector<8x128xf32>
    %152 = vector.extract_strided_slice %137 {offsets = [0, 384], sizes = [8, 128], strides = [1, 1]} : vector<8x512xf32> to vector<8x128xf32>
    %153 = arith.negf %152 : vector<8x128xf32>
    %154 = math.exp %153 : vector<8x128xf32>
    %cst_40 = arith.constant 1.000000e+00 : f32
    %155 = vector.broadcast %cst_40 : f32 to vector<8x128xf32>
    %156 = arith.addf %155, %154 : vector<8x128xf32>
    %157 = arith.divf %155, %156 : vector<8x128xf32>
    %158 = arith.mulf %149, %130 : vector<8x128xf32>
    %159 = arith.mulf %143, %151 : vector<8x128xf32>
    %160 = arith.addf %158, %159 : vector<8x128xf32>
    %161 = math.tanh %160 : vector<8x128xf32>
    %162 = arith.mulf %157, %161 : vector<8x128xf32>
    %163 = vector.extract_strided_slice %10 {offsets = [0, 5, 0], sizes = [8, 1, 512], strides = [1, 1, 1]} : vector<8x8x512xf32> to vector<8x1x512xf32>
    %164 = vector.shape_cast %163 : vector<8x1x512xf32> to vector<8x512xf32>
    %c0_41 = arith.constant 0 : index
    %c0_42 = arith.constant 0 : index
    %165 = vector.load %arg3[%c0_41, %c0_42] : memref<128x512xf32, #tpu.memory_space<vmem>>, vector<128x512xf32>
    %cst_43 = arith.constant dense<0.000000e+00> : vector<8x512xf32>
    %166 = tpu.matmul %162, %165, %cst_43 {dimension_numbers = #tpu.dot_dimension_numbers<[1], [0], [0], [1], [0, 0, 1, 1], [], []>} : vector<8x128xf32>, vector<128x512xf32>, vector<8x512xf32> -> vector<8x512xf32>
    %167 = arith.addf %164, %166 : vector<8x512xf32>
    %168 = vector.extract_strided_slice %167 {offsets = [0, 0], sizes = [8, 128], strides = [1, 1]} : vector<8x512xf32> to vector<8x128xf32>
    %169 = arith.negf %168 : vector<8x128xf32>
    %170 = math.exp %169 : vector<8x128xf32>
    %cst_44 = arith.constant 1.000000e+00 : f32
    %171 = vector.broadcast %cst_44 : f32 to vector<8x128xf32>
    %172 = arith.addf %171, %170 : vector<8x128xf32>
    %173 = arith.divf %171, %172 : vector<8x128xf32>
    %174 = vector.extract_strided_slice %167 {offsets = [0, 128], sizes = [8, 128], strides = [1, 1]} : vector<8x512xf32> to vector<8x128xf32>
    %175 = arith.negf %174 : vector<8x128xf32>
    %176 = math.exp %175 : vector<8x128xf32>
    %cst_45 = arith.constant 1.000000e+00 : f32
    %177 = vector.broadcast %cst_45 : f32 to vector<8x128xf32>
    %178 = arith.addf %177, %176 : vector<8x128xf32>
    %179 = arith.divf %177, %178 : vector<8x128xf32>
    %180 = vector.extract_strided_slice %167 {offsets = [0, 256], sizes = [8, 128], strides = [1, 1]} : vector<8x512xf32> to vector<8x128xf32>
    %181 = math.tanh %180 : vector<8x128xf32>
    %182 = vector.extract_strided_slice %167 {offsets = [0, 384], sizes = [8, 128], strides = [1, 1]} : vector<8x512xf32> to vector<8x128xf32>
    %183 = arith.negf %182 : vector<8x128xf32>
    %184 = math.exp %183 : vector<8x128xf32>
    %cst_46 = arith.constant 1.000000e+00 : f32
    %185 = vector.broadcast %cst_46 : f32 to vector<8x128xf32>
    %186 = arith.addf %185, %184 : vector<8x128xf32>
    %187 = arith.divf %185, %186 : vector<8x128xf32>
    %188 = arith.mulf %179, %160 : vector<8x128xf32>
    %189 = arith.mulf %173, %181 : vector<8x128xf32>
    %190 = arith.addf %188, %189 : vector<8x128xf32>
    %191 = math.tanh %190 : vector<8x128xf32>
    %192 = arith.mulf %187, %191 : vector<8x128xf32>
    %193 = vector.extract_strided_slice %10 {offsets = [0, 6, 0], sizes = [8, 1, 512], strides = [1, 1, 1]} : vector<8x8x512xf32> to vector<8x1x512xf32>
    %194 = vector.shape_cast %193 : vector<8x1x512xf32> to vector<8x512xf32>
    %c0_47 = arith.constant 0 : index
    %c0_48 = arith.constant 0 : index
    %195 = vector.load %arg3[%c0_47, %c0_48] : memref<128x512xf32, #tpu.memory_space<vmem>>, vector<128x512xf32>
    %cst_49 = arith.constant dense<0.000000e+00> : vector<8x512xf32>
    %196 = tpu.matmul %192, %195, %cst_49 {dimension_numbers = #tpu.dot_dimension_numbers<[1], [0], [0], [1], [0, 0, 1, 1], [], []>} : vector<8x128xf32>, vector<128x512xf32>, vector<8x512xf32> -> vector<8x512xf32>
    %197 = arith.addf %194, %196 : vector<8x512xf32>
    %198 = vector.extract_strided_slice %197 {offsets = [0, 0], sizes = [8, 128], strides = [1, 1]} : vector<8x512xf32> to vector<8x128xf32>
    %199 = arith.negf %198 : vector<8x128xf32>
    %200 = math.exp %199 : vector<8x128xf32>
    %cst_50 = arith.constant 1.000000e+00 : f32
    %201 = vector.broadcast %cst_50 : f32 to vector<8x128xf32>
    %202 = arith.addf %201, %200 : vector<8x128xf32>
    %203 = arith.divf %201, %202 : vector<8x128xf32>
    %204 = vector.extract_strided_slice %197 {offsets = [0, 128], sizes = [8, 128], strides = [1, 1]} : vector<8x512xf32> to vector<8x128xf32>
    %205 = arith.negf %204 : vector<8x128xf32>
    %206 = math.exp %205 : vector<8x128xf32>
    %cst_51 = arith.constant 1.000000e+00 : f32
    %207 = vector.broadcast %cst_51 : f32 to vector<8x128xf32>
    %208 = arith.addf %207, %206 : vector<8x128xf32>
    %209 = arith.divf %207, %208 : vector<8x128xf32>
    %210 = vector.extract_strided_slice %197 {offsets = [0, 256], sizes = [8, 128], strides = [1, 1]} : vector<8x512xf32> to vector<8x128xf32>
    %211 = math.tanh %210 : vector<8x128xf32>
    %212 = vector.extract_strided_slice %197 {offsets = [0, 384], sizes = [8, 128], strides = [1, 1]} : vector<8x512xf32> to vector<8x128xf32>
    %213 = arith.negf %212 : vector<8x128xf32>
    %214 = math.exp %213 : vector<8x128xf32>
    %cst_52 = arith.constant 1.000000e+00 : f32
    %215 = vector.broadcast %cst_52 : f32 to vector<8x128xf32>
    %216 = arith.addf %215, %214 : vector<8x128xf32>
    %217 = arith.divf %215, %216 : vector<8x128xf32>
    %218 = arith.mulf %209, %190 : vector<8x128xf32>
    %219 = arith.mulf %203, %211 : vector<8x128xf32>
    %220 = arith.addf %218, %219 : vector<8x128xf32>
    %221 = math.tanh %220 : vector<8x128xf32>
    %222 = arith.mulf %217, %221 : vector<8x128xf32>
    %223 = vector.extract_strided_slice %10 {offsets = [0, 7, 0], sizes = [8, 1, 512], strides = [1, 1, 1]} : vector<8x8x512xf32> to vector<8x1x512xf32>
    %224 = vector.shape_cast %223 : vector<8x1x512xf32> to vector<8x512xf32>
    %c0_53 = arith.constant 0 : index
    %c0_54 = arith.constant 0 : index
    %225 = vector.load %arg3[%c0_53, %c0_54] : memref<128x512xf32, #tpu.memory_space<vmem>>, vector<128x512xf32>
    %cst_55 = arith.constant dense<0.000000e+00> : vector<8x512xf32>
    %226 = tpu.matmul %222, %225, %cst_55 {dimension_numbers = #tpu.dot_dimension_numbers<[1], [0], [0], [1], [0, 0, 1, 1], [], []>} : vector<8x128xf32>, vector<128x512xf32>, vector<8x512xf32> -> vector<8x512xf32>
    %227 = arith.addf %224, %226 : vector<8x512xf32>
    %228 = vector.extract_strided_slice %227 {offsets = [0, 0], sizes = [8, 128], strides = [1, 1]} : vector<8x512xf32> to vector<8x128xf32>
    %229 = arith.negf %228 : vector<8x128xf32>
    %230 = math.exp %229 : vector<8x128xf32>
    %cst_56 = arith.constant 1.000000e+00 : f32
    %231 = vector.broadcast %cst_56 : f32 to vector<8x128xf32>
    %232 = arith.addf %231, %230 : vector<8x128xf32>
    %233 = arith.divf %231, %232 : vector<8x128xf32>
    %234 = vector.extract_strided_slice %227 {offsets = [0, 128], sizes = [8, 128], strides = [1, 1]} : vector<8x512xf32> to vector<8x128xf32>
    %235 = arith.negf %234 : vector<8x128xf32>
    %236 = math.exp %235 : vector<8x128xf32>
    %cst_57 = arith.constant 1.000000e+00 : f32
    %237 = vector.broadcast %cst_57 : f32 to vector<8x128xf32>
    %238 = arith.addf %237, %236 : vector<8x128xf32>
    %239 = arith.divf %237, %238 : vector<8x128xf32>
    %240 = vector.extract_strided_slice %227 {offsets = [0, 256], sizes = [8, 128], strides = [1, 1]} : vector<8x512xf32> to vector<8x128xf32>
    %241 = math.tanh %240 : vector<8x128xf32>
    %242 = vector.extract_strided_slice %227 {offsets = [0, 384], sizes = [8, 128], strides = [1, 1]} : vector<8x512xf32> to vector<8x128xf32>
    %243 = arith.negf %242 : vector<8x128xf32>
    %244 = math.exp %243 : vector<8x128xf32>
    %cst_58 = arith.constant 1.000000e+00 : f32
    %245 = vector.broadcast %cst_58 : f32 to vector<8x128xf32>
    %246 = arith.addf %245, %244 : vector<8x128xf32>
    %247 = arith.divf %245, %246 : vector<8x128xf32>
    %248 = arith.mulf %239, %220 : vector<8x128xf32>
    %249 = arith.mulf %233, %241 : vector<8x128xf32>
    %250 = arith.addf %248, %249 : vector<8x128xf32>
    %251 = math.tanh %250 : vector<8x128xf32>
    %252 = arith.mulf %247, %251 : vector<8x128xf32>
    %c0_59 = arith.constant 0 : index
    %c0_60 = arith.constant 0 : index
    %253 = vector.load %arg7[%c0_59, %c0_60] : memref<8x128xf32, #tpu.memory_space<vmem>>, vector<8x128xf32>
    tpu.vector_store %arg7[%c0_59, %c0_60], %252 {strides = array<i32>} : memref<8x128xf32, #tpu.memory_space<vmem>>, vector<8x128xf32>,
    %c0_61 = arith.constant 0 : index
    %c0_62 = arith.constant 0 : index
    %254 = vector.load %arg8[%c0_61, %c0_62] : memref<8x128xf32, #tpu.memory_space<vmem>>, vector<8x128xf32>
    tpu.vector_store %arg8[%c0_61, %c0_62], %250 {strides = array<i32>} : memref<8x128xf32, #tpu.memory_space<vmem>>, vector<8x128xf32>,
    %c0_i32_63 = arith.constant 0 : i32
    %255 = arith.cmpi eq, %arg0, %c0_i32_63 : i32
    %256 = arith.extui %255 : i1 to i32
    %c0_i32_64 = arith.constant 0 : i32
    %257 = arith.cmpi ne, %256, %c0_i32_64 : i32
    scf.if %257 {
      %c0_65 = arith.constant 0 : index
      %c0_66 = arith.constant 0 : index
      %258 = vector.load %arg5[%c0_65, %c0_66] : memref<8x128xf32, #tpu.memory_space<vmem>>, vector<8x128xf32>
      tpu.vector_store %arg5[%c0_65, %c0_66], %252 {strides = array<i32>} : memref<8x128xf32, #tpu.memory_space<vmem>>, vector<8x128xf32>,
      %c0_67 = arith.constant 0 : index
      %c0_68 = arith.constant 0 : index
      %259 = vector.load %arg6[%c0_67, %c0_68] : memref<8x128xf32, #tpu.memory_space<vmem>>, vector<8x128xf32>
      tpu.vector_store %arg6[%c0_67, %c0_68], %250 {strides = array<i32>} : memref<8x128xf32, #tpu.memory_space<vmem>>, vector<8x128xf32>,
    } else {
    }
    return
  }
  func.func @transform_0(%arg0: i32) -> (i32, i32, i32) {
    %c0_i32 = arith.constant 0 : i32
    %c0_i32_0 = arith.constant 0 : i32
    %c0_i32_1 = arith.constant 0 : i32
    return %c0_i32, %arg0, %c0_i32_0 : i32, i32, i32
  }
  func.func @transform_1(%arg0: i32) -> (i32, i32) {
    %c0_i32 = arith.constant 0 : i32
    %c0_i32_0 = arith.constant 0 : i32
    %c0_i32_1 = arith.constant 0 : i32
    return %c0_i32, %c0_i32_0 : i32, i32
  }
  func.func @transform_2(%arg0: i32) -> (i32, i32) {
    %c0_i32 = arith.constant 0 : i32
    %c0_i32_0 = arith.constant 0 : i32
    %c0_i32_1 = arith.constant 0 : i32
    return %c0_i32, %c0_i32_0 : i32, i32
  }
  func.func @transform_3(%arg0: i32) -> (i32, i32) {
    %c0_i32 = arith.constant 0 : i32
    %c0_i32_0 = arith.constant 0 : i32
    %c0_i32_1 = arith.constant 0 : i32
    return %c0_i32, %c0_i32_0 : i32, i32
  }
  func.func @transform_4(%arg0: i32) -> (i32, i32) {
    %c0_i32 = arith.constant 0 : i32
    %c0_i32_0 = arith.constant 0 : i32
    %c0_i32_1 = arith.constant 0 : i32
    return %c0_i32, %c0_i32_0 : i32, i32
  }
  func.func @transform_5(%arg0: i32) -> (i32, i32) {
    %c0_i32 = arith.constant 0 : i32
    %c0_i32_0 = arith.constant 0 : i32
    %c0_i32_1 = arith.constant 0 : i32
    return %c0_i32, %c0_i32_0 : i32, i32
  }
}

module attributes {stable_mosaic.version = 11 : i64} {
  func.func @_decoder_head_kernel(%arg0: i32, %arg1: memref<8x128xf32, #tpu.memory_space<vmem>>, %arg2: memref<8x128xf32, #tpu.memory_space<vmem>>, %arg3: memref<8x128xf32, #tpu.memory_space<vmem>>, %arg4: memref<128x128xf32, #tpu.memory_space<vmem>>, %arg5: memref<1x128xf32, #tpu.memory_space<vmem>>, %arg6: memref<128x128xf32, #tpu.memory_space<vmem>>, %arg7: memref<1x128xf32, #tpu.memory_space<vmem>>, %arg8: memref<128x128xf32, #tpu.memory_space<vmem>>, %arg9: memref<1x128xf32, #tpu.memory_space<vmem>>, %arg10: memref<128x512xf32, #tpu.memory_space<vmem>>, %arg11: memref<128x512xf32, #tpu.memory_space<vmem>>, %arg12: memref<1x512xf32, #tpu.memory_space<vmem>>, %arg13: memref<128x128xf32, #tpu.memory_space<vmem>>, %arg14: memref<1x128xf32, #tpu.memory_space<vmem>>, %arg15: memref<8x8x128xf32, #tpu.memory_space<vmem>>, %arg16: memref<8x128xf32, #tpu.memory_space<vmem>>, %arg17: memref<8x128xf32, #tpu.memory_space<vmem>>, %arg18: memref<8x128xf32, #tpu.memory_space<vmem>>, %arg19: memref<8x128xf32, #tpu.memory_space<vmem>>, %arg20: memref<8x512xf32, #tpu.memory_space<vmem>>, %arg21: memref<8x8x128xf32, #tpu.memory_space<vmem>>) attributes {dimension_semantics = [#tpu.dimension_semantics<arbitrary>], iteration_bounds = array<i64: 1>, scalar_prefetch = 0 : i64, scratch_operands = 4 : i64, tpu.core_type = #tpu.core_type<tc>, window_params = [{pipeline_mode = #tpu.pipeline_mode<synchronous>, transform_indices = @transform_0, window_bounds = array<i64: 8, 128>}, {pipeline_mode = #tpu.pipeline_mode<synchronous>, transform_indices = @transform_1, window_bounds = array<i64: 8, 128>}, {pipeline_mode = #tpu.pipeline_mode<synchronous>, transform_indices = @transform_2, window_bounds = array<i64: 8, 128>}, {pipeline_mode = #tpu.pipeline_mode<synchronous>, transform_indices = @transform_3, window_bounds = array<i64: 128, 128>}, {pipeline_mode = #tpu.pipeline_mode<synchronous>, transform_indices = @transform_4, window_bounds = array<i64: 1, 128>}, {pipeline_mode = #tpu.pipeline_mode<synchronous>, transform_indices = @transform_5, window_bounds = array<i64: 128, 128>}, {pipeline_mode = #tpu.pipeline_mode<synchronous>, transform_indices = @transform_6, window_bounds = array<i64: 1, 128>}, {pipeline_mode = #tpu.pipeline_mode<synchronous>, transform_indices = @transform_7, window_bounds = array<i64: 128, 128>}, {pipeline_mode = #tpu.pipeline_mode<synchronous>, transform_indices = @transform_8, window_bounds = array<i64: 1, 128>}, {pipeline_mode = #tpu.pipeline_mode<synchronous>, transform_indices = @transform_9, window_bounds = array<i64: 128, 512>}, {pipeline_mode = #tpu.pipeline_mode<synchronous>, transform_indices = @transform_10, window_bounds = array<i64: 128, 512>}, {pipeline_mode = #tpu.pipeline_mode<synchronous>, transform_indices = @transform_11, window_bounds = array<i64: 1, 512>}, {pipeline_mode = #tpu.pipeline_mode<synchronous>, transform_indices = @transform_12, window_bounds = array<i64: 128, 128>}, {pipeline_mode = #tpu.pipeline_mode<synchronous>, transform_indices = @transform_13, window_bounds = array<i64: 1, 128>}, {transform_indices = @transform_14, window_bounds = array<i64: 8, 8, 128>}, {pipeline_mode = #tpu.pipeline_mode<synchronous>, transform_indices = @transform_15, window_bounds = array<i64: 8, 128>}, {pipeline_mode = #tpu.pipeline_mode<synchronous>, transform_indices = @transform_16, window_bounds = array<i64: 8, 128>}]} {
    %c0_i32 = arith.constant 0 : i32
    %0 = arith.cmpi eq, %arg0, %c0_i32 : i32
    %1 = arith.extui %0 : i1 to i32
    %c0_i32_0 = arith.constant 0 : i32
    %2 = arith.cmpi ne, %1, %c0_i32_0 : i32
    scf.if %2 {
      %c0_85 = arith.constant 0 : index
      %c0_86 = arith.constant 0 : index
      %265 = vector.load %arg1[%c0_85, %c0_86] : memref<8x128xf32, #tpu.memory_space<vmem>>, vector<8x128xf32>
      %c0_87 = arith.constant 0 : index
      %c0_88 = arith.constant 0 : index
      %266 = vector.load %arg4[%c0_87, %c0_88] : memref<128x128xf32, #tpu.memory_space<vmem>>, vector<128x128xf32>
      %cst_89 = arith.constant dense<0.000000e+00> : vector<8x128xf32>
      %267 = tpu.matmul %265, %266, %cst_89 {dimension_numbers = #tpu.dot_dimension_numbers<[1], [0], [0], [1], [0, 0, 1, 1], [], []>} : vector<8x128xf32>, vector<128x128xf32>, vector<8x128xf32> -> vector<8x128xf32>
      %c0_90 = arith.constant 0 : index
      %c0_91 = arith.constant 0 : index
      %268 = vector.load %arg5[%c0_90, %c0_91] : memref<1x128xf32, #tpu.memory_space<vmem>>, vector<1x128xf32>
      %269 = vector.broadcast %268 : vector<1x128xf32> to vector<8x128xf32>
      %270 = arith.addf %267, %269 : vector<8x128xf32>
      %c0_92 = arith.constant 0 : index
      %c0_93 = arith.constant 0 : index
      %271 = vector.load %arg6[%c0_92, %c0_93] : memref<128x128xf32, #tpu.memory_space<vmem>>, vector<128x128xf32>
      %cst_94 = arith.constant dense<0.000000e+00> : vector<8x128xf32>
      %272 = tpu.matmul %265, %271, %cst_94 {dimension_numbers = #tpu.dot_dimension_numbers<[1], [0], [0], [1], [0, 0, 1, 1], [], []>} : vector<8x128xf32>, vector<128x128xf32>, vector<8x128xf32> -> vector<8x128xf32>
      %c0_95 = arith.constant 0 : index
      %c0_96 = arith.constant 0 : index
      %273 = vector.load %arg7[%c0_95, %c0_96] : memref<1x128xf32, #tpu.memory_space<vmem>>, vector<1x128xf32>
      %274 = vector.broadcast %273 : vector<1x128xf32> to vector<8x128xf32>
      %275 = arith.addf %272, %274 : vector<8x128xf32>
      %c0_97 = arith.constant 0 : index
      %c0_98 = arith.constant 0 : index
      %276 = vector.load %arg3[%c0_97, %c0_98] : memref<8x128xf32, #tpu.memory_space<vmem>>, vector<8x128xf32>
      %cst_99 = arith.constant 5.000000e-01 : f32
      %277 = vector.broadcast %cst_99 : f32 to vector<8x128xf32>
      %278 = arith.mulf %277, %275 : vector<8x128xf32>
      %279 = math.exp %278 : vector<8x128xf32>
      %280 = arith.mulf %276, %279 : vector<8x128xf32>
      %281 = arith.addf %270, %280 : vector<8x128xf32>
      %c0_100 = arith.constant 0 : index
      %c0_101 = arith.constant 0 : index
      %282 = vector.load %arg16[%c0_100, %c0_101] : memref<8x128xf32, #tpu.memory_space<vmem>>, vector<8x128xf32>
      tpu.vector_store %arg16[%c0_100, %c0_101], %270 {strides = array<i32>} : memref<8x128xf32, #tpu.memory_space<vmem>>, vector<8x128xf32>,
      %c0_102 = arith.constant 0 : index
      %c0_103 = arith.constant 0 : index
      %283 = vector.load %arg17[%c0_102, %c0_103] : memref<8x128xf32, #tpu.memory_space<vmem>>, vector<8x128xf32>
      tpu.vector_store %arg17[%c0_102, %c0_103], %275 {strides = array<i32>} : memref<8x128xf32, #tpu.memory_space<vmem>>, vector<8x128xf32>,
      %c0_104 = arith.constant 0 : index
      %c0_105 = arith.constant 0 : index
      %284 = vector.load %arg8[%c0_104, %c0_105] : memref<128x128xf32, #tpu.memory_space<vmem>>, vector<128x128xf32>
      %cst_106 = arith.constant dense<0.000000e+00> : vector<8x128xf32>
      %285 = tpu.matmul %281, %284, %cst_106 {dimension_numbers = #tpu.dot_dimension_numbers<[1], [0], [0], [1], [0, 0, 1, 1], [], []>} : vector<8x128xf32>, vector<128x128xf32>, vector<8x128xf32> -> vector<8x128xf32>
      %c0_107 = arith.constant 0 : index
      %c0_108 = arith.constant 0 : index
      %286 = vector.load %arg9[%c0_107, %c0_108] : memref<1x128xf32, #tpu.memory_space<vmem>>, vector<1x128xf32>
      %287 = vector.broadcast %286 : vector<1x128xf32> to vector<8x128xf32>
      %288 = arith.addf %285, %287 : vector<8x128xf32>
      %c0_109 = arith.constant 0 : index
      %c0_110 = arith.constant 0 : index
      %289 = vector.load %arg18[%c0_109, %c0_110] : memref<8x128xf32, #tpu.memory_space<vmem>>, vector<8x128xf32>
      tpu.vector_store %arg18[%c0_109, %c0_110], %288 {strides = array<i32>} : memref<8x128xf32, #tpu.memory_space<vmem>>, vector<8x128xf32>,
      %c0_111 = arith.constant 0 : index
      %c0_112 = arith.constant 0 : index
      %290 = vector.load %arg2[%c0_111, %c0_112] : memref<8x128xf32, #tpu.memory_space<vmem>>, vector<8x128xf32>
      %c0_113 = arith.constant 0 : index
      %c0_114 = arith.constant 0 : index
      %291 = vector.load %arg19[%c0_113, %c0_114] : memref<8x128xf32, #tpu.memory_space<vmem>>, vector<8x128xf32>
      tpu.vector_store %arg19[%c0_113, %c0_114], %290 {strides = array<i32>} : memref<8x128xf32, #tpu.memory_space<vmem>>, vector<8x128xf32>,
      %c0_115 = arith.constant 0 : index
      %c0_116 = arith.constant 0 : index
      %292 = vector.load %arg10[%c0_115, %c0_116] : memref<128x512xf32, #tpu.memory_space<vmem>>, vector<128x512xf32>
      %cst_117 = arith.constant dense<0.000000e+00> : vector<8x512xf32>
      %293 = tpu.matmul %281, %292, %cst_117 {dimension_numbers = #tpu.dot_dimension_numbers<[1], [0], [0], [1], [0, 0, 1, 1], [], []>} : vector<8x128xf32>, vector<128x512xf32>, vector<8x512xf32> -> vector<8x512xf32>
      %c0_118 = arith.constant 0 : index
      %c0_119 = arith.constant 0 : index
      %294 = vector.load %arg12[%c0_118, %c0_119] : memref<1x512xf32, #tpu.memory_space<vmem>>, vector<1x512xf32>
      %295 = vector.broadcast %294 : vector<1x512xf32> to vector<8x512xf32>
      %296 = arith.addf %293, %295 : vector<8x512xf32>
      %c0_120 = arith.constant 0 : index
      %c0_121 = arith.constant 0 : index
      %297 = vector.load %arg20[%c0_120, %c0_121] : memref<8x512xf32, #tpu.memory_space<vmem>>, vector<8x512xf32>
      tpu.vector_store %arg20[%c0_120, %c0_121], %296 {strides = array<i32>} : memref<8x512xf32, #tpu.memory_space<vmem>>, vector<8x512xf32>,
    } else {
    }
    %c0 = arith.constant 0 : index
    %c0_1 = arith.constant 0 : index
    %3 = vector.load %arg20[%c0, %c0_1] : memref<8x512xf32, #tpu.memory_space<vmem>>, vector<8x512xf32>
    %c0_2 = arith.constant 0 : index
    %c0_3 = arith.constant 0 : index
    %4 = vector.load %arg18[%c0_2, %c0_3] : memref<8x128xf32, #tpu.memory_space<vmem>>, vector<8x128xf32>
    %c0_4 = arith.constant 0 : index
    %c0_5 = arith.constant 0 : index
    %5 = vector.load %arg19[%c0_4, %c0_5] : memref<8x128xf32, #tpu.memory_space<vmem>>, vector<8x128xf32>
    %c0_6 = arith.constant 0 : index
    %c0_7 = arith.constant 0 : index
    %6 = vector.load %arg11[%c0_6, %c0_7] : memref<128x512xf32, #tpu.memory_space<vmem>>, vector<128x512xf32>
    %cst = arith.constant dense<0.000000e+00> : vector<8x512xf32>
    %7 = tpu.matmul %4, %6, %cst {dimension_numbers = #tpu.dot_dimension_numbers<[1], [0], [0], [1], [0, 0, 1, 1], [], []>} : vector<8x128xf32>, vector<128x512xf32>, vector<8x512xf32> -> vector<8x512xf32>
    %8 = arith.addf %3, %7 : vector<8x512xf32>
    %9 = vector.extract_strided_slice %8 {offsets = [0, 0], sizes = [8, 128], strides = [1, 1]} : vector<8x512xf32> to vector<8x128xf32>
    %10 = arith.negf %9 : vector<8x128xf32>
    %11 = math.exp %10 : vector<8x128xf32>
    %cst_8 = arith.constant 1.000000e+00 : f32
    %12 = vector.broadcast %cst_8 : f32 to vector<8x128xf32>
    %13 = arith.addf %12, %11 : vector<8x128xf32>
    %14 = arith.divf %12, %13 : vector<8x128xf32>
    %15 = vector.extract_strided_slice %8 {offsets = [0, 128], sizes = [8, 128], strides = [1, 1]} : vector<8x512xf32> to vector<8x128xf32>
    %16 = arith.negf %15 : vector<8x128xf32>
    %17 = math.exp %16 : vector<8x128xf32>
    %cst_9 = arith.constant 1.000000e+00 : f32
    %18 = vector.broadcast %cst_9 : f32 to vector<8x128xf32>
    %19 = arith.addf %18, %17 : vector<8x128xf32>
    %20 = arith.divf %18, %19 : vector<8x128xf32>
    %21 = vector.extract_strided_slice %8 {offsets = [0, 256], sizes = [8, 128], strides = [1, 1]} : vector<8x512xf32> to vector<8x128xf32>
    %22 = math.tanh %21 : vector<8x128xf32>
    %23 = vector.extract_strided_slice %8 {offsets = [0, 384], sizes = [8, 128], strides = [1, 1]} : vector<8x512xf32> to vector<8x128xf32>
    %24 = arith.negf %23 : vector<8x128xf32>
    %25 = math.exp %24 : vector<8x128xf32>
    %cst_10 = arith.constant 1.000000e+00 : f32
    %26 = vector.broadcast %cst_10 : f32 to vector<8x128xf32>
    %27 = arith.addf %26, %25 : vector<8x128xf32>
    %28 = arith.divf %26, %27 : vector<8x128xf32>
    %29 = arith.mulf %20, %5 : vector<8x128xf32>
    %30 = arith.mulf %14, %22 : vector<8x128xf32>
    %31 = arith.addf %29, %30 : vector<8x128xf32>
    %32 = math.tanh %31 : vector<8x128xf32>
    %33 = arith.mulf %28, %32 : vector<8x128xf32>
    %c0_11 = arith.constant 0 : index
    %c0_12 = arith.constant 0 : index
    %c0_13 = arith.constant 0 : index
    %34 = vector.load %arg21[%c0_11, %c0_12, %c0_13] : memref<8x8x128xf32, #tpu.memory_space<vmem>>, vector<1x8x128xf32>
    %35 = vector.shape_cast %34 : vector<1x8x128xf32> to vector<8x128xf32>
    %36 = vector.shape_cast %33 : vector<8x128xf32> to vector<1x8x128xf32>
    tpu.vector_store %arg21[%c0_11, %c0_12, %c0_13], %36 {strides = array<i32>} : memref<8x8x128xf32, #tpu.memory_space<vmem>>, vector<1x8x128xf32>,
    %c0_14 = arith.constant 0 : index
    %c0_15 = arith.constant 0 : index
    %37 = vector.load %arg11[%c0_14, %c0_15] : memref<128x512xf32, #tpu.memory_space<vmem>>, vector<128x512xf32>
    %cst_16 = arith.constant dense<0.000000e+00> : vector<8x512xf32>
    %38 = tpu.matmul %33, %37, %cst_16 {dimension_numbers = #tpu.dot_dimension_numbers<[1], [0], [0], [1], [0, 0, 1, 1], [], []>} : vector<8x128xf32>, vector<128x512xf32>, vector<8x512xf32> -> vector<8x512xf32>
    %39 = arith.addf %3, %38 : vector<8x512xf32>
    %40 = vector.extract_strided_slice %39 {offsets = [0, 0], sizes = [8, 128], strides = [1, 1]} : vector<8x512xf32> to vector<8x128xf32>
    %41 = arith.negf %40 : vector<8x128xf32>
    %42 = math.exp %41 : vector<8x128xf32>
    %cst_17 = arith.constant 1.000000e+00 : f32
    %43 = vector.broadcast %cst_17 : f32 to vector<8x128xf32>
    %44 = arith.addf %43, %42 : vector<8x128xf32>
    %45 = arith.divf %43, %44 : vector<8x128xf32>
    %46 = vector.extract_strided_slice %39 {offsets = [0, 128], sizes = [8, 128], strides = [1, 1]} : vector<8x512xf32> to vector<8x128xf32>
    %47 = arith.negf %46 : vector<8x128xf32>
    %48 = math.exp %47 : vector<8x128xf32>
    %cst_18 = arith.constant 1.000000e+00 : f32
    %49 = vector.broadcast %cst_18 : f32 to vector<8x128xf32>
    %50 = arith.addf %49, %48 : vector<8x128xf32>
    %51 = arith.divf %49, %50 : vector<8x128xf32>
    %52 = vector.extract_strided_slice %39 {offsets = [0, 256], sizes = [8, 128], strides = [1, 1]} : vector<8x512xf32> to vector<8x128xf32>
    %53 = math.tanh %52 : vector<8x128xf32>
    %54 = vector.extract_strided_slice %39 {offsets = [0, 384], sizes = [8, 128], strides = [1, 1]} : vector<8x512xf32> to vector<8x128xf32>
    %55 = arith.negf %54 : vector<8x128xf32>
    %56 = math.exp %55 : vector<8x128xf32>
    %cst_19 = arith.constant 1.000000e+00 : f32
    %57 = vector.broadcast %cst_19 : f32 to vector<8x128xf32>
    %58 = arith.addf %57, %56 : vector<8x128xf32>
    %59 = arith.divf %57, %58 : vector<8x128xf32>
    %60 = arith.mulf %51, %31 : vector<8x128xf32>
    %61 = arith.mulf %45, %53 : vector<8x128xf32>
    %62 = arith.addf %60, %61 : vector<8x128xf32>
    %63 = math.tanh %62 : vector<8x128xf32>
    %64 = arith.mulf %59, %63 : vector<8x128xf32>
    %c1 = arith.constant 1 : index
    %c0_20 = arith.constant 0 : index
    %c0_21 = arith.constant 0 : index
    %65 = vector.load %arg21[%c1, %c0_20, %c0_21] : memref<8x8x128xf32, #tpu.memory_space<vmem>>, vector<1x8x128xf32>
    %66 = vector.shape_cast %65 : vector<1x8x128xf32> to vector<8x128xf32>
    %67 = vector.shape_cast %64 : vector<8x128xf32> to vector<1x8x128xf32>
    tpu.vector_store %arg21[%c1, %c0_20, %c0_21], %67 {strides = array<i32>} : memref<8x8x128xf32, #tpu.memory_space<vmem>>, vector<1x8x128xf32>,
    %c0_22 = arith.constant 0 : index
    %c0_23 = arith.constant 0 : index
    %68 = vector.load %arg11[%c0_22, %c0_23] : memref<128x512xf32, #tpu.memory_space<vmem>>, vector<128x512xf32>
    %cst_24 = arith.constant dense<0.000000e+00> : vector<8x512xf32>
    %69 = tpu.matmul %64, %68, %cst_24 {dimension_numbers = #tpu.dot_dimension_numbers<[1], [0], [0], [1], [0, 0, 1, 1], [], []>} : vector<8x128xf32>, vector<128x512xf32>, vector<8x512xf32> -> vector<8x512xf32>
    %70 = arith.addf %3, %69 : vector<8x512xf32>
    %71 = vector.extract_strided_slice %70 {offsets = [0, 0], sizes = [8, 128], strides = [1, 1]} : vector<8x512xf32> to vector<8x128xf32>
    %72 = arith.negf %71 : vector<8x128xf32>
    %73 = math.exp %72 : vector<8x128xf32>
    %cst_25 = arith.constant 1.000000e+00 : f32
    %74 = vector.broadcast %cst_25 : f32 to vector<8x128xf32>
    %75 = arith.addf %74, %73 : vector<8x128xf32>
    %76 = arith.divf %74, %75 : vector<8x128xf32>
    %77 = vector.extract_strided_slice %70 {offsets = [0, 128], sizes = [8, 128], strides = [1, 1]} : vector<8x512xf32> to vector<8x128xf32>
    %78 = arith.negf %77 : vector<8x128xf32>
    %79 = math.exp %78 : vector<8x128xf32>
    %cst_26 = arith.constant 1.000000e+00 : f32
    %80 = vector.broadcast %cst_26 : f32 to vector<8x128xf32>
    %81 = arith.addf %80, %79 : vector<8x128xf32>
    %82 = arith.divf %80, %81 : vector<8x128xf32>
    %83 = vector.extract_strided_slice %70 {offsets = [0, 256], sizes = [8, 128], strides = [1, 1]} : vector<8x512xf32> to vector<8x128xf32>
    %84 = math.tanh %83 : vector<8x128xf32>
    %85 = vector.extract_strided_slice %70 {offsets = [0, 384], sizes = [8, 128], strides = [1, 1]} : vector<8x512xf32> to vector<8x128xf32>
    %86 = arith.negf %85 : vector<8x128xf32>
    %87 = math.exp %86 : vector<8x128xf32>
    %cst_27 = arith.constant 1.000000e+00 : f32
    %88 = vector.broadcast %cst_27 : f32 to vector<8x128xf32>
    %89 = arith.addf %88, %87 : vector<8x128xf32>
    %90 = arith.divf %88, %89 : vector<8x128xf32>
    %91 = arith.mulf %82, %62 : vector<8x128xf32>
    %92 = arith.mulf %76, %84 : vector<8x128xf32>
    %93 = arith.addf %91, %92 : vector<8x128xf32>
    %94 = math.tanh %93 : vector<8x128xf32>
    %95 = arith.mulf %90, %94 : vector<8x128xf32>
    %c2 = arith.constant 2 : index
    %c0_28 = arith.constant 0 : index
    %c0_29 = arith.constant 0 : index
    %96 = vector.load %arg21[%c2, %c0_28, %c0_29] : memref<8x8x128xf32, #tpu.memory_space<vmem>>, vector<1x8x128xf32>
    %97 = vector.shape_cast %96 : vector<1x8x128xf32> to vector<8x128xf32>
    %98 = vector.shape_cast %95 : vector<8x128xf32> to vector<1x8x128xf32>
    tpu.vector_store %arg21[%c2, %c0_28, %c0_29], %98 {strides = array<i32>} : memref<8x8x128xf32, #tpu.memory_space<vmem>>, vector<1x8x128xf32>,
    %c0_30 = arith.constant 0 : index
    %c0_31 = arith.constant 0 : index
    %99 = vector.load %arg11[%c0_30, %c0_31] : memref<128x512xf32, #tpu.memory_space<vmem>>, vector<128x512xf32>
    %cst_32 = arith.constant dense<0.000000e+00> : vector<8x512xf32>
    %100 = tpu.matmul %95, %99, %cst_32 {dimension_numbers = #tpu.dot_dimension_numbers<[1], [0], [0], [1], [0, 0, 1, 1], [], []>} : vector<8x128xf32>, vector<128x512xf32>, vector<8x512xf32> -> vector<8x512xf32>
    %101 = arith.addf %3, %100 : vector<8x512xf32>
    %102 = vector.extract_strided_slice %101 {offsets = [0, 0], sizes = [8, 128], strides = [1, 1]} : vector<8x512xf32> to vector<8x128xf32>
    %103 = arith.negf %102 : vector<8x128xf32>
    %104 = math.exp %103 : vector<8x128xf32>
    %cst_33 = arith.constant 1.000000e+00 : f32
    %105 = vector.broadcast %cst_33 : f32 to vector<8x128xf32>
    %106 = arith.addf %105, %104 : vector<8x128xf32>
    %107 = arith.divf %105, %106 : vector<8x128xf32>
    %108 = vector.extract_strided_slice %101 {offsets = [0, 128], sizes = [8, 128], strides = [1, 1]} : vector<8x512xf32> to vector<8x128xf32>
    %109 = arith.negf %108 : vector<8x128xf32>
    %110 = math.exp %109 : vector<8x128xf32>
    %cst_34 = arith.constant 1.000000e+00 : f32
    %111 = vector.broadcast %cst_34 : f32 to vector<8x128xf32>
    %112 = arith.addf %111, %110 : vector<8x128xf32>
    %113 = arith.divf %111, %112 : vector<8x128xf32>
    %114 = vector.extract_strided_slice %101 {offsets = [0, 256], sizes = [8, 128], strides = [1, 1]} : vector<8x512xf32> to vector<8x128xf32>
    %115 = math.tanh %114 : vector<8x128xf32>
    %116 = vector.extract_strided_slice %101 {offsets = [0, 384], sizes = [8, 128], strides = [1, 1]} : vector<8x512xf32> to vector<8x128xf32>
    %117 = arith.negf %116 : vector<8x128xf32>
    %118 = math.exp %117 : vector<8x128xf32>
    %cst_35 = arith.constant 1.000000e+00 : f32
    %119 = vector.broadcast %cst_35 : f32 to vector<8x128xf32>
    %120 = arith.addf %119, %118 : vector<8x128xf32>
    %121 = arith.divf %119, %120 : vector<8x128xf32>
    %122 = arith.mulf %113, %93 : vector<8x128xf32>
    %123 = arith.mulf %107, %115 : vector<8x128xf32>
    %124 = arith.addf %122, %123 : vector<8x128xf32>
    %125 = math.tanh %124 : vector<8x128xf32>
    %126 = arith.mulf %121, %125 : vector<8x128xf32>
    %c3 = arith.constant 3 : index
    %c0_36 = arith.constant 0 : index
    %c0_37 = arith.constant 0 : index
    %127 = vector.load %arg21[%c3, %c0_36, %c0_37] : memref<8x8x128xf32, #tpu.memory_space<vmem>>, vector<1x8x128xf32>
    %128 = vector.shape_cast %127 : vector<1x8x128xf32> to vector<8x128xf32>
    %129 = vector.shape_cast %126 : vector<8x128xf32> to vector<1x8x128xf32>
    tpu.vector_store %arg21[%c3, %c0_36, %c0_37], %129 {strides = array<i32>} : memref<8x8x128xf32, #tpu.memory_space<vmem>>, vector<1x8x128xf32>,
    %c0_38 = arith.constant 0 : index
    %c0_39 = arith.constant 0 : index
    %130 = vector.load %arg11[%c0_38, %c0_39] : memref<128x512xf32, #tpu.memory_space<vmem>>, vector<128x512xf32>
    %cst_40 = arith.constant dense<0.000000e+00> : vector<8x512xf32>
    %131 = tpu.matmul %126, %130, %cst_40 {dimension_numbers = #tpu.dot_dimension_numbers<[1], [0], [0], [1], [0, 0, 1, 1], [], []>} : vector<8x128xf32>, vector<128x512xf32>, vector<8x512xf32> -> vector<8x512xf32>
    %132 = arith.addf %3, %131 : vector<8x512xf32>
    %133 = vector.extract_strided_slice %132 {offsets = [0, 0], sizes = [8, 128], strides = [1, 1]} : vector<8x512xf32> to vector<8x128xf32>
    %134 = arith.negf %133 : vector<8x128xf32>
    %135 = math.exp %134 : vector<8x128xf32>
    %cst_41 = arith.constant 1.000000e+00 : f32
    %136 = vector.broadcast %cst_41 : f32 to vector<8x128xf32>
    %137 = arith.addf %136, %135 : vector<8x128xf32>
    %138 = arith.divf %136, %137 : vector<8x128xf32>
    %139 = vector.extract_strided_slice %132 {offsets = [0, 128], sizes = [8, 128], strides = [1, 1]} : vector<8x512xf32> to vector<8x128xf32>
    %140 = arith.negf %139 : vector<8x128xf32>
    %141 = math.exp %140 : vector<8x128xf32>
    %cst_42 = arith.constant 1.000000e+00 : f32
    %142 = vector.broadcast %cst_42 : f32 to vector<8x128xf32>
    %143 = arith.addf %142, %141 : vector<8x128xf32>
    %144 = arith.divf %142, %143 : vector<8x128xf32>
    %145 = vector.extract_strided_slice %132 {offsets = [0, 256], sizes = [8, 128], strides = [1, 1]} : vector<8x512xf32> to vector<8x128xf32>
    %146 = math.tanh %145 : vector<8x128xf32>
    %147 = vector.extract_strided_slice %132 {offsets = [0, 384], sizes = [8, 128], strides = [1, 1]} : vector<8x512xf32> to vector<8x128xf32>
    %148 = arith.negf %147 : vector<8x128xf32>
    %149 = math.exp %148 : vector<8x128xf32>
    %cst_43 = arith.constant 1.000000e+00 : f32
    %150 = vector.broadcast %cst_43 : f32 to vector<8x128xf32>
    %151 = arith.addf %150, %149 : vector<8x128xf32>
    %152 = arith.divf %150, %151 : vector<8x128xf32>
    %153 = arith.mulf %144, %124 : vector<8x128xf32>
    %154 = arith.mulf %138, %146 : vector<8x128xf32>
    %155 = arith.addf %153, %154 : vector<8x128xf32>
    %156 = math.tanh %155 : vector<8x128xf32>
    %157 = arith.mulf %152, %156 : vector<8x128xf32>
    %c4 = arith.constant 4 : index
    %c0_44 = arith.constant 0 : index
    %c0_45 = arith.constant 0 : index
    %158 = vector.load %arg21[%c4, %c0_44, %c0_45] : memref<8x8x128xf32, #tpu.memory_space<vmem>>, vector<1x8x128xf32>
    %159 = vector.shape_cast %158 : vector<1x8x128xf32> to vector<8x128xf32>
    %160 = vector.shape_cast %157 : vector<8x128xf32> to vector<1x8x128xf32>
    tpu.vector_store %arg21[%c4, %c0_44, %c0_45], %160 {strides = array<i32>} : memref<8x8x128xf32, #tpu.memory_space<vmem>>, vector<1x8x128xf32>,
    %c0_46 = arith.constant 0 : index
    %c0_47 = arith.constant 0 : index
    %161 = vector.load %arg11[%c0_46, %c0_47] : memref<128x512xf32, #tpu.memory_space<vmem>>, vector<128x512xf32>
    %cst_48 = arith.constant dense<0.000000e+00> : vector<8x512xf32>
    %162 = tpu.matmul %157, %161, %cst_48 {dimension_numbers = #tpu.dot_dimension_numbers<[1], [0], [0], [1], [0, 0, 1, 1], [], []>} : vector<8x128xf32>, vector<128x512xf32>, vector<8x512xf32> -> vector<8x512xf32>
    %163 = arith.addf %3, %162 : vector<8x512xf32>
    %164 = vector.extract_strided_slice %163 {offsets = [0, 0], sizes = [8, 128], strides = [1, 1]} : vector<8x512xf32> to vector<8x128xf32>
    %165 = arith.negf %164 : vector<8x128xf32>
    %166 = math.exp %165 : vector<8x128xf32>
    %cst_49 = arith.constant 1.000000e+00 : f32
    %167 = vector.broadcast %cst_49 : f32 to vector<8x128xf32>
    %168 = arith.addf %167, %166 : vector<8x128xf32>
    %169 = arith.divf %167, %168 : vector<8x128xf32>
    %170 = vector.extract_strided_slice %163 {offsets = [0, 128], sizes = [8, 128], strides = [1, 1]} : vector<8x512xf32> to vector<8x128xf32>
    %171 = arith.negf %170 : vector<8x128xf32>
    %172 = math.exp %171 : vector<8x128xf32>
    %cst_50 = arith.constant 1.000000e+00 : f32
    %173 = vector.broadcast %cst_50 : f32 to vector<8x128xf32>
    %174 = arith.addf %173, %172 : vector<8x128xf32>
    %175 = arith.divf %173, %174 : vector<8x128xf32>
    %176 = vector.extract_strided_slice %163 {offsets = [0, 256], sizes = [8, 128], strides = [1, 1]} : vector<8x512xf32> to vector<8x128xf32>
    %177 = math.tanh %176 : vector<8x128xf32>
    %178 = vector.extract_strided_slice %163 {offsets = [0, 384], sizes = [8, 128], strides = [1, 1]} : vector<8x512xf32> to vector<8x128xf32>
    %179 = arith.negf %178 : vector<8x128xf32>
    %180 = math.exp %179 : vector<8x128xf32>
    %cst_51 = arith.constant 1.000000e+00 : f32
    %181 = vector.broadcast %cst_51 : f32 to vector<8x128xf32>
    %182 = arith.addf %181, %180 : vector<8x128xf32>
    %183 = arith.divf %181, %182 : vector<8x128xf32>
    %184 = arith.mulf %175, %155 : vector<8x128xf32>
    %185 = arith.mulf %169, %177 : vector<8x128xf32>
    %186 = arith.addf %184, %185 : vector<8x128xf32>
    %187 = math.tanh %186 : vector<8x128xf32>
    %188 = arith.mulf %183, %187 : vector<8x128xf32>
    %c5 = arith.constant 5 : index
    %c0_52 = arith.constant 0 : index
    %c0_53 = arith.constant 0 : index
    %189 = vector.load %arg21[%c5, %c0_52, %c0_53] : memref<8x8x128xf32, #tpu.memory_space<vmem>>, vector<1x8x128xf32>
    %190 = vector.shape_cast %189 : vector<1x8x128xf32> to vector<8x128xf32>
    %191 = vector.shape_cast %188 : vector<8x128xf32> to vector<1x8x128xf32>
    tpu.vector_store %arg21[%c5, %c0_52, %c0_53], %191 {strides = array<i32>} : memref<8x8x128xf32, #tpu.memory_space<vmem>>, vector<1x8x128xf32>,
    %c0_54 = arith.constant 0 : index
    %c0_55 = arith.constant 0 : index
    %192 = vector.load %arg11[%c0_54, %c0_55] : memref<128x512xf32, #tpu.memory_space<vmem>>, vector<128x512xf32>
    %cst_56 = arith.constant dense<0.000000e+00> : vector<8x512xf32>
    %193 = tpu.matmul %188, %192, %cst_56 {dimension_numbers = #tpu.dot_dimension_numbers<[1], [0], [0], [1], [0, 0, 1, 1], [], []>} : vector<8x128xf32>, vector<128x512xf32>, vector<8x512xf32> -> vector<8x512xf32>
    %194 = arith.addf %3, %193 : vector<8x512xf32>
    %195 = vector.extract_strided_slice %194 {offsets = [0, 0], sizes = [8, 128], strides = [1, 1]} : vector<8x512xf32> to vector<8x128xf32>
    %196 = arith.negf %195 : vector<8x128xf32>
    %197 = math.exp %196 : vector<8x128xf32>
    %cst_57 = arith.constant 1.000000e+00 : f32
    %198 = vector.broadcast %cst_57 : f32 to vector<8x128xf32>
    %199 = arith.addf %198, %197 : vector<8x128xf32>
    %200 = arith.divf %198, %199 : vector<8x128xf32>
    %201 = vector.extract_strided_slice %194 {offsets = [0, 128], sizes = [8, 128], strides = [1, 1]} : vector<8x512xf32> to vector<8x128xf32>
    %202 = arith.negf %201 : vector<8x128xf32>
    %203 = math.exp %202 : vector<8x128xf32>
    %cst_58 = arith.constant 1.000000e+00 : f32
    %204 = vector.broadcast %cst_58 : f32 to vector<8x128xf32>
    %205 = arith.addf %204, %203 : vector<8x128xf32>
    %206 = arith.divf %204, %205 : vector<8x128xf32>
    %207 = vector.extract_strided_slice %194 {offsets = [0, 256], sizes = [8, 128], strides = [1, 1]} : vector<8x512xf32> to vector<8x128xf32>
    %208 = math.tanh %207 : vector<8x128xf32>
    %209 = vector.extract_strided_slice %194 {offsets = [0, 384], sizes = [8, 128], strides = [1, 1]} : vector<8x512xf32> to vector<8x128xf32>
    %210 = arith.negf %209 : vector<8x128xf32>
    %211 = math.exp %210 : vector<8x128xf32>
    %cst_59 = arith.constant 1.000000e+00 : f32
    %212 = vector.broadcast %cst_59 : f32 to vector<8x128xf32>
    %213 = arith.addf %212, %211 : vector<8x128xf32>
    %214 = arith.divf %212, %213 : vector<8x128xf32>
    %215 = arith.mulf %206, %186 : vector<8x128xf32>
    %216 = arith.mulf %200, %208 : vector<8x128xf32>
    %217 = arith.addf %215, %216 : vector<8x128xf32>
    %218 = math.tanh %217 : vector<8x128xf32>
    %219 = arith.mulf %214, %218 : vector<8x128xf32>
    %c6 = arith.constant 6 : index
    %c0_60 = arith.constant 0 : index
    %c0_61 = arith.constant 0 : index
    %220 = vector.load %arg21[%c6, %c0_60, %c0_61] : memref<8x8x128xf32, #tpu.memory_space<vmem>>, vector<1x8x128xf32>
    %221 = vector.shape_cast %220 : vector<1x8x128xf32> to vector<8x128xf32>
    %222 = vector.shape_cast %219 : vector<8x128xf32> to vector<1x8x128xf32>
    tpu.vector_store %arg21[%c6, %c0_60, %c0_61], %222 {strides = array<i32>} : memref<8x8x128xf32, #tpu.memory_space<vmem>>, vector<1x8x128xf32>,
    %c0_62 = arith.constant 0 : index
    %c0_63 = arith.constant 0 : index
    %223 = vector.load %arg11[%c0_62, %c0_63] : memref<128x512xf32, #tpu.memory_space<vmem>>, vector<128x512xf32>
    %cst_64 = arith.constant dense<0.000000e+00> : vector<8x512xf32>
    %224 = tpu.matmul %219, %223, %cst_64 {dimension_numbers = #tpu.dot_dimension_numbers<[1], [0], [0], [1], [0, 0, 1, 1], [], []>} : vector<8x128xf32>, vector<128x512xf32>, vector<8x512xf32> -> vector<8x512xf32>
    %225 = arith.addf %3, %224 : vector<8x512xf32>
    %226 = vector.extract_strided_slice %225 {offsets = [0, 0], sizes = [8, 128], strides = [1, 1]} : vector<8x512xf32> to vector<8x128xf32>
    %227 = arith.negf %226 : vector<8x128xf32>
    %228 = math.exp %227 : vector<8x128xf32>
    %cst_65 = arith.constant 1.000000e+00 : f32
    %229 = vector.broadcast %cst_65 : f32 to vector<8x128xf32>
    %230 = arith.addf %229, %228 : vector<8x128xf32>
    %231 = arith.divf %229, %230 : vector<8x128xf32>
    %232 = vector.extract_strided_slice %225 {offsets = [0, 128], sizes = [8, 128], strides = [1, 1]} : vector<8x512xf32> to vector<8x128xf32>
    %233 = arith.negf %232 : vector<8x128xf32>
    %234 = math.exp %233 : vector<8x128xf32>
    %cst_66 = arith.constant 1.000000e+00 : f32
    %235 = vector.broadcast %cst_66 : f32 to vector<8x128xf32>
    %236 = arith.addf %235, %234 : vector<8x128xf32>
    %237 = arith.divf %235, %236 : vector<8x128xf32>
    %238 = vector.extract_strided_slice %225 {offsets = [0, 256], sizes = [8, 128], strides = [1, 1]} : vector<8x512xf32> to vector<8x128xf32>
    %239 = math.tanh %238 : vector<8x128xf32>
    %240 = vector.extract_strided_slice %225 {offsets = [0, 384], sizes = [8, 128], strides = [1, 1]} : vector<8x512xf32> to vector<8x128xf32>
    %241 = arith.negf %240 : vector<8x128xf32>
    %242 = math.exp %241 : vector<8x128xf32>
    %cst_67 = arith.constant 1.000000e+00 : f32
    %243 = vector.broadcast %cst_67 : f32 to vector<8x128xf32>
    %244 = arith.addf %243, %242 : vector<8x128xf32>
    %245 = arith.divf %243, %244 : vector<8x128xf32>
    %246 = arith.mulf %237, %217 : vector<8x128xf32>
    %247 = arith.mulf %231, %239 : vector<8x128xf32>
    %248 = arith.addf %246, %247 : vector<8x128xf32>
    %249 = math.tanh %248 : vector<8x128xf32>
    %250 = arith.mulf %245, %249 : vector<8x128xf32>
    %c7 = arith.constant 7 : index
    %c0_68 = arith.constant 0 : index
    %c0_69 = arith.constant 0 : index
    %251 = vector.load %arg21[%c7, %c0_68, %c0_69] : memref<8x8x128xf32, #tpu.memory_space<vmem>>, vector<1x8x128xf32>
    %252 = vector.shape_cast %251 : vector<1x8x128xf32> to vector<8x128xf32>
    %253 = vector.shape_cast %250 : vector<8x128xf32> to vector<1x8x128xf32>
    tpu.vector_store %arg21[%c7, %c0_68, %c0_69], %253 {strides = array<i32>} : memref<8x8x128xf32, #tpu.memory_space<vmem>>, vector<1x8x128xf32>,
    %c0_70 = arith.constant 0 : index
    %c0_71 = arith.constant 0 : index
    %254 = vector.load %arg18[%c0_70, %c0_71] : memref<8x128xf32, #tpu.memory_space<vmem>>, vector<8x128xf32>
    tpu.vector_store %arg18[%c0_70, %c0_71], %250 {strides = array<i32>} : memref<8x128xf32, #tpu.memory_space<vmem>>, vector<8x128xf32>,
    %c0_72 = arith.constant 0 : index
    %c0_73 = arith.constant 0 : index
    %255 = vector.load %arg19[%c0_72, %c0_73] : memref<8x128xf32, #tpu.memory_space<vmem>>, vector<8x128xf32>
    tpu.vector_store %arg19[%c0_72, %c0_73], %248 {strides = array<i32>} : memref<8x128xf32, #tpu.memory_space<vmem>>, vector<8x128xf32>,
    %c0_74 = arith.constant 0 : index
    %c0_75 = arith.constant 0 : index
    %c0_76 = arith.constant 0 : index
    %256 = vector.load %arg21[%c0_74, %c0_75, %c0_76] : memref<8x8x128xf32, #tpu.memory_space<vmem>>, vector<8x8x128xf32>
    %257 = vector.shape_cast %256 : vector<8x8x128xf32> to vector<64x128xf32>
    %c0_77 = arith.constant 0 : index
    %c0_78 = arith.constant 0 : index
    %258 = vector.load %arg13[%c0_77, %c0_78] : memref<128x128xf32, #tpu.memory_space<vmem>>, vector<128x128xf32>
    %cst_79 = arith.constant dense<0.000000e+00> : vector<64x128xf32>
    %259 = tpu.matmul %257, %258, %cst_79 {dimension_numbers = #tpu.dot_dimension_numbers<[1], [0], [0], [1], [0, 0, 1, 1], [], []>} : vector<64x128xf32>, vector<128x128xf32>, vector<64x128xf32> -> vector<64x128xf32>
    %c0_80 = arith.constant 0 : index
    %c0_81 = arith.constant 0 : index
    %260 = vector.load %arg14[%c0_80, %c0_81] : memref<1x128xf32, #tpu.memory_space<vmem>>, vector<1x128xf32>
    %261 = vector.broadcast %260 : vector<1x128xf32> to vector<64x128xf32>
    %262 = arith.addf %259, %261 : vector<64x128xf32>
    %263 = vector.shape_cast %262 : vector<64x128xf32> to vector<8x8x128xf32>
    %c0_82 = arith.constant 0 : index
    %c0_83 = arith.constant 0 : index
    %c0_84 = arith.constant 0 : index
    %264 = vector.load %arg15[%c0_82, %c0_83, %c0_84] : memref<8x8x128xf32, #tpu.memory_space<vmem>>, vector<8x8x128xf32>
    tpu.vector_store %arg15[%c0_82, %c0_83, %c0_84], %263 {strides = array<i32>} : memref<8x8x128xf32, #tpu.memory_space<vmem>>, vector<8x8x128xf32>,
    return
  }
  func.func @transform_0(%arg0: i32) -> (i32, i32) {
    %c0_i32 = arith.constant 0 : i32
    %c0_i32_0 = arith.constant 0 : i32
    %c0_i32_1 = arith.constant 0 : i32
    return %c0_i32, %c0_i32_0 : i32, i32
  }
  func.func @transform_1(%arg0: i32) -> (i32, i32) {
    %c0_i32 = arith.constant 0 : i32
    %c0_i32_0 = arith.constant 0 : i32
    %c0_i32_1 = arith.constant 0 : i32
    return %c0_i32, %c0_i32_0 : i32, i32
  }
  func.func @transform_2(%arg0: i32) -> (i32, i32) {
    %c0_i32 = arith.constant 0 : i32
    %c0_i32_0 = arith.constant 0 : i32
    %c0_i32_1 = arith.constant 0 : i32
    return %c0_i32, %c0_i32_0 : i32, i32
  }
  func.func @transform_3(%arg0: i32) -> (i32, i32) {
    %c0_i32 = arith.constant 0 : i32
    %c0_i32_0 = arith.constant 0 : i32
    %c0_i32_1 = arith.constant 0 : i32
    return %c0_i32, %c0_i32_0 : i32, i32
  }
  func.func @transform_4(%arg0: i32) -> (i32, i32) {
    %c0_i32 = arith.constant 0 : i32
    %c0_i32_0 = arith.constant 0 : i32
    %c0_i32_1 = arith.constant 0 : i32
    return %c0_i32, %c0_i32_0 : i32, i32
  }
  func.func @transform_5(%arg0: i32) -> (i32, i32) {
    %c0_i32 = arith.constant 0 : i32
    %c0_i32_0 = arith.constant 0 : i32
    %c0_i32_1 = arith.constant 0 : i32
    return %c0_i32, %c0_i32_0 : i32, i32
  }
  func.func @transform_6(%arg0: i32) -> (i32, i32) {
    %c0_i32 = arith.constant 0 : i32
    %c0_i32_0 = arith.constant 0 : i32
    %c0_i32_1 = arith.constant 0 : i32
    return %c0_i32, %c0_i32_0 : i32, i32
  }
  func.func @transform_7(%arg0: i32) -> (i32, i32) {
    %c0_i32 = arith.constant 0 : i32
    %c0_i32_0 = arith.constant 0 : i32
    %c0_i32_1 = arith.constant 0 : i32
    return %c0_i32, %c0_i32_0 : i32, i32
  }
  func.func @transform_8(%arg0: i32) -> (i32, i32) {
    %c0_i32 = arith.constant 0 : i32
    %c0_i32_0 = arith.constant 0 : i32
    %c0_i32_1 = arith.constant 0 : i32
    return %c0_i32, %c0_i32_0 : i32, i32
  }
  func.func @transform_9(%arg0: i32) -> (i32, i32) {
    %c0_i32 = arith.constant 0 : i32
    %c0_i32_0 = arith.constant 0 : i32
    %c0_i32_1 = arith.constant 0 : i32
    return %c0_i32, %c0_i32_0 : i32, i32
  }
  func.func @transform_10(%arg0: i32) -> (i32, i32) {
    %c0_i32 = arith.constant 0 : i32
    %c0_i32_0 = arith.constant 0 : i32
    %c0_i32_1 = arith.constant 0 : i32
    return %c0_i32, %c0_i32_0 : i32, i32
  }
  func.func @transform_11(%arg0: i32) -> (i32, i32) {
    %c0_i32 = arith.constant 0 : i32
    %c0_i32_0 = arith.constant 0 : i32
    %c0_i32_1 = arith.constant 0 : i32
    return %c0_i32, %c0_i32_0 : i32, i32
  }
  func.func @transform_12(%arg0: i32) -> (i32, i32) {
    %c0_i32 = arith.constant 0 : i32
    %c0_i32_0 = arith.constant 0 : i32
    %c0_i32_1 = arith.constant 0 : i32
    return %c0_i32, %c0_i32_0 : i32, i32
  }
  func.func @transform_13(%arg0: i32) -> (i32, i32) {
    %c0_i32 = arith.constant 0 : i32
    %c0_i32_0 = arith.constant 0 : i32
    %c0_i32_1 = arith.constant 0 : i32
    return %c0_i32, %c0_i32_0 : i32, i32
  }
  func.func @transform_14(%arg0: i32) -> (i32, i32, i32) {
    %c0_i32 = arith.constant 0 : i32
    %c0_i32_0 = arith.constant 0 : i32
    %c0_i32_1 = arith.constant 0 : i32
    return %arg0, %c0_i32, %c0_i32_0 : i32, i32, i32
  }
  func.func @transform_15(%arg0: i32) -> (i32, i32) {
    %c0_i32 = arith.constant 0 : i32
    %c0_i32_0 = arith.constant 0 : i32
    %c0_i32_1 = arith.constant 0 : i32
    return %c0_i32, %c0_i32_0 : i32, i32
  }
  func.func @transform_16(%arg0: i32) -> (i32, i32) {
    %c0_i32 = arith.constant 0 : i32
    %c0_i32_0 = arith.constant 0 : i32
    %c0_i32_1 = arith.constant 0 : i32
    return %c0_i32, %c0_i32_0 : i32, i32
  }
}

</mosaic_0001>

<llo_original>
// kernel: lstmvae_forward.2
$region0: #{lstmvae_forward.2}
  #allocation0 [shape = 'u32[]', space=smem, size = 0x4, offset = 0x4, fixed_abs, tag = 'smem constant byte address 0x4 - core index']
  #allocation1 [shape = 'u32[72,128]{1,0:T(1,128)}', space=vmem, size = 0x9000, scoped, tag = 'internal scratch']
  #allocation2 [shape = 'f32[8,128]{1,0:T(8,128)}', space=vmem, size = 0x1000, scoped, tag = 'scratch operand']
  #allocation3 [shape = 'f32[8,128]{1,0:T(8,128)}', space=vmem, size = 0x1000, scoped, tag = 'scratch operand']
  %s0 = inlined_call_operand.vmem [shape: f32[8,8,128], index: 0, kind: input, shape index: {}]
  %s1 = inlined_call_operand.hbm [shape: f32[128,512], index: 1, kind: input, shape index: {}]
  %s2 = inlined_call_operand.hbm [shape: f32[128,512], index: 2, kind: input, shape index: {}]
  %s3 = inlined_call_operand.vmem [shape: f32[1,512], index: 3, kind: input, shape index: {}]
  %s4 = inlined_call_operand.vmem [shape: f32[8,128], index: 4, kind: output, shape index: {0}]
  %s5 = inlined_call_operand.vmem [shape: f32[8,128], index: 5, kind: output, shape index: {1}]
  %6 = xla_tuple %s4, %s5
  %s7 = sld [smem:[#allocation0]]
  $region50: #{lstmvae_forward.2} parent=0
    _
  %s9 = ssub.s32 1, %s7
  %s10 = scalar_select 0, %s9, %s7
  $region1: #{lstmvae_forward.2} parent=0
    #allocation4 [shape = 'u8[262144]{0}', space=vmem, size = 0x40000, scoped, tag = 'input window, operand 1, single buffered']
    #allocation5 [shape = 's32[1]{0}', space=sflag, size = 0x4, scoped, tag = 'scoped memory for lstmvae_forward.2']
    #allocation6 [shape = 'u8[262144]{0}', space=vmem, size = 0x40000, scoped, tag = 'input window, operand 2, single buffered']
    #allocation7 [shape = 's32[1]{0}', space=sflag, size = 0x4, scoped, tag = 'scoped memory for lstmvae_forward.2']
    %11 = vsyncpa [#allocation5], 0
    %12 = vsyncpa [#allocation7], 0
    // Predicated region
    $region2: #{lstmvae_forward.2} parent=1 // pred_check
      _
    $region3: #{lstmvae_forward.2} parent=1 // pred_check_branch
      %14 = sbr.rel (0) target = $region5
    $region4: #{lstmvae_forward.2} parent=1 // pred_region
      _
    $region5: #{lstmvae_forward.2} parent=1 // pred_fallthru
      _
    // Predicated region
    $region6: #{lstmvae_forward.2} parent=1 // pred_check
      _
    $region7: #{lstmvae_forward.2} parent=1 // pred_check_branch
      %16 = sbr.rel (0) target = $region9
    $region8: #{lstmvae_forward.2} parent=1 // pred_region
      %18 = vsyncadd [#allocation5], 0
      %s19 = sshll.u32 %s1, 4
      %s20 = int_to_ptr.hbm [resolvable:$true] %s19
      %s21 = sshll.u32 [#allocation4], 4
      %s22 = int_to_ptr.vmem [resolvable:$true] %s21
      %27 = dma.hbm_to_vmem [thread:$0]  %s20, 8192, %s22, [#allocation5], 512, 512, 32
    $region9: #{lstmvae_forward.2} parent=1 // pred_fallthru
      _
    // Predicated region
    $region10: #{lstmvae_forward.2} parent=1 // pred_check
      _
    $region11: #{lstmvae_forward.2} parent=1 // pred_check_branch
      %29 = sbr.rel (0) target = $region13
    $region12: #{lstmvae_forward.2} parent=1 // pred_region
      %31 = vsyncadd [#allocation7], 0
      %s32 = sshll.u32 %s2, 4
      %s33 = int_to_ptr.hbm [resolvable:$true] %s32
      %s34 = sshll.u32 [#allocation6], 4
      %s35 = int_to_ptr.vmem [resolvable:$true] %s34
      %40 = dma.hbm_to_vmem [thread:$0]  %s33, 8192, %s35, [#allocation7], 512, 512, 32
    $region13: #{lstmvae_forward.2} parent=1 // pred_fallthru
      _
    // Predicated region
    $region14: #{lstmvae_forward.2} parent=1 // pred_check
      _
    $region15: #{lstmvae_forward.2} parent=1 // pred_check_branch
      %42 = sbr.rel (0) target = $region17
    $region16: #{lstmvae_forward.2} parent=1 // pred_region
      _
    $region17: #{lstmvae_forward.2} parent=1 // pred_fallthru
      _
    // Predicated region
    $region18: #{lstmvae_forward.2} parent=1 // pred_check
      _
    $region19: #{lstmvae_forward.2} parent=1 // pred_check_branch
      %44 = sbr.rel (0) target = $region21
    $region20: #{lstmvae_forward.2} parent=1 // pred_region
      %46 = dma.done [#allocation5], 8192
    $region21: #{lstmvae_forward.2} parent=1 // pred_fallthru
      _
    // Predicated region
    $region22: #{lstmvae_forward.2} parent=1 // pred_check
      _
    $region23: #{lstmvae_forward.2} parent=1 // pred_check_branch
      %48 = sbr.rel (0) target = $region25
    $region24: #{lstmvae_forward.2} parent=1 // pred_region
      %50 = dma.done [#allocation7], 8192
    $region25: #{lstmvae_forward.2} parent=1 // pred_fallthru
      _
    %p51 = scmp.eq.s32.totalorder 0, 0
    // Predicated region
    $region26: #{lstmvae_forward.2} parent=1 // pred_check
      %p52 = pneg %p51
    $region27: #{lstmvae_forward.2} parent=1 // pred_check_branch
      %54 = sbr.rel (%p52) target = $region29
    $region28: #{lstmvae_forward.2} parent=1 // pred_region
      %55 = vst [vmem:[#allocation2] sm:$0xff] 0.0
      %56 = vst [vmem:[#allocation3] sm:$0xff] 0.0
    $region29: #{lstmvae_forward.2} parent=1 // pred_fallthru
      _
    %v57 = vld [vmem:[%s0] sm:$0xff]
    %v58 = vld [vmem:[%s0 + $0x8] sm:$0xff]
    %v59 = vld [vmem:[%s0 + $0x10] sm:$0xff]
    %v60 = vld [vmem:[%s0 + $0x18] sm:$0xff]
    %v61 = vld [vmem:[%s0 + $0x20] sm:$0xff]
    %v62 = vld [vmem:[%s0 + $0x28] sm:$0xff]
    %v63 = vld [vmem:[%s0 + $0x30] sm:$0xff]
    %v64 = vld [vmem:[%s0 + $0x38] sm:$0xff]
    %v65 = vld [vmem:[#allocation4] sm:$0xff]
    %v66 = vld [vmem:[#allocation4 + $0x8] sm:$0xff]
    %v67 = vld [vmem:[#allocation4 + $0x10] sm:$0xff]
    %v68 = vld [vmem:[#allocation4 + $0x18] sm:$0xff]
    %v69 = vld [vmem:[#allocation4 + $0x20] sm:$0xff]
    %v70 = vld [vmem:[#allocation4 + $0x28] sm:$0xff]
    %v71 = vld [vmem:[#allocation4 + $0x30] sm:$0xff]
    %v72 = vld [vmem:[#allocation4 + $0x38] sm:$0xff]
    %v73 = vld [vmem:[#allocation4 + $0x40] sm:$0xff]
    %v74 = vld [vmem:[#allocation4 + $0x48] sm:$0xff]
    %v75 = vld [vmem:[#allocation4 + $0x50] sm:$0xff]
    %v76 = vld [vmem:[#allocation4 + $0x58] sm:$0xff]
    %v77 = vld [vmem:[#allocation4 + $0x60] sm:$0xff]
    %v78 = vld [vmem:[#allocation4 + $0x68] sm:$0xff]
    %v79 = vld [vmem:[#allocation4 + $0x70] sm:$0xff]
    %v80 = vld [vmem:[#allocation4 + $0x78] sm:$0xff]
    %v81 = vld [vmem:[#allocation4 + $0x80] sm:$0xff]
    %v82 = vld [vmem:[#allocation4 + $0x88] sm:$0xff]
    %v83 = vld [vmem:[#allocation4 + $0x90] sm:$0xff]
    %v84 = vld [vmem:[#allocation4 + $0x98] sm:$0xff]
    %v85 = vld [vmem:[#allocation4 + $0xa0] sm:$0xff]
    %v86 = vld [vmem:[#allocation4 + $0xa8] sm:$0xff]
    %v87 = vld [vmem:[#allocation4 + $0xb0] sm:$0xff]
    %v88 = vld [vmem:[#allocation4 + $0xb8] sm:$0xff]
    %v89 = vld [vmem:[#allocation4 + $0xc0] sm:$0xff]
    %v90 = vld [vmem:[#allocation4 + $0xc8] sm:$0xff]
    %v91 = vld [vmem:[#allocation4 + $0xd0] sm:$0xff]
    %v92 = vld [vmem:[#allocation4 + $0xd8] sm:$0xff]
    %v93 = vld [vmem:[#allocation4 + $0xe0] sm:$0xff]
    %v94 = vld [vmem:[#allocation4 + $0xe8] sm:$0xff]
    %v95 = vld [vmem:[#allocation4 + $0xf0] sm:$0xff]
    %v96 = vld [vmem:[#allocation4 + $0xf8] sm:$0xff]
    %v97 = vld [vmem:[#allocation4 + $0x100] sm:$0xff]
    %v98 = vld [vmem:[#allocation4 + $0x108] sm:$0xff]
    %v99 = vld [vmem:[#allocation4 + $0x110] sm:$0xff]
    %v100 = vld [vmem:[#allocation4 + $0x118] sm:$0xff]
    %v101 = vld [vmem:[#allocation4 + $0x120] sm:$0xff]
    %v102 = vld [vmem:[#allocation4 + $0x128] sm:$0xff]
    %v103 = vld [vmem:[#allocation4 + $0x130] sm:$0xff]
    %v104 = vld [vmem:[#allocation4 + $0x138] sm:$0xff]
    %v105 = vld [vmem:[#allocation4 + $0x140] sm:$0xff]
    %v106 = vld [vmem:[#allocation4 + $0x148] sm:$0xff]
    %v107 = vld [vmem:[#allocation4 + $0x150] sm:$0xff]
    %v108 = vld [vmem:[#allocation4 + $0x158] sm:$0xff]
    %v109 = vld [vmem:[#allocation4 + $0x160] sm:$0xff]
    %v110 = vld [vmem:[#allocation4 + $0x168] sm:$0xff]
    %v111 = vld [vmem:[#allocation4 + $0x170] sm:$0xff]
    %v112 = vld [vmem:[#allocation4 + $0x178] sm:$0xff]
    %v113 = vld [vmem:[#allocation4 + $0x180] sm:$0xff]
    %v114 = vld [vmem:[#allocation4 + $0x188] sm:$0xff]
    %v115 = vld [vmem:[#allocation4 + $0x190] sm:$0xff]
    %v116 = vld [vmem:[#allocation4 + $0x198] sm:$0xff]
    %v117 = vld [vmem:[#allocation4 + $0x1a0] sm:$0xff]
    %v118 = vld [vmem:[#allocation4 + $0x1a8] sm:$0xff]
    %v119 = vld [vmem:[#allocation4 + $0x1b0] sm:$0xff]
    %v120 = vld [vmem:[#allocation4 + $0x1b8] sm:$0xff]
    %v121 = vld [vmem:[#allocation4 + $0x1c0] sm:$0xff]
    %v122 = vld [vmem:[#allocation4 + $0x1c8] sm:$0xff]
    %v123 = vld [vmem:[#allocation4 + $0x1d0] sm:$0xff]
    %v124 = vld [vmem:[#allocation4 + $0x1d8] sm:$0xff]
    %v125 = vld [vmem:[#allocation4 + $0x1e0] sm:$0xff]
    %v126 = vld [vmem:[#allocation4 + $0x1e8] sm:$0xff]
    %v127 = vld [vmem:[#allocation4 + $0x1f0] sm:$0xff]
    %v128 = vld [vmem:[#allocation4 + $0x1f8] sm:$0xff]
    %v129 = vld [vmem:[%s3] sm:$0xf]
    %v131 = vperm.slane %v129, 0
    %v132 = vperm.slane %v129, 1
    %v133 = vperm.slane %v129, 2
    %v134 = vperm.slane %v129, 3
    %139 = vmatpush.msra.mxu0 %v125
    %140 = vmatpush.msra.mxu0 %v121
    %141 = vmatpush.msra.mxu0 %v117
    %142 = vmatpush.msra.mxu0 %v113
    %143 = vmatpush.msra.mxu0 %v109
    %144 = vmatpush.msra.mxu0 %v105
    %145 = vmatpush.msra.mxu0 %v101
    %146 = vmatpush.msra.mxu0 %v97
    %147 = vmatpush.msra.mxu0 %v93
    %148 = vmatpush.msra.mxu0 %v89
    %149 = vmatpush.msra.mxu0 %v85
    %150 = vmatpush.msra.mxu0 %v81
    %151 = vmatpush.msra.mxu0 %v77
    %152 = vmatpush.msra.mxu0 %v73
    %153 = vmatpush.msra.mxu0 %v69
    %154 = vmatpush.msra.mxu0 %v65
    %155 = vmatmul.f32.gmra.mxu0 %v57
    %v156 = vpop.f32.mrf.mxu0
    %v157 = vadd.f32 %v131, %v156
    %158 = vmatmul.f32.gmra.mxu0 %v58
    %v159 = vpop.f32.mrf.mxu0
    %v160 = vadd.f32 %v131, %v159
    %161 = vmatmul.f32.gmra.mxu0 %v59
    %v162 = vpop.f32.mrf.mxu0
    %v163 = vadd.f32 %v131, %v162
    %164 = vmatmul.f32.gmra.mxu0 %v60
    %v165 = vpop.f32.mrf.mxu0
    %v166 = vadd.f32 %v131, %v165
    %167 = vmatmul.f32.gmra.mxu0 %v61
    %v168 = vpop.f32.mrf.mxu0
    %v169 = vadd.f32 %v131, %v168
    %170 = vmatmul.f32.gmra.mxu0 %v62
    %v171 = vpop.f32.mrf.mxu0
    %v172 = vadd.f32 %v131, %v171
    %173 = vmatmul.f32.gmra.mxu0 %v63
    %v174 = vpop.f32.mrf.mxu0
    %v175 = vadd.f32 %v131, %v174
    %176 = vmatmul.f32.gmra.mxu0 %v64
    %v177 = vpop.f32.mrf.mxu0
    %v178 = vadd.f32 %v131, %v177
    %179 = vdwg.mxu0
    %180 = vmatpush.msra.mxu0 %v126
    %181 = vmatpush.msra.mxu0 %v122
    %182 = vmatpush.msra.mxu0 %v118
    %183 = vmatpush.msra.mxu0 %v114
    %184 = vmatpush.msra.mxu0 %v110
    %185 = vmatpush.msra.mxu0 %v106
    %186 = vmatpush.msra.mxu0 %v102
    %187 = vmatpush.msra.mxu0 %v98
    %188 = vmatpush.msra.mxu0 %v94
    %189 = vmatpush.msra.mxu0 %v90
    %190 = vmatpush.msra.mxu0 %v86
    %191 = vmatpush.msra.mxu0 %v82
    %192 = vmatpush.msra.mxu0 %v78
    %193 = vmatpush.msra.mxu0 %v74
    %194 = vmatpush.msra.mxu0 %v70
    %195 = vmatpush.msra.mxu0 %v66
    %196 = vmatmul.f32.gmra.mxu0 %v57
    %v197 = vpop.f32.mrf.mxu0
    %v198 = vadd.f32 %v132, %v197
    %199 = vmatmul.f32.gmra.mxu0 %v58
    %v200 = vpop.f32.mrf.mxu0
    %v201 = vadd.f32 %v132, %v200
    %202 = vmatmul.f32.gmra.mxu0 %v59
    %v203 = vpop.f32.mrf.mxu0
    %v204 = vadd.f32 %v132, %v203
    %205 = vmatmul.f32.gmra.mxu0 %v60
    %v206 = vpop.f32.mrf.mxu0
    %v207 = vadd.f32 %v132, %v206
    %208 = vmatmul.f32.gmra.mxu0 %v61
    %v209 = vpop.f32.mrf.mxu0
    %v210 = vadd.f32 %v132, %v209
    %211 = vmatmul.f32.gmra.mxu0 %v62
    %v212 = vpop.f32.mrf.mxu0
    %v213 = vadd.f32 %v132, %v212
    %214 = vmatmul.f32.gmra.mxu0 %v63
    %v215 = vpop.f32.mrf.mxu0
    %v216 = vadd.f32 %v132, %v215
    %217 = vmatmul.f32.gmra.mxu0 %v64
    %v218 = vpop.f32.mrf.mxu0
    %v219 = vadd.f32 %v132, %v218
    %220 = vdwg.mxu0
    %221 = vmatpush.msra.mxu0 %v127
    %222 = vmatpush.msra.mxu0 %v123
    %223 = vmatpush.msra.mxu0 %v119
    %224 = vmatpush.msra.mxu0 %v115
    %225 = vmatpush.msra.mxu0 %v111
    %226 = vmatpush.msra.mxu0 %v107
    %227 = vmatpush.msra.mxu0 %v103
    %228 = vmatpush.msra.mxu0 %v99
    %229 = vmatpush.msra.mxu0 %v95
    %230 = vmatpush.msra.mxu0 %v91
    %231 = vmatpush.msra.mxu0 %v87
    %232 = vmatpush.msra.mxu0 %v83
    %233 = vmatpush.msra.mxu0 %v79
    %234 = vmatpush.msra.mxu0 %v75
    %235 = vmatpush.msra.mxu0 %v71
    %236 = vmatpush.msra.mxu0 %v67
    %237 = vmatmul.f32.gmra.mxu0 %v57
    %v238 = vpop.f32.mrf.mxu0
    %v239 = vadd.f32 %v133, %v238
    %240 = vmatmul.f32.gmra.mxu0 %v58
    %v241 = vpop.f32.mrf.mxu0
    %v242 = vadd.f32 %v133, %v241
    %243 = vmatmul.f32.gmra.mxu0 %v59
    %v244 = vpop.f32.mrf.mxu0
    %v245 = vadd.f32 %v133, %v244
    %246 = vmatmul.f32.gmra.mxu0 %v60
    %v247 = vpop.f32.mrf.mxu0
    %v248 = vadd.f32 %v133, %v247
    %249 = vmatmul.f32.gmra.mxu0 %v61
    %v250 = vpop.f32.mrf.mxu0
    %v251 = vadd.f32 %v133, %v250
    %252 = vmatmul.f32.gmra.mxu0 %v62
    %v253 = vpop.f32.mrf.mxu0
    %v254 = vadd.f32 %v133, %v253
    %255 = vmatmul.f32.gmra.mxu0 %v63
    %v256 = vpop.f32.mrf.mxu0
    %v257 = vadd.f32 %v133, %v256
    %258 = vmatmul.f32.gmra.mxu0 %v64
    %v259 = vpop.f32.mrf.mxu0
    %v260 = vadd.f32 %v133, %v259
    %261 = vdwg.mxu0
    %262 = vmatpush.msra.mxu0 %v128
    %263 = vmatpush.msra.mxu0 %v124
    %264 = vmatpush.msra.mxu0 %v120
    %265 = vmatpush.msra.mxu0 %v116
    %266 = vmatpush.msra.mxu0 %v112
    %267 = vmatpush.msra.mxu0 %v108
    %268 = vmatpush.msra.mxu0 %v104
    %269 = vmatpush.msra.mxu0 %v100
    %270 = vmatpush.msra.mxu0 %v96
    %271 = vmatpush.msra.mxu0 %v92
    %272 = vmatpush.msra.mxu0 %v88
    %273 = vmatpush.msra.mxu0 %v84
    %274 = vmatpush.msra.mxu0 %v80
    %275 = vmatpush.msra.mxu0 %v76
    %276 = vmatpush.msra.mxu0 %v72
    %277 = vmatpush.msra.mxu0 %v68
    %278 = vmatmul.f32.gmra.mxu0 %v57
    %v279 = vpop.f32.mrf.mxu0
    %v280 = vadd.f32 %v134, %v279
    %281 = vmatmul.f32.gmra.mxu0 %v58
    %v282 = vpop.f32.mrf.mxu0
    %v283 = vadd.f32 %v134, %v282
    %284 = vmatmul.f32.gmra.mxu0 %v59
    %v285 = vpop.f32.mrf.mxu0
    %v286 = vadd.f32 %v134, %v285
    %287 = vmatmul.f32.gmra.mxu0 %v60
    %v288 = vpop.f32.mrf.mxu0
    %v289 = vadd.f32 %v134, %v288
    %290 = vmatmul.f32.gmra.mxu0 %v61
    %v291 = vpop.f32.mrf.mxu0
    %v292 = vadd.f32 %v134, %v291
    %293 = vmatmul.f32.gmra.mxu0 %v62
    %v294 = vpop.f32.mrf.mxu0
    %v295 = vadd.f32 %v134, %v294
    %296 = vmatmul.f32.gmra.mxu0 %v63
    %v297 = vpop.f32.mrf.mxu0
    %v298 = vadd.f32 %v134, %v297
    %299 = vmatmul.f32.gmra.mxu0 %v64
    %v300 = vpop.f32.mrf.mxu0
    %v301 = vadd.f32 %v134, %v300
    %302 = vdwg.mxu0
    %v303 = vld [vmem:[#allocation2] sm:$0xff]
    %v304 = vld [vmem:[#allocation3] sm:$0xff]
    %v305 = vld [vmem:[#allocation6] sm:$0xff]
    %v306 = vld [vmem:[#allocation6 + $0x8] sm:$0xff]
    %v307 = vld [vmem:[#allocation6 + $0x10] sm:$0xff]
    %v308 = vld [vmem:[#allocation6 + $0x18] sm:$0xff]
    %v309 = vld [vmem:[#allocation6 + $0x20] sm:$0xff]
    %v310 = vld [vmem:[#allocation6 + $0x28] sm:$0xff]
    %v311 = vld [vmem:[#allocation6 + $0x30] sm:$0xff]
    %v312 = vld [vmem:[#allocation6 + $0x38] sm:$0xff]
    %v313 = vld [vmem:[#allocation6 + $0x40] sm:$0xff]
    %v314 = vld [vmem:[#allocation6 + $0x48] sm:$0xff]
    %v315 = vld [vmem:[#allocation6 + $0x50] sm:$0xff]
    %v316 = vld [vmem:[#allocation6 + $0x58] sm:$0xff]
    %v317 = vld [vmem:[#allocation6 + $0x60] sm:$0xff]
    %v318 = vld [vmem:[#allocation6 + $0x68] sm:$0xff]
    %v319 = vld [vmem:[#allocation6 + $0x70] sm:$0xff]
    %v320 = vld [vmem:[#allocation6 + $0x78] sm:$0xff]
    %v321 = vld [vmem:[#allocation6 + $0x80] sm:$0xff]
    %v322 = vld [vmem:[#allocation6 + $0x88] sm:$0xff]
    %v323 = vld [vmem:[#allocation6 + $0x90] sm:$0xff]
    %v324 = vld [vmem:[#allocation6 + $0x98] sm:$0xff]
    %v325 = vld [vmem:[#allocation6 + $0xa0] sm:$0xff]
    %v326 = vld [vmem:[#allocation6 + $0xa8] sm:$0xff]
    %v327 = vld [vmem:[#allocation6 + $0xb0] sm:$0xff]
    %v328 = vld [vmem:[#allocation6 + $0xb8] sm:$0xff]
    %v329 = vld [vmem:[#allocation6 + $0xc0] sm:$0xff]
    %v330 = vld [vmem:[#allocation6 + $0xc8] sm:$0xff]
    %v331 = vld [vmem:[#allocation6 + $0xd0] sm:$0xff]
    %v332 = vld [vmem:[#allocation6 + $0xd8] sm:$0xff]
    %v333 = vld [vmem:[#allocation6 + $0xe0] sm:$0xff]
    %v334 = vld [vmem:[#allocation6 + $0xe8] sm:$0xff]
    %v335 = vld [vmem:[#allocation6 + $0xf0] sm:$0xff]
    %v336 = vld [vmem:[#allocation6 + $0xf8] sm:$0xff]
    %v337 = vld [vmem:[#allocation6 + $0x100] sm:$0xff]
    %v338 = vld [vmem:[#allocation6 + $0x108] sm:$0xff]
    %v339 = vld [vmem:[#allocation6 + $0x110] sm:$0xff]
    %v340 = vld [vmem:[#allocation6 + $0x118] sm:$0xff]
    %v341 = vld [vmem:[#allocation6 + $0x120] sm:$0xff]
    %v342 = vld [vmem:[#allocation6 + $0x128] sm:$0xff]
    %v343 = vld [vmem:[#allocation6 + $0x130] sm:$0xff]
    %v344 = vld [vmem:[#allocation6 + $0x138] sm:$0xff]
    %v345 = vld [vmem:[#allocation6 + $0x140] sm:$0xff]
    %v346 = vld [vmem:[#allocation6 + $0x148] sm:$0xff]
    %v347 = vld [vmem:[#allocation6 + $0x150] sm:$0xff]
    %v348 = vld [vmem:[#allocation6 + $0x158] sm:$0xff]
    %v349 = vld [vmem:[#allocation6 + $0x160] sm:$0xff]
    %v350 = vld [vmem:[#allocation6 + $0x168] sm:$0xff]
    %v351 = vld [vmem:[#allocation6 + $0x170] sm:$0xff]
    %v352 = vld [vmem:[#allocation6 + $0x178] sm:$0xff]
    %v353 = vld [vmem:[#allocation6 + $0x180] sm:$0xff]
    %v354 = vld [vmem:[#allocation6 + $0x188] sm:$0xff]
    %v355 = vld [vmem:[#allocation6 + $0x190] sm:$0xff]
    %v356 = vld [vmem:[#allocation6 + $0x198] sm:$0xff]
    %v357 = vld [vmem:[#allocation6 + $0x1a0] sm:$0xff]
    %v358 = vld [vmem:[#allocation6 + $0x1a8] sm:$0xff]
    %v359 = vld [vmem:[#allocation6 + $0x1b0] sm:$0xff]
    %v360 = vld [vmem:[#allocation6 + $0x1b8] sm:$0xff]
    %v361 = vld [vmem:[#allocation6 + $0x1c0] sm:$0xff]
    %v362 = vld [vmem:[#allocation6 + $0x1c8] sm:$0xff]
    %v363 = vld [vmem:[#allocation6 + $0x1d0] sm:$0xff]
    %v364 = vld [vmem:[#allocation6 + $0x1d8] sm:$0xff]
    %v365 = vld [vmem:[#allocation6 + $0x1e0] sm:$0xff]
    %v366 = vld [vmem:[#allocation6 + $0x1e8] sm:$0xff]
    %v367 = vld [vmem:[#allocation6 + $0x1f0] sm:$0xff]
    %v368 = vld [vmem:[#allocation6 + $0x1f8] sm:$0xff]
    %369 = vmatpush.msra.mxu0 %v365
    %370 = vmatpush.msra.mxu0 %v361
    %371 = vmatpush.msra.mxu0 %v357
    %372 = vmatpush.msra.mxu0 %v353
    %373 = vmatpush.msra.mxu0 %v349
    %374 = vmatpush.msra.mxu0 %v345
    %375 = vmatpush.msra.mxu0 %v341
    %376 = vmatpush.msra.mxu0 %v337
    %377 = vmatpush.msra.mxu0 %v333
    %378 = vmatpush.msra.mxu0 %v329
    %379 = vmatpush.msra.mxu0 %v325
    %380 = vmatpush.msra.mxu0 %v321
    %381 = vmatpush.msra.mxu0 %v317
    %382 = vmatpush.msra.mxu0 %v313
    %383 = vmatpush.msra.mxu0 %v309
    %384 = vmatpush.msra.mxu0 %v305
    %385 = vmatmul.f32.gmra.mxu0 %v303
    %v386 = vpop.f32.mrf.mxu0
    %v387 = vadd.f32 0.0, %v386
    %388 = vdwg.mxu0
    %389 = vmatpush.msra.mxu0 %v366
    %390 = vmatpush.msra.mxu0 %v362
    %391 = vmatpush.msra.mxu0 %v358
    %392 = vmatpush.msra.mxu0 %v354
    %393 = vmatpush.msra.mxu0 %v350
    %394 = vmatpush.msra.mxu0 %v346
    %395 = vmatpush.msra.mxu0 %v342
    %396 = vmatpush.msra.mxu0 %v338
    %397 = vmatpush.msra.mxu0 %v334
    %398 = vmatpush.msra.mxu0 %v330
    %399 = vmatpush.msra.mxu0 %v326
    %400 = vmatpush.msra.mxu0 %v322
    %401 = vmatpush.msra.mxu0 %v318
    %402 = vmatpush.msra.mxu0 %v314
    %403 = vmatpush.msra.mxu0 %v310
    %404 = vmatpush.msra.mxu0 %v306
    %405 = vmatmul.f32.gmra.mxu0 %v303
    %v406 = vpop.f32.mrf.mxu0
    %v407 = vadd.f32 0.0, %v406
    %408 = vdwg.mxu0
    %409 = vmatpush.msra.mxu0 %v367
    %410 = vmatpush.msra.mxu0 %v363
    %411 = vmatpush.msra.mxu0 %v359
    %412 = vmatpush.msra.mxu0 %v355
    %413 = vmatpush.msra.mxu0 %v351
    %414 = vmatpush.msra.mxu0 %v347
    %415 = vmatpush.msra.mxu0 %v343
    %416 = vmatpush.msra.mxu0 %v339
    %417 = vmatpush.msra.mxu0 %v335
    %418 = vmatpush.msra.mxu0 %v331
    %419 = vmatpush.msra.mxu0 %v327
    %420 = vmatpush.msra.mxu0 %v323
    %421 = vmatpush.msra.mxu0 %v319
    %422 = vmatpush.msra.mxu0 %v315
    %423 = vmatpush.msra.mxu0 %v311
    %424 = vmatpush.msra.mxu0 %v307
    %425 = vmatmul.f32.gmra.mxu0 %v303
    %v426 = vpop.f32.mrf.mxu0
    %v427 = vadd.f32 0.0, %v426
    %428 = vdwg.mxu0
    %429 = vmatpush.msra.mxu0 %v368
    %430 = vmatpush.msra.mxu0 %v364
    %431 = vmatpush.msra.mxu0 %v360
    %432 = vmatpush.msra.mxu0 %v356
    %433 = vmatpush.msra.mxu0 %v352
    %434 = vmatpush.msra.mxu0 %v348
    %435 = vmatpush.msra.mxu0 %v344
    %436 = vmatpush.msra.mxu0 %v340
    %437 = vmatpush.msra.mxu0 %v336
    %438 = vmatpush.msra.mxu0 %v332
    %439 = vmatpush.msra.mxu0 %v328
    %440 = vmatpush.msra.mxu0 %v324
    %441 = vmatpush.msra.mxu0 %v320
    %442 = vmatpush.msra.mxu0 %v316
    %443 = vmatpush.msra.mxu0 %v312
    %444 = vmatpush.msra.mxu0 %v308
    %445 = vmatmul.f32.gmra.mxu0 %v303
    %v446 = vpop.f32.mrf.mxu0
    %v447 = vadd.f32 0.0, %v446
    %448 = vdwg.mxu0
    %v453 = vrot.slane %v387, 1
    %v454 = vrot.slane %v407, 1
    %v455 = vrot.slane %v427, 1
    %v456 = vrot.slane %v447, 1
    %v457 = vrot.slane %v387, 2
    %v458 = vrot.slane %v407, 2
    %v459 = vrot.slane %v427, 2
    %v460 = vrot.slane %v447, 2
    %v461 = vrot.slane %v387, 3
    %v462 = vrot.slane %v407, 3
    %v463 = vrot.slane %v427, 3
    %v464 = vrot.slane %v447, 3
    %v465 = vrot.slane %v387, 4
    %v466 = vrot.slane %v407, 4
    %v467 = vrot.slane %v427, 4
    %v468 = vrot.slane %v447, 4
    %v469 = vrot.slane %v387, 5
    %v470 = vrot.slane %v407, 5
    %v471 = vrot.slane %v427, 5
    %v472 = vrot.slane %v447, 5
    %v473 = vrot.slane %v387, 6
    %v474 = vrot.slane %v407, 6
    %v475 = vrot.slane %v427, 6
    %v476 = vrot.slane %v447, 6
    %v477 = vrot.slane %v387, 7
    %v478 = vrot.slane %v407, 7
    %v479 = vrot.slane %v427, 7
    %v480 = vrot.slane %v447, 7
    %v513 = vadd.f32 %v157, %v387
    %v514 = vadd.f32 %v198, %v407
    %v515 = vadd.f32 %v239, %v427
    %v516 = vadd.f32 %v280, %v447
    %v517 = vadd.f32 %v160, %v453
    %v518 = vadd.f32 %v201, %v454
    %v519 = vadd.f32 %v242, %v455
    %v520 = vadd.f32 %v283, %v456
    %v521 = vadd.f32 %v163, %v457
    %v522 = vadd.f32 %v204, %v458
    %v523 = vadd.f32 %v245, %v459
    %v524 = vadd.f32 %v286, %v460
    %v525 = vadd.f32 %v166, %v461
    %v526 = vadd.f32 %v207, %v462
    %v527 = vadd.f32 %v248, %v463
    %v528 = vadd.f32 %v289, %v464
    %v529 = vadd.f32 %v169, %v465
    %v530 = vadd.f32 %v210, %v466
    %v531 = vadd.f32 %v251, %v467
    %v532 = vadd.f32 %v292, %v468
    %v533 = vadd.f32 %v172, %v469
    %v534 = vadd.f32 %v213, %v470
    %v535 = vadd.f32 %v254, %v471
    %v536 = vadd.f32 %v295, %v472
    %v537 = vadd.f32 %v175, %v473
    %v538 = vadd.f32 %v216, %v474
    %v539 = vadd.f32 %v257, %v475
    %v540 = vadd.f32 %v298, %v476
    %v541 = vadd.f32 %v178, %v477
    %v542 = vadd.f32 %v219, %v478
    %v543 = vadd.f32 %v260, %v479
    %v544 = vadd.f32 %v301, %v480
    %v545 = vxor.u32 %v513, 2147483648
    %v546 = vxor.u32 %v517, 2147483648
    %v547 = vxor.u32 %v521, 2147483648
    %v548 = vxor.u32 %v525, 2147483648
    %v549 = vxor.u32 %v529, 2147483648
    %v550 = vxor.u32 %v533, 2147483648
    %v551 = vxor.u32 %v537, 2147483648
    %v552 = vxor.u32 %v541, 2147483648
    %v553 = vmul.f32 %v545, 1.442695
    %v554 = vpow.pop %v553
    %v555 = vmul.f32 %v546, 1.442695
    %v556 = vpow.pop %v555
    %v557 = vmul.f32 %v547, 1.442695
    %v558 = vpow.pop %v557
    %v559 = vmul.f32 %v548, 1.442695
    %v560 = vpow.pop %v559
    %v561 = vmul.f32 %v549, 1.442695
    %v562 = vpow.pop %v561
    %v563 = vmul.f32 %v550, 1.442695
    %v564 = vpow.pop %v563
    %v565 = vmul.f32 %v551, 1.442695
    %v566 = vpow.pop %v565
    %v567 = vmul.f32 %v552, 1.442695
    %v568 = vpow.pop %v567
    %v569 = vadd.f32 %v554, 1.0
    %v570 = vadd.f32 %v556, 1.0
    %v571 = vadd.f32 %v558, 1.0
    %v572 = vadd.f32 %v560, 1.0
    %v573 = vadd.f32 %v562, 1.0
    %v574 = vadd.f32 %v564, 1.0
    %v575 = vadd.f32 %v566, 1.0
    %v576 = vadd.f32 %v568, 1.0
    %v577 = vrcp.pop %v569
    %v578 = vmul.f32 %v569, %v577
    %v579 = vsub.f32 1.0, %v578
    %v580 = vmul.f32 %v577, %v579
    %v581 = vadd.f32 %v577, %v580
    %vm582 = vweird.f32 %v569
    %vm583 = vweird.f32 %v577
    %vm584 = vmor %vm582, %vm583
    %v585 = vsel %vm584, %v577, %v581
    %v586 = vand.u32 2147483647, %v569
    %vm587 = vcmp.eq.f32.partialorder %v586, 8.507059e+37
    %v588 = vand.u32 %v569, 2147483648
    %v589 = vor.u32 1.1754944e-38, %v588
    %v590 = vsel %vm587, %v589, %v585
    %v591 = vmul.f32 1.0, %v590
    %v592 = vrcp.pop %v570
    %v593 = vmul.f32 %v570, %v592
    %v594 = vsub.f32 1.0, %v593
    %v595 = vmul.f32 %v592, %v594
    %v596 = vadd.f32 %v592, %v595
    %vm597 = vweird.f32 %v570
    %vm598 = vweird.f32 %v592
    %vm599 = vmor %vm597, %vm598
    %v600 = vsel %vm599, %v592, %v596
    %v601 = vand.u32 2147483647, %v570
    %vm602 = vcmp.eq.f32.partialorder %v601, 8.507059e+37
    %v603 = vand.u32 %v570, 2147483648
    %v604 = vor.u32 1.1754944e-38, %v603
    %v605 = vsel %vm602, %v604, %v600
    %v606 = vmul.f32 1.0, %v605
    %v607 = vrcp.pop %v571
    %v608 = vmul.f32 %v571, %v607
    %v609 = vsub.f32 1.0, %v608
    %v610 = vmul.f32 %v607, %v609
    %v611 = vadd.f32 %v607, %v610
    %vm612 = vweird.f32 %v571
    %vm613 = vweird.f32 %v607
    %vm614 = vmor %vm612, %vm613
    %v615 = vsel %vm614, %v607, %v611
    %v616 = vand.u32 2147483647, %v571
    %vm617 = vcmp.eq.f32.partialorder %v616, 8.507059e+37
    %v618 = vand.u32 %v571, 2147483648
    %v619 = vor.u32 1.1754944e-38, %v618
    %v620 = vsel %vm617, %v619, %v615
    %v621 = vmul.f32 1.0, %v620
    %v622 = vrcp.pop %v572
    %v623 = vmul.f32 %v572, %v622
    %v624 = vsub.f32 1.0, %v623
    %v625 = vmul.f32 %v622, %v624
    %v626 = vadd.f32 %v622, %v625
    %vm627 = vweird.f32 %v572
    %vm628 = vweird.f32 %v622
    %vm629 = vmor %vm627, %vm628
    %v630 = vsel %vm629, %v622, %v626
    %v631 = vand.u32 2147483647, %v572
    %vm632 = vcmp.eq.f32.partialorder %v631, 8.507059e+37
    %v633 = vand.u32 %v572, 2147483648
    %v634 = vor.u32 1.1754944e-38, %v633
    %v635 = vsel %vm632, %v634, %v630
    %v636 = vmul.f32 1.0, %v635
    %v637 = vrcp.pop %v573
    %v638 = vmul.f32 %v573, %v637
    %v639 = vsub.f32 1.0, %v638
    %v640 = vmul.f32 %v637, %v639
    %v641 = vadd.f32 %v637, %v640
    %vm642 = vweird.f32 %v573
    %vm643 = vweird.f32 %v637
    %vm644 = vmor %vm642, %vm643
    %v645 = vsel %vm644, %v637, %v641
    %v646 = vand.u32 2147483647, %v573
    %vm647 = vcmp.eq.f32.partialorder %v646, 8.507059e+37
    %v648 = vand.u32 %v573, 2147483648
    %v649 = vor.u32 1.1754944e-38, %v648
    %v650 = vsel %vm647, %v649, %v645
    %v651 = vmul.f32 1.0, %v650
    %v652 = vrcp.pop %v574
    %v653 = vmul.f32 %v574, %v652
    %v654 = vsub.f32 1.0, %v653
    %v655 = vmul.f32 %v652, %v654
    %v656 = vadd.f32 %v652, %v655
    %vm657 = vweird.f32 %v574
    %vm658 = vweird.f32 %v652
    %vm659 = vmor %vm657, %vm658
    %v660 = vsel %vm659, %v652, %v656
    %v661 = vand.u32 2147483647, %v574
    %vm662 = vcmp.eq.f32.partialorder %v661, 8.507059e+37
    %v663 = vand.u32 %v574, 2147483648
    %v664 = vor.u32 1.1754944e-38, %v663
    %v665 = vsel %vm662, %v664, %v660
    %v666 = vmul.f32 1.0, %v665
    %v667 = vrcp.pop %v575
    %v668 = vmul.f32 %v575, %v667
    %v669 = vsub.f32 1.0, %v668
    %v670 = vmul.f32 %v667, %v669
    %v671 = vadd.f32 %v667, %v670
    %vm672 = vweird.f32 %v575
    %vm673 = vweird.f32 %v667
    %vm674 = vmor %vm672, %vm673
    %v675 = vsel %vm674, %v667, %v671
    %v676 = vand.u32 2147483647, %v575
    %vm677 = vcmp.eq.f32.partialorder %v676, 8.507059e+37
    %v678 = vand.u32 %v575, 2147483648
    %v679 = vor.u32 1.1754944e-38, %v678
    %v680 = vsel %vm677, %v679, %v675
    %v681 = vmul.f32 1.0, %v680
    %v682 = vrcp.pop %v576
    %v683 = vmul.f32 %v576, %v682
    %v684 = vsub.f32 1.0, %v683
    %v685 = vmul.f32 %v682, %v684
    %v686 = vadd.f32 %v682, %v685
    %vm687 = vweird.f32 %v576
    %vm688 = vweird.f32 %v682
    %vm689 = vmor %vm687, %vm688
    %v690 = vsel %vm689, %v682, %v686
    %v691 = vand.u32 2147483647, %v576
    %vm692 = vcmp.eq.f32.partialorder %v691, 8.507059e+37
    %v693 = vand.u32 %v576, 2147483648
    %v694 = vor.u32 1.1754944e-38, %v693
    %v695 = vsel %vm692, %v694, %v690
    %v696 = vmul.f32 1.0, %v695
    %v697 = vxor.u32 %v514, 2147483648
    %v698 = vxor.u32 %v518, 2147483648
    %v699 = vxor.u32 %v522, 2147483648
    %v700 = vxor.u32 %v526, 2147483648
    %v701 = vxor.u32 %v530, 2147483648
    %v702 = vxor.u32 %v534, 2147483648
    %v703 = vxor.u32 %v538, 2147483648
    %v704 = vxor.u32 %v542, 2147483648
    %v705 = vmul.f32 %v697, 1.442695
    %v706 = vpow.pop %v705
    %v707 = vmul.f32 %v698, 1.442695
    %v708 = vpow.pop %v707
    %v709 = vmul.f32 %v699, 1.442695
    %v710 = vpow.pop %v709
    %v711 = vmul.f32 %v700, 1.442695
    %v712 = vpow.pop %v711
    %v713 = vmul.f32 %v701, 1.442695
    %v714 = vpow.pop %v713
    %v715 = vmul.f32 %v702, 1.442695
    %v716 = vpow.pop %v715
    %v717 = vmul.f32 %v703, 1.442695
    %v718 = vpow.pop %v717
    %v719 = vmul.f32 %v704, 1.442695
    %v720 = vpow.pop %v719
    %v721 = vadd.f32 %v706, 1.0
    %v722 = vadd.f32 %v708, 1.0
    %v723 = vadd.f32 %v710, 1.0
    %v724 = vadd.f32 %v712, 1.0
    %v725 = vadd.f32 %v714, 1.0
    %v726 = vadd.f32 %v716, 1.0
    %v727 = vadd.f32 %v718, 1.0
    %v728 = vadd.f32 %v720, 1.0
    %v729 = vrcp.pop %v721
    %v730 = vmul.f32 %v721, %v729
    %v731 = vsub.f32 1.0, %v730
    %v732 = vmul.f32 %v729, %v731
    %v733 = vadd.f32 %v729, %v732
    %vm734 = vweird.f32 %v721
    %vm735 = vweird.f32 %v729
    %vm736 = vmor %vm734, %vm735
    %v737 = vsel %vm736, %v729, %v733
    %v738 = vand.u32 2147483647, %v721
    %vm739 = vcmp.eq.f32.partialorder %v738, 8.507059e+37
    %v740 = vand.u32 %v721, 2147483648
    %v741 = vor.u32 1.1754944e-38, %v740
    %v742 = vsel %vm739, %v741, %v737
    %v743 = vmul.f32 1.0, %v742
    %v744 = vrcp.pop %v722
    %v745 = vmul.f32 %v722, %v744
    %v746 = vsub.f32 1.0, %v745
    %v747 = vmul.f32 %v744, %v746
    %v748 = vadd.f32 %v744, %v747
    %vm749 = vweird.f32 %v722
    %vm750 = vweird.f32 %v744
    %vm751 = vmor %vm749, %vm750
    %v752 = vsel %vm751, %v744, %v748
    %v753 = vand.u32 2147483647, %v722
    %vm754 = vcmp.eq.f32.partialorder %v753, 8.507059e+37
    %v755 = vand.u32 %v722, 2147483648
    %v756 = vor.u32 1.1754944e-38, %v755
    %v757 = vsel %vm754, %v756, %v752
    %v758 = vmul.f32 1.0, %v757
    %v759 = vrcp.pop %v723
    %v760 = vmul.f32 %v723, %v759
    %v761 = vsub.f32 1.0, %v760
    %v762 = vmul.f32 %v759, %v761
    %v763 = vadd.f32 %v759, %v762
    %vm764 = vweird.f32 %v723
    %vm765 = vweird.f32 %v759
    %vm766 = vmor %vm764, %vm765
    %v767 = vsel %vm766, %v759, %v763
    %v768 = vand.u32 2147483647, %v723
    %vm769 = vcmp.eq.f32.partialorder %v768, 8.507059e+37
    %v770 = vand.u32 %v723, 2147483648
    %v771 = vor.u32 1.1754944e-38, %v770
    %v772 = vsel %vm769, %v771, %v767
    %v773 = vmul.f32 1.0, %v772
    %v774 = vrcp.pop %v724
    %v775 = vmul.f32 %v724, %v774
    %v776 = vsub.f32 1.0, %v775
    %v777 = vmul.f32 %v774, %v776
    %v778 = vadd.f32 %v774, %v777
    %vm779 = vweird.f32 %v724
    %vm780 = vweird.f32 %v774
    %vm781 = vmor %vm779, %vm780
    %v782 = vsel %vm781, %v774, %v778
    %v783 = vand.u32 2147483647, %v724
    %vm784 = vcmp.eq.f32.partialorder %v783, 8.507059e+37
    %v785 = vand.u32 %v724, 2147483648
    %v786 = vor.u32 1.1754944e-38, %v785
    %v787 = vsel %vm784, %v786, %v782
    %v788 = vmul.f32 1.0, %v787
    %v789 = vrcp.pop %v725
    %v790 = vmul.f32 %v725, %v789
    %v791 = vsub.f32 1.0, %v790
    %v792 = vmul.f32 %v789, %v791
    %v793 = vadd.f32 %v789, %v792
    %vm794 = vweird.f32 %v725
    %vm795 = vweird.f32 %v789
    %vm796 = vmor %vm794, %vm795
    %v797 = vsel %vm796, %v789, %v793
    %v798 = vand.u32 2147483647, %v725
    %vm799 = vcmp.eq.f32.partialorder %v798, 8.507059e+37
    %v800 = vand.u32 %v725, 2147483648
    %v801 = vor.u32 1.1754944e-38, %v800
    %v802 = vsel %vm799, %v801, %v797
    %v803 = vmul.f32 1.0, %v802
    %v804 = vrcp.pop %v726
    %v805 = vmul.f32 %v726, %v804
    %v806 = vsub.f32 1.0, %v805
    %v807 = vmul.f32 %v804, %v806
    %v808 = vadd.f32 %v804, %v807
    %vm809 = vweird.f32 %v726
    %vm810 = vweird.f32 %v804
    %vm811 = vmor %vm809, %vm810
    %v812 = vsel %vm811, %v804, %v808
    %v813 = vand.u32 2147483647, %v726
    %vm814 = vcmp.eq.f32.partialorder %v813, 8.507059e+37
    %v815 = vand.u32 %v726, 2147483648
    %v816 = vor.u32 1.1754944e-38, %v815
    %v817 = vsel %vm814, %v816, %v812
    %v818 = vmul.f32 1.0, %v817
    %v819 = vrcp.pop %v727
    %v820 = vmul.f32 %v727, %v819
    %v821 = vsub.f32 1.0, %v820
    %v822 = vmul.f32 %v819, %v821
    %v823 = vadd.f32 %v819, %v822
    %vm824 = vweird.f32 %v727
    %vm825 = vweird.f32 %v819
    %vm826 = vmor %vm824, %vm825
    %v827 = vsel %vm826, %v819, %v823
    %v828 = vand.u32 2147483647, %v727
    %vm829 = vcmp.eq.f32.partialorder %v828, 8.507059e+37
    %v830 = vand.u32 %v727, 2147483648
    %v831 = vor.u32 1.1754944e-38, %v830
    %v832 = vsel %vm829, %v831, %v827
    %v833 = vmul.f32 1.0, %v832
    %v834 = vrcp.pop %v728
    %v835 = vmul.f32 %v728, %v834
    %v836 = vsub.f32 1.0, %v835
    %v837 = vmul.f32 %v834, %v836
    %v838 = vadd.f32 %v834, %v837
    %vm839 = vweird.f32 %v728
    %vm840 = vweird.f32 %v834
    %vm841 = vmor %vm839, %vm840
    %v842 = vsel %vm841, %v834, %v838
    %v843 = vand.u32 2147483647, %v728
    %vm844 = vcmp.eq.f32.partialorder %v843, 8.507059e+37
    %v845 = vand.u32 %v728, 2147483648
    %v846 = vor.u32 1.1754944e-38, %v845
    %v847 = vsel %vm844, %v846, %v842
    %v848 = vmul.f32 1.0, %v847
    %v849 = vtanh.pop %v515
    %v850 = vtanh.pop %v519
    %v851 = vtanh.pop %v523
    %v852 = vtanh.pop %v527
    %v853 = vtanh.pop %v531
    %v854 = vtanh.pop %v535
    %v855 = vtanh.pop %v539
    %v856 = vtanh.pop %v543
    %v857 = vxor.u32 %v516, 2147483648
    %v858 = vxor.u32 %v520, 2147483648
    %v859 = vxor.u32 %v524, 2147483648
    %v860 = vxor.u32 %v528, 2147483648
    %v861 = vxor.u32 %v532, 2147483648
    %v862 = vxor.u32 %v536, 2147483648
    %v863 = vxor.u32 %v540, 2147483648
    %v864 = vxor.u32 %v544, 2147483648
    %v865 = vmul.f32 %v857, 1.442695
    %v866 = vpow.pop %v865
    %v867 = vmul.f32 %v858, 1.442695
    %v868 = vpow.pop %v867
    %v869 = vmul.f32 %v859, 1.442695
    %v870 = vpow.pop %v869
    %v871 = vmul.f32 %v860, 1.442695
    %v872 = vpow.pop %v871
    %v873 = vmul.f32 %v861, 1.442695
    %v874 = vpow.pop %v873
    %v875 = vmul.f32 %v862, 1.442695
    %v876 = vpow.pop %v875
    %v877 = vmul.f32 %v863, 1.442695
    %v878 = vpow.pop %v877
    %v879 = vmul.f32 %v864, 1.442695
    %v880 = vpow.pop %v879
    %v881 = vadd.f32 %v866, 1.0
    %v882 = vadd.f32 %v868, 1.0
    %v883 = vadd.f32 %v870, 1.0
    %v884 = vadd.f32 %v872, 1.0
    %v885 = vadd.f32 %v874, 1.0
    %v886 = vadd.f32 %v876, 1.0
    %v887 = vadd.f32 %v878, 1.0
    %v888 = vadd.f32 %v880, 1.0
    %v889 = vrcp.pop %v881
    %v890 = vmul.f32 %v881, %v889
    %v891 = vsub.f32 1.0, %v890
    %v892 = vmul.f32 %v889, %v891
    %v893 = vadd.f32 %v889, %v892
    %vm894 = vweird.f32 %v881
    %vm895 = vweird.f32 %v889
    %vm896 = vmor %vm894, %vm895
    %v897 = vsel %vm896, %v889, %v893
    %v898 = vand.u32 2147483647, %v881
    %vm899 = vcmp.eq.f32.partialorder %v898, 8.507059e+37
    %v900 = vand.u32 %v881, 2147483648
    %v901 = vor.u32 1.1754944e-38, %v900
    %v902 = vsel %vm899, %v901, %v897
    %v903 = vmul.f32 1.0, %v902
    %v904 = vrcp.pop %v882
    %v905 = vmul.f32 %v882, %v904
    %v906 = vsub.f32 1.0, %v905
    %v907 = vmul.f32 %v904, %v906
    %v908 = vadd.f32 %v904, %v907
    %vm909 = vweird.f32 %v882
    %vm910 = vweird.f32 %v904
    %vm911 = vmor %vm909, %vm910
    %v912 = vsel %vm911, %v904, %v908
    %v913 = vand.u32 2147483647, %v882
    %vm914 = vcmp.eq.f32.partialorder %v913, 8.507059e+37
    %v915 = vand.u32 %v882, 2147483648
    %v916 = vor.u32 1.1754944e-38, %v915
    %v917 = vsel %vm914, %v916, %v912
    %v918 = vmul.f32 1.0, %v917
    %v919 = vrcp.pop %v883
    %v920 = vmul.f32 %v883, %v919
    %v921 = vsub.f32 1.0, %v920
    %v922 = vmul.f32 %v919, %v921
    %v923 = vadd.f32 %v919, %v922
    %vm924 = vweird.f32 %v883
    %vm925 = vweird.f32 %v919
    %vm926 = vmor %vm924, %vm925
    %v927 = vsel %vm926, %v919, %v923
    %v928 = vand.u32 2147483647, %v883
    %vm929 = vcmp.eq.f32.partialorder %v928, 8.507059e+37
    %v930 = vand.u32 %v883, 2147483648
    %v931 = vor.u32 1.1754944e-38, %v930
    %v932 = vsel %vm929, %v931, %v927
    %v933 = vmul.f32 1.0, %v932
    %v934 = vrcp.pop %v884
    %v935 = vmul.f32 %v884, %v934
    %v936 = vsub.f32 1.0, %v935
    %v937 = vmul.f32 %v934, %v936
    %v938 = vadd.f32 %v934, %v937
    %vm939 = vweird.f32 %v884
    %vm940 = vweird.f32 %v934
    %vm941 = vmor %vm939, %vm940
    %v942 = vsel %vm941, %v934, %v938
    %v943 = vand.u32 2147483647, %v884
    %vm944 = vcmp.eq.f32.partialorder %v943, 8.507059e+37
    %v945 = vand.u32 %v884, 2147483648
    %v946 = vor.u32 1.1754944e-38, %v945
    %v947 = vsel %vm944, %v946, %v942
    %v948 = vmul.f32 1.0, %v947
    %v949 = vrcp.pop %v885
    %v950 = vmul.f32 %v885, %v949
    %v951 = vsub.f32 1.0, %v950
    %v952 = vmul.f32 %v949, %v951
    %v953 = vadd.f32 %v949, %v952
    %vm954 = vweird.f32 %v885
    %vm955 = vweird.f32 %v949
    %vm956 = vmor %vm954, %vm955
    %v957 = vsel %vm956, %v949, %v953
    %v958 = vand.u32 2147483647, %v885
    %vm959 = vcmp.eq.f32.partialorder %v958, 8.507059e+37
    %v960 = vand.u32 %v885, 2147483648
    %v961 = vor.u32 1.1754944e-38, %v960
    %v962 = vsel %vm959, %v961, %v957
    %v963 = vmul.f32 1.0, %v962
    %v964 = vrcp.pop %v886
    %v965 = vmul.f32 %v886, %v964
    %v966 = vsub.f32 1.0, %v965
    %v967 = vmul.f32 %v964, %v966
    %v968 = vadd.f32 %v964, %v967
    %vm969 = vweird.f32 %v886
    %vm970 = vweird.f32 %v964
    %vm971 = vmor %vm969, %vm970
    %v972 = vsel %vm971, %v964, %v968
    %v973 = vand.u32 2147483647, %v886
    %vm974 = vcmp.eq.f32.partialorder %v973, 8.507059e+37
    %v975 = vand.u32 %v886, 2147483648
    %v976 = vor.u32 1.1754944e-38, %v975
    %v977 = vsel %vm974, %v976, %v972
    %v978 = vmul.f32 1.0, %v977
    %v979 = vrcp.pop %v887
    %v980 = vmul.f32 %v887, %v979
    %v981 = vsub.f32 1.0, %v980
    %v982 = vmul.f32 %v979, %v981
    %v983 = vadd.f32 %v979, %v982
    %vm984 = vweird.f32 %v887
    %vm985 = vweird.f32 %v979
    %vm986 = vmor %vm984, %vm985
    %v987 = vsel %vm986, %v979, %v983
    %v988 = vand.u32 2147483647, %v887
    %vm989 = vcmp.eq.f32.partialorder %v988, 8.507059e+37
    %v990 = vand.u32 %v887, 2147483648
    %v991 = vor.u32 1.1754944e-38, %v990
    %v992 = vsel %vm989, %v991, %v987
    %v993 = vmul.f32 1.0, %v992
    %v994 = vrcp.pop %v888
    %v995 = vmul.f32 %v888, %v994
    %v996 = vsub.f32 1.0, %v995
    %v997 = vmul.f32 %v994, %v996
    %v998 = vadd.f32 %v994, %v997
    %vm999 = vweird.f32 %v888
    %vm1000 = vweird.f32 %v994
    %vm1001 = vmor %vm999, %vm1000
    %v1002 = vsel %vm1001, %v994, %v998
    %v1003 = vand.u32 2147483647, %v888
    %vm1004 = vcmp.eq.f32.partialorder %v1003, 8.507059e+37
    %v1005 = vand.u32 %v888, 2147483648
    %v1006 = vor.u32 1.1754944e-38, %v1005
    %v1007 = vsel %vm1004, %v1006, %v1002
    %v1008 = vmul.f32 1.0, %v1007
    %v1010 = vrot.slane %v304, 1
    %v1011 = vrot.slane %v304, 2
    %v1012 = vrot.slane %v304, 3
    %v1013 = vrot.slane %v304, 4
    %v1014 = vrot.slane %v304, 5
    %v1015 = vrot.slane %v304, 6
    %v1016 = vrot.slane %v304, 7
    %v1025 = vmul.f32 %v743, %v304
    %v1026 = vmul.f32 %v758, %v1010
    %v1027 = vmul.f32 %v773, %v1011
    %v1028 = vmul.f32 %v788, %v1012
    %v1029 = vmul.f32 %v803, %v1013
    %v1030 = vmul.f32 %v818, %v1014
    %v1031 = vmul.f32 %v833, %v1015
    %v1032 = vmul.f32 %v848, %v1016
    %v1033 = vmul.f32 %v591, %v849
    %v1034 = vmul.f32 %v606, %v850
    %v1035 = vmul.f32 %v621, %v851
    %v1036 = vmul.f32 %v636, %v852
    %v1037 = vmul.f32 %v651, %v853
    %v1038 = vmul.f32 %v666, %v854
    %v1039 = vmul.f32 %v681, %v855
    %v1040 = vmul.f32 %v696, %v856
    %v1041 = vadd.f32 %v1025, %v1033
    %v1042 = vadd.f32 %v1026, %v1034
    %v1043 = vadd.f32 %v1027, %v1035
    %v1044 = vadd.f32 %v1028, %v1036
    %v1045 = vadd.f32 %v1029, %v1037
    %v1046 = vadd.f32 %v1030, %v1038
    %v1047 = vadd.f32 %v1031, %v1039
    %v1048 = vadd.f32 %v1032, %v1040
    %v1049 = vtanh.pop %v1041
    %v1050 = vtanh.pop %v1042
    %v1051 = vtanh.pop %v1043
    %v1052 = vtanh.pop %v1044
    %v1053 = vtanh.pop %v1045
    %v1054 = vtanh.pop %v1046
    %v1055 = vtanh.pop %v1047
    %v1056 = vtanh.pop %v1048
    %v1057 = vmul.f32 %v903, %v1049
    %v1058 = vmul.f32 %v918, %v1050
    %v1059 = vmul.f32 %v933, %v1051
    %v1060 = vmul.f32 %v948, %v1052
    %v1061 = vmul.f32 %v963, %v1053
    %v1062 = vmul.f32 %v978, %v1054
    %v1063 = vmul.f32 %v993, %v1055
    %v1064 = vmul.f32 %v1008, %v1056
    %v1073 = vrot.slane %v1058, 7
    %vm1074 = vcmask 1041409
    %v1075 = vsel %vm1074, %v1073, %v1057
    %v1076 = vrot.slane %v1059, 6
    %vm1077 = vcmask 1042434
    %v1078 = vsel %vm1077, %v1076, %v1075
    %v1079 = vrot.slane %v1060, 5
    %vm1080 = vcmask 1043459
    %v1081 = vsel %vm1080, %v1079, %v1078
    %v1082 = vrot.slane %v1061, 4
    %vm1083 = vcmask 1044484
    %v1084 = vsel %vm1083, %v1082, %v1081
    %v1085 = vrot.slane %v1062, 3
    %vm1086 = vcmask 1045509
    %v1087 = vsel %vm1086, %v1085, %v1084
    %v1088 = vrot.slane %v1063, 2
    %vm1089 = vcmask 1046534
    %v1090 = vsel %vm1089, %v1088, %v1087
    %v1091 = vrot.slane %v1064, 1
    %vm1092 = vcmask 1047559
    %v1093 = vsel %vm1092, %v1091, %v1090
    %1095 = vmatpush.msra.mxu0 %v365
    %1096 = vmatpush.msra.mxu0 %v361
    %1097 = vmatpush.msra.mxu0 %v357
    %1098 = vmatpush.msra.mxu0 %v353
    %1099 = vmatpush.msra.mxu0 %v349
    %1100 = vmatpush.msra.mxu0 %v345
    %1101 = vmatpush.msra.mxu0 %v341
    %1102 = vmatpush.msra.mxu0 %v337
    %1103 = vmatpush.msra.mxu0 %v333
    %1104 = vmatpush.msra.mxu0 %v329
    %1105 = vmatpush.msra.mxu0 %v325
    %1106 = vmatpush.msra.mxu0 %v321
    %1107 = vmatpush.msra.mxu0 %v317
    %1108 = vmatpush.msra.mxu0 %v313
    %1109 = vmatpush.msra.mxu0 %v309
    %1110 = vmatpush.msra.mxu0 %v305
    %1111 = vmatmul.f32.gmra.mxu0 %v1093
    %v1112 = vpop.f32.mrf.mxu0
    %v1113 = vadd.f32 0.0, %v1112
    %1114 = vdwg.mxu0
    %1115 = vmatpush.msra.mxu0 %v366
    %1116 = vmatpush.msra.mxu0 %v362
    %1117 = vmatpush.msra.mxu0 %v358
    %1118 = vmatpush.msra.mxu0 %v354
    %1119 = vmatpush.msra.mxu0 %v350
    %1120 = vmatpush.msra.mxu0 %v346
    %1121 = vmatpush.msra.mxu0 %v342
    %1122 = vmatpush.msra.mxu0 %v338
    %1123 = vmatpush.msra.mxu0 %v334
    %1124 = vmatpush.msra.mxu0 %v330
    %1125 = vmatpush.msra.mxu0 %v326
    %1126 = vmatpush.msra.mxu0 %v322
    %1127 = vmatpush.msra.mxu0 %v318
    %1128 = vmatpush.msra.mxu0 %v314
    %1129 = vmatpush.msra.mxu0 %v310
    %1130 = vmatpush.msra.mxu0 %v306
    %1131 = vmatmul.f32.gmra.mxu0 %v1093
    %v1132 = vpop.f32.mrf.mxu0
    %v1133 = vadd.f32 0.0, %v1132
    %1134 = vdwg.mxu0
    %1135 = vmatpush.msra.mxu0 %v367
    %1136 = vmatpush.msra.mxu0 %v363
    %1137 = vmatpush.msra.mxu0 %v359
    %1138 = vmatpush.msra.mxu0 %v355
    %1139 = vmatpush.msra.mxu0 %v351
    %1140 = vmatpush.msra.mxu0 %v347
    %1141 = vmatpush.msra.mxu0 %v343
    %1142 = vmatpush.msra.mxu0 %v339
    %1143 = vmatpush.msra.mxu0 %v335
    %1144 = vmatpush.msra.mxu0 %v331
    %1145 = vmatpush.msra.mxu0 %v327
    %1146 = vmatpush.msra.mxu0 %v323
    %1147 = vmatpush.msra.mxu0 %v319
    %1148 = vmatpush.msra.mxu0 %v315
    %1149 = vmatpush.msra.mxu0 %v311
    %1150 = vmatpush.msra.mxu0 %v307
    %1151 = vmatmul.f32.gmra.mxu0 %v1093
    %v1152 = vpop.f32.mrf.mxu0
    %v1153 = vadd.f32 0.0, %v1152
    %1154 = vdwg.mxu0
    %1155 = vmatpush.msra.mxu0 %v368
    %1156 = vmatpush.msra.mxu0 %v364
    %1157 = vmatpush.msra.mxu0 %v360
    %1158 = vmatpush.msra.mxu0 %v356
    %1159 = vmatpush.msra.mxu0 %v352
    %1160 = vmatpush.msra.mxu0 %v348
    %1161 = vmatpush.msra.mxu0 %v344
    %1162 = vmatpush.msra.mxu0 %v340
    %1163 = vmatpush.msra.mxu0 %v336
    %1164 = vmatpush.msra.mxu0 %v332
    %1165 = vmatpush.msra.mxu0 %v328
    %1166 = vmatpush.msra.mxu0 %v324
    %1167 = vmatpush.msra.mxu0 %v320
    %1168 = vmatpush.msra.mxu0 %v316
    %1169 = vmatpush.msra.mxu0 %v312
    %1170 = vmatpush.msra.mxu0 %v308
    %1171 = vmatmul.f32.gmra.mxu0 %v1093
    %v1172 = vpop.f32.mrf.mxu0
    %v1173 = vadd.f32 0.0, %v1172
    %1174 = vdwg.mxu0
    %v1179 = vrot.slane %v1113, 7
    %v1180 = vrot.slane %v1133, 7
    %v1181 = vrot.slane %v1153, 7
    %v1182 = vrot.slane %v1173, 7
    %v1183 = vrot.slane %v1113, 1
    %v1184 = vrot.slane %v1133, 1
    %v1185 = vrot.slane %v1153, 1
    %v1186 = vrot.slane %v1173, 1
    %v1187 = vrot.slane %v1113, 2
    %v1188 = vrot.slane %v1133, 2
    %v1189 = vrot.slane %v1153, 2
    %v1190 = vrot.slane %v1173, 2
    %v1191 = vrot.slane %v1113, 3
    %v1192 = vrot.slane %v1133, 3
    %v1193 = vrot.slane %v1153, 3
    %v1194 = vrot.slane %v1173, 3
    %v1195 = vrot.slane %v1113, 4
    %v1196 = vrot.slane %v1133, 4
    %v1197 = vrot.slane %v1153, 4
    %v1198 = vrot.slane %v1173, 4
    %v1199 = vrot.slane %v1113, 5
    %v1200 = vrot.slane %v1133, 5
    %v1201 = vrot.slane %v1153, 5
    %v1202 = vrot.slane %v1173, 5
    %v1203 = vrot.slane %v1113, 6
    %v1204 = vrot.slane %v1133, 6
    %v1205 = vrot.slane %v1153, 6
    %v1206 = vrot.slane %v1173, 6
    %v1239 = vadd.f32 %v157, %v1179
    %v1240 = vadd.f32 %v198, %v1180
    %v1241 = vadd.f32 %v239, %v1181
    %v1242 = vadd.f32 %v280, %v1182
    %v1243 = vadd.f32 %v160, %v1113
    %v1244 = vadd.f32 %v201, %v1133
    %v1245 = vadd.f32 %v242, %v1153
    %v1246 = vadd.f32 %v283, %v1173
    %v1247 = vadd.f32 %v163, %v1183
    %v1248 = vadd.f32 %v204, %v1184
    %v1249 = vadd.f32 %v245, %v1185
    %v1250 = vadd.f32 %v286, %v1186
    %v1251 = vadd.f32 %v166, %v1187
    %v1252 = vadd.f32 %v207, %v1188
    %v1253 = vadd.f32 %v248, %v1189
    %v1254 = vadd.f32 %v289, %v1190
    %v1255 = vadd.f32 %v169, %v1191
    %v1256 = vadd.f32 %v210, %v1192
    %v1257 = vadd.f32 %v251, %v1193
    %v1258 = vadd.f32 %v292, %v1194
    %v1259 = vadd.f32 %v172, %v1195
    %v1260 = vadd.f32 %v213, %v1196
    %v1261 = vadd.f32 %v254, %v1197
    %v1262 = vadd.f32 %v295, %v1198
    %v1263 = vadd.f32 %v175, %v1199
    %v1264 = vadd.f32 %v216, %v1200
    %v1265 = vadd.f32 %v257, %v1201
    %v1266 = vadd.f32 %v298, %v1202
    %v1267 = vadd.f32 %v178, %v1203
    %v1268 = vadd.f32 %v219, %v1204
    %v1269 = vadd.f32 %v260, %v1205
    %v1270 = vadd.f32 %v301, %v1206
    %v1271 = vxor.u32 %v1239, 2147483648
    %v1272 = vxor.u32 %v1243, 2147483648
    %v1273 = vxor.u32 %v1247, 2147483648
    %v1274 = vxor.u32 %v1251, 2147483648
    %v1275 = vxor.u32 %v1255, 2147483648
    %v1276 = vxor.u32 %v1259, 2147483648
    %v1277 = vxor.u32 %v1263, 2147483648
    %v1278 = vxor.u32 %v1267, 2147483648
    %v1279 = vmul.f32 %v1271, 1.442695
    %v1280 = vpow.pop %v1279
    %v1281 = vmul.f32 %v1272, 1.442695
    %v1282 = vpow.pop %v1281
    %v1283 = vmul.f32 %v1273, 1.442695
    %v1284 = vpow.pop %v1283
    %v1285 = vmul.f32 %v1274, 1.442695
    %v1286 = vpow.pop %v1285
    %v1287 = vmul.f32 %v1275, 1.442695
    %v1288 = vpow.pop %v1287
    %v1289 = vmul.f32 %v1276, 1.442695
    %v1290 = vpow.pop %v1289
    %v1291 = vmul.f32 %v1277, 1.442695
    %v1292 = vpow.pop %v1291
    %v1293 = vmul.f32 %v1278, 1.442695
    %v1294 = vpow.pop %v1293
    %v1295 = vadd.f32 %v1280, 1.0
    %v1296 = vadd.f32 %v1282, 1.0
    %v1297 = vadd.f32 %v1284, 1.0
    %v1298 = vadd.f32 %v1286, 1.0
    %v1299 = vadd.f32 %v1288, 1.0
    %v1300 = vadd.f32 %v1290, 1.0
    %v1301 = vadd.f32 %v1292, 1.0
    %v1302 = vadd.f32 %v1294, 1.0
    %v1303 = vrcp.pop %v1295
    %v1304 = vmul.f32 %v1295, %v1303
    %v1305 = vsub.f32 1.0, %v1304
    %v1306 = vmul.f32 %v1303, %v1305
    %v1307 = vadd.f32 %v1303, %v1306
    %vm1308 = vweird.f32 %v1295
    %vm1309 = vweird.f32 %v1303
    %vm1310 = vmor %vm1308, %vm1309
    %v1311 = vsel %vm1310, %v1303, %v1307
    %v1312 = vand.u32 2147483647, %v1295
    %vm1313 = vcmp.eq.f32.partialorder %v1312, 8.507059e+37
    %v1314 = vand.u32 %v1295, 2147483648
    %v1315 = vor.u32 1.1754944e-38, %v1314
    %v1316 = vsel %vm1313, %v1315, %v1311
    %v1317 = vmul.f32 1.0, %v1316
    %v1318 = vrcp.pop %v1296
    %v1319 = vmul.f32 %v1296, %v1318
    %v1320 = vsub.f32 1.0, %v1319
    %v1321 = vmul.f32 %v1318, %v1320
    %v1322 = vadd.f32 %v1318, %v1321
    %vm1323 = vweird.f32 %v1296
    %vm1324 = vweird.f32 %v1318
    %vm1325 = vmor %vm1323, %vm1324
    %v1326 = vsel %vm1325, %v1318, %v1322
    %v1327 = vand.u32 2147483647, %v1296
    %vm1328 = vcmp.eq.f32.partialorder %v1327, 8.507059e+37
    %v1329 = vand.u32 %v1296, 2147483648
    %v1330 = vor.u32 1.1754944e-38, %v1329
    %v1331 = vsel %vm1328, %v1330, %v1326
    %v1332 = vmul.f32 1.0, %v1331
    %v1333 = vrcp.pop %v1297
    %v1334 = vmul.f32 %v1297, %v1333
    %v1335 = vsub.f32 1.0, %v1334
    %v1336 = vmul.f32 %v1333, %v1335
    %v1337 = vadd.f32 %v1333, %v1336
    %vm1338 = vweird.f32 %v1297
    %vm1339 = vweird.f32 %v1333
    %vm1340 = vmor %vm1338, %vm1339
    %v1341 = vsel %vm1340, %v1333, %v1337
    %v1342 = vand.u32 2147483647, %v1297
    %vm1343 = vcmp.eq.f32.partialorder %v1342, 8.507059e+37
    %v1344 = vand.u32 %v1297, 2147483648
    %v1345 = vor.u32 1.1754944e-38, %v1344
    %v1346 = vsel %vm1343, %v1345, %v1341
    %v1347 = vmul.f32 1.0, %v1346
    %v1348 = vrcp.pop %v1298
    %v1349 = vmul.f32 %v1298, %v1348
    %v1350 = vsub.f32 1.0, %v1349
    %v1351 = vmul.f32 %v1348, %v1350
    %v1352 = vadd.f32 %v1348, %v1351
    %vm1353 = vweird.f32 %v1298
    %vm1354 = vweird.f32 %v1348
    %vm1355 = vmor %vm1353, %vm1354
    %v1356 = vsel %vm1355, %v1348, %v1352
    %v1357 = vand.u32 2147483647, %v1298
    %vm1358 = vcmp.eq.f32.partialorder %v1357, 8.507059e+37
    %v1359 = vand.u32 %v1298, 2147483648
    %v1360 = vor.u32 1.1754944e-38, %v1359
    %v1361 = vsel %vm1358, %v1360, %v1356
    %v1362 = vmul.f32 1.0, %v1361
    %v1363 = vrcp.pop %v1299
    %v1364 = vmul.f32 %v1299, %v1363
    %v1365 = vsub.f32 1.0, %v1364
    %v1366 = vmul.f32 %v1363, %v1365
    %v1367 = vadd.f32 %v1363, %v1366
    %vm1368 = vweird.f32 %v1299
    %vm1369 = vweird.f32 %v1363
    %vm1370 = vmor %vm1368, %vm1369
    %v1371 = vsel %vm1370, %v1363, %v1367
    %v1372 = vand.u32 2147483647, %v1299
    %vm1373 = vcmp.eq.f32.partialorder %v1372, 8.507059e+37
    %v1374 = vand.u32 %v1299, 2147483648
    %v1375 = vor.u32 1.1754944e-38, %v1374
    %v1376 = vsel %vm1373, %v1375, %v1371
    %v1377 = vmul.f32 1.0, %v1376
    %v1378 = vrcp.pop %v1300
    %v1379 = vmul.f32 %v1300, %v1378
    %v1380 = vsub.f32 1.0, %v1379
    %v1381 = vmul.f32 %v1378, %v1380
    %v1382 = vadd.f32 %v1378, %v1381
    %vm1383 = vweird.f32 %v1300
    %vm1384 = vweird.f32 %v1378
    %vm1385 = vmor %vm1383, %vm1384
    %v1386 = vsel %vm1385, %v1378, %v1382
    %v1387 = vand.u32 2147483647, %v1300
    %vm1388 = vcmp.eq.f32.partialorder %v1387, 8.507059e+37
    %v1389 = vand.u32 %v1300, 2147483648
    %v1390 = vor.u32 1.1754944e-38, %v1389
    %v1391 = vsel %vm1388, %v1390, %v1386
    %v1392 = vmul.f32 1.0, %v1391
    %v1393 = vrcp.pop %v1301
    %v1394 = vmul.f32 %v1301, %v1393
    %v1395 = vsub.f32 1.0, %v1394
    %v1396 = vmul.f32 %v1393, %v1395
    %v1397 = vadd.f32 %v1393, %v1396
    %vm1398 = vweird.f32 %v1301
    %vm1399 = vweird.f32 %v1393
    %vm1400 = vmor %vm1398, %vm1399
    %v1401 = vsel %vm1400, %v1393, %v1397
    %v1402 = vand.u32 2147483647, %v1301
    %vm1403 = vcmp.eq.f32.partialorder %v1402, 8.507059e+37
    %v1404 = vand.u32 %v1301, 2147483648
    %v1405 = vor.u32 1.1754944e-38, %v1404
    %v1406 = vsel %vm1403, %v1405, %v1401
    %v1407 = vmul.f32 1.0, %v1406
    %v1408 = vrcp.pop %v1302
    %v1409 = vmul.f32 %v1302, %v1408
    %v1410 = vsub.f32 1.0, %v1409
    %v1411 = vmul.f32 %v1408, %v1410
    %v1412 = vadd.f32 %v1408, %v1411
    %vm1413 = vweird.f32 %v1302
    %vm1414 = vweird.f32 %v1408
    %vm1415 = vmor %vm1413, %vm1414
    %v1416 = vsel %vm1415, %v1408, %v1412
    %v1417 = vand.u32 2147483647, %v1302
    %vm1418 = vcmp.eq.f32.partialorder %v1417, 8.507059e+37
    %v1419 = vand.u32 %v1302, 2147483648
    %v1420 = vor.u32 1.1754944e-38, %v1419
    %v1421 = vsel %vm1418, %v1420, %v1416
    %v1422 = vmul.f32 1.0, %v1421
    %v1423 = vxor.u32 %v1240, 2147483648
    %v1424 = vxor.u32 %v1244, 2147483648
    %v1425 = vxor.u32 %v1248, 2147483648
    %v1426 = vxor.u32 %v1252, 2147483648
    %v1427 = vxor.u32 %v1256, 2147483648
    %v1428 = vxor.u32 %v1260, 2147483648
    %v1429 = vxor.u32 %v1264, 2147483648
    %v1430 = vxor.u32 %v1268, 2147483648
    %v1431 = vmul.f32 %v1423, 1.442695
    %v1432 = vpow.pop %v1431
    %v1433 = vmul.f32 %v1424, 1.442695
    %v1434 = vpow.pop %v1433
    %v1435 = vmul.f32 %v1425, 1.442695
    %v1436 = vpow.pop %v1435
    %v1437 = vmul.f32 %v1426, 1.442695
    %v1438 = vpow.pop %v1437
    %v1439 = vmul.f32 %v1427, 1.442695
    %v1440 = vpow.pop %v1439
    %v1441 = vmul.f32 %v1428, 1.442695
    %v1442 = vpow.pop %v1441
    %v1443 = vmul.f32 %v1429, 1.442695
    %v1444 = vpow.pop %v1443
    %v1445 = vmul.f32 %v1430, 1.442695
    %v1446 = vpow.pop %v1445
    %v1447 = vadd.f32 %v1432, 1.0
    %v1448 = vadd.f32 %v1434, 1.0
    %v1449 = vadd.f32 %v1436, 1.0
    %v1450 = vadd.f32 %v1438, 1.0
    %v1451 = vadd.f32 %v1440, 1.0
    %v1452 = vadd.f32 %v1442, 1.0
    %v1453 = vadd.f32 %v1444, 1.0
    %v1454 = vadd.f32 %v1446, 1.0
    %v1455 = vrcp.pop %v1447
    %v1456 = vmul.f32 %v1447, %v1455
    %v1457 = vsub.f32 1.0, %v1456
    %v1458 = vmul.f32 %v1455, %v1457
    %v1459 = vadd.f32 %v1455, %v1458
    %vm1460 = vweird.f32 %v1447
    %vm1461 = vweird.f32 %v1455
    %vm1462 = vmor %vm1460, %vm1461
    %v1463 = vsel %vm1462, %v1455, %v1459
    %v1464 = vand.u32 2147483647, %v1447
    %vm1465 = vcmp.eq.f32.partialorder %v1464, 8.507059e+37
    %v1466 = vand.u32 %v1447, 2147483648
    %v1467 = vor.u32 1.1754944e-38, %v1466
    %v1468 = vsel %vm1465, %v1467, %v1463
    %v1469 = vmul.f32 1.0, %v1468
    %v1470 = vrcp.pop %v1448
    %v1471 = vmul.f32 %v1448, %v1470
    %v1472 = vsub.f32 1.0, %v1471
    %v1473 = vmul.f32 %v1470, %v1472
    %v1474 = vadd.f32 %v1470, %v1473
    %vm1475 = vweird.f32 %v1448
    %vm1476 = vweird.f32 %v1470
    %vm1477 = vmor %vm1475, %vm1476
    %v1478 = vsel %vm1477, %v1470, %v1474
    %v1479 = vand.u32 2147483647, %v1448
    %vm1480 = vcmp.eq.f32.partialorder %v1479, 8.507059e+37
    %v1481 = vand.u32 %v1448, 2147483648
    %v1482 = vor.u32 1.1754944e-38, %v1481
    %v1483 = vsel %vm1480, %v1482, %v1478
    %v1484 = vmul.f32 1.0, %v1483
    %v1485 = vrcp.pop %v1449
    %v1486 = vmul.f32 %v1449, %v1485
    %v1487 = vsub.f32 1.0, %v1486
    %v1488 = vmul.f32 %v1485, %v1487
    %v1489 = vadd.f32 %v1485, %v1488
    %vm1490 = vweird.f32 %v1449
    %vm1491 = vweird.f32 %v1485
    %vm1492 = vmor %vm1490, %vm1491
    %v1493 = vsel %vm1492, %v1485, %v1489
    %v1494 = vand.u32 2147483647, %v1449
    %vm1495 = vcmp.eq.f32.partialorder %v1494, 8.507059e+37
    %v1496 = vand.u32 %v1449, 2147483648
    %v1497 = vor.u32 1.1754944e-38, %v1496
    %v1498 = vsel %vm1495, %v1497, %v1493
    %v1499 = vmul.f32 1.0, %v1498
    %v1500 = vrcp.pop %v1450
    %v1501 = vmul.f32 %v1450, %v1500
    %v1502 = vsub.f32 1.0, %v1501
    %v1503 = vmul.f32 %v1500, %v1502
    %v1504 = vadd.f32 %v1500, %v1503
    %vm1505 = vweird.f32 %v1450
    %vm1506 = vweird.f32 %v1500
    %vm1507 = vmor %vm1505, %vm1506
    %v1508 = vsel %vm1507, %v1500, %v1504
    %v1509 = vand.u32 2147483647, %v1450
    %vm1510 = vcmp.eq.f32.partialorder %v1509, 8.507059e+37
    %v1511 = vand.u32 %v1450, 2147483648
    %v1512 = vor.u32 1.1754944e-38, %v1511
    %v1513 = vsel %vm1510, %v1512, %v1508
    %v1514 = vmul.f32 1.0, %v1513
    %v1515 = vrcp.pop %v1451
    %v1516 = vmul.f32 %v1451, %v1515
    %v1517 = vsub.f32 1.0, %v1516
    %v1518 = vmul.f32 %v1515, %v1517
    %v1519 = vadd.f32 %v1515, %v1518
    %vm1520 = vweird.f32 %v1451
    %vm1521 = vweird.f32 %v1515
    %vm1522 = vmor %vm1520, %vm1521
    %v1523 = vsel %vm1522, %v1515, %v1519
    %v1524 = vand.u32 2147483647, %v1451
    %vm1525 = vcmp.eq.f32.partialorder %v1524, 8.507059e+37
    %v1526 = vand.u32 %v1451, 2147483648
    %v1527 = vor.u32 1.1754944e-38, %v1526
    %v1528 = vsel %vm1525, %v1527, %v1523
    %v1529 = vmul.f32 1.0, %v1528
    %v1530 = vrcp.pop %v1452
    %v1531 = vmul.f32 %v1452, %v1530
    %v1532 = vsub.f32 1.0, %v1531
    %v1533 = vmul.f32 %v1530, %v1532
    %v1534 = vadd.f32 %v1530, %v1533
    %vm1535 = vweird.f32 %v1452
    %vm1536 = vweird.f32 %v1530
    %vm1537 = vmor %vm1535, %vm1536
    %v1538 = vsel %vm1537, %v1530, %v1534
    %v1539 = vand.u32 2147483647, %v1452
    %vm1540 = vcmp.eq.f32.partialorder %v1539, 8.507059e+37
    %v1541 = vand.u32 %v1452, 2147483648
    %v1542 = vor.u32 1.1754944e-38, %v1541
    %v1543 = vsel %vm1540, %v1542, %v1538
    %v1544 = vmul.f32 1.0, %v1543
    %v1545 = vrcp.pop %v1453
    %v1546 = vmul.f32 %v1453, %v1545
    %v1547 = vsub.f32 1.0, %v1546
    %v1548 = vmul.f32 %v1545, %v1547
    %v1549 = vadd.f32 %v1545, %v1548
    %vm1550 = vweird.f32 %v1453
    %vm1551 = vweird.f32 %v1545
    %vm1552 = vmor %vm1550, %vm1551
    %v1553 = vsel %vm1552, %v1545, %v1549
    %v1554 = vand.u32 2147483647, %v1453
    %vm1555 = vcmp.eq.f32.partialorder %v1554, 8.507059e+37
    %v1556 = vand.u32 %v1453, 2147483648
    %v1557 = vor.u32 1.1754944e-38, %v1556
    %v1558 = vsel %vm1555, %v1557, %v1553
    %v1559 = vmul.f32 1.0, %v1558
    %v1560 = vrcp.pop %v1454
    %v1561 = vmul.f32 %v1454, %v1560
    %v1562 = vsub.f32 1.0, %v1561
    %v1563 = vmul.f32 %v1560, %v1562
    %v1564 = vadd.f32 %v1560, %v1563
    %vm1565 = vweird.f32 %v1454
    %vm1566 = vweird.f32 %v1560
    %vm1567 = vmor %vm1565, %vm1566
    %v1568 = vsel %vm1567, %v1560, %v1564
    %v1569 = vand.u32 2147483647, %v1454
    %vm1570 = vcmp.eq.f32.partialorder %v1569, 8.507059e+37
    %v1571 = vand.u32 %v1454, 2147483648
    %v1572 = vor.u32 1.1754944e-38, %v1571
    %v1573 = vsel %vm1570, %v1572, %v1568
    %v1574 = vmul.f32 1.0, %v1573
    %v1575 = vtanh.pop %v1241
    %v1576 = vtanh.pop %v1245
    %v1577 = vtanh.pop %v1249
    %v1578 = vtanh.pop %v1253
    %v1579 = vtanh.pop %v1257
    %v1580 = vtanh.pop %v1261
    %v1581 = vtanh.pop %v1265
    %v1582 = vtanh.pop %v1269
    %v1583 = vxor.u32 %v1242, 2147483648
    %v1584 = vxor.u32 %v1246, 2147483648
    %v1585 = vxor.u32 %v1250, 2147483648
    %v1586 = vxor.u32 %v1254, 2147483648
    %v1587 = vxor.u32 %v1258, 2147483648
    %v1588 = vxor.u32 %v1262, 2147483648
    %v1589 = vxor.u32 %v1266, 2147483648
    %v1590 = vxor.u32 %v1270, 2147483648
    %v1591 = vmul.f32 %v1583, 1.442695
    %v1592 = vpow.pop %v1591
    %v1593 = vmul.f32 %v1584, 1.442695
    %v1594 = vpow.pop %v1593
    %v1595 = vmul.f32 %v1585, 1.442695
    %v1596 = vpow.pop %v1595
    %v1597 = vmul.f32 %v1586, 1.442695
    %v1598 = vpow.pop %v1597
    %v1599 = vmul.f32 %v1587, 1.442695
    %v1600 = vpow.pop %v1599
    %v1601 = vmul.f32 %v1588, 1.442695
    %v1602 = vpow.pop %v1601
    %v1603 = vmul.f32 %v1589, 1.442695
    %v1604 = vpow.pop %v1603
    %v1605 = vmul.f32 %v1590, 1.442695
    %v1606 = vpow.pop %v1605
    %v1607 = vadd.f32 %v1592, 1.0
    %v1608 = vadd.f32 %v1594, 1.0
    %v1609 = vadd.f32 %v1596, 1.0
    %v1610 = vadd.f32 %v1598, 1.0
    %v1611 = vadd.f32 %v1600, 1.0
    %v1612 = vadd.f32 %v1602, 1.0
    %v1613 = vadd.f32 %v1604, 1.0
    %v1614 = vadd.f32 %v1606, 1.0
    %v1615 = vrcp.pop %v1607
    %v1616 = vmul.f32 %v1607, %v1615
    %v1617 = vsub.f32 1.0, %v1616
    %v1618 = vmul.f32 %v1615, %v1617
    %v1619 = vadd.f32 %v1615, %v1618
    %vm1620 = vweird.f32 %v1607
    %vm1621 = vweird.f32 %v1615
    %vm1622 = vmor %vm1620, %vm1621
    %v1623 = vsel %vm1622, %v1615, %v1619
    %v1624 = vand.u32 2147483647, %v1607
    %vm1625 = vcmp.eq.f32.partialorder %v1624, 8.507059e+37
    %v1626 = vand.u32 %v1607, 2147483648
    %v1627 = vor.u32 1.1754944e-38, %v1626
    %v1628 = vsel %vm1625, %v1627, %v1623
    %v1629 = vmul.f32 1.0, %v1628
    %v1630 = vrcp.pop %v1608
    %v1631 = vmul.f32 %v1608, %v1630
    %v1632 = vsub.f32 1.0, %v1631
    %v1633 = vmul.f32 %v1630, %v1632
    %v1634 = vadd.f32 %v1630, %v1633
    %vm1635 = vweird.f32 %v1608
    %vm1636 = vweird.f32 %v1630
    %vm1637 = vmor %vm1635, %vm1636
    %v1638 = vsel %vm1637, %v1630, %v1634
    %v1639 = vand.u32 2147483647, %v1608
    %vm1640 = vcmp.eq.f32.partialorder %v1639, 8.507059e+37
    %v1641 = vand.u32 %v1608, 2147483648
    %v1642 = vor.u32 1.1754944e-38, %v1641
    %v1643 = vsel %vm1640, %v1642, %v1638
    %v1644 = vmul.f32 1.0, %v1643
    %v1645 = vrcp.pop %v1609
    %v1646 = vmul.f32 %v1609, %v1645
    %v1647 = vsub.f32 1.0, %v1646
    %v1648 = vmul.f32 %v1645, %v1647
    %v1649 = vadd.f32 %v1645, %v1648
    %vm1650 = vweird.f32 %v1609
    %vm1651 = vweird.f32 %v1645
    %vm1652 = vmor %vm1650, %vm1651
    %v1653 = vsel %vm1652, %v1645, %v1649
    %v1654 = vand.u32 2147483647, %v1609
    %vm1655 = vcmp.eq.f32.partialorder %v1654, 8.507059e+37
    %v1656 = vand.u32 %v1609, 2147483648
    %v1657 = vor.u32 1.1754944e-38, %v1656
    %v1658 = vsel %vm1655, %v1657, %v1653
    %v1659 = vmul.f32 1.0, %v1658
    %v1660 = vrcp.pop %v1610
    %v1661 = vmul.f32 %v1610, %v1660
    %v1662 = vsub.f32 1.0, %v1661
    %v1663 = vmul.f32 %v1660, %v1662
    %v1664 = vadd.f32 %v1660, %v1663
    %vm1665 = vweird.f32 %v1610
    %vm1666 = vweird.f32 %v1660
    %vm1667 = vmor %vm1665, %vm1666
    %v1668 = vsel %vm1667, %v1660, %v1664
    %v1669 = vand.u32 2147483647, %v1610
    %vm1670 = vcmp.eq.f32.partialorder %v1669, 8.507059e+37
    %v1671 = vand.u32 %v1610, 2147483648
    %v1672 = vor.u32 1.1754944e-38, %v1671
    %v1673 = vsel %vm1670, %v1672, %v1668
    %v1674 = vmul.f32 1.0, %v1673
    %v1675 = vrcp.pop %v1611
    %v1676 = vmul.f32 %v1611, %v1675
    %v1677 = vsub.f32 1.0, %v1676
    %v1678 = vmul.f32 %v1675, %v1677
    %v1679 = vadd.f32 %v1675, %v1678
    %vm1680 = vweird.f32 %v1611
    %vm1681 = vweird.f32 %v1675
    %vm1682 = vmor %vm1680, %vm1681
    %v1683 = vsel %vm1682, %v1675, %v1679
    %v1684 = vand.u32 2147483647, %v1611
    %vm1685 = vcmp.eq.f32.partialorder %v1684, 8.507059e+37
    %v1686 = vand.u32 %v1611, 2147483648
    %v1687 = vor.u32 1.1754944e-38, %v1686
    %v1688 = vsel %vm1685, %v1687, %v1683
    %v1689 = vmul.f32 1.0, %v1688
    %v1690 = vrcp.pop %v1612
    %v1691 = vmul.f32 %v1612, %v1690
    %v1692 = vsub.f32 1.0, %v1691
    %v1693 = vmul.f32 %v1690, %v1692
    %v1694 = vadd.f32 %v1690, %v1693
    %vm1695 = vweird.f32 %v1612
    %vm1696 = vweird.f32 %v1690
    %vm1697 = vmor %vm1695, %vm1696
    %v1698 = vsel %vm1697, %v1690, %v1694
    %v1699 = vand.u32 2147483647, %v1612
    %vm1700 = vcmp.eq.f32.partialorder %v1699, 8.507059e+37
    %v1701 = vand.u32 %v1612, 2147483648
    %v1702 = vor.u32 1.1754944e-38, %v1701
    %v1703 = vsel %vm1700, %v1702, %v1698
    %v1704 = vmul.f32 1.0, %v1703
    %v1705 = vrcp.pop %v1613
    %v1706 = vmul.f32 %v1613, %v1705
    %v1707 = vsub.f32 1.0, %v1706
    %v1708 = vmul.f32 %v1705, %v1707
    %v1709 = vadd.f32 %v1705, %v1708
    %vm1710 = vweird.f32 %v1613
    %vm1711 = vweird.f32 %v1705
    %vm1712 = vmor %vm1710, %vm1711
    %v1713 = vsel %vm1712, %v1705, %v1709
    %v1714 = vand.u32 2147483647, %v1613
    %vm1715 = vcmp.eq.f32.partialorder %v1714, 8.507059e+37
    %v1716 = vand.u32 %v1613, 2147483648
    %v1717 = vor.u32 1.1754944e-38, %v1716
    %v1718 = vsel %vm1715, %v1717, %v1713
    %v1719 = vmul.f32 1.0, %v1718
    %v1720 = vrcp.pop %v1614
    %v1721 = vmul.f32 %v1614, %v1720
    %v1722 = vsub.f32 1.0, %v1721
    %v1723 = vmul.f32 %v1720, %v1722
    %v1724 = vadd.f32 %v1720, %v1723
    %vm1725 = vweird.f32 %v1614
    %vm1726 = vweird.f32 %v1720
    %vm1727 = vmor %vm1725, %vm1726
    %v1728 = vsel %vm1727, %v1720, %v1724
    %v1729 = vand.u32 2147483647, %v1614
    %vm1730 = vcmp.eq.f32.partialorder %v1729, 8.507059e+37
    %v1731 = vand.u32 %v1614, 2147483648
    %v1732 = vor.u32 1.1754944e-38, %v1731
    %v1733 = vsel %vm1730, %v1732, %v1728
    %v1734 = vmul.f32 1.0, %v1733
    %v1743 = vrot.slane %v1041, 7
    %v1744 = vrot.slane %v1042, 7
    %v1745 = vrot.slane %v1043, 7
    %v1746 = vrot.slane %v1044, 7
    %v1747 = vrot.slane %v1045, 7
    %v1748 = vrot.slane %v1046, 7
    %v1749 = vrot.slane %v1047, 7
    %v1750 = vrot.slane %v1048, 7
    %v1759 = vmul.f32 %v1469, %v1743
    %v1760 = vmul.f32 %v1484, %v1744
    %v1761 = vmul.f32 %v1499, %v1745
    %v1762 = vmul.f32 %v1514, %v1746
    %v1763 = vmul.f32 %v1529, %v1747
    %v1764 = vmul.f32 %v1544, %v1748
    %v1765 = vmul.f32 %v1559, %v1749
    %v1766 = vmul.f32 %v1574, %v1750
    %v1767 = vmul.f32 %v1317, %v1575
    %v1768 = vmul.f32 %v1332, %v1576
    %v1769 = vmul.f32 %v1347, %v1577
    %v1770 = vmul.f32 %v1362, %v1578
    %v1771 = vmul.f32 %v1377, %v1579
    %v1772 = vmul.f32 %v1392, %v1580
    %v1773 = vmul.f32 %v1407, %v1581
    %v1774 = vmul.f32 %v1422, %v1582
    %v1775 = vadd.f32 %v1759, %v1767
    %v1776 = vadd.f32 %v1760, %v1768
    %v1777 = vadd.f32 %v1761, %v1769
    %v1778 = vadd.f32 %v1762, %v1770
    %v1779 = vadd.f32 %v1763, %v1771
    %v1780 = vadd.f32 %v1764, %v1772
    %v1781 = vadd.f32 %v1765, %v1773
    %v1782 = vadd.f32 %v1766, %v1774
    %v1783 = vtanh.pop %v1775
    %v1784 = vtanh.pop %v1776
    %v1785 = vtanh.pop %v1777
    %v1786 = vtanh.pop %v1778
    %v1787 = vtanh.pop %v1779
    %v1788 = vtanh.pop %v1780
    %v1789 = vtanh.pop %v1781
    %v1790 = vtanh.pop %v1782
    %v1791 = vmul.f32 %v1629, %v1783
    %v1792 = vmul.f32 %v1644, %v1784
    %v1793 = vmul.f32 %v1659, %v1785
    %v1794 = vmul.f32 %v1674, %v1786
    %v1795 = vmul.f32 %v1689, %v1787
    %v1796 = vmul.f32 %v1704, %v1788
    %v1797 = vmul.f32 %v1719, %v1789
    %v1798 = vmul.f32 %v1734, %v1790
    %v1807 = vrot.slane %v1791, 1
    %v1808 = vsel %vm1074, %v1792, %v1807
    %v1809 = vrot.slane %v1793, 7
    %v1810 = vsel %vm1077, %v1809, %v1808
    %v1811 = vrot.slane %v1794, 6
    %v1812 = vsel %vm1080, %v1811, %v1810
    %v1813 = vrot.slane %v1795, 5
    %v1814 = vsel %vm1083, %v1813, %v1812
    %v1815 = vrot.slane %v1796, 4
    %v1816 = vsel %vm1086, %v1815, %v1814
    %v1817 = vrot.slane %v1797, 3
    %v1818 = vsel %vm1089, %v1817, %v1816
    %v1819 = vrot.slane %v1798, 2
    %v1820 = vsel %vm1092, %v1819, %v1818
    %1822 = vmatpush.msra.mxu0 %v365
    %1823 = vmatpush.msra.mxu0 %v361
    %1824 = vmatpush.msra.mxu0 %v357
    %1825 = vmatpush.msra.mxu0 %v353
    %1826 = vmatpush.msra.mxu0 %v349
    %1827 = vmatpush.msra.mxu0 %v345
    %1828 = vmatpush.msra.mxu0 %v341
    %1829 = vmatpush.msra.mxu0 %v337
    %1830 = vmatpush.msra.mxu0 %v333
    %1831 = vmatpush.msra.mxu0 %v329
    %1832 = vmatpush.msra.mxu0 %v325
    %1833 = vmatpush.msra.mxu0 %v321
    %1834 = vmatpush.msra.mxu0 %v317
    %1835 = vmatpush.msra.mxu0 %v313
    %1836 = vmatpush.msra.mxu0 %v309
    %1837 = vmatpush.msra.mxu0 %v305
    %1838 = vmatmul.f32.gmra.mxu0 %v1820
    %v1839 = vpop.f32.mrf.mxu0
    %v1840 = vadd.f32 0.0, %v1839
    %1841 = vdwg.mxu0
    %1842 = vmatpush.msra.mxu0 %v366
    %1843 = vmatpush.msra.mxu0 %v362
    %1844 = vmatpush.msra.mxu0 %v358
    %1845 = vmatpush.msra.mxu0 %v354
    %1846 = vmatpush.msra.mxu0 %v350
    %1847 = vmatpush.msra.mxu0 %v346
    %1848 = vmatpush.msra.mxu0 %v342
    %1849 = vmatpush.msra.mxu0 %v338
    %1850 = vmatpush.msra.mxu0 %v334
    %1851 = vmatpush.msra.mxu0 %v330
    %1852 = vmatpush.msra.mxu0 %v326
    %1853 = vmatpush.msra.mxu0 %v322
    %1854 = vmatpush.msra.mxu0 %v318
    %1855 = vmatpush.msra.mxu0 %v314
    %1856 = vmatpush.msra.mxu0 %v310
    %1857 = vmatpush.msra.mxu0 %v306
    %1858 = vmatmul.f32.gmra.mxu0 %v1820
    %v1859 = vpop.f32.mrf.mxu0
    %v1860 = vadd.f32 0.0, %v1859
    %1861 = vdwg.mxu0
    %1862 = vmatpush.msra.mxu0 %v367
    %1863 = vmatpush.msra.mxu0 %v363
    %1864 = vmatpush.msra.mxu0 %v359
    %1865 = vmatpush.msra.mxu0 %v355
    %1866 = vmatpush.msra.mxu0 %v351
    %1867 = vmatpush.msra.mxu0 %v347
    %1868 = vmatpush.msra.mxu0 %v343
    %1869 = vmatpush.msra.mxu0 %v339
    %1870 = vmatpush.msra.mxu0 %v335
    %1871 = vmatpush.msra.mxu0 %v331
    %1872 = vmatpush.msra.mxu0 %v327
    %1873 = vmatpush.msra.mxu0 %v323
    %1874 = vmatpush.msra.mxu0 %v319
    %1875 = vmatpush.msra.mxu0 %v315
    %1876 = vmatpush.msra.mxu0 %v311
    %1877 = vmatpush.msra.mxu0 %v307
    %1878 = vmatmul.f32.gmra.mxu0 %v1820
    %v1879 = vpop.f32.mrf.mxu0
    %v1880 = vadd.f32 0.0, %v1879
    %1881 = vdwg.mxu0
    %1882 = vmatpush.msra.mxu0 %v368
    %1883 = vmatpush.msra.mxu0 %v364
    %1884 = vmatpush.msra.mxu0 %v360
    %1885 = vmatpush.msra.mxu0 %v356
    %1886 = vmatpush.msra.mxu0 %v352
    %1887 = vmatpush.msra.mxu0 %v348
    %1888 = vmatpush.msra.mxu0 %v344
    %1889 = vmatpush.msra.mxu0 %v340
    %1890 = vmatpush.msra.mxu0 %v336
    %1891 = vmatpush.msra.mxu0 %v332
    %1892 = vmatpush.msra.mxu0 %v328
    %1893 = vmatpush.msra.mxu0 %v324
    %1894 = vmatpush.msra.mxu0 %v320
    %1895 = vmatpush.msra.mxu0 %v316
    %1896 = vmatpush.msra.mxu0 %v312
    %1897 = vmatpush.msra.mxu0 %v308
    %1898 = vmatmul.f32.gmra.mxu0 %v1820
    %v1899 = vpop.f32.mrf.mxu0
    %v1900 = vadd.f32 0.0, %v1899
    %1901 = vdwg.mxu0
    %v1906 = vrot.slane %v1840, 6
    %v1907 = vrot.slane %v1860, 6
    %v1908 = vrot.slane %v1880, 6
    %v1909 = vrot.slane %v1900, 6
    %v1910 = vrot.slane %v1840, 7
    %v1911 = vrot.slane %v1860, 7
    %v1912 = vrot.slane %v1880, 7
    %v1913 = vrot.slane %v1900, 7
    %v1914 = vrot.slane %v1840, 1
    %v1915 = vrot.slane %v1860, 1
    %v1916 = vrot.slane %v1880, 1
    %v1917 = vrot.slane %v1900, 1
    %v1918 = vrot.slane %v1840, 2
    %v1919 = vrot.slane %v1860, 2
    %v1920 = vrot.slane %v1880, 2
    %v1921 = vrot.slane %v1900, 2
    %v1922 = vrot.slane %v1840, 3
    %v1923 = vrot.slane %v1860, 3
    %v1924 = vrot.slane %v1880, 3
    %v1925 = vrot.slane %v1900, 3
    %v1926 = vrot.slane %v1840, 4
    %v1927 = vrot.slane %v1860, 4
    %v1928 = vrot.slane %v1880, 4
    %v1929 = vrot.slane %v1900, 4
    %v1930 = vrot.slane %v1840, 5
    %v1931 = vrot.slane %v1860, 5
    %v1932 = vrot.slane %v1880, 5
    %v1933 = vrot.slane %v1900, 5
    %v1966 = vadd.f32 %v157, %v1906
    %v1967 = vadd.f32 %v198, %v1907
    %v1968 = vadd.f32 %v239, %v1908
    %v1969 = vadd.f32 %v280, %v1909
    %v1970 = vadd.f32 %v160, %v1910
    %v1971 = vadd.f32 %v201, %v1911
    %v1972 = vadd.f32 %v242, %v1912
    %v1973 = vadd.f32 %v283, %v1913
    %v1974 = vadd.f32 %v163, %v1840
    %v1975 = vadd.f32 %v204, %v1860
    %v1976 = vadd.f32 %v245, %v1880
    %v1977 = vadd.f32 %v286, %v1900
    %v1978 = vadd.f32 %v166, %v1914
    %v1979 = vadd.f32 %v207, %v1915
    %v1980 = vadd.f32 %v248, %v1916
    %v1981 = vadd.f32 %v289, %v1917
    %v1982 = vadd.f32 %v169, %v1918
    %v1983 = vadd.f32 %v210, %v1919
    %v1984 = vadd.f32 %v251, %v1920
    %v1985 = vadd.f32 %v292, %v1921
    %v1986 = vadd.f32 %v172, %v1922
    %v1987 = vadd.f32 %v213, %v1923
    %v1988 = vadd.f32 %v254, %v1924
    %v1989 = vadd.f32 %v295, %v1925
    %v1990 = vadd.f32 %v175, %v1926
    %v1991 = vadd.f32 %v216, %v1927
    %v1992 = vadd.f32 %v257, %v1928
    %v1993 = vadd.f32 %v298, %v1929
    %v1994 = vadd.f32 %v178, %v1930
    %v1995 = vadd.f32 %v219, %v1931
    %v1996 = vadd.f32 %v260, %v1932
    %v1997 = vadd.f32 %v301, %v1933
    %v1998 = vxor.u32 %v1966, 2147483648
    %v1999 = vxor.u32 %v1970, 2147483648
    %v2000 = vxor.u32 %v1974, 2147483648
    %v2001 = vxor.u32 %v1978, 2147483648
    %v2002 = vxor.u32 %v1982, 2147483648
    %v2003 = vxor.u32 %v1986, 2147483648
    %v2004 = vxor.u32 %v1990, 2147483648
    %v2005 = vxor.u32 %v1994, 2147483648
    %v2006 = vmul.f32 %v1998, 1.442695
    %v2007 = vpow.pop %v2006
    %v2008 = vmul.f32 %v1999, 1.442695
    %v2009 = vpow.pop %v2008
    %v2010 = vmul.f32 %v2000, 1.442695
    %v2011 = vpow.pop %v2010
    %v2012 = vmul.f32 %v2001, 1.442695
    %v2013 = vpow.pop %v2012
    %v2014 = vmul.f32 %v2002, 1.442695
    %v2015 = vpow.pop %v2014
    %v2016 = vmul.f32 %v2003, 1.442695
    %v2017 = vpow.pop %v2016
    %v2018 = vmul.f32 %v2004, 1.442695
    %v2019 = vpow.pop %v2018
    %v2020 = vmul.f32 %v2005, 1.442695
    %v2021 = vpow.pop %v2020
    %v2022 = vadd.f32 %v2007, 1.0
    %v2023 = vadd.f32 %v2009, 1.0
    %v2024 = vadd.f32 %v2011, 1.0
    %v2025 = vadd.f32 %v2013, 1.0
    %v2026 = vadd.f32 %v2015, 1.0
    %v2027 = vadd.f32 %v2017, 1.0
    %v2028 = vadd.f32 %v2019, 1.0
    %v2029 = vadd.f32 %v2021, 1.0
    %v2030 = vrcp.pop %v2022
    %v2031 = vmul.f32 %v2022, %v2030
    %v2032 = vsub.f32 1.0, %v2031
    %v2033 = vmul.f32 %v2030, %v2032
    %v2034 = vadd.f32 %v2030, %v2033
    %vm2035 = vweird.f32 %v2022
    %vm2036 = vweird.f32 %v2030
    %vm2037 = vmor %vm2035, %vm2036
    %v2038 = vsel %vm2037, %v2030, %v2034
    %v2039 = vand.u32 2147483647, %v2022
    %vm2040 = vcmp.eq.f32.partialorder %v2039, 8.507059e+37
    %v2041 = vand.u32 %v2022, 2147483648
    %v2042 = vor.u32 1.1754944e-38, %v2041
    %v2043 = vsel %vm2040, %v2042, %v2038
    %v2044 = vmul.f32 1.0, %v2043
    %v2045 = vrcp.pop %v2023
    %v2046 = vmul.f32 %v2023, %v2045
    %v2047 = vsub.f32 1.0, %v2046
    %v2048 = vmul.f32 %v2045, %v2047
    %v2049 = vadd.f32 %v2045, %v2048
    %vm2050 = vweird.f32 %v2023
    %vm2051 = vweird.f32 %v2045
    %vm2052 = vmor %vm2050, %vm2051
    %v2053 = vsel %vm2052, %v2045, %v2049
    %v2054 = vand.u32 2147483647, %v2023
    %vm2055 = vcmp.eq.f32.partialorder %v2054, 8.507059e+37
    %v2056 = vand.u32 %v2023, 2147483648
    %v2057 = vor.u32 1.1754944e-38, %v2056
    %v2058 = vsel %vm2055, %v2057, %v2053
    %v2059 = vmul.f32 1.0, %v2058
    %v2060 = vrcp.pop %v2024
    %v2061 = vmul.f32 %v2024, %v2060
    %v2062 = vsub.f32 1.0, %v2061
    %v2063 = vmul.f32 %v2060, %v2062
    %v2064 = vadd.f32 %v2060, %v2063
    %vm2065 = vweird.f32 %v2024
    %vm2066 = vweird.f32 %v2060
    %vm2067 = vmor %vm2065, %vm2066
    %v2068 = vsel %vm2067, %v2060, %v2064
    %v2069 = vand.u32 2147483647, %v2024
    %vm2070 = vcmp.eq.f32.partialorder %v2069, 8.507059e+37
    %v2071 = vand.u32 %v2024, 2147483648
    %v2072 = vor.u32 1.1754944e-38, %v2071
    %v2073 = vsel %vm2070, %v2072, %v2068
    %v2074 = vmul.f32 1.0, %v2073
    %v2075 = vrcp.pop %v2025
    %v2076 = vmul.f32 %v2025, %v2075
    %v2077 = vsub.f32 1.0, %v2076
    %v2078 = vmul.f32 %v2075, %v2077
    %v2079 = vadd.f32 %v2075, %v2078
    %vm2080 = vweird.f32 %v2025
    %vm2081 = vweird.f32 %v2075
    %vm2082 = vmor %vm2080, %vm2081
    %v2083 = vsel %vm2082, %v2075, %v2079
    %v2084 = vand.u32 2147483647, %v2025
    %vm2085 = vcmp.eq.f32.partialorder %v2084, 8.507059e+37
    %v2086 = vand.u32 %v2025, 2147483648
    %v2087 = vor.u32 1.1754944e-38, %v2086
    %v2088 = vsel %vm2085, %v2087, %v2083
    %v2089 = vmul.f32 1.0, %v2088
    %v2090 = vrcp.pop %v2026
    %v2091 = vmul.f32 %v2026, %v2090
    %v2092 = vsub.f32 1.0, %v2091
    %v2093 = vmul.f32 %v2090, %v2092
    %v2094 = vadd.f32 %v2090, %v2093
    %vm2095 = vweird.f32 %v2026
    %vm2096 = vweird.f32 %v2090
    %vm2097 = vmor %vm2095, %vm2096
    %v2098 = vsel %vm2097, %v2090, %v2094
    %v2099 = vand.u32 2147483647, %v2026
    %vm2100 = vcmp.eq.f32.partialorder %v2099, 8.507059e+37
    %v2101 = vand.u32 %v2026, 2147483648
    %v2102 = vor.u32 1.1754944e-38, %v2101
    %v2103 = vsel %vm2100, %v2102, %v2098
    %v2104 = vmul.f32 1.0, %v2103
    %v2105 = vrcp.pop %v2027
    %v2106 = vmul.f32 %v2027, %v2105
    %v2107 = vsub.f32 1.0, %v2106
    %v2108 = vmul.f32 %v2105, %v2107
    %v2109 = vadd.f32 %v2105, %v2108
    %vm2110 = vweird.f32 %v2027
    %vm2111 = vweird.f32 %v2105
    %vm2112 = vmor %vm2110, %vm2111
    %v2113 = vsel %vm2112, %v2105, %v2109
    %v2114 = vand.u32 2147483647, %v2027
    %vm2115 = vcmp.eq.f32.partialorder %v2114, 8.507059e+37
    %v2116 = vand.u32 %v2027, 2147483648
    %v2117 = vor.u32 1.1754944e-38, %v2116
    %v2118 = vsel %vm2115, %v2117, %v2113
    %v2119 = vmul.f32 1.0, %v2118
    %v2120 = vrcp.pop %v2028
    %v2121 = vmul.f32 %v2028, %v2120
    %v2122 = vsub.f32 1.0, %v2121
    %v2123 = vmul.f32 %v2120, %v2122
    %v2124 = vadd.f32 %v2120, %v2123
    %vm2125 = vweird.f32 %v2028
    %vm2126 = vweird.f32 %v2120
    %vm2127 = vmor %vm2125, %vm2126
    %v2128 = vsel %vm2127, %v2120, %v2124
    %v2129 = vand.u32 2147483647, %v2028
    %vm2130 = vcmp.eq.f32.partialorder %v2129, 8.507059e+37
    %v2131 = vand.u32 %v2028, 2147483648
    %v2132 = vor.u32 1.1754944e-38, %v2131
    %v2133 = vsel %vm2130, %v2132, %v2128
    %v2134 = vmul.f32 1.0, %v2133
    %v2135 = vrcp.pop %v2029
    %v2136 = vmul.f32 %v2029, %v2135
    %v2137 = vsub.f32 1.0, %v2136
    %v2138 = vmul.f32 %v2135, %v2137
    %v2139 = vadd.f32 %v2135, %v2138
    %vm2140 = vweird.f32 %v2029
    %vm2141 = vweird.f32 %v2135
    %vm2142 = vmor %vm2140, %vm2141
    %v2143 = vsel %vm2142, %v2135, %v2139
    %v2144 = vand.u32 2147483647, %v2029
    %vm2145 = vcmp.eq.f32.partialorder %v2144, 8.507059e+37
    %v2146 = vand.u32 %v2029, 2147483648
    %v2147 = vor.u32 1.1754944e-38, %v2146
    %v2148 = vsel %vm2145, %v2147, %v2143
    %v2149 = vmul.f32 1.0, %v2148
    %v2150 = vxor.u32 %v1967, 2147483648
    %v2151 = vxor.u32 %v1971, 2147483648
    %v2152 = vxor.u32 %v1975, 2147483648
    %v2153 = vxor.u32 %v1979, 2147483648
    %v2154 = vxor.u32 %v1983, 2147483648
    %v2155 = vxor.u32 %v1987, 2147483648
    %v2156 = vxor.u32 %v1991, 2147483648
    %v2157 = vxor.u32 %v1995, 2147483648
    %v2158 = vmul.f32 %v2150, 1.442695
    %v2159 = vpow.pop %v2158
    %v2160 = vmul.f32 %v2151, 1.442695
    %v2161 = vpow.pop %v2160
    %v2162 = vmul.f32 %v2152, 1.442695
    %v2163 = vpow.pop %v2162
    %v2164 = vmul.f32 %v2153, 1.442695
    %v2165 = vpow.pop %v2164
    %v2166 = vmul.f32 %v2154, 1.442695
    %v2167 = vpow.pop %v2166
    %v2168 = vmul.f32 %v2155, 1.442695
    %v2169 = vpow.pop %v2168
    %v2170 = vmul.f32 %v2156, 1.442695
    %v2171 = vpow.pop %v2170
    %v2172 = vmul.f32 %v2157, 1.442695
    %v2173 = vpow.pop %v2172
    %v2174 = vadd.f32 %v2159, 1.0
    %v2175 = vadd.f32 %v2161, 1.0
    %v2176 = vadd.f32 %v2163, 1.0
    %v2177 = vadd.f32 %v2165, 1.0
    %v2178 = vadd.f32 %v2167, 1.0
    %v2179 = vadd.f32 %v2169, 1.0
    %v2180 = vadd.f32 %v2171, 1.0
    %v2181 = vadd.f32 %v2173, 1.0
    %v2182 = vrcp.pop %v2174
    %v2183 = vmul.f32 %v2174, %v2182
    %v2184 = vsub.f32 1.0, %v2183
    %v2185 = vmul.f32 %v2182, %v2184
    %v2186 = vadd.f32 %v2182, %v2185
    %vm2187 = vweird.f32 %v2174
    %vm2188 = vweird.f32 %v2182
    %vm2189 = vmor %vm2187, %vm2188
    %v2190 = vsel %vm2189, %v2182, %v2186
    %v2191 = vand.u32 2147483647, %v2174
    %vm2192 = vcmp.eq.f32.partialorder %v2191, 8.507059e+37
    %v2193 = vand.u32 %v2174, 2147483648
    %v2194 = vor.u32 1.1754944e-38, %v2193
    %v2195 = vsel %vm2192, %v2194, %v2190
    %v2196 = vmul.f32 1.0, %v2195
    %v2197 = vrcp.pop %v2175
    %v2198 = vmul.f32 %v2175, %v2197
    %v2199 = vsub.f32 1.0, %v2198
    %v2200 = vmul.f32 %v2197, %v2199
    %v2201 = vadd.f32 %v2197, %v2200
    %vm2202 = vweird.f32 %v2175
    %vm2203 = vweird.f32 %v2197
    %vm2204 = vmor %vm2202, %vm2203
    %v2205 = vsel %vm2204, %v2197, %v2201
    %v2206 = vand.u32 2147483647, %v2175
    %vm2207 = vcmp.eq.f32.partialorder %v2206, 8.507059e+37
    %v2208 = vand.u32 %v2175, 2147483648
    %v2209 = vor.u32 1.1754944e-38, %v2208
    %v2210 = vsel %vm2207, %v2209, %v2205
    %v2211 = vmul.f32 1.0, %v2210
    %v2212 = vrcp.pop %v2176
    %v2213 = vmul.f32 %v2176, %v2212
    %v2214 = vsub.f32 1.0, %v2213
    %v2215 = vmul.f32 %v2212, %v2214
    %v2216 = vadd.f32 %v2212, %v2215
    %vm2217 = vweird.f32 %v2176
    %vm2218 = vweird.f32 %v2212
    %vm2219 = vmor %vm2217, %vm2218
    %v2220 = vsel %vm2219, %v2212, %v2216
    %v2221 = vand.u32 2147483647, %v2176
    %vm2222 = vcmp.eq.f32.partialorder %v2221, 8.507059e+37
    %v2223 = vand.u32 %v2176, 2147483648
    %v2224 = vor.u32 1.1754944e-38, %v2223
    %v2225 = vsel %vm2222, %v2224, %v2220
    %v2226 = vmul.f32 1.0, %v2225
    %v2227 = vrcp.pop %v2177
    %v2228 = vmul.f32 %v2177, %v2227
    %v2229 = vsub.f32 1.0, %v2228
    %v2230 = vmul.f32 %v2227, %v2229
    %v2231 = vadd.f32 %v2227, %v2230
    %vm2232 = vweird.f32 %v2177
    %vm2233 = vweird.f32 %v2227
    %vm2234 = vmor %vm2232, %vm2233
    %v2235 = vsel %vm2234, %v2227, %v2231
    %v2236 = vand.u32 2147483647, %v2177
    %vm2237 = vcmp.eq.f32.partialorder %v2236, 8.507059e+37
    %v2238 = vand.u32 %v2177, 2147483648
    %v2239 = vor.u32 1.1754944e-38, %v2238
    %v2240 = vsel %vm2237, %v2239, %v2235
    %v2241 = vmul.f32 1.0, %v2240
    %v2242 = vrcp.pop %v2178
    %v2243 = vmul.f32 %v2178, %v2242
    %v2244 = vsub.f32 1.0, %v2243
    %v2245 = vmul.f32 %v2242, %v2244
    %v2246 = vadd.f32 %v2242, %v2245
    %vm2247 = vweird.f32 %v2178
    %vm2248 = vweird.f32 %v2242
    %vm2249 = vmor %vm2247, %vm2248
    %v2250 = vsel %vm2249, %v2242, %v2246
    %v2251 = vand.u32 2147483647, %v2178
    %vm2252 = vcmp.eq.f32.partialorder %v2251, 8.507059e+37
    %v2253 = vand.u32 %v2178, 2147483648
    %v2254 = vor.u32 1.1754944e-38, %v2253
    %v2255 = vsel %vm2252, %v2254, %v2250
    %v2256 = vmul.f32 1.0, %v2255
    %v2257 = vrcp.pop %v2179
    %v2258 = vmul.f32 %v2179, %v2257
    %v2259 = vsub.f32 1.0, %v2258
    %v2260 = vmul.f32 %v2257, %v2259
    %v2261 = vadd.f32 %v2257, %v2260
    %vm2262 = vweird.f32 %v2179
    %vm2263 = vweird.f32 %v2257
    %vm2264 = vmor %vm2262, %vm2263
    %v2265 = vsel %vm2264, %v2257, %v2261
    %v2266 = vand.u32 2147483647, %v2179
    %vm2267 = vcmp.eq.f32.partialorder %v2266, 8.507059e+37
    %v2268 = vand.u32 %v2179, 2147483648
    %v2269 = vor.u32 1.1754944e-38, %v2268
    %v2270 = vsel %vm2267, %v2269, %v2265
    %v2271 = vmul.f32 1.0, %v2270
    %v2272 = vrcp.pop %v2180
    %v2273 = vmul.f32 %v2180, %v2272
    %v2274 = vsub.f32 1.0, %v2273
    %v2275 = vmul.f32 %v2272, %v2274
    %v2276 = vadd.f32 %v2272, %v2275
    %vm2277 = vweird.f32 %v2180
    %vm2278 = vweird.f32 %v2272
    %vm2279 = vmor %vm2277, %vm2278
    %v2280 = vsel %vm2279, %v2272, %v2276
    %v2281 = vand.u32 2147483647, %v2180
    %vm2282 = vcmp.eq.f32.partialorder %v2281, 8.507059e+37
    %v2283 = vand.u32 %v2180, 2147483648
    %v2284 = vor.u32 1.1754944e-38, %v2283
    %v2285 = vsel %vm2282, %v2284, %v2280
    %v2286 = vmul.f32 1.0, %v2285
    %v2287 = vrcp.pop %v2181
    %v2288 = vmul.f32 %v2181, %v2287
    %v2289 = vsub.f32 1.0, %v2288
    %v2290 = vmul.f32 %v2287, %v2289
    %v2291 = vadd.f32 %v2287, %v2290
    %vm2292 = vweird.f32 %v2181
    %vm2293 = vweird.f32 %v2287
    %vm2294 = vmor %vm2292, %vm2293
    %v2295 = vsel %vm2294, %v2287, %v2291
    %v2296 = vand.u32 2147483647, %v2181
    %vm2297 = vcmp.eq.f32.partialorder %v2296, 8.507059e+37
    %v2298 = vand.u32 %v2181, 2147483648
    %v2299 = vor.u32 1.1754944e-38, %v2298
    %v2300 = vsel %vm2297, %v2299, %v2295
    %v2301 = vmul.f32 1.0, %v2300
    %v2302 = vtanh.pop %v1968
    %v2303 = vtanh.pop %v1972
    %v2304 = vtanh.pop %v1976
    %v2305 = vtanh.pop %v1980
    %v2306 = vtanh.pop %v1984
    %v2307 = vtanh.pop %v1988
    %v2308 = vtanh.pop %v1992
    %v2309 = vtanh.pop %v1996
    %v2310 = vxor.u32 %v1969, 2147483648
    %v2311 = vxor.u32 %v1973, 2147483648
    %v2312 = vxor.u32 %v1977, 2147483648
    %v2313 = vxor.u32 %v1981, 2147483648
    %v2314 = vxor.u32 %v1985, 2147483648
    %v2315 = vxor.u32 %v1989, 2147483648
    %v2316 = vxor.u32 %v1993, 2147483648
    %v2317 = vxor.u32 %v1997, 2147483648
    %v2318 = vmul.f32 %v2310, 1.442695
    %v2319 = vpow.pop %v2318
    %v2320 = vmul.f32 %v2311, 1.442695
    %v2321 = vpow.pop %v2320
    %v2322 = vmul.f32 %v2312, 1.442695
    %v2323 = vpow.pop %v2322
    %v2324 = vmul.f32 %v2313, 1.442695
    %v2325 = vpow.pop %v2324
    %v2326 = vmul.f32 %v2314, 1.442695
    %v2327 = vpow.pop %v2326
    %v2328 = vmul.f32 %v2315, 1.442695
    %v2329 = vpow.pop %v2328
    %v2330 = vmul.f32 %v2316, 1.442695
    %v2331 = vpow.pop %v2330
    %v2332 = vmul.f32 %v2317, 1.442695
    %v2333 = vpow.pop %v2332
    %v2334 = vadd.f32 %v2319, 1.0
    %v2335 = vadd.f32 %v2321, 1.0
    %v2336 = vadd.f32 %v2323, 1.0
    %v2337 = vadd.f32 %v2325, 1.0
    %v2338 = vadd.f32 %v2327, 1.0
    %v2339 = vadd.f32 %v2329, 1.0
    %v2340 = vadd.f32 %v2331, 1.0
    %v2341 = vadd.f32 %v2333, 1.0
    %v2342 = vrcp.pop %v2334
    %v2343 = vmul.f32 %v2334, %v2342
    %v2344 = vsub.f32 1.0, %v2343
    %v2345 = vmul.f32 %v2342, %v2344
    %v2346 = vadd.f32 %v2342, %v2345
    %vm2347 = vweird.f32 %v2334
    %vm2348 = vweird.f32 %v2342
    %vm2349 = vmor %vm2347, %vm2348
    %v2350 = vsel %vm2349, %v2342, %v2346
    %v2351 = vand.u32 2147483647, %v2334
    %vm2352 = vcmp.eq.f32.partialorder %v2351, 8.507059e+37
    %v2353 = vand.u32 %v2334, 2147483648
    %v2354 = vor.u32 1.1754944e-38, %v2353
    %v2355 = vsel %vm2352, %v2354, %v2350
    %v2356 = vmul.f32 1.0, %v2355
    %v2357 = vrcp.pop %v2335
    %v2358 = vmul.f32 %v2335, %v2357
    %v2359 = vsub.f32 1.0, %v2358
    %v2360 = vmul.f32 %v2357, %v2359
    %v2361 = vadd.f32 %v2357, %v2360
    %vm2362 = vweird.f32 %v2335
    %vm2363 = vweird.f32 %v2357
    %vm2364 = vmor %vm2362, %vm2363
    %v2365 = vsel %vm2364, %v2357, %v2361
    %v2366 = vand.u32 2147483647, %v2335
    %vm2367 = vcmp.eq.f32.partialorder %v2366, 8.507059e+37
    %v2368 = vand.u32 %v2335, 2147483648
    %v2369 = vor.u32 1.1754944e-38, %v2368
    %v2370 = vsel %vm2367, %v2369, %v2365
    %v2371 = vmul.f32 1.0, %v2370
    %v2372 = vrcp.pop %v2336
    %v2373 = vmul.f32 %v2336, %v2372
    %v2374 = vsub.f32 1.0, %v2373
    %v2375 = vmul.f32 %v2372, %v2374
    %v2376 = vadd.f32 %v2372, %v2375
    %vm2377 = vweird.f32 %v2336
    %vm2378 = vweird.f32 %v2372
    %vm2379 = vmor %vm2377, %vm2378
    %v2380 = vsel %vm2379, %v2372, %v2376
    %v2381 = vand.u32 2147483647, %v2336
    %vm2382 = vcmp.eq.f32.partialorder %v2381, 8.507059e+37
    %v2383 = vand.u32 %v2336, 2147483648
    %v2384 = vor.u32 1.1754944e-38, %v2383
    %v2385 = vsel %vm2382, %v2384, %v2380
    %v2386 = vmul.f32 1.0, %v2385
    %v2387 = vrcp.pop %v2337
    %v2388 = vmul.f32 %v2337, %v2387
    %v2389 = vsub.f32 1.0, %v2388
    %v2390 = vmul.f32 %v2387, %v2389
    %v2391 = vadd.f32 %v2387, %v2390
    %vm2392 = vweird.f32 %v2337
    %vm2393 = vweird.f32 %v2387
    %vm2394 = vmor %vm2392, %vm2393
    %v2395 = vsel %vm2394, %v2387, %v2391
    %v2396 = vand.u32 2147483647, %v2337
    %vm2397 = vcmp.eq.f32.partialorder %v2396, 8.507059e+37
    %v2398 = vand.u32 %v2337, 2147483648
    %v2399 = vor.u32 1.1754944e-38, %v2398
    %v2400 = vsel %vm2397, %v2399, %v2395
    %v2401 = vmul.f32 1.0, %v2400
    %v2402 = vrcp.pop %v2338
    %v2403 = vmul.f32 %v2338, %v2402
    %v2404 = vsub.f32 1.0, %v2403
    %v2405 = vmul.f32 %v2402, %v2404
    %v2406 = vadd.f32 %v2402, %v2405
    %vm2407 = vweird.f32 %v2338
    %vm2408 = vweird.f32 %v2402
    %vm2409 = vmor %vm2407, %vm2408
    %v2410 = vsel %vm2409, %v2402, %v2406
    %v2411 = vand.u32 2147483647, %v2338
    %vm2412 = vcmp.eq.f32.partialorder %v2411, 8.507059e+37
    %v2413 = vand.u32 %v2338, 2147483648
    %v2414 = vor.u32 1.1754944e-38, %v2413
    %v2415 = vsel %vm2412, %v2414, %v2410
    %v2416 = vmul.f32 1.0, %v2415
    %v2417 = vrcp.pop %v2339
    %v2418 = vmul.f32 %v2339, %v2417
    %v2419 = vsub.f32 1.0, %v2418
    %v2420 = vmul.f32 %v2417, %v2419
    %v2421 = vadd.f32 %v2417, %v2420
    %vm2422 = vweird.f32 %v2339
    %vm2423 = vweird.f32 %v2417
    %vm2424 = vmor %vm2422, %vm2423
    %v2425 = vsel %vm2424, %v2417, %v2421
    %v2426 = vand.u32 2147483647, %v2339
    %vm2427 = vcmp.eq.f32.partialorder %v2426, 8.507059e+37
    %v2428 = vand.u32 %v2339, 2147483648
    %v2429 = vor.u32 1.1754944e-38, %v2428
    %v2430 = vsel %vm2427, %v2429, %v2425
    %v2431 = vmul.f32 1.0, %v2430
    %v2432 = vrcp.pop %v2340
    %v2433 = vmul.f32 %v2340, %v2432
    %v2434 = vsub.f32 1.0, %v2433
    %v2435 = vmul.f32 %v2432, %v2434
    %v2436 = vadd.f32 %v2432, %v2435
    %vm2437 = vweird.f32 %v2340
    %vm2438 = vweird.f32 %v2432
    %vm2439 = vmor %vm2437, %vm2438
    %v2440 = vsel %vm2439, %v2432, %v2436
    %v2441 = vand.u32 2147483647, %v2340
    %vm2442 = vcmp.eq.f32.partialorder %v2441, 8.507059e+37
    %v2443 = vand.u32 %v2340, 2147483648
    %v2444 = vor.u32 1.1754944e-38, %v2443
    %v2445 = vsel %vm2442, %v2444, %v2440
    %v2446 = vmul.f32 1.0, %v2445
    %v2447 = vrcp.pop %v2341
    %v2448 = vmul.f32 %v2341, %v2447
    %v2449 = vsub.f32 1.0, %v2448
    %v2450 = vmul.f32 %v2447, %v2449
    %v2451 = vadd.f32 %v2447, %v2450
    %vm2452 = vweird.f32 %v2341
    %vm2453 = vweird.f32 %v2447
    %vm2454 = vmor %vm2452, %vm2453
    %v2455 = vsel %vm2454, %v2447, %v2451
    %v2456 = vand.u32 2147483647, %v2341
    %vm2457 = vcmp.eq.f32.partialorder %v2456, 8.507059e+37
    %v2458 = vand.u32 %v2341, 2147483648
    %v2459 = vor.u32 1.1754944e-38, %v2458
    %v2460 = vsel %vm2457, %v2459, %v2455
    %v2461 = vmul.f32 1.0, %v2460
    %v2470 = vrot.slane %v1775, 7
    %v2471 = vrot.slane %v1776, 7
    %v2472 = vrot.slane %v1777, 7
    %v2473 = vrot.slane %v1778, 7
    %v2474 = vrot.slane %v1779, 7
    %v2475 = vrot.slane %v1780, 7
    %v2476 = vrot.slane %v1781, 7
    %v2477 = vrot.slane %v1782, 7
    %v2486 = vmul.f32 %v2196, %v2470
    %v2487 = vmul.f32 %v2211, %v2471
    %v2488 = vmul.f32 %v2226, %v2472
    %v2489 = vmul.f32 %v2241, %v2473
    %v2490 = vmul.f32 %v2256, %v2474
    %v2491 = vmul.f32 %v2271, %v2475
    %v2492 = vmul.f32 %v2286, %v2476
    %v2493 = vmul.f32 %v2301, %v2477
    %v2494 = vmul.f32 %v2044, %v2302
    %v2495 = vmul.f32 %v2059, %v2303
    %v2496 = vmul.f32 %v2074, %v2304
    %v2497 = vmul.f32 %v2089, %v2305
    %v2498 = vmul.f32 %v2104, %v2306
    %v2499 = vmul.f32 %v2119, %v2307
    %v2500 = vmul.f32 %v2134, %v2308
    %v2501 = vmul.f32 %v2149, %v2309
    %v2502 = vadd.f32 %v2486, %v2494
    %v2503 = vadd.f32 %v2487, %v2495
    %v2504 = vadd.f32 %v2488, %v2496
    %v2505 = vadd.f32 %v2489, %v2497
    %v2506 = vadd.f32 %v2490, %v2498
    %v2507 = vadd.f32 %v2491, %v2499
    %v2508 = vadd.f32 %v2492, %v2500
    %v2509 = vadd.f32 %v2493, %v2501
    %v2510 = vtanh.pop %v2502
    %v2511 = vtanh.pop %v2503
    %v2512 = vtanh.pop %v2504
    %v2513 = vtanh.pop %v2505
    %v2514 = vtanh.pop %v2506
    %v2515 = vtanh.pop %v2507
    %v2516 = vtanh.pop %v2508
    %v2517 = vtanh.pop %v2509
    %v2518 = vmul.f32 %v2356, %v2510
    %v2519 = vmul.f32 %v2371, %v2511
    %v2520 = vmul.f32 %v2386, %v2512
    %v2521 = vmul.f32 %v2401, %v2513
    %v2522 = vmul.f32 %v2416, %v2514
    %v2523 = vmul.f32 %v2431, %v2515
    %v2524 = vmul.f32 %v2446, %v2516
    %v2525 = vmul.f32 %v2461, %v2517
    %v2534 = vrot.slane %v2518, 2
    %v2535 = vrot.slane %v2519, 1
    %v2536 = vsel %vm1074, %v2535, %v2534
    %v2537 = vsel %vm1077, %v2520, %v2536
    %v2538 = vrot.slane %v2521, 7
    %v2539 = vsel %vm1080, %v2538, %v2537
    %v2540 = vrot.slane %v2522, 6
    %v2541 = vsel %vm1083, %v2540, %v2539
    %v2542 = vrot.slane %v2523, 5
    %v2543 = vsel %vm1086, %v2542, %v2541
    %v2544 = vrot.slane %v2524, 4
    %v2545 = vsel %vm1089, %v2544, %v2543
    %v2546 = vrot.slane %v2525, 3
    %v2547 = vsel %vm1092, %v2546, %v2545
    %2549 = vmatpush.msra.mxu0 %v365
    %2550 = vmatpush.msra.mxu0 %v361
    %2551 = vmatpush.msra.mxu0 %v357
    %2552 = vmatpush.msra.mxu0 %v353
    %2553 = vmatpush.msra.mxu0 %v349
    %2554 = vmatpush.msra.mxu0 %v345
    %2555 = vmatpush.msra.mxu0 %v341
    %2556 = vmatpush.msra.mxu0 %v337
    %2557 = vmatpush.msra.mxu0 %v333
    %2558 = vmatpush.msra.mxu0 %v329
    %2559 = vmatpush.msra.mxu0 %v325
    %2560 = vmatpush.msra.mxu0 %v321
    %2561 = vmatpush.msra.mxu0 %v317
    %2562 = vmatpush.msra.mxu0 %v313
    %2563 = vmatpush.msra.mxu0 %v309
    %2564 = vmatpush.msra.mxu0 %v305
    %2565 = vmatmul.f32.gmra.mxu0 %v2547
    %v2566 = vpop.f32.mrf.mxu0
    %v2567 = vadd.f32 0.0, %v2566
    %2568 = vdwg.mxu0
    %2569 = vmatpush.msra.mxu0 %v366
    %2570 = vmatpush.msra.mxu0 %v362
    %2571 = vmatpush.msra.mxu0 %v358
    %2572 = vmatpush.msra.mxu0 %v354
    %2573 = vmatpush.msra.mxu0 %v350
    %2574 = vmatpush.msra.mxu0 %v346
    %2575 = vmatpush.msra.mxu0 %v342
    %2576 = vmatpush.msra.mxu0 %v338
    %2577 = vmatpush.msra.mxu0 %v334
    %2578 = vmatpush.msra.mxu0 %v330
    %2579 = vmatpush.msra.mxu0 %v326
    %2580 = vmatpush.msra.mxu0 %v322
    %2581 = vmatpush.msra.mxu0 %v318
    %2582 = vmatpush.msra.mxu0 %v314
    %2583 = vmatpush.msra.mxu0 %v310
    %2584 = vmatpush.msra.mxu0 %v306
    %2585 = vmatmul.f32.gmra.mxu0 %v2547
    %v2586 = vpop.f32.mrf.mxu0
    %v2587 = vadd.f32 0.0, %v2586
    %2588 = vdwg.mxu0
    %2589 = vmatpush.msra.mxu0 %v367
    %2590 = vmatpush.msra.mxu0 %v363
    %2591 = vmatpush.msra.mxu0 %v359
    %2592 = vmatpush.msra.mxu0 %v355
    %2593 = vmatpush.msra.mxu0 %v351
    %2594 = vmatpush.msra.mxu0 %v347
    %2595 = vmatpush.msra.mxu0 %v343
    %2596 = vmatpush.msra.mxu0 %v339
    %2597 = vmatpush.msra.mxu0 %v335
    %2598 = vmatpush.msra.mxu0 %v331
    %2599 = vmatpush.msra.mxu0 %v327
    %2600 = vmatpush.msra.mxu0 %v323
    %2601 = vmatpush.msra.mxu0 %v319
    %2602 = vmatpush.msra.mxu0 %v315
    %2603 = vmatpush.msra.mxu0 %v311
    %2604 = vmatpush.msra.mxu0 %v307
    %2605 = vmatmul.f32.gmra.mxu0 %v2547
    %v2606 = vpop.f32.mrf.mxu0
    %v2607 = vadd.f32 0.0, %v2606
    %2608 = vdwg.mxu0
    %2609 = vmatpush.msra.mxu0 %v368
    %2610 = vmatpush.msra.mxu0 %v364
    %2611 = vmatpush.msra.mxu0 %v360
    %2612 = vmatpush.msra.mxu0 %v356
    %2613 = vmatpush.msra.mxu0 %v352
    %2614 = vmatpush.msra.mxu0 %v348
    %2615 = vmatpush.msra.mxu0 %v344
    %2616 = vmatpush.msra.mxu0 %v340
    %2617 = vmatpush.msra.mxu0 %v336
    %2618 = vmatpush.msra.mxu0 %v332
    %2619 = vmatpush.msra.mxu0 %v328
    %2620 = vmatpush.msra.mxu0 %v324
    %2621 = vmatpush.msra.mxu0 %v320
    %2622 = vmatpush.msra.mxu0 %v316
    %2623 = vmatpush.msra.mxu0 %v312
    %2624 = vmatpush.msra.mxu0 %v308
    %2625 = vmatmul.f32.gmra.mxu0 %v2547
    %v2626 = vpop.f32.mrf.mxu0
    %v2627 = vadd.f32 0.0, %v2626
    %2628 = vdwg.mxu0
    %v2633 = vrot.slane %v2567, 5
    %v2634 = vrot.slane %v2587, 5
    %v2635 = vrot.slane %v2607, 5
    %v2636 = vrot.slane %v2627, 5
    %v2637 = vrot.slane %v2567, 6
    %v2638 = vrot.slane %v2587, 6
    %v2639 = vrot.slane %v2607, 6
    %v2640 = vrot.slane %v2627, 6
    %v2641 = vrot.slane %v2567, 7
    %v2642 = vrot.slane %v2587, 7
    %v2643 = vrot.slane %v2607, 7
    %v2644 = vrot.slane %v2627, 7
    %v2645 = vrot.slane %v2567, 1
    %v2646 = vrot.slane %v2587, 1
    %v2647 = vrot.slane %v2607, 1
    %v2648 = vrot.slane %v2627, 1
    %v2649 = vrot.slane %v2567, 2
    %v2650 = vrot.slane %v2587, 2
    %v2651 = vrot.slane %v2607, 2
    %v2652 = vrot.slane %v2627, 2
    %v2653 = vrot.slane %v2567, 3
    %v2654 = vrot.slane %v2587, 3
    %v2655 = vrot.slane %v2607, 3
    %v2656 = vrot.slane %v2627, 3
    %v2657 = vrot.slane %v2567, 4
    %v2658 = vrot.slane %v2587, 4
    %v2659 = vrot.slane %v2607, 4
    %v2660 = vrot.slane %v2627, 4
    %v2693 = vadd.f32 %v157, %v2633
    %v2694 = vadd.f32 %v198, %v2634
    %v2695 = vadd.f32 %v239, %v2635
    %v2696 = vadd.f32 %v280, %v2636
    %v2697 = vadd.f32 %v160, %v2637
    %v2698 = vadd.f32 %v201, %v2638
    %v2699 = vadd.f32 %v242, %v2639
    %v2700 = vadd.f32 %v283, %v2640
    %v2701 = vadd.f32 %v163, %v2641
    %v2702 = vadd.f32 %v204, %v2642
    %v2703 = vadd.f32 %v245, %v2643
    %v2704 = vadd.f32 %v286, %v2644
    %v2705 = vadd.f32 %v166, %v2567
    %v2706 = vadd.f32 %v207, %v2587
    %v2707 = vadd.f32 %v248, %v2607
    %v2708 = vadd.f32 %v289, %v2627
    %v2709 = vadd.f32 %v169, %v2645
    %v2710 = vadd.f32 %v210, %v2646
    %v2711 = vadd.f32 %v251, %v2647
    %v2712 = vadd.f32 %v292, %v2648
    %v2713 = vadd.f32 %v172, %v2649
    %v2714 = vadd.f32 %v213, %v2650
    %v2715 = vadd.f32 %v254, %v2651
    %v2716 = vadd.f32 %v295, %v2652
    %v2717 = vadd.f32 %v175, %v2653
    %v2718 = vadd.f32 %v216, %v2654
    %v2719 = vadd.f32 %v257, %v2655
    %v2720 = vadd.f32 %v298, %v2656
    %v2721 = vadd.f32 %v178, %v2657
    %v2722 = vadd.f32 %v219, %v2658
    %v2723 = vadd.f32 %v260, %v2659
    %v2724 = vadd.f32 %v301, %v2660
    %v2725 = vxor.u32 %v2693, 2147483648
    %v2726 = vxor.u32 %v2697, 2147483648
    %v2727 = vxor.u32 %v2701, 2147483648
    %v2728 = vxor.u32 %v2705, 2147483648
    %v2729 = vxor.u32 %v2709, 2147483648
    %v2730 = vxor.u32 %v2713, 2147483648
    %v2731 = vxor.u32 %v2717, 2147483648
    %v2732 = vxor.u32 %v2721, 2147483648
    %v2733 = vmul.f32 %v2725, 1.442695
    %v2734 = vpow.pop %v2733
    %v2735 = vmul.f32 %v2726, 1.442695
    %v2736 = vpow.pop %v2735
    %v2737 = vmul.f32 %v2727, 1.442695
    %v2738 = vpow.pop %v2737
    %v2739 = vmul.f32 %v2728, 1.442695
    %v2740 = vpow.pop %v2739
    %v2741 = vmul.f32 %v2729, 1.442695
    %v2742 = vpow.pop %v2741
    %v2743 = vmul.f32 %v2730, 1.442695
    %v2744 = vpow.pop %v2743
    %v2745 = vmul.f32 %v2731, 1.442695
    %v2746 = vpow.pop %v2745
    %v2747 = vmul.f32 %v2732, 1.442695
    %v2748 = vpow.pop %v2747
    %v2749 = vadd.f32 %v2734, 1.0
    %v2750 = vadd.f32 %v2736, 1.0
    %v2751 = vadd.f32 %v2738, 1.0
    %v2752 = vadd.f32 %v2740, 1.0
    %v2753 = vadd.f32 %v2742, 1.0
    %v2754 = vadd.f32 %v2744, 1.0
    %v2755 = vadd.f32 %v2746, 1.0
    %v2756 = vadd.f32 %v2748, 1.0
    %v2757 = vrcp.pop %v2749
    %v2758 = vmul.f32 %v2749, %v2757
    %v2759 = vsub.f32 1.0, %v2758
    %v2760 = vmul.f32 %v2757, %v2759
    %v2761 = vadd.f32 %v2757, %v2760
    %vm2762 = vweird.f32 %v2749
    %vm2763 = vweird.f32 %v2757
    %vm2764 = vmor %vm2762, %vm2763
    %v2765 = vsel %vm2764, %v2757, %v2761
    %v2766 = vand.u32 2147483647, %v2749
    %vm2767 = vcmp.eq.f32.partialorder %v2766, 8.507059e+37
    %v2768 = vand.u32 %v2749, 2147483648
    %v2769 = vor.u32 1.1754944e-38, %v2768
    %v2770 = vsel %vm2767, %v2769, %v2765
    %v2771 = vmul.f32 1.0, %v2770
    %v2772 = vrcp.pop %v2750
    %v2773 = vmul.f32 %v2750, %v2772
    %v2774 = vsub.f32 1.0, %v2773
    %v2775 = vmul.f32 %v2772, %v2774
    %v2776 = vadd.f32 %v2772, %v2775
    %vm2777 = vweird.f32 %v2750
    %vm2778 = vweird.f32 %v2772
    %vm2779 = vmor %vm2777, %vm2778
    %v2780 = vsel %vm2779, %v2772, %v2776
    %v2781 = vand.u32 2147483647, %v2750
    %vm2782 = vcmp.eq.f32.partialorder %v2781, 8.507059e+37
    %v2783 = vand.u32 %v2750, 2147483648
    %v2784 = vor.u32 1.1754944e-38, %v2783
    %v2785 = vsel %vm2782, %v2784, %v2780
    %v2786 = vmul.f32 1.0, %v2785
    %v2787 = vrcp.pop %v2751
    %v2788 = vmul.f32 %v2751, %v2787
    %v2789 = vsub.f32 1.0, %v2788
    %v2790 = vmul.f32 %v2787, %v2789
    %v2791 = vadd.f32 %v2787, %v2790
    %vm2792 = vweird.f32 %v2751
    %vm2793 = vweird.f32 %v2787
    %vm2794 = vmor %vm2792, %vm2793
    %v2795 = vsel %vm2794, %v2787, %v2791
    %v2796 = vand.u32 2147483647, %v2751
    %vm2797 = vcmp.eq.f32.partialorder %v2796, 8.507059e+37
    %v2798 = vand.u32 %v2751, 2147483648
    %v2799 = vor.u32 1.1754944e-38, %v2798
    %v2800 = vsel %vm2797, %v2799, %v2795
    %v2801 = vmul.f32 1.0, %v2800
    %v2802 = vrcp.pop %v2752
    %v2803 = vmul.f32 %v2752, %v2802
    %v2804 = vsub.f32 1.0, %v2803
    %v2805 = vmul.f32 %v2802, %v2804
    %v2806 = vadd.f32 %v2802, %v2805
    %vm2807 = vweird.f32 %v2752
    %vm2808 = vweird.f32 %v2802
    %vm2809 = vmor %vm2807, %vm2808
    %v2810 = vsel %vm2809, %v2802, %v2806
    %v2811 = vand.u32 2147483647, %v2752
    %vm2812 = vcmp.eq.f32.partialorder %v2811, 8.507059e+37
    %v2813 = vand.u32 %v2752, 2147483648
    %v2814 = vor.u32 1.1754944e-38, %v2813
    %v2815 = vsel %vm2812, %v2814, %v2810
    %v2816 = vmul.f32 1.0, %v2815
    %v2817 = vrcp.pop %v2753
    %v2818 = vmul.f32 %v2753, %v2817
    %v2819 = vsub.f32 1.0, %v2818
    %v2820 = vmul.f32 %v2817, %v2819
    %v2821 = vadd.f32 %v2817, %v2820
    %vm2822 = vweird.f32 %v2753
    %vm2823 = vweird.f32 %v2817
    %vm2824 = vmor %vm2822, %vm2823
    %v2825 = vsel %vm2824, %v2817, %v2821
    %v2826 = vand.u32 2147483647, %v2753
    %vm2827 = vcmp.eq.f32.partialorder %v2826, 8.507059e+37
    %v2828 = vand.u32 %v2753, 2147483648
    %v2829 = vor.u32 1.1754944e-38, %v2828
    %v2830 = vsel %vm2827, %v2829, %v2825
    %v2831 = vmul.f32 1.0, %v2830
    %v2832 = vrcp.pop %v2754
    %v2833 = vmul.f32 %v2754, %v2832
    %v2834 = vsub.f32 1.0, %v2833
    %v2835 = vmul.f32 %v2832, %v2834
    %v2836 = vadd.f32 %v2832, %v2835
    %vm2837 = vweird.f32 %v2754
    %vm2838 = vweird.f32 %v2832
    %vm2839 = vmor %vm2837, %vm2838
    %v2840 = vsel %vm2839, %v2832, %v2836
    %v2841 = vand.u32 2147483647, %v2754
    %vm2842 = vcmp.eq.f32.partialorder %v2841, 8.507059e+37
    %v2843 = vand.u32 %v2754, 2147483648
    %v2844 = vor.u32 1.1754944e-38, %v2843
    %v2845 = vsel %vm2842, %v2844, %v2840
    %v2846 = vmul.f32 1.0, %v2845
    %v2847 = vrcp.pop %v2755
    %v2848 = vmul.f32 %v2755, %v2847
    %v2849 = vsub.f32 1.0, %v2848
    %v2850 = vmul.f32 %v2847, %v2849
    %v2851 = vadd.f32 %v2847, %v2850
    %vm2852 = vweird.f32 %v2755
    %vm2853 = vweird.f32 %v2847
    %vm2854 = vmor %vm2852, %vm2853
    %v2855 = vsel %vm2854, %v2847, %v2851
    %v2856 = vand.u32 2147483647, %v2755
    %vm2857 = vcmp.eq.f32.partialorder %v2856, 8.507059e+37
    %v2858 = vand.u32 %v2755, 2147483648
    %v2859 = vor.u32 1.1754944e-38, %v2858
    %v2860 = vsel %vm2857, %v2859, %v2855
    %v2861 = vmul.f32 1.0, %v2860
    %v2862 = vrcp.pop %v2756
    %v2863 = vmul.f32 %v2756, %v2862
    %v2864 = vsub.f32 1.0, %v2863
    %v2865 = vmul.f32 %v2862, %v2864
    %v2866 = vadd.f32 %v2862, %v2865
    %vm2867 = vweird.f32 %v2756
    %vm2868 = vweird.f32 %v2862
    %vm2869 = vmor %vm2867, %vm2868
    %v2870 = vsel %vm2869, %v2862, %v2866
    %v2871 = vand.u32 2147483647, %v2756
    %vm2872 = vcmp.eq.f32.partialorder %v2871, 8.507059e+37
    %v2873 = vand.u32 %v2756, 2147483648
    %v2874 = vor.u32 1.1754944e-38, %v2873
    %v2875 = vsel %vm2872, %v2874, %v2870
    %v2876 = vmul.f32 1.0, %v2875
    %v2877 = vxor.u32 %v2694, 2147483648
    %v2878 = vxor.u32 %v2698, 2147483648
    %v2879 = vxor.u32 %v2702, 2147483648
    %v2880 = vxor.u32 %v2706, 2147483648
    %v2881 = vxor.u32 %v2710, 2147483648
    %v2882 = vxor.u32 %v2714, 2147483648
    %v2883 = vxor.u32 %v2718, 2147483648
    %v2884 = vxor.u32 %v2722, 2147483648
    %v2885 = vmul.f32 %v2877, 1.442695
    %v2886 = vpow.pop %v2885
    %v2887 = vmul.f32 %v2878, 1.442695
    %v2888 = vpow.pop %v2887
    %v2889 = vmul.f32 %v2879, 1.442695
    %v2890 = vpow.pop %v2889
    %v2891 = vmul.f32 %v2880, 1.442695
    %v2892 = vpow.pop %v2891
    %v2893 = vmul.f32 %v2881, 1.442695
    %v2894 = vpow.pop %v2893
    %v2895 = vmul.f32 %v2882, 1.442695
    %v2896 = vpow.pop %v2895
    %v2897 = vmul.f32 %v2883, 1.442695
    %v2898 = vpow.pop %v2897
    %v2899 = vmul.f32 %v2884, 1.442695
    %v2900 = vpow.pop %v2899
    %v2901 = vadd.f32 %v2886, 1.0
    %v2902 = vadd.f32 %v2888, 1.0
    %v2903 = vadd.f32 %v2890, 1.0
    %v2904 = vadd.f32 %v2892, 1.0
    %v2905 = vadd.f32 %v2894, 1.0
    %v2906 = vadd.f32 %v2896, 1.0
    %v2907 = vadd.f32 %v2898, 1.0
    %v2908 = vadd.f32 %v2900, 1.0
    %v2909 = vrcp.pop %v2901
    %v2910 = vmul.f32 %v2901, %v2909
    %v2911 = vsub.f32 1.0, %v2910
    %v2912 = vmul.f32 %v2909, %v2911
    %v2913 = vadd.f32 %v2909, %v2912
    %vm2914 = vweird.f32 %v2901
    %vm2915 = vweird.f32 %v2909
    %vm2916 = vmor %vm2914, %vm2915
    %v2917 = vsel %vm2916, %v2909, %v2913
    %v2918 = vand.u32 2147483647, %v2901
    %vm2919 = vcmp.eq.f32.partialorder %v2918, 8.507059e+37
    %v2920 = vand.u32 %v2901, 2147483648
    %v2921 = vor.u32 1.1754944e-38, %v2920
    %v2922 = vsel %vm2919, %v2921, %v2917
    %v2923 = vmul.f32 1.0, %v2922
    %v2924 = vrcp.pop %v2902
    %v2925 = vmul.f32 %v2902, %v2924
    %v2926 = vsub.f32 1.0, %v2925
    %v2927 = vmul.f32 %v2924, %v2926
    %v2928 = vadd.f32 %v2924, %v2927
    %vm2929 = vweird.f32 %v2902
    %vm2930 = vweird.f32 %v2924
    %vm2931 = vmor %vm2929, %vm2930
    %v2932 = vsel %vm2931, %v2924, %v2928
    %v2933 = vand.u32 2147483647, %v2902
    %vm2934 = vcmp.eq.f32.partialorder %v2933, 8.507059e+37
    %v2935 = vand.u32 %v2902, 2147483648
    %v2936 = vor.u32 1.1754944e-38, %v2935
    %v2937 = vsel %vm2934, %v2936, %v2932
    %v2938 = vmul.f32 1.0, %v2937
    %v2939 = vrcp.pop %v2903
    %v2940 = vmul.f32 %v2903, %v2939
    %v2941 = vsub.f32 1.0, %v2940
    %v2942 = vmul.f32 %v2939, %v2941
    %v2943 = vadd.f32 %v2939, %v2942
    %vm2944 = vweird.f32 %v2903
    %vm2945 = vweird.f32 %v2939
    %vm2946 = vmor %vm2944, %vm2945
    %v2947 = vsel %vm2946, %v2939, %v2943
    %v2948 = vand.u32 2147483647, %v2903
    %vm2949 = vcmp.eq.f32.partialorder %v2948, 8.507059e+37
    %v2950 = vand.u32 %v2903, 2147483648
    %v2951 = vor.u32 1.1754944e-38, %v2950
    %v2952 = vsel %vm2949, %v2951, %v2947
    %v2953 = vmul.f32 1.0, %v2952
    %v2954 = vrcp.pop %v2904
    %v2955 = vmul.f32 %v2904, %v2954
    %v2956 = vsub.f32 1.0, %v2955
    %v2957 = vmul.f32 %v2954, %v2956
    %v2958 = vadd.f32 %v2954, %v2957
    %vm2959 = vweird.f32 %v2904
    %vm2960 = vweird.f32 %v2954
    %vm2961 = vmor %vm2959, %vm2960
    %v2962 = vsel %vm2961, %v2954, %v2958
    %v2963 = vand.u32 2147483647, %v2904
    %vm2964 = vcmp.eq.f32.partialorder %v2963, 8.507059e+37
    %v2965 = vand.u32 %v2904, 2147483648
    %v2966 = vor.u32 1.1754944e-38, %v2965
    %v2967 = vsel %vm2964, %v2966, %v2962
    %v2968 = vmul.f32 1.0, %v2967
    %v2969 = vrcp.pop %v2905
    %v2970 = vmul.f32 %v2905, %v2969
    %v2971 = vsub.f32 1.0, %v2970
    %v2972 = vmul.f32 %v2969, %v2971
    %v2973 = vadd.f32 %v2969, %v2972
    %vm2974 = vweird.f32 %v2905
    %vm2975 = vweird.f32 %v2969
    %vm2976 = vmor %vm2974, %vm2975
    %v2977 = vsel %vm2976, %v2969, %v2973
    %v2978 = vand.u32 2147483647, %v2905
    %vm2979 = vcmp.eq.f32.partialorder %v2978, 8.507059e+37
    %v2980 = vand.u32 %v2905, 2147483648
    %v2981 = vor.u32 1.1754944e-38, %v2980
    %v2982 = vsel %vm2979, %v2981, %v2977
    %v2983 = vmul.f32 1.0, %v2982
    %v2984 = vrcp.pop %v2906
    %v2985 = vmul.f32 %v2906, %v2984
    %v2986 = vsub.f32 1.0, %v2985
    %v2987 = vmul.f32 %v2984, %v2986
    %v2988 = vadd.f32 %v2984, %v2987
    %vm2989 = vweird.f32 %v2906
    %vm2990 = vweird.f32 %v2984
    %vm2991 = vmor %vm2989, %vm2990
    %v2992 = vsel %vm2991, %v2984, %v2988
    %v2993 = vand.u32 2147483647, %v2906
    %vm2994 = vcmp.eq.f32.partialorder %v2993, 8.507059e+37
    %v2995 = vand.u32 %v2906, 2147483648
    %v2996 = vor.u32 1.1754944e-38, %v2995
    %v2997 = vsel %vm2994, %v2996, %v2992
    %v2998 = vmul.f32 1.0, %v2997
    %v2999 = vrcp.pop %v2907
    %v3000 = vmul.f32 %v2907, %v2999
    %v3001 = vsub.f32 1.0, %v3000
    %v3002 = vmul.f32 %v2999, %v3001
    %v3003 = vadd.f32 %v2999, %v3002
    %vm3004 = vweird.f32 %v2907
    %vm3005 = vweird.f32 %v2999
    %vm3006 = vmor %vm3004, %vm3005
    %v3007 = vsel %vm3006, %v2999, %v3003
    %v3008 = vand.u32 2147483647, %v2907
    %vm3009 = vcmp.eq.f32.partialorder %v3008, 8.507059e+37
    %v3010 = vand.u32 %v2907, 2147483648
    %v3011 = vor.u32 1.1754944e-38, %v3010
    %v3012 = vsel %vm3009, %v3011, %v3007
    %v3013 = vmul.f32 1.0, %v3012
    %v3014 = vrcp.pop %v2908
    %v3015 = vmul.f32 %v2908, %v3014
    %v3016 = vsub.f32 1.0, %v3015
    %v3017 = vmul.f32 %v3014, %v3016
    %v3018 = vadd.f32 %v3014, %v3017
    %vm3019 = vweird.f32 %v2908
    %vm3020 = vweird.f32 %v3014
    %vm3021 = vmor %vm3019, %vm3020
    %v3022 = vsel %vm3021, %v3014, %v3018
    %v3023 = vand.u32 2147483647, %v2908
    %vm3024 = vcmp.eq.f32.partialorder %v3023, 8.507059e+37
    %v3025 = vand.u32 %v2908, 2147483648
    %v3026 = vor.u32 1.1754944e-38, %v3025
    %v3027 = vsel %vm3024, %v3026, %v3022
    %v3028 = vmul.f32 1.0, %v3027
    %v3029 = vtanh.pop %v2695
    %v3030 = vtanh.pop %v2699
    %v3031 = vtanh.pop %v2703
    %v3032 = vtanh.pop %v2707
    %v3033 = vtanh.pop %v2711
    %v3034 = vtanh.pop %v2715
    %v3035 = vtanh.pop %v2719
    %v3036 = vtanh.pop %v2723
    %v3037 = vxor.u32 %v2696, 2147483648
    %v3038 = vxor.u32 %v2700, 2147483648
    %v3039 = vxor.u32 %v2704, 2147483648
    %v3040 = vxor.u32 %v2708, 2147483648
    %v3041 = vxor.u32 %v2712, 2147483648
    %v3042 = vxor.u32 %v2716, 2147483648
    %v3043 = vxor.u32 %v2720, 2147483648
    %v3044 = vxor.u32 %v2724, 2147483648
    %v3045 = vmul.f32 %v3037, 1.442695
    %v3046 = vpow.pop %v3045
    %v3047 = vmul.f32 %v3038, 1.442695
    %v3048 = vpow.pop %v3047
    %v3049 = vmul.f32 %v3039, 1.442695
    %v3050 = vpow.pop %v3049
    %v3051 = vmul.f32 %v3040, 1.442695
    %v3052 = vpow.pop %v3051
    %v3053 = vmul.f32 %v3041, 1.442695
    %v3054 = vpow.pop %v3053
    %v3055 = vmul.f32 %v3042, 1.442695
    %v3056 = vpow.pop %v3055
    %v3057 = vmul.f32 %v3043, 1.442695
    %v3058 = vpow.pop %v3057
    %v3059 = vmul.f32 %v3044, 1.442695
    %v3060 = vpow.pop %v3059
    %v3061 = vadd.f32 %v3046, 1.0
    %v3062 = vadd.f32 %v3048, 1.0
    %v3063 = vadd.f32 %v3050, 1.0
    %v3064 = vadd.f32 %v3052, 1.0
    %v3065 = vadd.f32 %v3054, 1.0
    %v3066 = vadd.f32 %v3056, 1.0
    %v3067 = vadd.f32 %v3058, 1.0
    %v3068 = vadd.f32 %v3060, 1.0
    %v3069 = vrcp.pop %v3061
    %v3070 = vmul.f32 %v3061, %v3069
    %v3071 = vsub.f32 1.0, %v3070
    %v3072 = vmul.f32 %v3069, %v3071
    %v3073 = vadd.f32 %v3069, %v3072
    %vm3074 = vweird.f32 %v3061
    %vm3075 = vweird.f32 %v3069
    %vm3076 = vmor %vm3074, %vm3075
    %v3077 = vsel %vm3076, %v3069, %v3073
    %v3078 = vand.u32 2147483647, %v3061
    %vm3079 = vcmp.eq.f32.partialorder %v3078, 8.507059e+37
    %v3080 = vand.u32 %v3061, 2147483648
    %v3081 = vor.u32 1.1754944e-38, %v3080
    %v3082 = vsel %vm3079, %v3081, %v3077
    %v3083 = vmul.f32 1.0, %v3082
    %v3084 = vrcp.pop %v3062
    %v3085 = vmul.f32 %v3062, %v3084
    %v3086 = vsub.f32 1.0, %v3085
    %v3087 = vmul.f32 %v3084, %v3086
    %v3088 = vadd.f32 %v3084, %v3087
    %vm3089 = vweird.f32 %v3062
    %vm3090 = vweird.f32 %v3084
    %vm3091 = vmor %vm3089, %vm3090
    %v3092 = vsel %vm3091, %v3084, %v3088
    %v3093 = vand.u32 2147483647, %v3062
    %vm3094 = vcmp.eq.f32.partialorder %v3093, 8.507059e+37
    %v3095 = vand.u32 %v3062, 2147483648
    %v3096 = vor.u32 1.1754944e-38, %v3095
    %v3097 = vsel %vm3094, %v3096, %v3092
    %v3098 = vmul.f32 1.0, %v3097
    %v3099 = vrcp.pop %v3063
    %v3100 = vmul.f32 %v3063, %v3099
    %v3101 = vsub.f32 1.0, %v3100
    %v3102 = vmul.f32 %v3099, %v3101
    %v3103 = vadd.f32 %v3099, %v3102
    %vm3104 = vweird.f32 %v3063
    %vm3105 = vweird.f32 %v3099
    %vm3106 = vmor %vm3104, %vm3105
    %v3107 = vsel %vm3106, %v3099, %v3103
    %v3108 = vand.u32 2147483647, %v3063
    %vm3109 = vcmp.eq.f32.partialorder %v3108, 8.507059e+37
    %v3110 = vand.u32 %v3063, 2147483648
    %v3111 = vor.u32 1.1754944e-38, %v3110
    %v3112 = vsel %vm3109, %v3111, %v3107
    %v3113 = vmul.f32 1.0, %v3112
    %v3114 = vrcp.pop %v3064
    %v3115 = vmul.f32 %v3064, %v3114
    %v3116 = vsub.f32 1.0, %v3115
    %v3117 = vmul.f32 %v3114, %v3116
    %v3118 = vadd.f32 %v3114, %v3117
    %vm3119 = vweird.f32 %v3064
    %vm3120 = vweird.f32 %v3114
    %vm3121 = vmor %vm3119, %vm3120
    %v3122 = vsel %vm3121, %v3114, %v3118
    %v3123 = vand.u32 2147483647, %v3064
    %vm3124 = vcmp.eq.f32.partialorder %v3123, 8.507059e+37
    %v3125 = vand.u32 %v3064, 2147483648
    %v3126 = vor.u32 1.1754944e-38, %v3125
    %v3127 = vsel %vm3124, %v3126, %v3122
    %v3128 = vmul.f32 1.0, %v3127
    %v3129 = vrcp.pop %v3065
    %v3130 = vmul.f32 %v3065, %v3129
    %v3131 = vsub.f32 1.0, %v3130
    %v3132 = vmul.f32 %v3129, %v3131
    %v3133 = vadd.f32 %v3129, %v3132
    %vm3134 = vweird.f32 %v3065
    %vm3135 = vweird.f32 %v3129
    %vm3136 = vmor %vm3134, %vm3135
    %v3137 = vsel %vm3136, %v3129, %v3133
    %v3138 = vand.u32 2147483647, %v3065
    %vm3139 = vcmp.eq.f32.partialorder %v3138, 8.507059e+37
    %v3140 = vand.u32 %v3065, 2147483648
    %v3141 = vor.u32 1.1754944e-38, %v3140
    %v3142 = vsel %vm3139, %v3141, %v3137
    %v3143 = vmul.f32 1.0, %v3142
    %v3144 = vrcp.pop %v3066
    %v3145 = vmul.f32 %v3066, %v3144
    %v3146 = vsub.f32 1.0, %v3145
    %v3147 = vmul.f32 %v3144, %v3146
    %v3148 = vadd.f32 %v3144, %v3147
    %vm3149 = vweird.f32 %v3066
    %vm3150 = vweird.f32 %v3144
    %vm3151 = vmor %vm3149, %vm3150
    %v3152 = vsel %vm3151, %v3144, %v3148
    %v3153 = vand.u32 2147483647, %v3066
    %vm3154 = vcmp.eq.f32.partialorder %v3153, 8.507059e+37
    %v3155 = vand.u32 %v3066, 2147483648
    %v3156 = vor.u32 1.1754944e-38, %v3155
    %v3157 = vsel %vm3154, %v3156, %v3152
    %v3158 = vmul.f32 1.0, %v3157
    %v3159 = vrcp.pop %v3067
    %v3160 = vmul.f32 %v3067, %v3159
    %v3161 = vsub.f32 1.0, %v3160
    %v3162 = vmul.f32 %v3159, %v3161
    %v3163 = vadd.f32 %v3159, %v3162
    %vm3164 = vweird.f32 %v3067
    %vm3165 = vweird.f32 %v3159
    %vm3166 = vmor %vm3164, %vm3165
    %v3167 = vsel %vm3166, %v3159, %v3163
    %v3168 = vand.u32 2147483647, %v3067
    %vm3169 = vcmp.eq.f32.partialorder %v3168, 8.507059e+37
    %v3170 = vand.u32 %v3067, 2147483648
    %v3171 = vor.u32 1.1754944e-38, %v3170
    %v3172 = vsel %vm3169, %v3171, %v3167
    %v3173 = vmul.f32 1.0, %v3172
    %v3174 = vrcp.pop %v3068
    %v3175 = vmul.f32 %v3068, %v3174
    %v3176 = vsub.f32 1.0, %v3175
    %v3177 = vmul.f32 %v3174, %v3176
    %v3178 = vadd.f32 %v3174, %v3177
    %vm3179 = vweird.f32 %v3068
    %vm3180 = vweird.f32 %v3174
    %vm3181 = vmor %vm3179, %vm3180
    %v3182 = vsel %vm3181, %v3174, %v3178
    %v3183 = vand.u32 2147483647, %v3068
    %vm3184 = vcmp.eq.f32.partialorder %v3183, 8.507059e+37
    %v3185 = vand.u32 %v3068, 2147483648
    %v3186 = vor.u32 1.1754944e-38, %v3185
    %v3187 = vsel %vm3184, %v3186, %v3182
    %v3188 = vmul.f32 1.0, %v3187
    %v3197 = vrot.slane %v2502, 7
    %v3198 = vrot.slane %v2503, 7
    %v3199 = vrot.slane %v2504, 7
    %v3200 = vrot.slane %v2505, 7
    %v3201 = vrot.slane %v2506, 7
    %v3202 = vrot.slane %v2507, 7
    %v3203 = vrot.slane %v2508, 7
    %v3204 = vrot.slane %v2509, 7
    %v3213 = vmul.f32 %v2923, %v3197
    %v3214 = vmul.f32 %v2938, %v3198
    %v3215 = vmul.f32 %v2953, %v3199
    %v3216 = vmul.f32 %v2968, %v3200
    %v3217 = vmul.f32 %v2983, %v3201
    %v3218 = vmul.f32 %v2998, %v3202
    %v3219 = vmul.f32 %v3013, %v3203
    %v3220 = vmul.f32 %v3028, %v3204
    %v3221 = vmul.f32 %v2771, %v3029
    %v3222 = vmul.f32 %v2786, %v3030
    %v3223 = vmul.f32 %v2801, %v3031
    %v3224 = vmul.f32 %v2816, %v3032
    %v3225 = vmul.f32 %v2831, %v3033
    %v3226 = vmul.f32 %v2846, %v3034
    %v3227 = vmul.f32 %v2861, %v3035
    %v3228 = vmul.f32 %v2876, %v3036
    %v3229 = vadd.f32 %v3213, %v3221
    %v3230 = vadd.f32 %v3214, %v3222
    %v3231 = vadd.f32 %v3215, %v3223
    %v3232 = vadd.f32 %v3216, %v3224
    %v3233 = vadd.f32 %v3217, %v3225
    %v3234 = vadd.f32 %v3218, %v3226
    %v3235 = vadd.f32 %v3219, %v3227
    %v3236 = vadd.f32 %v3220, %v3228
    %v3237 = vtanh.pop %v3229
    %v3238 = vtanh.pop %v3230
    %v3239 = vtanh.pop %v3231
    %v3240 = vtanh.pop %v3232
    %v3241 = vtanh.pop %v3233
    %v3242 = vtanh.pop %v3234
    %v3243 = vtanh.pop %v3235
    %v3244 = vtanh.pop %v3236
    %v3245 = vmul.f32 %v3083, %v3237
    %v3246 = vmul.f32 %v3098, %v3238
    %v3247 = vmul.f32 %v3113, %v3239
    %v3248 = vmul.f32 %v3128, %v3240
    %v3249 = vmul.f32 %v3143, %v3241
    %v3250 = vmul.f32 %v3158, %v3242
    %v3251 = vmul.f32 %v3173, %v3243
    %v3252 = vmul.f32 %v3188, %v3244
    %v3261 = vrot.slane %v3245, 3
    %v3262 = vrot.slane %v3246, 2
    %v3263 = vsel %vm1074, %v3262, %v3261
    %v3264 = vrot.slane %v3247, 1
    %v3265 = vsel %vm1077, %v3264, %v3263
    %v3266 = vsel %vm1080, %v3248, %v3265
    %v3267 = vrot.slane %v3249, 7
    %v3268 = vsel %vm1083, %v3267, %v3266
    %v3269 = vrot.slane %v3250, 6
    %v3270 = vsel %vm1086, %v3269, %v3268
    %v3271 = vrot.slane %v3251, 5
    %v3272 = vsel %vm1089, %v3271, %v3270
    %v3273 = vrot.slane %v3252, 4
    %v3274 = vsel %vm1092, %v3273, %v3272
    %3276 = vmatpush.msra.mxu0 %v365
    %3277 = vmatpush.msra.mxu0 %v361
    %3278 = vmatpush.msra.mxu0 %v357
    %3279 = vmatpush.msra.mxu0 %v353
    %3280 = vmatpush.msra.mxu0 %v349
    %3281 = vmatpush.msra.mxu0 %v345
    %3282 = vmatpush.msra.mxu0 %v341
    %3283 = vmatpush.msra.mxu0 %v337
    %3284 = vmatpush.msra.mxu0 %v333
    %3285 = vmatpush.msra.mxu0 %v329
    %3286 = vmatpush.msra.mxu0 %v325
    %3287 = vmatpush.msra.mxu0 %v321
    %3288 = vmatpush.msra.mxu0 %v317
    %3289 = vmatpush.msra.mxu0 %v313
    %3290 = vmatpush.msra.mxu0 %v309
    %3291 = vmatpush.msra.mxu0 %v305
    %3292 = vmatmul.f32.gmra.mxu0 %v3274
    %v3293 = vpop.f32.mrf.mxu0
    %v3294 = vadd.f32 0.0, %v3293
    %3295 = vdwg.mxu0
    %3296 = vmatpush.msra.mxu0 %v366
    %3297 = vmatpush.msra.mxu0 %v362
    %3298 = vmatpush.msra.mxu0 %v358
    %3299 = vmatpush.msra.mxu0 %v354
    %3300 = vmatpush.msra.mxu0 %v350
    %3301 = vmatpush.msra.mxu0 %v346
    %3302 = vmatpush.msra.mxu0 %v342
    %3303 = vmatpush.msra.mxu0 %v338
    %3304 = vmatpush.msra.mxu0 %v334
    %3305 = vmatpush.msra.mxu0 %v330
    %3306 = vmatpush.msra.mxu0 %v326
    %3307 = vmatpush.msra.mxu0 %v322
    %3308 = vmatpush.msra.mxu0 %v318
    %3309 = vmatpush.msra.mxu0 %v314
    %3310 = vmatpush.msra.mxu0 %v310
    %3311 = vmatpush.msra.mxu0 %v306
    %3312 = vmatmul.f32.gmra.mxu0 %v3274
    %v3313 = vpop.f32.mrf.mxu0
    %v3314 = vadd.f32 0.0, %v3313
    %3315 = vdwg.mxu0
    %3316 = vmatpush.msra.mxu0 %v367
    %3317 = vmatpush.msra.mxu0 %v363
    %3318 = vmatpush.msra.mxu0 %v359
    %3319 = vmatpush.msra.mxu0 %v355
    %3320 = vmatpush.msra.mxu0 %v351
    %3321 = vmatpush.msra.mxu0 %v347
    %3322 = vmatpush.msra.mxu0 %v343
    %3323 = vmatpush.msra.mxu0 %v339
    %3324 = vmatpush.msra.mxu0 %v335
    %3325 = vmatpush.msra.mxu0 %v331
    %3326 = vmatpush.msra.mxu0 %v327
    %3327 = vmatpush.msra.mxu0 %v323
    %3328 = vmatpush.msra.mxu0 %v319
    %3329 = vmatpush.msra.mxu0 %v315
    %3330 = vmatpush.msra.mxu0 %v311
    %3331 = vmatpush.msra.mxu0 %v307
    %3332 = vmatmul.f32.gmra.mxu0 %v3274
    %v3333 = vpop.f32.mrf.mxu0
    %v3334 = vadd.f32 0.0, %v3333
    %3335 = vdwg.mxu0
    %3336 = vmatpush.msra.mxu0 %v368
    %3337 = vmatpush.msra.mxu0 %v364
    %3338 = vmatpush.msra.mxu0 %v360
    %3339 = vmatpush.msra.mxu0 %v356
    %3340 = vmatpush.msra.mxu0 %v352
    %3341 = vmatpush.msra.mxu0 %v348
    %3342 = vmatpush.msra.mxu0 %v344
    %3343 = vmatpush.msra.mxu0 %v340
    %3344 = vmatpush.msra.mxu0 %v336
    %3345 = vmatpush.msra.mxu0 %v332
    %3346 = vmatpush.msra.mxu0 %v328
    %3347 = vmatpush.msra.mxu0 %v324
    %3348 = vmatpush.msra.mxu0 %v320
    %3349 = vmatpush.msra.mxu0 %v316
    %3350 = vmatpush.msra.mxu0 %v312
    %3351 = vmatpush.msra.mxu0 %v308
    %3352 = vmatmul.f32.gmra.mxu0 %v3274
    %v3353 = vpop.f32.mrf.mxu0
    %v3354 = vadd.f32 0.0, %v3353
    %3355 = vdwg.mxu0
    %v3360 = vrot.slane %v3294, 4
    %v3361 = vrot.slane %v3314, 4
    %v3362 = vrot.slane %v3334, 4
    %v3363 = vrot.slane %v3354, 4
    %v3364 = vrot.slane %v3294, 5
    %v3365 = vrot.slane %v3314, 5
    %v3366 = vrot.slane %v3334, 5
    %v3367 = vrot.slane %v3354, 5
    %v3368 = vrot.slane %v3294, 6
    %v3369 = vrot.slane %v3314, 6
    %v3370 = vrot.slane %v3334, 6
    %v3371 = vrot.slane %v3354, 6
    %v3372 = vrot.slane %v3294, 7
    %v3373 = vrot.slane %v3314, 7
    %v3374 = vrot.slane %v3334, 7
    %v3375 = vrot.slane %v3354, 7
    %v3376 = vrot.slane %v3294, 1
    %v3377 = vrot.slane %v3314, 1
    %v3378 = vrot.slane %v3334, 1
    %v3379 = vrot.slane %v3354, 1
    %v3380 = vrot.slane %v3294, 2
    %v3381 = vrot.slane %v3314, 2
    %v3382 = vrot.slane %v3334, 2
    %v3383 = vrot.slane %v3354, 2
    %v3384 = vrot.slane %v3294, 3
    %v3385 = vrot.slane %v3314, 3
    %v3386 = vrot.slane %v3334, 3
    %v3387 = vrot.slane %v3354, 3
    %v3420 = vadd.f32 %v157, %v3360
    %v3421 = vadd.f32 %v198, %v3361
    %v3422 = vadd.f32 %v239, %v3362
    %v3423 = vadd.f32 %v280, %v3363
    %v3424 = vadd.f32 %v160, %v3364
    %v3425 = vadd.f32 %v201, %v3365
    %v3426 = vadd.f32 %v242, %v3366
    %v3427 = vadd.f32 %v283, %v3367
    %v3428 = vadd.f32 %v163, %v3368
    %v3429 = vadd.f32 %v204, %v3369
    %v3430 = vadd.f32 %v245, %v3370
    %v3431 = vadd.f32 %v286, %v3371
    %v3432 = vadd.f32 %v166, %v3372
    %v3433 = vadd.f32 %v207, %v3373
    %v3434 = vadd.f32 %v248, %v3374
    %v3435 = vadd.f32 %v289, %v3375
    %v3436 = vadd.f32 %v169, %v3294
    %v3437 = vadd.f32 %v210, %v3314
    %v3438 = vadd.f32 %v251, %v3334
    %v3439 = vadd.f32 %v292, %v3354
    %v3440 = vadd.f32 %v172, %v3376
    %v3441 = vadd.f32 %v213, %v3377
    %v3442 = vadd.f32 %v254, %v3378
    %v3443 = vadd.f32 %v295, %v3379
    %v3444 = vadd.f32 %v175, %v3380
    %v3445 = vadd.f32 %v216, %v3381
    %v3446 = vadd.f32 %v257, %v3382
    %v3447 = vadd.f32 %v298, %v3383
    %v3448 = vadd.f32 %v178, %v3384
    %v3449 = vadd.f32 %v219, %v3385
    %v3450 = vadd.f32 %v260, %v3386
    %v3451 = vadd.f32 %v301, %v3387
    %v3452 = vxor.u32 %v3420, 2147483648
    %v3453 = vxor.u32 %v3424, 2147483648
    %v3454 = vxor.u32 %v3428, 2147483648
    %v3455 = vxor.u32 %v3432, 2147483648
    %v3456 = vxor.u32 %v3436, 2147483648
    %v3457 = vxor.u32 %v3440, 2147483648
    %v3458 = vxor.u32 %v3444, 2147483648
    %v3459 = vxor.u32 %v3448, 2147483648
    %v3460 = vmul.f32 %v3452, 1.442695
    %v3461 = vpow.pop %v3460
    %v3462 = vmul.f32 %v3453, 1.442695
    %v3463 = vpow.pop %v3462
    %v3464 = vmul.f32 %v3454, 1.442695
    %v3465 = vpow.pop %v3464
    %v3466 = vmul.f32 %v3455, 1.442695
    %v3467 = vpow.pop %v3466
    %v3468 = vmul.f32 %v3456, 1.442695
    %v3469 = vpow.pop %v3468
    %v3470 = vmul.f32 %v3457, 1.442695
    %v3471 = vpow.pop %v3470
    %v3472 = vmul.f32 %v3458, 1.442695
    %v3473 = vpow.pop %v3472
    %v3474 = vmul.f32 %v3459, 1.442695
    %v3475 = vpow.pop %v3474
    %v3476 = vadd.f32 %v3461, 1.0
    %v3477 = vadd.f32 %v3463, 1.0
    %v3478 = vadd.f32 %v3465, 1.0
    %v3479 = vadd.f32 %v3467, 1.0
    %v3480 = vadd.f32 %v3469, 1.0
    %v3481 = vadd.f32 %v3471, 1.0
    %v3482 = vadd.f32 %v3473, 1.0
    %v3483 = vadd.f32 %v3475, 1.0
    %v3484 = vrcp.pop %v3476
    %v3485 = vmul.f32 %v3476, %v3484
    %v3486 = vsub.f32 1.0, %v3485
    %v3487 = vmul.f32 %v3484, %v3486
    %v3488 = vadd.f32 %v3484, %v3487
    %vm3489 = vweird.f32 %v3476
    %vm3490 = vweird.f32 %v3484
    %vm3491 = vmor %vm3489, %vm3490
    %v3492 = vsel %vm3491, %v3484, %v3488
    %v3493 = vand.u32 2147483647, %v3476
    %vm3494 = vcmp.eq.f32.partialorder %v3493, 8.507059e+37
    %v3495 = vand.u32 %v3476, 2147483648
    %v3496 = vor.u32 1.1754944e-38, %v3495
    %v3497 = vsel %vm3494, %v3496, %v3492
    %v3498 = vmul.f32 1.0, %v3497
    %v3499 = vrcp.pop %v3477
    %v3500 = vmul.f32 %v3477, %v3499
    %v3501 = vsub.f32 1.0, %v3500
    %v3502 = vmul.f32 %v3499, %v3501
    %v3503 = vadd.f32 %v3499, %v3502
    %vm3504 = vweird.f32 %v3477
    %vm3505 = vweird.f32 %v3499
    %vm3506 = vmor %vm3504, %vm3505
    %v3507 = vsel %vm3506, %v3499, %v3503
    %v3508 = vand.u32 2147483647, %v3477
    %vm3509 = vcmp.eq.f32.partialorder %v3508, 8.507059e+37
    %v3510 = vand.u32 %v3477, 2147483648
    %v3511 = vor.u32 1.1754944e-38, %v3510
    %v3512 = vsel %vm3509, %v3511, %v3507
    %v3513 = vmul.f32 1.0, %v3512
    %v3514 = vrcp.pop %v3478
    %v3515 = vmul.f32 %v3478, %v3514
    %v3516 = vsub.f32 1.0, %v3515
    %v3517 = vmul.f32 %v3514, %v3516
    %v3518 = vadd.f32 %v3514, %v3517
    %vm3519 = vweird.f32 %v3478
    %vm3520 = vweird.f32 %v3514
    %vm3521 = vmor %vm3519, %vm3520
    %v3522 = vsel %vm3521, %v3514, %v3518
    %v3523 = vand.u32 2147483647, %v3478
    %vm3524 = vcmp.eq.f32.partialorder %v3523, 8.507059e+37
    %v3525 = vand.u32 %v3478, 2147483648
    %v3526 = vor.u32 1.1754944e-38, %v3525
    %v3527 = vsel %vm3524, %v3526, %v3522
    %v3528 = vmul.f32 1.0, %v3527
    %v3529 = vrcp.pop %v3479
    %v3530 = vmul.f32 %v3479, %v3529
    %v3531 = vsub.f32 1.0, %v3530
    %v3532 = vmul.f32 %v3529, %v3531
    %v3533 = vadd.f32 %v3529, %v3532
    %vm3534 = vweird.f32 %v3479
    %vm3535 = vweird.f32 %v3529
    %vm3536 = vmor %vm3534, %vm3535
    %v3537 = vsel %vm3536, %v3529, %v3533
    %v3538 = vand.u32 2147483647, %v3479
    %vm3539 = vcmp.eq.f32.partialorder %v3538, 8.507059e+37
    %v3540 = vand.u32 %v3479, 2147483648
    %v3541 = vor.u32 1.1754944e-38, %v3540
    %v3542 = vsel %vm3539, %v3541, %v3537
    %v3543 = vmul.f32 1.0, %v3542
    %v3544 = vrcp.pop %v3480
    %v3545 = vmul.f32 %v3480, %v3544
    %v3546 = vsub.f32 1.0, %v3545
    %v3547 = vmul.f32 %v3544, %v3546
    %v3548 = vadd.f32 %v3544, %v3547
    %vm3549 = vweird.f32 %v3480
    %vm3550 = vweird.f32 %v3544
    %vm3551 = vmor %vm3549, %vm3550
    %v3552 = vsel %vm3551, %v3544, %v3548
    %v3553 = vand.u32 2147483647, %v3480
    %vm3554 = vcmp.eq.f32.partialorder %v3553, 8.507059e+37
    %v3555 = vand.u32 %v3480, 2147483648
    %v3556 = vor.u32 1.1754944e-38, %v3555
    %v3557 = vsel %vm3554, %v3556, %v3552
    %v3558 = vmul.f32 1.0, %v3557
    %v3559 = vrcp.pop %v3481
    %v3560 = vmul.f32 %v3481, %v3559
    %v3561 = vsub.f32 1.0, %v3560
    %v3562 = vmul.f32 %v3559, %v3561
    %v3563 = vadd.f32 %v3559, %v3562
    %vm3564 = vweird.f32 %v3481
    %vm3565 = vweird.f32 %v3559
    %vm3566 = vmor %vm3564, %vm3565
    %v3567 = vsel %vm3566, %v3559, %v3563
    %v3568 = vand.u32 2147483647, %v3481
    %vm3569 = vcmp.eq.f32.partialorder %v3568, 8.507059e+37
    %v3570 = vand.u32 %v3481, 2147483648
    %v3571 = vor.u32 1.1754944e-38, %v3570
    %v3572 = vsel %vm3569, %v3571, %v3567
    %v3573 = vmul.f32 1.0, %v3572
    %v3574 = vrcp.pop %v3482
    %v3575 = vmul.f32 %v3482, %v3574
    %v3576 = vsub.f32 1.0, %v3575
    %v3577 = vmul.f32 %v3574, %v3576
    %v3578 = vadd.f32 %v3574, %v3577
    %vm3579 = vweird.f32 %v3482
    %vm3580 = vweird.f32 %v3574
    %vm3581 = vmor %vm3579, %vm3580
    %v3582 = vsel %vm3581, %v3574, %v3578
    %v3583 = vand.u32 2147483647, %v3482
    %vm3584 = vcmp.eq.f32.partialorder %v3583, 8.507059e+37
    %v3585 = vand.u32 %v3482, 2147483648
    %v3586 = vor.u32 1.1754944e-38, %v3585
    %v3587 = vsel %vm3584, %v3586, %v3582
    %v3588 = vmul.f32 1.0, %v3587
    %v3589 = vrcp.pop %v3483
    %v3590 = vmul.f32 %v3483, %v3589
    %v3591 = vsub.f32 1.0, %v3590
    %v3592 = vmul.f32 %v3589, %v3591
    %v3593 = vadd.f32 %v3589, %v3592
    %vm3594 = vweird.f32 %v3483
    %vm3595 = vweird.f32 %v3589
    %vm3596 = vmor %vm3594, %vm3595
    %v3597 = vsel %vm3596, %v3589, %v3593
    %v3598 = vand.u32 2147483647, %v3483
    %vm3599 = vcmp.eq.f32.partialorder %v3598, 8.507059e+37
    %v3600 = vand.u32 %v3483, 2147483648
    %v3601 = vor.u32 1.1754944e-38, %v3600
    %v3602 = vsel %vm3599, %v3601, %v3597
    %v3603 = vmul.f32 1.0, %v3602
    %v3604 = vxor.u32 %v3421, 2147483648
    %v3605 = vxor.u32 %v3425, 2147483648
    %v3606 = vxor.u32 %v3429, 2147483648
    %v3607 = vxor.u32 %v3433, 2147483648
    %v3608 = vxor.u32 %v3437, 2147483648
    %v3609 = vxor.u32 %v3441, 2147483648
    %v3610 = vxor.u32 %v3445, 2147483648
    %v3611 = vxor.u32 %v3449, 2147483648
    %v3612 = vmul.f32 %v3604, 1.442695
    %v3613 = vpow.pop %v3612
    %v3614 = vmul.f32 %v3605, 1.442695
    %v3615 = vpow.pop %v3614
    %v3616 = vmul.f32 %v3606, 1.442695
    %v3617 = vpow.pop %v3616
    %v3618 = vmul.f32 %v3607, 1.442695
    %v3619 = vpow.pop %v3618
    %v3620 = vmul.f32 %v3608, 1.442695
    %v3621 = vpow.pop %v3620
    %v3622 = vmul.f32 %v3609, 1.442695
    %v3623 = vpow.pop %v3622
    %v3624 = vmul.f32 %v3610, 1.442695
    %v3625 = vpow.pop %v3624
    %v3626 = vmul.f32 %v3611, 1.442695
    %v3627 = vpow.pop %v3626
    %v3628 = vadd.f32 %v3613, 1.0
    %v3629 = vadd.f32 %v3615, 1.0
    %v3630 = vadd.f32 %v3617, 1.0
    %v3631 = vadd.f32 %v3619, 1.0
    %v3632 = vadd.f32 %v3621, 1.0
    %v3633 = vadd.f32 %v3623, 1.0
    %v3634 = vadd.f32 %v3625, 1.0
    %v3635 = vadd.f32 %v3627, 1.0
    %v3636 = vrcp.pop %v3628
    %v3637 = vmul.f32 %v3628, %v3636
    %v3638 = vsub.f32 1.0, %v3637
    %v3639 = vmul.f32 %v3636, %v3638
    %v3640 = vadd.f32 %v3636, %v3639
    %vm3641 = vweird.f32 %v3628
    %vm3642 = vweird.f32 %v3636
    %vm3643 = vmor %vm3641, %vm3642
    %v3644 = vsel %vm3643, %v3636, %v3640
    %v3645 = vand.u32 2147483647, %v3628
    %vm3646 = vcmp.eq.f32.partialorder %v3645, 8.507059e+37
    %v3647 = vand.u32 %v3628, 2147483648
    %v3648 = vor.u32 1.1754944e-38, %v3647
    %v3649 = vsel %vm3646, %v3648, %v3644
    %v3650 = vmul.f32 1.0, %v3649
    %v3651 = vrcp.pop %v3629
    %v3652 = vmul.f32 %v3629, %v3651
    %v3653 = vsub.f32 1.0, %v3652
    %v3654 = vmul.f32 %v3651, %v3653
    %v3655 = vadd.f32 %v3651, %v3654
    %vm3656 = vweird.f32 %v3629
    %vm3657 = vweird.f32 %v3651
    %vm3658 = vmor %vm3656, %vm3657
    %v3659 = vsel %vm3658, %v3651, %v3655
    %v3660 = vand.u32 2147483647, %v3629
    %vm3661 = vcmp.eq.f32.partialorder %v3660, 8.507059e+37
    %v3662 = vand.u32 %v3629, 2147483648
    %v3663 = vor.u32 1.1754944e-38, %v3662
    %v3664 = vsel %vm3661, %v3663, %v3659
    %v3665 = vmul.f32 1.0, %v3664
    %v3666 = vrcp.pop %v3630
    %v3667 = vmul.f32 %v3630, %v3666
    %v3668 = vsub.f32 1.0, %v3667
    %v3669 = vmul.f32 %v3666, %v3668
    %v3670 = vadd.f32 %v3666, %v3669
    %vm3671 = vweird.f32 %v3630
    %vm3672 = vweird.f32 %v3666
    %vm3673 = vmor %vm3671, %vm3672
    %v3674 = vsel %vm3673, %v3666, %v3670
    %v3675 = vand.u32 2147483647, %v3630
    %vm3676 = vcmp.eq.f32.partialorder %v3675, 8.507059e+37
    %v3677 = vand.u32 %v3630, 2147483648
    %v3678 = vor.u32 1.1754944e-38, %v3677
    %v3679 = vsel %vm3676, %v3678, %v3674
    %v3680 = vmul.f32 1.0, %v3679
    %v3681 = vrcp.pop %v3631
    %v3682 = vmul.f32 %v3631, %v3681
    %v3683 = vsub.f32 1.0, %v3682
    %v3684 = vmul.f32 %v3681, %v3683
    %v3685 = vadd.f32 %v3681, %v3684
    %vm3686 = vweird.f32 %v3631
    %vm3687 = vweird.f32 %v3681
    %vm3688 = vmor %vm3686, %vm3687
    %v3689 = vsel %vm3688, %v3681, %v3685
    %v3690 = vand.u32 2147483647, %v3631
    %vm3691 = vcmp.eq.f32.partialorder %v3690, 8.507059e+37
    %v3692 = vand.u32 %v3631, 2147483648
    %v3693 = vor.u32 1.1754944e-38, %v3692
    %v3694 = vsel %vm3691, %v3693, %v3689
    %v3695 = vmul.f32 1.0, %v3694
    %v3696 = vrcp.pop %v3632
    %v3697 = vmul.f32 %v3632, %v3696
    %v3698 = vsub.f32 1.0, %v3697
    %v3699 = vmul.f32 %v3696, %v3698
    %v3700 = vadd.f32 %v3696, %v3699
    %vm3701 = vweird.f32 %v3632
    %vm3702 = vweird.f32 %v3696
    %vm3703 = vmor %vm3701, %vm3702
    %v3704 = vsel %vm3703, %v3696, %v3700
    %v3705 = vand.u32 2147483647, %v3632
    %vm3706 = vcmp.eq.f32.partialorder %v3705, 8.507059e+37
    %v3707 = vand.u32 %v3632, 2147483648
    %v3708 = vor.u32 1.1754944e-38, %v3707
    %v3709 = vsel %vm3706, %v3708, %v3704
    %v3710 = vmul.f32 1.0, %v3709
    %v3711 = vrcp.pop %v3633
    %v3712 = vmul.f32 %v3633, %v3711
    %v3713 = vsub.f32 1.0, %v3712
    %v3714 = vmul.f32 %v3711, %v3713
    %v3715 = vadd.f32 %v3711, %v3714
    %vm3716 = vweird.f32 %v3633
    %vm3717 = vweird.f32 %v3711
    %vm3718 = vmor %vm3716, %vm3717
    %v3719 = vsel %vm3718, %v3711, %v3715
    %v3720 = vand.u32 2147483647, %v3633
    %vm3721 = vcmp.eq.f32.partialorder %v3720, 8.507059e+37
    %v3722 = vand.u32 %v3633, 2147483648
    %v3723 = vor.u32 1.1754944e-38, %v3722
    %v3724 = vsel %vm3721, %v3723, %v3719
    %v3725 = vmul.f32 1.0, %v3724
    %v3726 = vrcp.pop %v3634
    %v3727 = vmul.f32 %v3634, %v3726
    %v3728 = vsub.f32 1.0, %v3727
    %v3729 = vmul.f32 %v3726, %v3728
    %v3730 = vadd.f32 %v3726, %v3729
    %vm3731 = vweird.f32 %v3634
    %vm3732 = vweird.f32 %v3726
    %vm3733 = vmor %vm3731, %vm3732
    %v3734 = vsel %vm3733, %v3726, %v3730
    %v3735 = vand.u32 2147483647, %v3634
    %vm3736 = vcmp.eq.f32.partialorder %v3735, 8.507059e+37
    %v3737 = vand.u32 %v3634, 2147483648
    %v3738 = vor.u32 1.1754944e-38, %v3737
    %v3739 = vsel %vm3736, %v3738, %v3734
    %v3740 = vmul.f32 1.0, %v3739
    %v3741 = vrcp.pop %v3635
    %v3742 = vmul.f32 %v3635, %v3741
    %v3743 = vsub.f32 1.0, %v3742
    %v3744 = vmul.f32 %v3741, %v3743
    %v3745 = vadd.f32 %v3741, %v3744
    %vm3746 = vweird.f32 %v3635
    %vm3747 = vweird.f32 %v3741
    %vm3748 = vmor %vm3746, %vm3747
    %v3749 = vsel %vm3748, %v3741, %v3745
    %v3750 = vand.u32 2147483647, %v3635
    %vm3751 = vcmp.eq.f32.partialorder %v3750, 8.507059e+37
    %v3752 = vand.u32 %v3635, 2147483648
    %v3753 = vor.u32 1.1754944e-38, %v3752
    %v3754 = vsel %vm3751, %v3753, %v3749
    %v3755 = vmul.f32 1.0, %v3754
    %v3756 = vtanh.pop %v3422
    %v3757 = vtanh.pop %v3426
    %v3758 = vtanh.pop %v3430
    %v3759 = vtanh.pop %v3434
    %v3760 = vtanh.pop %v3438
    %v3761 = vtanh.pop %v3442
    %v3762 = vtanh.pop %v3446
    %v3763 = vtanh.pop %v3450
    %v3764 = vxor.u32 %v3423, 2147483648
    %v3765 = vxor.u32 %v3427, 2147483648
    %v3766 = vxor.u32 %v3431, 2147483648
    %v3767 = vxor.u32 %v3435, 2147483648
    %v3768 = vxor.u32 %v3439, 2147483648
    %v3769 = vxor.u32 %v3443, 2147483648
    %v3770 = vxor.u32 %v3447, 2147483648
    %v3771 = vxor.u32 %v3451, 2147483648
    %v3772 = vmul.f32 %v3764, 1.442695
    %v3773 = vpow.pop %v3772
    %v3774 = vmul.f32 %v3765, 1.442695
    %v3775 = vpow.pop %v3774
    %v3776 = vmul.f32 %v3766, 1.442695
    %v3777 = vpow.pop %v3776
    %v3778 = vmul.f32 %v3767, 1.442695
    %v3779 = vpow.pop %v3778
    %v3780 = vmul.f32 %v3768, 1.442695
    %v3781 = vpow.pop %v3780
    %v3782 = vmul.f32 %v3769, 1.442695
    %v3783 = vpow.pop %v3782
    %v3784 = vmul.f32 %v3770, 1.442695
    %v3785 = vpow.pop %v3784
    %v3786 = vmul.f32 %v3771, 1.442695
    %v3787 = vpow.pop %v3786
    %v3788 = vadd.f32 %v3773, 1.0
    %v3789 = vadd.f32 %v3775, 1.0
    %v3790 = vadd.f32 %v3777, 1.0
    %v3791 = vadd.f32 %v3779, 1.0
    %v3792 = vadd.f32 %v3781, 1.0
    %v3793 = vadd.f32 %v3783, 1.0
    %v3794 = vadd.f32 %v3785, 1.0
    %v3795 = vadd.f32 %v3787, 1.0
    %v3796 = vrcp.pop %v3788
    %v3797 = vmul.f32 %v3788, %v3796
    %v3798 = vsub.f32 1.0, %v3797
    %v3799 = vmul.f32 %v3796, %v3798
    %v3800 = vadd.f32 %v3796, %v3799
    %vm3801 = vweird.f32 %v3788
    %vm3802 = vweird.f32 %v3796
    %vm3803 = vmor %vm3801, %vm3802
    %v3804 = vsel %vm3803, %v3796, %v3800
    %v3805 = vand.u32 2147483647, %v3788
    %vm3806 = vcmp.eq.f32.partialorder %v3805, 8.507059e+37
    %v3807 = vand.u32 %v3788, 2147483648
    %v3808 = vor.u32 1.1754944e-38, %v3807
    %v3809 = vsel %vm3806, %v3808, %v3804
    %v3810 = vmul.f32 1.0, %v3809
    %v3811 = vrcp.pop %v3789
    %v3812 = vmul.f32 %v3789, %v3811
    %v3813 = vsub.f32 1.0, %v3812
    %v3814 = vmul.f32 %v3811, %v3813
    %v3815 = vadd.f32 %v3811, %v3814
    %vm3816 = vweird.f32 %v3789
    %vm3817 = vweird.f32 %v3811
    %vm3818 = vmor %vm3816, %vm3817
    %v3819 = vsel %vm3818, %v3811, %v3815
    %v3820 = vand.u32 2147483647, %v3789
    %vm3821 = vcmp.eq.f32.partialorder %v3820, 8.507059e+37
    %v3822 = vand.u32 %v3789, 2147483648
    %v3823 = vor.u32 1.1754944e-38, %v3822
    %v3824 = vsel %vm3821, %v3823, %v3819
    %v3825 = vmul.f32 1.0, %v3824
    %v3826 = vrcp.pop %v3790
    %v3827 = vmul.f32 %v3790, %v3826
    %v3828 = vsub.f32 1.0, %v3827
    %v3829 = vmul.f32 %v3826, %v3828
    %v3830 = vadd.f32 %v3826, %v3829
    %vm3831 = vweird.f32 %v3790
    %vm3832 = vweird.f32 %v3826
    %vm3833 = vmor %vm3831, %vm3832
    %v3834 = vsel %vm3833, %v3826, %v3830
    %v3835 = vand.u32 2147483647, %v3790
    %vm3836 = vcmp.eq.f32.partialorder %v3835, 8.507059e+37
    %v3837 = vand.u32 %v3790, 2147483648
    %v3838 = vor.u32 1.1754944e-38, %v3837
    %v3839 = vsel %vm3836, %v3838, %v3834
    %v3840 = vmul.f32 1.0, %v3839
    %v3841 = vrcp.pop %v3791
    %v3842 = vmul.f32 %v3791, %v3841
    %v3843 = vsub.f32 1.0, %v3842
    %v3844 = vmul.f32 %v3841, %v3843
    %v3845 = vadd.f32 %v3841, %v3844
    %vm3846 = vweird.f32 %v3791
    %vm3847 = vweird.f32 %v3841
    %vm3848 = vmor %vm3846, %vm3847
    %v3849 = vsel %vm3848, %v3841, %v3845
    %v3850 = vand.u32 2147483647, %v3791
    %vm3851 = vcmp.eq.f32.partialorder %v3850, 8.507059e+37
    %v3852 = vand.u32 %v3791, 2147483648
    %v3853 = vor.u32 1.1754944e-38, %v3852
    %v3854 = vsel %vm3851, %v3853, %v3849
    %v3855 = vmul.f32 1.0, %v3854
    %v3856 = vrcp.pop %v3792
    %v3857 = vmul.f32 %v3792, %v3856
    %v3858 = vsub.f32 1.0, %v3857
    %v3859 = vmul.f32 %v3856, %v3858
    %v3860 = vadd.f32 %v3856, %v3859
    %vm3861 = vweird.f32 %v3792
    %vm3862 = vweird.f32 %v3856
    %vm3863 = vmor %vm3861, %vm3862
    %v3864 = vsel %vm3863, %v3856, %v3860
    %v3865 = vand.u32 2147483647, %v3792
    %vm3866 = vcmp.eq.f32.partialorder %v3865, 8.507059e+37
    %v3867 = vand.u32 %v3792, 2147483648
    %v3868 = vor.u32 1.1754944e-38, %v3867
    %v3869 = vsel %vm3866, %v3868, %v3864
    %v3870 = vmul.f32 1.0, %v3869
    %v3871 = vrcp.pop %v3793
    %v3872 = vmul.f32 %v3793, %v3871
    %v3873 = vsub.f32 1.0, %v3872
    %v3874 = vmul.f32 %v3871, %v3873
    %v3875 = vadd.f32 %v3871, %v3874
    %vm3876 = vweird.f32 %v3793
    %vm3877 = vweird.f32 %v3871
    %vm3878 = vmor %vm3876, %vm3877
    %v3879 = vsel %vm3878, %v3871, %v3875
    %v3880 = vand.u32 2147483647, %v3793
    %vm3881 = vcmp.eq.f32.partialorder %v3880, 8.507059e+37
    %v3882 = vand.u32 %v3793, 2147483648
    %v3883 = vor.u32 1.1754944e-38, %v3882
    %v3884 = vsel %vm3881, %v3883, %v3879
    %v3885 = vmul.f32 1.0, %v3884
    %v3886 = vrcp.pop %v3794
    %v3887 = vmul.f32 %v3794, %v3886
    %v3888 = vsub.f32 1.0, %v3887
    %v3889 = vmul.f32 %v3886, %v3888
    %v3890 = vadd.f32 %v3886, %v3889
    %vm3891 = vweird.f32 %v3794
    %vm3892 = vweird.f32 %v3886
    %vm3893 = vmor %vm3891, %vm3892
    %v3894 = vsel %vm3893, %v3886, %v3890
    %v3895 = vand.u32 2147483647, %v3794
    %vm3896 = vcmp.eq.f32.partialorder %v3895, 8.507059e+37
    %v3897 = vand.u32 %v3794, 2147483648
    %v3898 = vor.u32 1.1754944e-38, %v3897
    %v3899 = vsel %vm3896, %v3898, %v3894
    %v3900 = vmul.f32 1.0, %v3899
    %v3901 = vrcp.pop %v3795
    %v3902 = vmul.f32 %v3795, %v3901
    %v3903 = vsub.f32 1.0, %v3902
    %v3904 = vmul.f32 %v3901, %v3903
    %v3905 = vadd.f32 %v3901, %v3904
    %vm3906 = vweird.f32 %v3795
    %vm3907 = vweird.f32 %v3901
    %vm3908 = vmor %vm3906, %vm3907
    %v3909 = vsel %vm3908, %v3901, %v3905
    %v3910 = vand.u32 2147483647, %v3795
    %vm3911 = vcmp.eq.f32.partialorder %v3910, 8.507059e+37
    %v3912 = vand.u32 %v3795, 2147483648
    %v3913 = vor.u32 1.1754944e-38, %v3912
    %v3914 = vsel %vm3911, %v3913, %v3909
    %v3915 = vmul.f32 1.0, %v3914
    %v3924 = vrot.slane %v3229, 7
    %v3925 = vrot.slane %v3230, 7
    %v3926 = vrot.slane %v3231, 7
    %v3927 = vrot.slane %v3232, 7
    %v3928 = vrot.slane %v3233, 7
    %v3929 = vrot.slane %v3234, 7
    %v3930 = vrot.slane %v3235, 7
    %v3931 = vrot.slane %v3236, 7
    %v3940 = vmul.f32 %v3650, %v3924
    %v3941 = vmul.f32 %v3665, %v3925
    %v3942 = vmul.f32 %v3680, %v3926
    %v3943 = vmul.f32 %v3695, %v3927
    %v3944 = vmul.f32 %v3710, %v3928
    %v3945 = vmul.f32 %v3725, %v3929
    %v3946 = vmul.f32 %v3740, %v3930
    %v3947 = vmul.f32 %v3755, %v3931
    %v3948 = vmul.f32 %v3498, %v3756
    %v3949 = vmul.f32 %v3513, %v3757
    %v3950 = vmul.f32 %v3528, %v3758
    %v3951 = vmul.f32 %v3543, %v3759
    %v3952 = vmul.f32 %v3558, %v3760
    %v3953 = vmul.f32 %v3573, %v3761
    %v3954 = vmul.f32 %v3588, %v3762
    %v3955 = vmul.f32 %v3603, %v3763
    %v3956 = vadd.f32 %v3940, %v3948
    %v3957 = vadd.f32 %v3941, %v3949
    %v3958 = vadd.f32 %v3942, %v3950
    %v3959 = vadd.f32 %v3943, %v3951
    %v3960 = vadd.f32 %v3944, %v3952
    %v3961 = vadd.f32 %v3945, %v3953
    %v3962 = vadd.f32 %v3946, %v3954
    %v3963 = vadd.f32 %v3947, %v3955
    %v3964 = vtanh.pop %v3956
    %v3965 = vtanh.pop %v3957
    %v3966 = vtanh.pop %v3958
    %v3967 = vtanh.pop %v3959
    %v3968 = vtanh.pop %v3960
    %v3969 = vtanh.pop %v3961
    %v3970 = vtanh.pop %v3962
    %v3971 = vtanh.pop %v3963
    %v3972 = vmul.f32 %v3810, %v3964
    %v3973 = vmul.f32 %v3825, %v3965
    %v3974 = vmul.f32 %v3840, %v3966
    %v3975 = vmul.f32 %v3855, %v3967
    %v3976 = vmul.f32 %v3870, %v3968
    %v3977 = vmul.f32 %v3885, %v3969
    %v3978 = vmul.f32 %v3900, %v3970
    %v3979 = vmul.f32 %v3915, %v3971
    %v3988 = vrot.slane %v3972, 4
    %v3989 = vrot.slane %v3973, 3
    %v3990 = vsel %vm1074, %v3989, %v3988
    %v3991 = vrot.slane %v3974, 2
    %v3992 = vsel %vm1077, %v3991, %v3990
    %v3993 = vrot.slane %v3975, 1
    %v3994 = vsel %vm1080, %v3993, %v3992
    %v3995 = vsel %vm1083, %v3976, %v3994
    %v3996 = vrot.slane %v3977, 7
    %v3997 = vsel %vm1086, %v3996, %v3995
    %v3998 = vrot.slane %v3978, 6
    %v3999 = vsel %vm1089, %v3998, %v3997
    %v4000 = vrot.slane %v3979, 5
    %v4001 = vsel %vm1092, %v4000, %v3999
    %4003 = vmatpush.msra.mxu0 %v365
    %4004 = vmatpush.msra.mxu0 %v361
    %4005 = vmatpush.msra.mxu0 %v357
    %4006 = vmatpush.msra.mxu0 %v353
    %4007 = vmatpush.msra.mxu0 %v349
    %4008 = vmatpush.msra.mxu0 %v345
    %4009 = vmatpush.msra.mxu0 %v341
    %4010 = vmatpush.msra.mxu0 %v337
    %4011 = vmatpush.msra.mxu0 %v333
    %4012 = vmatpush.msra.mxu0 %v329
    %4013 = vmatpush.msra.mxu0 %v325
    %4014 = vmatpush.msra.mxu0 %v321
    %4015 = vmatpush.msra.mxu0 %v317
    %4016 = vmatpush.msra.mxu0 %v313
    %4017 = vmatpush.msra.mxu0 %v309
    %4018 = vmatpush.msra.mxu0 %v305
    %4019 = vmatmul.f32.gmra.mxu0 %v4001
    %v4020 = vpop.f32.mrf.mxu0
    %v4021 = vadd.f32 0.0, %v4020
    %4022 = vdwg.mxu0
    %4023 = vmatpush.msra.mxu0 %v366
    %4024 = vmatpush.msra.mxu0 %v362
    %4025 = vmatpush.msra.mxu0 %v358
    %4026 = vmatpush.msra.mxu0 %v354
    %4027 = vmatpush.msra.mxu0 %v350
    %4028 = vmatpush.msra.mxu0 %v346
    %4029 = vmatpush.msra.mxu0 %v342
    %4030 = vmatpush.msra.mxu0 %v338
    %4031 = vmatpush.msra.mxu0 %v334
    %4032 = vmatpush.msra.mxu0 %v330
    %4033 = vmatpush.msra.mxu0 %v326
    %4034 = vmatpush.msra.mxu0 %v322
    %4035 = vmatpush.msra.mxu0 %v318
    %4036 = vmatpush.msra.mxu0 %v314
    %4037 = vmatpush.msra.mxu0 %v310
    %4038 = vmatpush.msra.mxu0 %v306
    %4039 = vmatmul.f32.gmra.mxu0 %v4001
    %v4040 = vpop.f32.mrf.mxu0
    %v4041 = vadd.f32 0.0, %v4040
    %4042 = vdwg.mxu0
    %4043 = vmatpush.msra.mxu0 %v367
    %4044 = vmatpush.msra.mxu0 %v363
    %4045 = vmatpush.msra.mxu0 %v359
    %4046 = vmatpush.msra.mxu0 %v355
    %4047 = vmatpush.msra.mxu0 %v351
    %4048 = vmatpush.msra.mxu0 %v347
    %4049 = vmatpush.msra.mxu0 %v343
    %4050 = vmatpush.msra.mxu0 %v339
    %4051 = vmatpush.msra.mxu0 %v335
    %4052 = vmatpush.msra.mxu0 %v331
    %4053 = vmatpush.msra.mxu0 %v327
    %4054 = vmatpush.msra.mxu0 %v323
    %4055 = vmatpush.msra.mxu0 %v319
    %4056 = vmatpush.msra.mxu0 %v315
    %4057 = vmatpush.msra.mxu0 %v311
    %4058 = vmatpush.msra.mxu0 %v307
    %4059 = vmatmul.f32.gmra.mxu0 %v4001
    %v4060 = vpop.f32.mrf.mxu0
    %v4061 = vadd.f32 0.0, %v4060
    %4062 = vdwg.mxu0
    %4063 = vmatpush.msra.mxu0 %v368
    %4064 = vmatpush.msra.mxu0 %v364
    %4065 = vmatpush.msra.mxu0 %v360
    %4066 = vmatpush.msra.mxu0 %v356
    %4067 = vmatpush.msra.mxu0 %v352
    %4068 = vmatpush.msra.mxu0 %v348
    %4069 = vmatpush.msra.mxu0 %v344
    %4070 = vmatpush.msra.mxu0 %v340
    %4071 = vmatpush.msra.mxu0 %v336
    %4072 = vmatpush.msra.mxu0 %v332
    %4073 = vmatpush.msra.mxu0 %v328
    %4074 = vmatpush.msra.mxu0 %v324
    %4075 = vmatpush.msra.mxu0 %v320
    %4076 = vmatpush.msra.mxu0 %v316
    %4077 = vmatpush.msra.mxu0 %v312
    %4078 = vmatpush.msra.mxu0 %v308
    %4079 = vmatmul.f32.gmra.mxu0 %v4001
    %v4080 = vpop.f32.mrf.mxu0
    %v4081 = vadd.f32 0.0, %v4080
    %4082 = vdwg.mxu0
    %v4087 = vrot.slane %v4021, 3
    %v4088 = vrot.slane %v4041, 3
    %v4089 = vrot.slane %v4061, 3
    %v4090 = vrot.slane %v4081, 3
    %v4091 = vrot.slane %v4021, 4
    %v4092 = vrot.slane %v4041, 4
    %v4093 = vrot.slane %v4061, 4
    %v4094 = vrot.slane %v4081, 4
    %v4095 = vrot.slane %v4021, 5
    %v4096 = vrot.slane %v4041, 5
    %v4097 = vrot.slane %v4061, 5
    %v4098 = vrot.slane %v4081, 5
    %v4099 = vrot.slane %v4021, 6
    %v4100 = vrot.slane %v4041, 6
    %v4101 = vrot.slane %v4061, 6
    %v4102 = vrot.slane %v4081, 6
    %v4103 = vrot.slane %v4021, 7
    %v4104 = vrot.slane %v4041, 7
    %v4105 = vrot.slane %v4061, 7
    %v4106 = vrot.slane %v4081, 7
    %v4107 = vrot.slane %v4021, 1
    %v4108 = vrot.slane %v4041, 1
    %v4109 = vrot.slane %v4061, 1
    %v4110 = vrot.slane %v4081, 1
    %v4111 = vrot.slane %v4021, 2
    %v4112 = vrot.slane %v4041, 2
    %v4113 = vrot.slane %v4061, 2
    %v4114 = vrot.slane %v4081, 2
    %v4147 = vadd.f32 %v157, %v4087
    %v4148 = vadd.f32 %v198, %v4088
    %v4149 = vadd.f32 %v239, %v4089
    %v4150 = vadd.f32 %v280, %v4090
    %v4151 = vadd.f32 %v160, %v4091
    %v4152 = vadd.f32 %v201, %v4092
    %v4153 = vadd.f32 %v242, %v4093
    %v4154 = vadd.f32 %v283, %v4094
    %v4155 = vadd.f32 %v163, %v4095
    %v4156 = vadd.f32 %v204, %v4096
    %v4157 = vadd.f32 %v245, %v4097
    %v4158 = vadd.f32 %v286, %v4098
    %v4159 = vadd.f32 %v166, %v4099
    %v4160 = vadd.f32 %v207, %v4100
    %v4161 = vadd.f32 %v248, %v4101
    %v4162 = vadd.f32 %v289, %v4102
    %v4163 = vadd.f32 %v169, %v4103
    %v4164 = vadd.f32 %v210, %v4104
    %v4165 = vadd.f32 %v251, %v4105
    %v4166 = vadd.f32 %v292, %v4106
    %v4167 = vadd.f32 %v172, %v4021
    %v4168 = vadd.f32 %v213, %v4041
    %v4169 = vadd.f32 %v254, %v4061
    %v4170 = vadd.f32 %v295, %v4081
    %v4171 = vadd.f32 %v175, %v4107
    %v4172 = vadd.f32 %v216, %v4108
    %v4173 = vadd.f32 %v257, %v4109
    %v4174 = vadd.f32 %v298, %v4110
    %v4175 = vadd.f32 %v178, %v4111
    %v4176 = vadd.f32 %v219, %v4112
    %v4177 = vadd.f32 %v260, %v4113
    %v4178 = vadd.f32 %v301, %v4114
    %v4179 = vxor.u32 %v4147, 2147483648
    %v4180 = vxor.u32 %v4151, 2147483648
    %v4181 = vxor.u32 %v4155, 2147483648
    %v4182 = vxor.u32 %v4159, 2147483648
    %v4183 = vxor.u32 %v4163, 2147483648
    %v4184 = vxor.u32 %v4167, 2147483648
    %v4185 = vxor.u32 %v4171, 2147483648
    %v4186 = vxor.u32 %v4175, 2147483648
    %v4187 = vmul.f32 %v4179, 1.442695
    %v4188 = vpow.pop %v4187
    %v4189 = vmul.f32 %v4180, 1.442695
    %v4190 = vpow.pop %v4189
    %v4191 = vmul.f32 %v4181, 1.442695
    %v4192 = vpow.pop %v4191
    %v4193 = vmul.f32 %v4182, 1.442695
    %v4194 = vpow.pop %v4193
    %v4195 = vmul.f32 %v4183, 1.442695
    %v4196 = vpow.pop %v4195
    %v4197 = vmul.f32 %v4184, 1.442695
    %v4198 = vpow.pop %v4197
    %v4199 = vmul.f32 %v4185, 1.442695
    %v4200 = vpow.pop %v4199
    %v4201 = vmul.f32 %v4186, 1.442695
    %v4202 = vpow.pop %v4201
    %v4203 = vadd.f32 %v4188, 1.0
    %v4204 = vadd.f32 %v4190, 1.0
    %v4205 = vadd.f32 %v4192, 1.0
    %v4206 = vadd.f32 %v4194, 1.0
    %v4207 = vadd.f32 %v4196, 1.0
    %v4208 = vadd.f32 %v4198, 1.0
    %v4209 = vadd.f32 %v4200, 1.0
    %v4210 = vadd.f32 %v4202, 1.0
    %v4211 = vrcp.pop %v4203
    %v4212 = vmul.f32 %v4203, %v4211
    %v4213 = vsub.f32 1.0, %v4212
    %v4214 = vmul.f32 %v4211, %v4213
    %v4215 = vadd.f32 %v4211, %v4214
    %vm4216 = vweird.f32 %v4203
    %vm4217 = vweird.f32 %v4211
    %vm4218 = vmor %vm4216, %vm4217
    %v4219 = vsel %vm4218, %v4211, %v4215
    %v4220 = vand.u32 2147483647, %v4203
    %vm4221 = vcmp.eq.f32.partialorder %v4220, 8.507059e+37
    %v4222 = vand.u32 %v4203, 2147483648
    %v4223 = vor.u32 1.1754944e-38, %v4222
    %v4224 = vsel %vm4221, %v4223, %v4219
    %v4225 = vmul.f32 1.0, %v4224
    %v4226 = vrcp.pop %v4204
    %v4227 = vmul.f32 %v4204, %v4226
    %v4228 = vsub.f32 1.0, %v4227
    %v4229 = vmul.f32 %v4226, %v4228
    %v4230 = vadd.f32 %v4226, %v4229
    %vm4231 = vweird.f32 %v4204
    %vm4232 = vweird.f32 %v4226
    %vm4233 = vmor %vm4231, %vm4232
    %v4234 = vsel %vm4233, %v4226, %v4230
    %v4235 = vand.u32 2147483647, %v4204
    %vm4236 = vcmp.eq.f32.partialorder %v4235, 8.507059e+37
    %v4237 = vand.u32 %v4204, 2147483648
    %v4238 = vor.u32 1.1754944e-38, %v4237
    %v4239 = vsel %vm4236, %v4238, %v4234
    %v4240 = vmul.f32 1.0, %v4239
    %v4241 = vrcp.pop %v4205
    %v4242 = vmul.f32 %v4205, %v4241
    %v4243 = vsub.f32 1.0, %v4242
    %v4244 = vmul.f32 %v4241, %v4243
    %v4245 = vadd.f32 %v4241, %v4244
    %vm4246 = vweird.f32 %v4205
    %vm4247 = vweird.f32 %v4241
    %vm4248 = vmor %vm4246, %vm4247
    %v4249 = vsel %vm4248, %v4241, %v4245
    %v4250 = vand.u32 2147483647, %v4205
    %vm4251 = vcmp.eq.f32.partialorder %v4250, 8.507059e+37
    %v4252 = vand.u32 %v4205, 2147483648
    %v4253 = vor.u32 1.1754944e-38, %v4252
    %v4254 = vsel %vm4251, %v4253, %v4249
    %v4255 = vmul.f32 1.0, %v4254
    %v4256 = vrcp.pop %v4206
    %v4257 = vmul.f32 %v4206, %v4256
    %v4258 = vsub.f32 1.0, %v4257
    %v4259 = vmul.f32 %v4256, %v4258
    %v4260 = vadd.f32 %v4256, %v4259
    %vm4261 = vweird.f32 %v4206
    %vm4262 = vweird.f32 %v4256
    %vm4263 = vmor %vm4261, %vm4262
    %v4264 = vsel %vm4263, %v4256, %v4260
    %v4265 = vand.u32 2147483647, %v4206
    %vm4266 = vcmp.eq.f32.partialorder %v4265, 8.507059e+37
    %v4267 = vand.u32 %v4206, 2147483648
    %v4268 = vor.u32 1.1754944e-38, %v4267
    %v4269 = vsel %vm4266, %v4268, %v4264
    %v4270 = vmul.f32 1.0, %v4269
    %v4271 = vrcp.pop %v4207
    %v4272 = vmul.f32 %v4207, %v4271
    %v4273 = vsub.f32 1.0, %v4272
    %v4274 = vmul.f32 %v4271, %v4273
    %v4275 = vadd.f32 %v4271, %v4274
    %vm4276 = vweird.f32 %v4207
    %vm4277 = vweird.f32 %v4271
    %vm4278 = vmor %vm4276, %vm4277
    %v4279 = vsel %vm4278, %v4271, %v4275
    %v4280 = vand.u32 2147483647, %v4207
    %vm4281 = vcmp.eq.f32.partialorder %v4280, 8.507059e+37
    %v4282 = vand.u32 %v4207, 2147483648
    %v4283 = vor.u32 1.1754944e-38, %v4282
    %v4284 = vsel %vm4281, %v4283, %v4279
    %v4285 = vmul.f32 1.0, %v4284
    %v4286 = vrcp.pop %v4208
    %v4287 = vmul.f32 %v4208, %v4286
    %v4288 = vsub.f32 1.0, %v4287
    %v4289 = vmul.f32 %v4286, %v4288
    %v4290 = vadd.f32 %v4286, %v4289
    %vm4291 = vweird.f32 %v4208
    %vm4292 = vweird.f32 %v4286
    %vm4293 = vmor %vm4291, %vm4292
    %v4294 = vsel %vm4293, %v4286, %v4290
    %v4295 = vand.u32 2147483647, %v4208
    %vm4296 = vcmp.eq.f32.partialorder %v4295, 8.507059e+37
    %v4297 = vand.u32 %v4208, 2147483648
    %v4298 = vor.u32 1.1754944e-38, %v4297
    %v4299 = vsel %vm4296, %v4298, %v4294
    %v4300 = vmul.f32 1.0, %v4299
    %v4301 = vrcp.pop %v4209
    %v4302 = vmul.f32 %v4209, %v4301
    %v4303 = vsub.f32 1.0, %v4302
    %v4304 = vmul.f32 %v4301, %v4303
    %v4305 = vadd.f32 %v4301, %v4304
    %vm4306 = vweird.f32 %v4209
    %vm4307 = vweird.f32 %v4301
    %vm4308 = vmor %vm4306, %vm4307
    %v4309 = vsel %vm4308, %v4301, %v4305
    %v4310 = vand.u32 2147483647, %v4209
    %vm4311 = vcmp.eq.f32.partialorder %v4310, 8.507059e+37
    %v4312 = vand.u32 %v4209, 2147483648
    %v4313 = vor.u32 1.1754944e-38, %v4312
    %v4314 = vsel %vm4311, %v4313, %v4309
    %v4315 = vmul.f32 1.0, %v4314
    %v4316 = vrcp.pop %v4210
    %v4317 = vmul.f32 %v4210, %v4316
    %v4318 = vsub.f32 1.0, %v4317
    %v4319 = vmul.f32 %v4316, %v4318
    %v4320 = vadd.f32 %v4316, %v4319
    %vm4321 = vweird.f32 %v4210
    %vm4322 = vweird.f32 %v4316
    %vm4323 = vmor %vm4321, %vm4322
    %v4324 = vsel %vm4323, %v4316, %v4320
    %v4325 = vand.u32 2147483647, %v4210
    %vm4326 = vcmp.eq.f32.partialorder %v4325, 8.507059e+37
    %v4327 = vand.u32 %v4210, 2147483648
    %v4328 = vor.u32 1.1754944e-38, %v4327
    %v4329 = vsel %vm4326, %v4328, %v4324
    %v4330 = vmul.f32 1.0, %v4329
    %v4331 = vxor.u32 %v4148, 2147483648
    %v4332 = vxor.u32 %v4152, 2147483648
    %v4333 = vxor.u32 %v4156, 2147483648
    %v4334 = vxor.u32 %v4160, 2147483648
    %v4335 = vxor.u32 %v4164, 2147483648
    %v4336 = vxor.u32 %v4168, 2147483648
    %v4337 = vxor.u32 %v4172, 2147483648
    %v4338 = vxor.u32 %v4176, 2147483648
    %v4339 = vmul.f32 %v4331, 1.442695
    %v4340 = vpow.pop %v4339
    %v4341 = vmul.f32 %v4332, 1.442695
    %v4342 = vpow.pop %v4341
    %v4343 = vmul.f32 %v4333, 1.442695
    %v4344 = vpow.pop %v4343
    %v4345 = vmul.f32 %v4334, 1.442695
    %v4346 = vpow.pop %v4345
    %v4347 = vmul.f32 %v4335, 1.442695
    %v4348 = vpow.pop %v4347
    %v4349 = vmul.f32 %v4336, 1.442695
    %v4350 = vpow.pop %v4349
    %v4351 = vmul.f32 %v4337, 1.442695
    %v4352 = vpow.pop %v4351
    %v4353 = vmul.f32 %v4338, 1.442695
    %v4354 = vpow.pop %v4353
    %v4355 = vadd.f32 %v4340, 1.0
    %v4356 = vadd.f32 %v4342, 1.0
    %v4357 = vadd.f32 %v4344, 1.0
    %v4358 = vadd.f32 %v4346, 1.0
    %v4359 = vadd.f32 %v4348, 1.0
    %v4360 = vadd.f32 %v4350, 1.0
    %v4361 = vadd.f32 %v4352, 1.0
    %v4362 = vadd.f32 %v4354, 1.0
    %v4363 = vrcp.pop %v4355
    %v4364 = vmul.f32 %v4355, %v4363
    %v4365 = vsub.f32 1.0, %v4364
    %v4366 = vmul.f32 %v4363, %v4365
    %v4367 = vadd.f32 %v4363, %v4366
    %vm4368 = vweird.f32 %v4355
    %vm4369 = vweird.f32 %v4363
    %vm4370 = vmor %vm4368, %vm4369
    %v4371 = vsel %vm4370, %v4363, %v4367
    %v4372 = vand.u32 2147483647, %v4355
    %vm4373 = vcmp.eq.f32.partialorder %v4372, 8.507059e+37
    %v4374 = vand.u32 %v4355, 2147483648
    %v4375 = vor.u32 1.1754944e-38, %v4374
    %v4376 = vsel %vm4373, %v4375, %v4371
    %v4377 = vmul.f32 1.0, %v4376
    %v4378 = vrcp.pop %v4356
    %v4379 = vmul.f32 %v4356, %v4378
    %v4380 = vsub.f32 1.0, %v4379
    %v4381 = vmul.f32 %v4378, %v4380
    %v4382 = vadd.f32 %v4378, %v4381
    %vm4383 = vweird.f32 %v4356
    %vm4384 = vweird.f32 %v4378
    %vm4385 = vmor %vm4383, %vm4384
    %v4386 = vsel %vm4385, %v4378, %v4382
    %v4387 = vand.u32 2147483647, %v4356
    %vm4388 = vcmp.eq.f32.partialorder %v4387, 8.507059e+37
    %v4389 = vand.u32 %v4356, 2147483648
    %v4390 = vor.u32 1.1754944e-38, %v4389
    %v4391 = vsel %vm4388, %v4390, %v4386
    %v4392 = vmul.f32 1.0, %v4391
    %v4393 = vrcp.pop %v4357
    %v4394 = vmul.f32 %v4357, %v4393
    %v4395 = vsub.f32 1.0, %v4394
    %v4396 = vmul.f32 %v4393, %v4395
    %v4397 = vadd.f32 %v4393, %v4396
    %vm4398 = vweird.f32 %v4357
    %vm4399 = vweird.f32 %v4393
    %vm4400 = vmor %vm4398, %vm4399
    %v4401 = vsel %vm4400, %v4393, %v4397
    %v4402 = vand.u32 2147483647, %v4357
    %vm4403 = vcmp.eq.f32.partialorder %v4402, 8.507059e+37
    %v4404 = vand.u32 %v4357, 2147483648
    %v4405 = vor.u32 1.1754944e-38, %v4404
    %v4406 = vsel %vm4403, %v4405, %v4401
    %v4407 = vmul.f32 1.0, %v4406
    %v4408 = vrcp.pop %v4358
    %v4409 = vmul.f32 %v4358, %v4408
    %v4410 = vsub.f32 1.0, %v4409
    %v4411 = vmul.f32 %v4408, %v4410
    %v4412 = vadd.f32 %v4408, %v4411
    %vm4413 = vweird.f32 %v4358
    %vm4414 = vweird.f32 %v4408
    %vm4415 = vmor %vm4413, %vm4414
    %v4416 = vsel %vm4415, %v4408, %v4412
    %v4417 = vand.u32 2147483647, %v4358
    %vm4418 = vcmp.eq.f32.partialorder %v4417, 8.507059e+37
    %v4419 = vand.u32 %v4358, 2147483648
    %v4420 = vor.u32 1.1754944e-38, %v4419
    %v4421 = vsel %vm4418, %v4420, %v4416
    %v4422 = vmul.f32 1.0, %v4421
    %v4423 = vrcp.pop %v4359
    %v4424 = vmul.f32 %v4359, %v4423
    %v4425 = vsub.f32 1.0, %v4424
    %v4426 = vmul.f32 %v4423, %v4425
    %v4427 = vadd.f32 %v4423, %v4426
    %vm4428 = vweird.f32 %v4359
    %vm4429 = vweird.f32 %v4423
    %vm4430 = vmor %vm4428, %vm4429
    %v4431 = vsel %vm4430, %v4423, %v4427
    %v4432 = vand.u32 2147483647, %v4359
    %vm4433 = vcmp.eq.f32.partialorder %v4432, 8.507059e+37
    %v4434 = vand.u32 %v4359, 2147483648
    %v4435 = vor.u32 1.1754944e-38, %v4434
    %v4436 = vsel %vm4433, %v4435, %v4431
    %v4437 = vmul.f32 1.0, %v4436
    %v4438 = vrcp.pop %v4360
    %v4439 = vmul.f32 %v4360, %v4438
    %v4440 = vsub.f32 1.0, %v4439
    %v4441 = vmul.f32 %v4438, %v4440
    %v4442 = vadd.f32 %v4438, %v4441
    %vm4443 = vweird.f32 %v4360
    %vm4444 = vweird.f32 %v4438
    %vm4445 = vmor %vm4443, %vm4444
    %v4446 = vsel %vm4445, %v4438, %v4442
    %v4447 = vand.u32 2147483647, %v4360
    %vm4448 = vcmp.eq.f32.partialorder %v4447, 8.507059e+37
    %v4449 = vand.u32 %v4360, 2147483648
    %v4450 = vor.u32 1.1754944e-38, %v4449
    %v4451 = vsel %vm4448, %v4450, %v4446
    %v4452 = vmul.f32 1.0, %v4451
    %v4453 = vrcp.pop %v4361
    %v4454 = vmul.f32 %v4361, %v4453
    %v4455 = vsub.f32 1.0, %v4454
    %v4456 = vmul.f32 %v4453, %v4455
    %v4457 = vadd.f32 %v4453, %v4456
    %vm4458 = vweird.f32 %v4361
    %vm4459 = vweird.f32 %v4453
    %vm4460 = vmor %vm4458, %vm4459
    %v4461 = vsel %vm4460, %v4453, %v4457
    %v4462 = vand.u32 2147483647, %v4361
    %vm4463 = vcmp.eq.f32.partialorder %v4462, 8.507059e+37
    %v4464 = vand.u32 %v4361, 2147483648
    %v4465 = vor.u32 1.1754944e-38, %v4464
    %v4466 = vsel %vm4463, %v4465, %v4461
    %v4467 = vmul.f32 1.0, %v4466
    %v4468 = vrcp.pop %v4362
    %v4469 = vmul.f32 %v4362, %v4468
    %v4470 = vsub.f32 1.0, %v4469
    %v4471 = vmul.f32 %v4468, %v4470
    %v4472 = vadd.f32 %v4468, %v4471
    %vm4473 = vweird.f32 %v4362
    %vm4474 = vweird.f32 %v4468
    %vm4475 = vmor %vm4473, %vm4474
    %v4476 = vsel %vm4475, %v4468, %v4472
    %v4477 = vand.u32 2147483647, %v4362
    %vm4478 = vcmp.eq.f32.partialorder %v4477, 8.507059e+37
    %v4479 = vand.u32 %v4362, 2147483648
    %v4480 = vor.u32 1.1754944e-38, %v4479
    %v4481 = vsel %vm4478, %v4480, %v4476
    %v4482 = vmul.f32 1.0, %v4481
    %v4483 = vtanh.pop %v4149
    %v4484 = vtanh.pop %v4153
    %v4485 = vtanh.pop %v4157
    %v4486 = vtanh.pop %v4161
    %v4487 = vtanh.pop %v4165
    %v4488 = vtanh.pop %v4169
    %v4489 = vtanh.pop %v4173
    %v4490 = vtanh.pop %v4177
    %v4491 = vxor.u32 %v4150, 2147483648
    %v4492 = vxor.u32 %v4154, 2147483648
    %v4493 = vxor.u32 %v4158, 2147483648
    %v4494 = vxor.u32 %v4162, 2147483648
    %v4495 = vxor.u32 %v4166, 2147483648
    %v4496 = vxor.u32 %v4170, 2147483648
    %v4497 = vxor.u32 %v4174, 2147483648
    %v4498 = vxor.u32 %v4178, 2147483648
    %v4499 = vmul.f32 %v4491, 1.442695
    %v4500 = vpow.pop %v4499
    %v4501 = vmul.f32 %v4492, 1.442695
    %v4502 = vpow.pop %v4501
    %v4503 = vmul.f32 %v4493, 1.442695
    %v4504 = vpow.pop %v4503
    %v4505 = vmul.f32 %v4494, 1.442695
    %v4506 = vpow.pop %v4505
    %v4507 = vmul.f32 %v4495, 1.442695
    %v4508 = vpow.pop %v4507
    %v4509 = vmul.f32 %v4496, 1.442695
    %v4510 = vpow.pop %v4509
    %v4511 = vmul.f32 %v4497, 1.442695
    %v4512 = vpow.pop %v4511
    %v4513 = vmul.f32 %v4498, 1.442695
    %v4514 = vpow.pop %v4513
    %v4515 = vadd.f32 %v4500, 1.0
    %v4516 = vadd.f32 %v4502, 1.0
    %v4517 = vadd.f32 %v4504, 1.0
    %v4518 = vadd.f32 %v4506, 1.0
    %v4519 = vadd.f32 %v4508, 1.0
    %v4520 = vadd.f32 %v4510, 1.0
    %v4521 = vadd.f32 %v4512, 1.0
    %v4522 = vadd.f32 %v4514, 1.0
    %v4523 = vrcp.pop %v4515
    %v4524 = vmul.f32 %v4515, %v4523
    %v4525 = vsub.f32 1.0, %v4524
    %v4526 = vmul.f32 %v4523, %v4525
    %v4527 = vadd.f32 %v4523, %v4526
    %vm4528 = vweird.f32 %v4515
    %vm4529 = vweird.f32 %v4523
    %vm4530 = vmor %vm4528, %vm4529
    %v4531 = vsel %vm4530, %v4523, %v4527
    %v4532 = vand.u32 2147483647, %v4515
    %vm4533 = vcmp.eq.f32.partialorder %v4532, 8.507059e+37
    %v4534 = vand.u32 %v4515, 2147483648
    %v4535 = vor.u32 1.1754944e-38, %v4534
    %v4536 = vsel %vm4533, %v4535, %v4531
    %v4537 = vmul.f32 1.0, %v4536
    %v4538 = vrcp.pop %v4516
    %v4539 = vmul.f32 %v4516, %v4538
    %v4540 = vsub.f32 1.0, %v4539
    %v4541 = vmul.f32 %v4538, %v4540
    %v4542 = vadd.f32 %v4538, %v4541
    %vm4543 = vweird.f32 %v4516
    %vm4544 = vweird.f32 %v4538
    %vm4545 = vmor %vm4543, %vm4544
    %v4546 = vsel %vm4545, %v4538, %v4542
    %v4547 = vand.u32 2147483647, %v4516
    %vm4548 = vcmp.eq.f32.partialorder %v4547, 8.507059e+37
    %v4549 = vand.u32 %v4516, 2147483648
    %v4550 = vor.u32 1.1754944e-38, %v4549
    %v4551 = vsel %vm4548, %v4550, %v4546
    %v4552 = vmul.f32 1.0, %v4551
    %v4553 = vrcp.pop %v4517
    %v4554 = vmul.f32 %v4517, %v4553
    %v4555 = vsub.f32 1.0, %v4554
    %v4556 = vmul.f32 %v4553, %v4555
    %v4557 = vadd.f32 %v4553, %v4556
    %vm4558 = vweird.f32 %v4517
    %vm4559 = vweird.f32 %v4553
    %vm4560 = vmor %vm4558, %vm4559
    %v4561 = vsel %vm4560, %v4553, %v4557
    %v4562 = vand.u32 2147483647, %v4517
    %vm4563 = vcmp.eq.f32.partialorder %v4562, 8.507059e+37
    %v4564 = vand.u32 %v4517, 2147483648
    %v4565 = vor.u32 1.1754944e-38, %v4564
    %v4566 = vsel %vm4563, %v4565, %v4561
    %v4567 = vmul.f32 1.0, %v4566
    %v4568 = vrcp.pop %v4518
    %v4569 = vmul.f32 %v4518, %v4568
    %v4570 = vsub.f32 1.0, %v4569
    %v4571 = vmul.f32 %v4568, %v4570
    %v4572 = vadd.f32 %v4568, %v4571
    %vm4573 = vweird.f32 %v4518
    %vm4574 = vweird.f32 %v4568
    %vm4575 = vmor %vm4573, %vm4574
    %v4576 = vsel %vm4575, %v4568, %v4572
    %v4577 = vand.u32 2147483647, %v4518
    %vm4578 = vcmp.eq.f32.partialorder %v4577, 8.507059e+37
    %v4579 = vand.u32 %v4518, 2147483648
    %v4580 = vor.u32 1.1754944e-38, %v4579
    %v4581 = vsel %vm4578, %v4580, %v4576
    %v4582 = vmul.f32 1.0, %v4581
    %v4583 = vrcp.pop %v4519
    %v4584 = vmul.f32 %v4519, %v4583
    %v4585 = vsub.f32 1.0, %v4584
    %v4586 = vmul.f32 %v4583, %v4585
    %v4587 = vadd.f32 %v4583, %v4586
    %vm4588 = vweird.f32 %v4519
    %vm4589 = vweird.f32 %v4583
    %vm4590 = vmor %vm4588, %vm4589
    %v4591 = vsel %vm4590, %v4583, %v4587
    %v4592 = vand.u32 2147483647, %v4519
    %vm4593 = vcmp.eq.f32.partialorder %v4592, 8.507059e+37
    %v4594 = vand.u32 %v4519, 2147483648
    %v4595 = vor.u32 1.1754944e-38, %v4594
    %v4596 = vsel %vm4593, %v4595, %v4591
    %v4597 = vmul.f32 1.0, %v4596
    %v4598 = vrcp.pop %v4520
    %v4599 = vmul.f32 %v4520, %v4598
    %v4600 = vsub.f32 1.0, %v4599
    %v4601 = vmul.f32 %v4598, %v4600
    %v4602 = vadd.f32 %v4598, %v4601
    %vm4603 = vweird.f32 %v4520
    %vm4604 = vweird.f32 %v4598
    %vm4605 = vmor %vm4603, %vm4604
    %v4606 = vsel %vm4605, %v4598, %v4602
    %v4607 = vand.u32 2147483647, %v4520
    %vm4608 = vcmp.eq.f32.partialorder %v4607, 8.507059e+37
    %v4609 = vand.u32 %v4520, 2147483648
    %v4610 = vor.u32 1.1754944e-38, %v4609
    %v4611 = vsel %vm4608, %v4610, %v4606
    %v4612 = vmul.f32 1.0, %v4611
    %v4613 = vrcp.pop %v4521
    %v4614 = vmul.f32 %v4521, %v4613
    %v4615 = vsub.f32 1.0, %v4614
    %v4616 = vmul.f32 %v4613, %v4615
    %v4617 = vadd.f32 %v4613, %v4616
    %vm4618 = vweird.f32 %v4521
    %vm4619 = vweird.f32 %v4613
    %vm4620 = vmor %vm4618, %vm4619
    %v4621 = vsel %vm4620, %v4613, %v4617
    %v4622 = vand.u32 2147483647, %v4521
    %vm4623 = vcmp.eq.f32.partialorder %v4622, 8.507059e+37
    %v4624 = vand.u32 %v4521, 2147483648
    %v4625 = vor.u32 1.1754944e-38, %v4624
    %v4626 = vsel %vm4623, %v4625, %v4621
    %v4627 = vmul.f32 1.0, %v4626
    %v4628 = vrcp.pop %v4522
    %v4629 = vmul.f32 %v4522, %v4628
    %v4630 = vsub.f32 1.0, %v4629
    %v4631 = vmul.f32 %v4628, %v4630
    %v4632 = vadd.f32 %v4628, %v4631
    %vm4633 = vweird.f32 %v4522
    %vm4634 = vweird.f32 %v4628
    %vm4635 = vmor %vm4633, %vm4634
    %v4636 = vsel %vm4635, %v4628, %v4632
    %v4637 = vand.u32 2147483647, %v4522
    %vm4638 = vcmp.eq.f32.partialorder %v4637, 8.507059e+37
    %v4639 = vand.u32 %v4522, 2147483648
    %v4640 = vor.u32 1.1754944e-38, %v4639
    %v4641 = vsel %vm4638, %v4640, %v4636
    %v4642 = vmul.f32 1.0, %v4641
    %v4651 = vrot.slane %v3956, 7
    %v4652 = vrot.slane %v3957, 7
    %v4653 = vrot.slane %v3958, 7
    %v4654 = vrot.slane %v3959, 7
    %v4655 = vrot.slane %v3960, 7
    %v4656 = vrot.slane %v3961, 7
    %v4657 = vrot.slane %v3962, 7
    %v4658 = vrot.slane %v3963, 7
    %v4667 = vmul.f32 %v4377, %v4651
    %v4668 = vmul.f32 %v4392, %v4652
    %v4669 = vmul.f32 %v4407, %v4653
    %v4670 = vmul.f32 %v4422, %v4654
    %v4671 = vmul.f32 %v4437, %v4655
    %v4672 = vmul.f32 %v4452, %v4656
    %v4673 = vmul.f32 %v4467, %v4657
    %v4674 = vmul.f32 %v4482, %v4658
    %v4675 = vmul.f32 %v4225, %v4483
    %v4676 = vmul.f32 %v4240, %v4484
    %v4677 = vmul.f32 %v4255, %v4485
    %v4678 = vmul.f32 %v4270, %v4486
    %v4679 = vmul.f32 %v4285, %v4487
    %v4680 = vmul.f32 %v4300, %v4488
    %v4681 = vmul.f32 %v4315, %v4489
    %v4682 = vmul.f32 %v4330, %v4490
    %v4683 = vadd.f32 %v4667, %v4675
    %v4684 = vadd.f32 %v4668, %v4676
    %v4685 = vadd.f32 %v4669, %v4677
    %v4686 = vadd.f32 %v4670, %v4678
    %v4687 = vadd.f32 %v4671, %v4679
    %v4688 = vadd.f32 %v4672, %v4680
    %v4689 = vadd.f32 %v4673, %v4681
    %v4690 = vadd.f32 %v4674, %v4682
    %v4691 = vtanh.pop %v4683
    %v4692 = vtanh.pop %v4684
    %v4693 = vtanh.pop %v4685
    %v4694 = vtanh.pop %v4686
    %v4695 = vtanh.pop %v4687
    %v4696 = vtanh.pop %v4688
    %v4697 = vtanh.pop %v4689
    %v4698 = vtanh.pop %v4690
    %v4699 = vmul.f32 %v4537, %v4691
    %v4700 = vmul.f32 %v4552, %v4692
    %v4701 = vmul.f32 %v4567, %v4693
    %v4702 = vmul.f32 %v4582, %v4694
    %v4703 = vmul.f32 %v4597, %v4695
    %v4704 = vmul.f32 %v4612, %v4696
    %v4705 = vmul.f32 %v4627, %v4697
    %v4706 = vmul.f32 %v4642, %v4698
    %v4715 = vrot.slane %v4699, 5
    %v4716 = vrot.slane %v4700, 4
    %v4717 = vsel %vm1074, %v4716, %v4715
    %v4718 = vrot.slane %v4701, 3
    %v4719 = vsel %vm1077, %v4718, %v4717
    %v4720 = vrot.slane %v4702, 2
    %v4721 = vsel %vm1080, %v4720, %v4719
    %v4722 = vrot.slane %v4703, 1
    %v4723 = vsel %vm1083, %v4722, %v4721
    %v4724 = vsel %vm1086, %v4704, %v4723
    %v4725 = vrot.slane %v4705, 7
    %v4726 = vsel %vm1089, %v4725, %v4724
    %v4727 = vrot.slane %v4706, 6
    %v4728 = vsel %vm1092, %v4727, %v4726
    %4730 = vmatpush.msra.mxu0 %v365
    %4731 = vmatpush.msra.mxu0 %v361
    %4732 = vmatpush.msra.mxu0 %v357
    %4733 = vmatpush.msra.mxu0 %v353
    %4734 = vmatpush.msra.mxu0 %v349
    %4735 = vmatpush.msra.mxu0 %v345
    %4736 = vmatpush.msra.mxu0 %v341
    %4737 = vmatpush.msra.mxu0 %v337
    %4738 = vmatpush.msra.mxu0 %v333
    %4739 = vmatpush.msra.mxu0 %v329
    %4740 = vmatpush.msra.mxu0 %v325
    %4741 = vmatpush.msra.mxu0 %v321
    %4742 = vmatpush.msra.mxu0 %v317
    %4743 = vmatpush.msra.mxu0 %v313
    %4744 = vmatpush.msra.mxu0 %v309
    %4745 = vmatpush.msra.mxu0 %v305
    %4746 = vmatmul.f32.gmra.mxu0 %v4728
    %v4747 = vpop.f32.mrf.mxu0
    %v4748 = vadd.f32 0.0, %v4747
    %4749 = vdwg.mxu0
    %4750 = vmatpush.msra.mxu0 %v366
    %4751 = vmatpush.msra.mxu0 %v362
    %4752 = vmatpush.msra.mxu0 %v358
    %4753 = vmatpush.msra.mxu0 %v354
    %4754 = vmatpush.msra.mxu0 %v350
    %4755 = vmatpush.msra.mxu0 %v346
    %4756 = vmatpush.msra.mxu0 %v342
    %4757 = vmatpush.msra.mxu0 %v338
    %4758 = vmatpush.msra.mxu0 %v334
    %4759 = vmatpush.msra.mxu0 %v330
    %4760 = vmatpush.msra.mxu0 %v326
    %4761 = vmatpush.msra.mxu0 %v322
    %4762 = vmatpush.msra.mxu0 %v318
    %4763 = vmatpush.msra.mxu0 %v314
    %4764 = vmatpush.msra.mxu0 %v310
    %4765 = vmatpush.msra.mxu0 %v306
    %4766 = vmatmul.f32.gmra.mxu0 %v4728
    %v4767 = vpop.f32.mrf.mxu0
    %v4768 = vadd.f32 0.0, %v4767
    %4769 = vdwg.mxu0
    %4770 = vmatpush.msra.mxu0 %v367
    %4771 = vmatpush.msra.mxu0 %v363
    %4772 = vmatpush.msra.mxu0 %v359
    %4773 = vmatpush.msra.mxu0 %v355
    %4774 = vmatpush.msra.mxu0 %v351
    %4775 = vmatpush.msra.mxu0 %v347
    %4776 = vmatpush.msra.mxu0 %v343
    %4777 = vmatpush.msra.mxu0 %v339
    %4778 = vmatpush.msra.mxu0 %v335
    %4779 = vmatpush.msra.mxu0 %v331
    %4780 = vmatpush.msra.mxu0 %v327
    %4781 = vmatpush.msra.mxu0 %v323
    %4782 = vmatpush.msra.mxu0 %v319
    %4783 = vmatpush.msra.mxu0 %v315
    %4784 = vmatpush.msra.mxu0 %v311
    %4785 = vmatpush.msra.mxu0 %v307
    %4786 = vmatmul.f32.gmra.mxu0 %v4728
    %v4787 = vpop.f32.mrf.mxu0
    %v4788 = vadd.f32 0.0, %v4787
    %4789 = vdwg.mxu0
    %4790 = vmatpush.msra.mxu0 %v368
    %4791 = vmatpush.msra.mxu0 %v364
    %4792 = vmatpush.msra.mxu0 %v360
    %4793 = vmatpush.msra.mxu0 %v356
    %4794 = vmatpush.msra.mxu0 %v352
    %4795 = vmatpush.msra.mxu0 %v348
    %4796 = vmatpush.msra.mxu0 %v344
    %4797 = vmatpush.msra.mxu0 %v340
    %4798 = vmatpush.msra.mxu0 %v336
    %4799 = vmatpush.msra.mxu0 %v332
    %4800 = vmatpush.msra.mxu0 %v328
    %4801 = vmatpush.msra.mxu0 %v324
    %4802 = vmatpush.msra.mxu0 %v320
    %4803 = vmatpush.msra.mxu0 %v316
    %4804 = vmatpush.msra.mxu0 %v312
    %4805 = vmatpush.msra.mxu0 %v308
    %4806 = vmatmul.f32.gmra.mxu0 %v4728
    %v4807 = vpop.f32.mrf.mxu0
    %v4808 = vadd.f32 0.0, %v4807
    %4809 = vdwg.mxu0
    %v4814 = vrot.slane %v4748, 2
    %v4815 = vrot.slane %v4768, 2
    %v4816 = vrot.slane %v4788, 2
    %v4817 = vrot.slane %v4808, 2
    %v4818 = vrot.slane %v4748, 3
    %v4819 = vrot.slane %v4768, 3
    %v4820 = vrot.slane %v4788, 3
    %v4821 = vrot.slane %v4808, 3
    %v4822 = vrot.slane %v4748, 4
    %v4823 = vrot.slane %v4768, 4
    %v4824 = vrot.slane %v4788, 4
    %v4825 = vrot.slane %v4808, 4
    %v4826 = vrot.slane %v4748, 5
    %v4827 = vrot.slane %v4768, 5
    %v4828 = vrot.slane %v4788, 5
    %v4829 = vrot.slane %v4808, 5
    %v4830 = vrot.slane %v4748, 6
    %v4831 = vrot.slane %v4768, 6
    %v4832 = vrot.slane %v4788, 6
    %v4833 = vrot.slane %v4808, 6
    %v4834 = vrot.slane %v4748, 7
    %v4835 = vrot.slane %v4768, 7
    %v4836 = vrot.slane %v4788, 7
    %v4837 = vrot.slane %v4808, 7
    %v4838 = vrot.slane %v4748, 1
    %v4839 = vrot.slane %v4768, 1
    %v4840 = vrot.slane %v4788, 1
    %v4841 = vrot.slane %v4808, 1
    %v4874 = vadd.f32 %v157, %v4814
    %v4875 = vadd.f32 %v198, %v4815
    %v4876 = vadd.f32 %v239, %v4816
    %v4877 = vadd.f32 %v280, %v4817
    %v4878 = vadd.f32 %v160, %v4818
    %v4879 = vadd.f32 %v201, %v4819
    %v4880 = vadd.f32 %v242, %v4820
    %v4881 = vadd.f32 %v283, %v4821
    %v4882 = vadd.f32 %v163, %v4822
    %v4883 = vadd.f32 %v204, %v4823
    %v4884 = vadd.f32 %v245, %v4824
    %v4885 = vadd.f32 %v286, %v4825
    %v4886 = vadd.f32 %v166, %v4826
    %v4887 = vadd.f32 %v207, %v4827
    %v4888 = vadd.f32 %v248, %v4828
    %v4889 = vadd.f32 %v289, %v4829
    %v4890 = vadd.f32 %v169, %v4830
    %v4891 = vadd.f32 %v210, %v4831
    %v4892 = vadd.f32 %v251, %v4832
    %v4893 = vadd.f32 %v292, %v4833
    %v4894 = vadd.f32 %v172, %v4834
    %v4895 = vadd.f32 %v213, %v4835
    %v4896 = vadd.f32 %v254, %v4836
    %v4897 = vadd.f32 %v295, %v4837
    %v4898 = vadd.f32 %v175, %v4748
    %v4899 = vadd.f32 %v216, %v4768
    %v4900 = vadd.f32 %v257, %v4788
    %v4901 = vadd.f32 %v298, %v4808
    %v4902 = vadd.f32 %v178, %v4838
    %v4903 = vadd.f32 %v219, %v4839
    %v4904 = vadd.f32 %v260, %v4840
    %v4905 = vadd.f32 %v301, %v4841
    %v4906 = vxor.u32 %v4874, 2147483648
    %v4907 = vxor.u32 %v4878, 2147483648
    %v4908 = vxor.u32 %v4882, 2147483648
    %v4909 = vxor.u32 %v4886, 2147483648
    %v4910 = vxor.u32 %v4890, 2147483648
    %v4911 = vxor.u32 %v4894, 2147483648
    %v4912 = vxor.u32 %v4898, 2147483648
    %v4913 = vxor.u32 %v4902, 2147483648
    %v4914 = vmul.f32 %v4906, 1.442695
    %v4915 = vpow.pop %v4914
    %v4916 = vmul.f32 %v4907, 1.442695
    %v4917 = vpow.pop %v4916
    %v4918 = vmul.f32 %v4908, 1.442695
    %v4919 = vpow.pop %v4918
    %v4920 = vmul.f32 %v4909, 1.442695
    %v4921 = vpow.pop %v4920
    %v4922 = vmul.f32 %v4910, 1.442695
    %v4923 = vpow.pop %v4922
    %v4924 = vmul.f32 %v4911, 1.442695
    %v4925 = vpow.pop %v4924
    %v4926 = vmul.f32 %v4912, 1.442695
    %v4927 = vpow.pop %v4926
    %v4928 = vmul.f32 %v4913, 1.442695
    %v4929 = vpow.pop %v4928
    %v4930 = vadd.f32 %v4915, 1.0
    %v4931 = vadd.f32 %v4917, 1.0
    %v4932 = vadd.f32 %v4919, 1.0
    %v4933 = vadd.f32 %v4921, 1.0
    %v4934 = vadd.f32 %v4923, 1.0
    %v4935 = vadd.f32 %v4925, 1.0
    %v4936 = vadd.f32 %v4927, 1.0
    %v4937 = vadd.f32 %v4929, 1.0
    %v4938 = vrcp.pop %v4930
    %v4939 = vmul.f32 %v4930, %v4938
    %v4940 = vsub.f32 1.0, %v4939
    %v4941 = vmul.f32 %v4938, %v4940
    %v4942 = vadd.f32 %v4938, %v4941
    %vm4943 = vweird.f32 %v4930
    %vm4944 = vweird.f32 %v4938
    %vm4945 = vmor %vm4943, %vm4944
    %v4946 = vsel %vm4945, %v4938, %v4942
    %v4947 = vand.u32 2147483647, %v4930
    %vm4948 = vcmp.eq.f32.partialorder %v4947, 8.507059e+37
    %v4949 = vand.u32 %v4930, 2147483648
    %v4950 = vor.u32 1.1754944e-38, %v4949
    %v4951 = vsel %vm4948, %v4950, %v4946
    %v4952 = vmul.f32 1.0, %v4951
    %v4953 = vrcp.pop %v4931
    %v4954 = vmul.f32 %v4931, %v4953
    %v4955 = vsub.f32 1.0, %v4954
    %v4956 = vmul.f32 %v4953, %v4955
    %v4957 = vadd.f32 %v4953, %v4956
    %vm4958 = vweird.f32 %v4931
    %vm4959 = vweird.f32 %v4953
    %vm4960 = vmor %vm4958, %vm4959
    %v4961 = vsel %vm4960, %v4953, %v4957
    %v4962 = vand.u32 2147483647, %v4931
    %vm4963 = vcmp.eq.f32.partialorder %v4962, 8.507059e+37
    %v4964 = vand.u32 %v4931, 2147483648
    %v4965 = vor.u32 1.1754944e-38, %v4964
    %v4966 = vsel %vm4963, %v4965, %v4961
    %v4967 = vmul.f32 1.0, %v4966
    %v4968 = vrcp.pop %v4932
    %v4969 = vmul.f32 %v4932, %v4968
    %v4970 = vsub.f32 1.0, %v4969
    %v4971 = vmul.f32 %v4968, %v4970
    %v4972 = vadd.f32 %v4968, %v4971
    %vm4973 = vweird.f32 %v4932
    %vm4974 = vweird.f32 %v4968
    %vm4975 = vmor %vm4973, %vm4974
    %v4976 = vsel %vm4975, %v4968, %v4972
    %v4977 = vand.u32 2147483647, %v4932
    %vm4978 = vcmp.eq.f32.partialorder %v4977, 8.507059e+37
    %v4979 = vand.u32 %v4932, 2147483648
    %v4980 = vor.u32 1.1754944e-38, %v4979
    %v4981 = vsel %vm4978, %v4980, %v4976
    %v4982 = vmul.f32 1.0, %v4981
    %v4983 = vrcp.pop %v4933
    %v4984 = vmul.f32 %v4933, %v4983
    %v4985 = vsub.f32 1.0, %v4984
    %v4986 = vmul.f32 %v4983, %v4985
    %v4987 = vadd.f32 %v4983, %v4986
    %vm4988 = vweird.f32 %v4933
    %vm4989 = vweird.f32 %v4983
    %vm4990 = vmor %vm4988, %vm4989
    %v4991 = vsel %vm4990, %v4983, %v4987
    %v4992 = vand.u32 2147483647, %v4933
    %vm4993 = vcmp.eq.f32.partialorder %v4992, 8.507059e+37
    %v4994 = vand.u32 %v4933, 2147483648
    %v4995 = vor.u32 1.1754944e-38, %v4994
    %v4996 = vsel %vm4993, %v4995, %v4991
    %v4997 = vmul.f32 1.0, %v4996
    %v4998 = vrcp.pop %v4934
    %v4999 = vmul.f32 %v4934, %v4998
    %v5000 = vsub.f32 1.0, %v4999
    %v5001 = vmul.f32 %v4998, %v5000
    %v5002 = vadd.f32 %v4998, %v5001
    %vm5003 = vweird.f32 %v4934
    %vm5004 = vweird.f32 %v4998
    %vm5005 = vmor %vm5003, %vm5004
    %v5006 = vsel %vm5005, %v4998, %v5002
    %v5007 = vand.u32 2147483647, %v4934
    %vm5008 = vcmp.eq.f32.partialorder %v5007, 8.507059e+37
    %v5009 = vand.u32 %v4934, 2147483648
    %v5010 = vor.u32 1.1754944e-38, %v5009
    %v5011 = vsel %vm5008, %v5010, %v5006
    %v5012 = vmul.f32 1.0, %v5011
    %v5013 = vrcp.pop %v4935
    %v5014 = vmul.f32 %v4935, %v5013
    %v5015 = vsub.f32 1.0, %v5014
    %v5016 = vmul.f32 %v5013, %v5015
    %v5017 = vadd.f32 %v5013, %v5016
    %vm5018 = vweird.f32 %v4935
    %vm5019 = vweird.f32 %v5013
    %vm5020 = vmor %vm5018, %vm5019
    %v5021 = vsel %vm5020, %v5013, %v5017
    %v5022 = vand.u32 2147483647, %v4935
    %vm5023 = vcmp.eq.f32.partialorder %v5022, 8.507059e+37
    %v5024 = vand.u32 %v4935, 2147483648
    %v5025 = vor.u32 1.1754944e-38, %v5024
    %v5026 = vsel %vm5023, %v5025, %v5021
    %v5027 = vmul.f32 1.0, %v5026
    %v5028 = vrcp.pop %v4936
    %v5029 = vmul.f32 %v4936, %v5028
    %v5030 = vsub.f32 1.0, %v5029
    %v5031 = vmul.f32 %v5028, %v5030
    %v5032 = vadd.f32 %v5028, %v5031
    %vm5033 = vweird.f32 %v4936
    %vm5034 = vweird.f32 %v5028
    %vm5035 = vmor %vm5033, %vm5034
    %v5036 = vsel %vm5035, %v5028, %v5032
    %v5037 = vand.u32 2147483647, %v4936
    %vm5038 = vcmp.eq.f32.partialorder %v5037, 8.507059e+37
    %v5039 = vand.u32 %v4936, 2147483648
    %v5040 = vor.u32 1.1754944e-38, %v5039
    %v5041 = vsel %vm5038, %v5040, %v5036
    %v5042 = vmul.f32 1.0, %v5041
    %v5043 = vrcp.pop %v4937
    %v5044 = vmul.f32 %v4937, %v5043
    %v5045 = vsub.f32 1.0, %v5044
    %v5046 = vmul.f32 %v5043, %v5045
    %v5047 = vadd.f32 %v5043, %v5046
    %vm5048 = vweird.f32 %v4937
    %vm5049 = vweird.f32 %v5043
    %vm5050 = vmor %vm5048, %vm5049
    %v5051 = vsel %vm5050, %v5043, %v5047
    %v5052 = vand.u32 2147483647, %v4937
    %vm5053 = vcmp.eq.f32.partialorder %v5052, 8.507059e+37
    %v5054 = vand.u32 %v4937, 2147483648
    %v5055 = vor.u32 1.1754944e-38, %v5054
    %v5056 = vsel %vm5053, %v5055, %v5051
    %v5057 = vmul.f32 1.0, %v5056
    %v5058 = vxor.u32 %v4875, 2147483648
    %v5059 = vxor.u32 %v4879, 2147483648
    %v5060 = vxor.u32 %v4883, 2147483648
    %v5061 = vxor.u32 %v4887, 2147483648
    %v5062 = vxor.u32 %v4891, 2147483648
    %v5063 = vxor.u32 %v4895, 2147483648
    %v5064 = vxor.u32 %v4899, 2147483648
    %v5065 = vxor.u32 %v4903, 2147483648
    %v5066 = vmul.f32 %v5058, 1.442695
    %v5067 = vpow.pop %v5066
    %v5068 = vmul.f32 %v5059, 1.442695
    %v5069 = vpow.pop %v5068
    %v5070 = vmul.f32 %v5060, 1.442695
    %v5071 = vpow.pop %v5070
    %v5072 = vmul.f32 %v5061, 1.442695
    %v5073 = vpow.pop %v5072
    %v5074 = vmul.f32 %v5062, 1.442695
    %v5075 = vpow.pop %v5074
    %v5076 = vmul.f32 %v5063, 1.442695
    %v5077 = vpow.pop %v5076
    %v5078 = vmul.f32 %v5064, 1.442695
    %v5079 = vpow.pop %v5078
    %v5080 = vmul.f32 %v5065, 1.442695
    %v5081 = vpow.pop %v5080
    %v5082 = vadd.f32 %v5067, 1.0
    %v5083 = vadd.f32 %v5069, 1.0
    %v5084 = vadd.f32 %v5071, 1.0
    %v5085 = vadd.f32 %v5073, 1.0
    %v5086 = vadd.f32 %v5075, 1.0
    %v5087 = vadd.f32 %v5077, 1.0
    %v5088 = vadd.f32 %v5079, 1.0
    %v5089 = vadd.f32 %v5081, 1.0
    %v5090 = vrcp.pop %v5082
    %v5091 = vmul.f32 %v5082, %v5090
    %v5092 = vsub.f32 1.0, %v5091
    %v5093 = vmul.f32 %v5090, %v5092
    %v5094 = vadd.f32 %v5090, %v5093
    %vm5095 = vweird.f32 %v5082
    %vm5096 = vweird.f32 %v5090
    %vm5097 = vmor %vm5095, %vm5096
    %v5098 = vsel %vm5097, %v5090, %v5094
    %v5099 = vand.u32 2147483647, %v5082
    %vm5100 = vcmp.eq.f32.partialorder %v5099, 8.507059e+37
    %v5101 = vand.u32 %v5082, 2147483648
    %v5102 = vor.u32 1.1754944e-38, %v5101
    %v5103 = vsel %vm5100, %v5102, %v5098
    %v5104 = vmul.f32 1.0, %v5103
    %v5105 = vrcp.pop %v5083
    %v5106 = vmul.f32 %v5083, %v5105
    %v5107 = vsub.f32 1.0, %v5106
    %v5108 = vmul.f32 %v5105, %v5107
    %v5109 = vadd.f32 %v5105, %v5108
    %vm5110 = vweird.f32 %v5083
    %vm5111 = vweird.f32 %v5105
    %vm5112 = vmor %vm5110, %vm5111
    %v5113 = vsel %vm5112, %v5105, %v5109
    %v5114 = vand.u32 2147483647, %v5083
    %vm5115 = vcmp.eq.f32.partialorder %v5114, 8.507059e+37
    %v5116 = vand.u32 %v5083, 2147483648
    %v5117 = vor.u32 1.1754944e-38, %v5116
    %v5118 = vsel %vm5115, %v5117, %v5113
    %v5119 = vmul.f32 1.0, %v5118
    %v5120 = vrcp.pop %v5084
    %v5121 = vmul.f32 %v5084, %v5120
    %v5122 = vsub.f32 1.0, %v5121
    %v5123 = vmul.f32 %v5120, %v5122
    %v5124 = vadd.f32 %v5120, %v5123
    %vm5125 = vweird.f32 %v5084
    %vm5126 = vweird.f32 %v5120
    %vm5127 = vmor %vm5125, %vm5126
    %v5128 = vsel %vm5127, %v5120, %v5124
    %v5129 = vand.u32 2147483647, %v5084
    %vm5130 = vcmp.eq.f32.partialorder %v5129, 8.507059e+37
    %v5131 = vand.u32 %v5084, 2147483648
    %v5132 = vor.u32 1.1754944e-38, %v5131
    %v5133 = vsel %vm5130, %v5132, %v5128
    %v5134 = vmul.f32 1.0, %v5133
    %v5135 = vrcp.pop %v5085
    %v5136 = vmul.f32 %v5085, %v5135
    %v5137 = vsub.f32 1.0, %v5136
    %v5138 = vmul.f32 %v5135, %v5137
    %v5139 = vadd.f32 %v5135, %v5138
    %vm5140 = vweird.f32 %v5085
    %vm5141 = vweird.f32 %v5135
    %vm5142 = vmor %vm5140, %vm5141
    %v5143 = vsel %vm5142, %v5135, %v5139
    %v5144 = vand.u32 2147483647, %v5085
    %vm5145 = vcmp.eq.f32.partialorder %v5144, 8.507059e+37
    %v5146 = vand.u32 %v5085, 2147483648
    %v5147 = vor.u32 1.1754944e-38, %v5146
    %v5148 = vsel %vm5145, %v5147, %v5143
    %v5149 = vmul.f32 1.0, %v5148
    %v5150 = vrcp.pop %v5086
    %v5151 = vmul.f32 %v5086, %v5150
    %v5152 = vsub.f32 1.0, %v5151
    %v5153 = vmul.f32 %v5150, %v5152
    %v5154 = vadd.f32 %v5150, %v5153
    %vm5155 = vweird.f32 %v5086
    %vm5156 = vweird.f32 %v5150
    %vm5157 = vmor %vm5155, %vm5156
    %v5158 = vsel %vm5157, %v5150, %v5154
    %v5159 = vand.u32 2147483647, %v5086
    %vm5160 = vcmp.eq.f32.partialorder %v5159, 8.507059e+37
    %v5161 = vand.u32 %v5086, 2147483648
    %v5162 = vor.u32 1.1754944e-38, %v5161
    %v5163 = vsel %vm5160, %v5162, %v5158
    %v5164 = vmul.f32 1.0, %v5163
    %v5165 = vrcp.pop %v5087
    %v5166 = vmul.f32 %v5087, %v5165
    %v5167 = vsub.f32 1.0, %v5166
    %v5168 = vmul.f32 %v5165, %v5167
    %v5169 = vadd.f32 %v5165, %v5168
    %vm5170 = vweird.f32 %v5087
    %vm5171 = vweird.f32 %v5165
    %vm5172 = vmor %vm5170, %vm5171
    %v5173 = vsel %vm5172, %v5165, %v5169
    %v5174 = vand.u32 2147483647, %v5087
    %vm5175 = vcmp.eq.f32.partialorder %v5174, 8.507059e+37
    %v5176 = vand.u32 %v5087, 2147483648
    %v5177 = vor.u32 1.1754944e-38, %v5176
    %v5178 = vsel %vm5175, %v5177, %v5173
    %v5179 = vmul.f32 1.0, %v5178
    %v5180 = vrcp.pop %v5088
    %v5181 = vmul.f32 %v5088, %v5180
    %v5182 = vsub.f32 1.0, %v5181
    %v5183 = vmul.f32 %v5180, %v5182
    %v5184 = vadd.f32 %v5180, %v5183
    %vm5185 = vweird.f32 %v5088
    %vm5186 = vweird.f32 %v5180
    %vm5187 = vmor %vm5185, %vm5186
    %v5188 = vsel %vm5187, %v5180, %v5184
    %v5189 = vand.u32 2147483647, %v5088
    %vm5190 = vcmp.eq.f32.partialorder %v5189, 8.507059e+37
    %v5191 = vand.u32 %v5088, 2147483648
    %v5192 = vor.u32 1.1754944e-38, %v5191
    %v5193 = vsel %vm5190, %v5192, %v5188
    %v5194 = vmul.f32 1.0, %v5193
    %v5195 = vrcp.pop %v5089
    %v5196 = vmul.f32 %v5089, %v5195
    %v5197 = vsub.f32 1.0, %v5196
    %v5198 = vmul.f32 %v5195, %v5197
    %v5199 = vadd.f32 %v5195, %v5198
    %vm5200 = vweird.f32 %v5089
    %vm5201 = vweird.f32 %v5195
    %vm5202 = vmor %vm5200, %vm5201
    %v5203 = vsel %vm5202, %v5195, %v5199
    %v5204 = vand.u32 2147483647, %v5089
    %vm5205 = vcmp.eq.f32.partialorder %v5204, 8.507059e+37
    %v5206 = vand.u32 %v5089, 2147483648
    %v5207 = vor.u32 1.1754944e-38, %v5206
    %v5208 = vsel %vm5205, %v5207, %v5203
    %v5209 = vmul.f32 1.0, %v5208
    %v5210 = vtanh.pop %v4876
    %v5211 = vtanh.pop %v4880
    %v5212 = vtanh.pop %v4884
    %v5213 = vtanh.pop %v4888
    %v5214 = vtanh.pop %v4892
    %v5215 = vtanh.pop %v4896
    %v5216 = vtanh.pop %v4900
    %v5217 = vtanh.pop %v4904
    %v5218 = vxor.u32 %v4877, 2147483648
    %v5219 = vxor.u32 %v4881, 2147483648
    %v5220 = vxor.u32 %v4885, 2147483648
    %v5221 = vxor.u32 %v4889, 2147483648
    %v5222 = vxor.u32 %v4893, 2147483648
    %v5223 = vxor.u32 %v4897, 2147483648
    %v5224 = vxor.u32 %v4901, 2147483648
    %v5225 = vxor.u32 %v4905, 2147483648
    %v5226 = vmul.f32 %v5218, 1.442695
    %v5227 = vpow.pop %v5226
    %v5228 = vmul.f32 %v5219, 1.442695
    %v5229 = vpow.pop %v5228
    %v5230 = vmul.f32 %v5220, 1.442695
    %v5231 = vpow.pop %v5230
    %v5232 = vmul.f32 %v5221, 1.442695
    %v5233 = vpow.pop %v5232
    %v5234 = vmul.f32 %v5222, 1.442695
    %v5235 = vpow.pop %v5234
    %v5236 = vmul.f32 %v5223, 1.442695
    %v5237 = vpow.pop %v5236
    %v5238 = vmul.f32 %v5224, 1.442695
    %v5239 = vpow.pop %v5238
    %v5240 = vmul.f32 %v5225, 1.442695
    %v5241 = vpow.pop %v5240
    %v5242 = vadd.f32 %v5227, 1.0
    %v5243 = vadd.f32 %v5229, 1.0
    %v5244 = vadd.f32 %v5231, 1.0
    %v5245 = vadd.f32 %v5233, 1.0
    %v5246 = vadd.f32 %v5235, 1.0
    %v5247 = vadd.f32 %v5237, 1.0
    %v5248 = vadd.f32 %v5239, 1.0
    %v5249 = vadd.f32 %v5241, 1.0
    %v5250 = vrcp.pop %v5242
    %v5251 = vmul.f32 %v5242, %v5250
    %v5252 = vsub.f32 1.0, %v5251
    %v5253 = vmul.f32 %v5250, %v5252
    %v5254 = vadd.f32 %v5250, %v5253
    %vm5255 = vweird.f32 %v5242
    %vm5256 = vweird.f32 %v5250
    %vm5257 = vmor %vm5255, %vm5256
    %v5258 = vsel %vm5257, %v5250, %v5254
    %v5259 = vand.u32 2147483647, %v5242
    %vm5260 = vcmp.eq.f32.partialorder %v5259, 8.507059e+37
    %v5261 = vand.u32 %v5242, 2147483648
    %v5262 = vor.u32 1.1754944e-38, %v5261
    %v5263 = vsel %vm5260, %v5262, %v5258
    %v5264 = vmul.f32 1.0, %v5263
    %v5265 = vrcp.pop %v5243
    %v5266 = vmul.f32 %v5243, %v5265
    %v5267 = vsub.f32 1.0, %v5266
    %v5268 = vmul.f32 %v5265, %v5267
    %v5269 = vadd.f32 %v5265, %v5268
    %vm5270 = vweird.f32 %v5243
    %vm5271 = vweird.f32 %v5265
    %vm5272 = vmor %vm5270, %vm5271
    %v5273 = vsel %vm5272, %v5265, %v5269
    %v5274 = vand.u32 2147483647, %v5243
    %vm5275 = vcmp.eq.f32.partialorder %v5274, 8.507059e+37
    %v5276 = vand.u32 %v5243, 2147483648
    %v5277 = vor.u32 1.1754944e-38, %v5276
    %v5278 = vsel %vm5275, %v5277, %v5273
    %v5279 = vmul.f32 1.0, %v5278
    %v5280 = vrcp.pop %v5244
    %v5281 = vmul.f32 %v5244, %v5280
    %v5282 = vsub.f32 1.0, %v5281
    %v5283 = vmul.f32 %v5280, %v5282
    %v5284 = vadd.f32 %v5280, %v5283
    %vm5285 = vweird.f32 %v5244
    %vm5286 = vweird.f32 %v5280
    %vm5287 = vmor %vm5285, %vm5286
    %v5288 = vsel %vm5287, %v5280, %v5284
    %v5289 = vand.u32 2147483647, %v5244
    %vm5290 = vcmp.eq.f32.partialorder %v5289, 8.507059e+37
    %v5291 = vand.u32 %v5244, 2147483648
    %v5292 = vor.u32 1.1754944e-38, %v5291
    %v5293 = vsel %vm5290, %v5292, %v5288
    %v5294 = vmul.f32 1.0, %v5293
    %v5295 = vrcp.pop %v5245
    %v5296 = vmul.f32 %v5245, %v5295
    %v5297 = vsub.f32 1.0, %v5296
    %v5298 = vmul.f32 %v5295, %v5297
    %v5299 = vadd.f32 %v5295, %v5298
    %vm5300 = vweird.f32 %v5245
    %vm5301 = vweird.f32 %v5295
    %vm5302 = vmor %vm5300, %vm5301
    %v5303 = vsel %vm5302, %v5295, %v5299
    %v5304 = vand.u32 2147483647, %v5245
    %vm5305 = vcmp.eq.f32.partialorder %v5304, 8.507059e+37
    %v5306 = vand.u32 %v5245, 2147483648
    %v5307 = vor.u32 1.1754944e-38, %v5306
    %v5308 = vsel %vm5305, %v5307, %v5303
    %v5309 = vmul.f32 1.0, %v5308
    %v5310 = vrcp.pop %v5246
    %v5311 = vmul.f32 %v5246, %v5310
    %v5312 = vsub.f32 1.0, %v5311
    %v5313 = vmul.f32 %v5310, %v5312
    %v5314 = vadd.f32 %v5310, %v5313
    %vm5315 = vweird.f32 %v5246
    %vm5316 = vweird.f32 %v5310
    %vm5317 = vmor %vm5315, %vm5316
    %v5318 = vsel %vm5317, %v5310, %v5314
    %v5319 = vand.u32 2147483647, %v5246
    %vm5320 = vcmp.eq.f32.partialorder %v5319, 8.507059e+37
    %v5321 = vand.u32 %v5246, 2147483648
    %v5322 = vor.u32 1.1754944e-38, %v5321
    %v5323 = vsel %vm5320, %v5322, %v5318
    %v5324 = vmul.f32 1.0, %v5323
    %v5325 = vrcp.pop %v5247
    %v5326 = vmul.f32 %v5247, %v5325
    %v5327 = vsub.f32 1.0, %v5326
    %v5328 = vmul.f32 %v5325, %v5327
    %v5329 = vadd.f32 %v5325, %v5328
    %vm5330 = vweird.f32 %v5247
    %vm5331 = vweird.f32 %v5325
    %vm5332 = vmor %vm5330, %vm5331
    %v5333 = vsel %vm5332, %v5325, %v5329
    %v5334 = vand.u32 2147483647, %v5247
    %vm5335 = vcmp.eq.f32.partialorder %v5334, 8.507059e+37
    %v5336 = vand.u32 %v5247, 2147483648
    %v5337 = vor.u32 1.1754944e-38, %v5336
    %v5338 = vsel %vm5335, %v5337, %v5333
    %v5339 = vmul.f32 1.0, %v5338
    %v5340 = vrcp.pop %v5248
    %v5341 = vmul.f32 %v5248, %v5340
    %v5342 = vsub.f32 1.0, %v5341
    %v5343 = vmul.f32 %v5340, %v5342
    %v5344 = vadd.f32 %v5340, %v5343
    %vm5345 = vweird.f32 %v5248
    %vm5346 = vweird.f32 %v5340
    %vm5347 = vmor %vm5345, %vm5346
    %v5348 = vsel %vm5347, %v5340, %v5344
    %v5349 = vand.u32 2147483647, %v5248
    %vm5350 = vcmp.eq.f32.partialorder %v5349, 8.507059e+37
    %v5351 = vand.u32 %v5248, 2147483648
    %v5352 = vor.u32 1.1754944e-38, %v5351
    %v5353 = vsel %vm5350, %v5352, %v5348
    %v5354 = vmul.f32 1.0, %v5353
    %v5355 = vrcp.pop %v5249
    %v5356 = vmul.f32 %v5249, %v5355
    %v5357 = vsub.f32 1.0, %v5356
    %v5358 = vmul.f32 %v5355, %v5357
    %v5359 = vadd.f32 %v5355, %v5358
    %vm5360 = vweird.f32 %v5249
    %vm5361 = vweird.f32 %v5355
    %vm5362 = vmor %vm5360, %vm5361
    %v5363 = vsel %vm5362, %v5355, %v5359
    %v5364 = vand.u32 2147483647, %v5249
    %vm5365 = vcmp.eq.f32.partialorder %v5364, 8.507059e+37
    %v5366 = vand.u32 %v5249, 2147483648
    %v5367 = vor.u32 1.1754944e-38, %v5366
    %v5368 = vsel %vm5365, %v5367, %v5363
    %v5369 = vmul.f32 1.0, %v5368
    %v5378 = vrot.slane %v4683, 7
    %v5379 = vrot.slane %v4684, 7
    %v5380 = vrot.slane %v4685, 7
    %v5381 = vrot.slane %v4686, 7
    %v5382 = vrot.slane %v4687, 7
    %v5383 = vrot.slane %v4688, 7
    %v5384 = vrot.slane %v4689, 7
    %v5385 = vrot.slane %v4690, 7
    %v5394 = vmul.f32 %v5104, %v5378
    %v5395 = vmul.f32 %v5119, %v5379
    %v5396 = vmul.f32 %v5134, %v5380
    %v5397 = vmul.f32 %v5149, %v5381
    %v5398 = vmul.f32 %v5164, %v5382
    %v5399 = vmul.f32 %v5179, %v5383
    %v5400 = vmul.f32 %v5194, %v5384
    %v5401 = vmul.f32 %v5209, %v5385
    %v5402 = vmul.f32 %v4952, %v5210
    %v5403 = vmul.f32 %v4967, %v5211
    %v5404 = vmul.f32 %v4982, %v5212
    %v5405 = vmul.f32 %v4997, %v5213
    %v5406 = vmul.f32 %v5012, %v5214
    %v5407 = vmul.f32 %v5027, %v5215
    %v5408 = vmul.f32 %v5042, %v5216
    %v5409 = vmul.f32 %v5057, %v5217
    %v5410 = vadd.f32 %v5394, %v5402
    %v5411 = vadd.f32 %v5395, %v5403
    %v5412 = vadd.f32 %v5396, %v5404
    %v5413 = vadd.f32 %v5397, %v5405
    %v5414 = vadd.f32 %v5398, %v5406
    %v5415 = vadd.f32 %v5399, %v5407
    %v5416 = vadd.f32 %v5400, %v5408
    %v5417 = vadd.f32 %v5401, %v5409
    %v5418 = vtanh.pop %v5410
    %v5419 = vtanh.pop %v5411
    %v5420 = vtanh.pop %v5412
    %v5421 = vtanh.pop %v5413
    %v5422 = vtanh.pop %v5414
    %v5423 = vtanh.pop %v5415
    %v5424 = vtanh.pop %v5416
    %v5425 = vtanh.pop %v5417
    %v5426 = vmul.f32 %v5264, %v5418
    %v5427 = vmul.f32 %v5279, %v5419
    %v5428 = vmul.f32 %v5294, %v5420
    %v5429 = vmul.f32 %v5309, %v5421
    %v5430 = vmul.f32 %v5324, %v5422
    %v5431 = vmul.f32 %v5339, %v5423
    %v5432 = vmul.f32 %v5354, %v5424
    %v5433 = vmul.f32 %v5369, %v5425
    %v5442 = vrot.slane %v5426, 6
    %v5443 = vrot.slane %v5427, 5
    %v5444 = vsel %vm1074, %v5443, %v5442
    %v5445 = vrot.slane %v5428, 4
    %v5446 = vsel %vm1077, %v5445, %v5444
    %v5447 = vrot.slane %v5429, 3
    %v5448 = vsel %vm1080, %v5447, %v5446
    %v5449 = vrot.slane %v5430, 2
    %v5450 = vsel %vm1083, %v5449, %v5448
    %v5451 = vrot.slane %v5431, 1
    %v5452 = vsel %vm1086, %v5451, %v5450
    %v5453 = vsel %vm1089, %v5432, %v5452
    %v5454 = vrot.slane %v5433, 7
    %v5455 = vsel %vm1092, %v5454, %v5453
    %5457 = vmatpush.msra.mxu0 %v365
    %5458 = vmatpush.msra.mxu0 %v361
    %5459 = vmatpush.msra.mxu0 %v357
    %5460 = vmatpush.msra.mxu0 %v353
    %5461 = vmatpush.msra.mxu0 %v349
    %5462 = vmatpush.msra.mxu0 %v345
    %5463 = vmatpush.msra.mxu0 %v341
    %5464 = vmatpush.msra.mxu0 %v337
    %5465 = vmatpush.msra.mxu0 %v333
    %5466 = vmatpush.msra.mxu0 %v329
    %5467 = vmatpush.msra.mxu0 %v325
    %5468 = vmatpush.msra.mxu0 %v321
    %5469 = vmatpush.msra.mxu0 %v317
    %5470 = vmatpush.msra.mxu0 %v313
    %5471 = vmatpush.msra.mxu0 %v309
    %5472 = vmatpush.msra.mxu0 %v305
    %5473 = vmatmul.f32.gmra.mxu0 %v5455
    %v5474 = vpop.f32.mrf.mxu0
    %v5475 = vadd.f32 0.0, %v5474
    %5476 = vdwg.mxu0
    %5477 = vmatpush.msra.mxu0 %v366
    %5478 = vmatpush.msra.mxu0 %v362
    %5479 = vmatpush.msra.mxu0 %v358
    %5480 = vmatpush.msra.mxu0 %v354
    %5481 = vmatpush.msra.mxu0 %v350
    %5482 = vmatpush.msra.mxu0 %v346
    %5483 = vmatpush.msra.mxu0 %v342
    %5484 = vmatpush.msra.mxu0 %v338
    %5485 = vmatpush.msra.mxu0 %v334
    %5486 = vmatpush.msra.mxu0 %v330
    %5487 = vmatpush.msra.mxu0 %v326
    %5488 = vmatpush.msra.mxu0 %v322
    %5489 = vmatpush.msra.mxu0 %v318
    %5490 = vmatpush.msra.mxu0 %v314
    %5491 = vmatpush.msra.mxu0 %v310
    %5492 = vmatpush.msra.mxu0 %v306
    %5493 = vmatmul.f32.gmra.mxu0 %v5455
    %v5494 = vpop.f32.mrf.mxu0
    %v5495 = vadd.f32 0.0, %v5494
    %5496 = vdwg.mxu0
    %5497 = vmatpush.msra.mxu0 %v367
    %5498 = vmatpush.msra.mxu0 %v363
    %5499 = vmatpush.msra.mxu0 %v359
    %5500 = vmatpush.msra.mxu0 %v355
    %5501 = vmatpush.msra.mxu0 %v351
    %5502 = vmatpush.msra.mxu0 %v347
    %5503 = vmatpush.msra.mxu0 %v343
    %5504 = vmatpush.msra.mxu0 %v339
    %5505 = vmatpush.msra.mxu0 %v335
    %5506 = vmatpush.msra.mxu0 %v331
    %5507 = vmatpush.msra.mxu0 %v327
    %5508 = vmatpush.msra.mxu0 %v323
    %5509 = vmatpush.msra.mxu0 %v319
    %5510 = vmatpush.msra.mxu0 %v315
    %5511 = vmatpush.msra.mxu0 %v311
    %5512 = vmatpush.msra.mxu0 %v307
    %5513 = vmatmul.f32.gmra.mxu0 %v5455
    %v5514 = vpop.f32.mrf.mxu0
    %v5515 = vadd.f32 0.0, %v5514
    %5516 = vdwg.mxu0
    %5517 = vmatpush.msra.mxu0 %v368
    %5518 = vmatpush.msra.mxu0 %v364
    %5519 = vmatpush.msra.mxu0 %v360
    %5520 = vmatpush.msra.mxu0 %v356
    %5521 = vmatpush.msra.mxu0 %v352
    %5522 = vmatpush.msra.mxu0 %v348
    %5523 = vmatpush.msra.mxu0 %v344
    %5524 = vmatpush.msra.mxu0 %v340
    %5525 = vmatpush.msra.mxu0 %v336
    %5526 = vmatpush.msra.mxu0 %v332
    %5527 = vmatpush.msra.mxu0 %v328
    %5528 = vmatpush.msra.mxu0 %v324
    %5529 = vmatpush.msra.mxu0 %v320
    %5530 = vmatpush.msra.mxu0 %v316
    %5531 = vmatpush.msra.mxu0 %v312
    %5532 = vmatpush.msra.mxu0 %v308
    %5533 = vmatmul.f32.gmra.mxu0 %v5455
    %v5534 = vpop.f32.mrf.mxu0
    %v5535 = vadd.f32 0.0, %v5534
    %5536 = vdwg.mxu0
    %v5541 = vrot.slane %v5475, 1
    %v5542 = vrot.slane %v5495, 1
    %v5543 = vrot.slane %v5515, 1
    %v5544 = vrot.slane %v5535, 1
    %v5545 = vrot.slane %v5475, 2
    %v5546 = vrot.slane %v5495, 2
    %v5547 = vrot.slane %v5515, 2
    %v5548 = vrot.slane %v5535, 2
    %v5549 = vrot.slane %v5475, 3
    %v5550 = vrot.slane %v5495, 3
    %v5551 = vrot.slane %v5515, 3
    %v5552 = vrot.slane %v5535, 3
    %v5553 = vrot.slane %v5475, 4
    %v5554 = vrot.slane %v5495, 4
    %v5555 = vrot.slane %v5515, 4
    %v5556 = vrot.slane %v5535, 4
    %v5557 = vrot.slane %v5475, 5
    %v5558 = vrot.slane %v5495, 5
    %v5559 = vrot.slane %v5515, 5
    %v5560 = vrot.slane %v5535, 5
    %v5561 = vrot.slane %v5475, 6
    %v5562 = vrot.slane %v5495, 6
    %v5563 = vrot.slane %v5515, 6
    %v5564 = vrot.slane %v5535, 6
    %v5565 = vrot.slane %v5475, 7
    %v5566 = vrot.slane %v5495, 7
    %v5567 = vrot.slane %v5515, 7
    %v5568 = vrot.slane %v5535, 7
    %v5601 = vadd.f32 %v157, %v5541
    %v5602 = vadd.f32 %v198, %v5542
    %v5603 = vadd.f32 %v239, %v5543
    %v5604 = vadd.f32 %v280, %v5544
    %v5605 = vadd.f32 %v160, %v5545
    %v5606 = vadd.f32 %v201, %v5546
    %v5607 = vadd.f32 %v242, %v5547
    %v5608 = vadd.f32 %v283, %v5548
    %v5609 = vadd.f32 %v163, %v5549
    %v5610 = vadd.f32 %v204, %v5550
    %v5611 = vadd.f32 %v245, %v5551
    %v5612 = vadd.f32 %v286, %v5552
    %v5613 = vadd.f32 %v166, %v5553
    %v5614 = vadd.f32 %v207, %v5554
    %v5615 = vadd.f32 %v248, %v5555
    %v5616 = vadd.f32 %v289, %v5556
    %v5617 = vadd.f32 %v169, %v5557
    %v5618 = vadd.f32 %v210, %v5558
    %v5619 = vadd.f32 %v251, %v5559
    %v5620 = vadd.f32 %v292, %v5560
    %v5621 = vadd.f32 %v172, %v5561
    %v5622 = vadd.f32 %v213, %v5562
    %v5623 = vadd.f32 %v254, %v5563
    %v5624 = vadd.f32 %v295, %v5564
    %v5625 = vadd.f32 %v175, %v5565
    %v5626 = vadd.f32 %v216, %v5566
    %v5627 = vadd.f32 %v257, %v5567
    %v5628 = vadd.f32 %v298, %v5568
    %v5629 = vadd.f32 %v178, %v5475
    %v5630 = vadd.f32 %v219, %v5495
    %v5631 = vadd.f32 %v260, %v5515
    %v5632 = vadd.f32 %v301, %v5535
    %v5633 = vxor.u32 %v5601, 2147483648
    %v5634 = vxor.u32 %v5605, 2147483648
    %v5635 = vxor.u32 %v5609, 2147483648
    %v5636 = vxor.u32 %v5613, 2147483648
    %v5637 = vxor.u32 %v5617, 2147483648
    %v5638 = vxor.u32 %v5621, 2147483648
    %v5639 = vxor.u32 %v5625, 2147483648
    %v5640 = vxor.u32 %v5629, 2147483648
    %v5641 = vmul.f32 %v5633, 1.442695
    %v5642 = vpow.pop %v5641
    %v5643 = vmul.f32 %v5634, 1.442695
    %v5644 = vpow.pop %v5643
    %v5645 = vmul.f32 %v5635, 1.442695
    %v5646 = vpow.pop %v5645
    %v5647 = vmul.f32 %v5636, 1.442695
    %v5648 = vpow.pop %v5647
    %v5649 = vmul.f32 %v5637, 1.442695
    %v5650 = vpow.pop %v5649
    %v5651 = vmul.f32 %v5638, 1.442695
    %v5652 = vpow.pop %v5651
    %v5653 = vmul.f32 %v5639, 1.442695
    %v5654 = vpow.pop %v5653
    %v5655 = vmul.f32 %v5640, 1.442695
    %v5656 = vpow.pop %v5655
    %v5657 = vadd.f32 %v5642, 1.0
    %v5658 = vadd.f32 %v5644, 1.0
    %v5659 = vadd.f32 %v5646, 1.0
    %v5660 = vadd.f32 %v5648, 1.0
    %v5661 = vadd.f32 %v5650, 1.0
    %v5662 = vadd.f32 %v5652, 1.0
    %v5663 = vadd.f32 %v5654, 1.0
    %v5664 = vadd.f32 %v5656, 1.0
    %v5665 = vrcp.pop %v5657
    %v5666 = vmul.f32 %v5657, %v5665
    %v5667 = vsub.f32 1.0, %v5666
    %v5668 = vmul.f32 %v5665, %v5667
    %v5669 = vadd.f32 %v5665, %v5668
    %vm5670 = vweird.f32 %v5657
    %vm5671 = vweird.f32 %v5665
    %vm5672 = vmor %vm5670, %vm5671
    %v5673 = vsel %vm5672, %v5665, %v5669
    %v5674 = vand.u32 2147483647, %v5657
    %vm5675 = vcmp.eq.f32.partialorder %v5674, 8.507059e+37
    %v5676 = vand.u32 %v5657, 2147483648
    %v5677 = vor.u32 1.1754944e-38, %v5676
    %v5678 = vsel %vm5675, %v5677, %v5673
    %v5679 = vmul.f32 1.0, %v5678
    %v5680 = vrcp.pop %v5658
    %v5681 = vmul.f32 %v5658, %v5680
    %v5682 = vsub.f32 1.0, %v5681
    %v5683 = vmul.f32 %v5680, %v5682
    %v5684 = vadd.f32 %v5680, %v5683
    %vm5685 = vweird.f32 %v5658
    %vm5686 = vweird.f32 %v5680
    %vm5687 = vmor %vm5685, %vm5686
    %v5688 = vsel %vm5687, %v5680, %v5684
    %v5689 = vand.u32 2147483647, %v5658
    %vm5690 = vcmp.eq.f32.partialorder %v5689, 8.507059e+37
    %v5691 = vand.u32 %v5658, 2147483648
    %v5692 = vor.u32 1.1754944e-38, %v5691
    %v5693 = vsel %vm5690, %v5692, %v5688
    %v5694 = vmul.f32 1.0, %v5693
    %v5695 = vrcp.pop %v5659
    %v5696 = vmul.f32 %v5659, %v5695
    %v5697 = vsub.f32 1.0, %v5696
    %v5698 = vmul.f32 %v5695, %v5697
    %v5699 = vadd.f32 %v5695, %v5698
    %vm5700 = vweird.f32 %v5659
    %vm5701 = vweird.f32 %v5695
    %vm5702 = vmor %vm5700, %vm5701
    %v5703 = vsel %vm5702, %v5695, %v5699
    %v5704 = vand.u32 2147483647, %v5659
    %vm5705 = vcmp.eq.f32.partialorder %v5704, 8.507059e+37
    %v5706 = vand.u32 %v5659, 2147483648
    %v5707 = vor.u32 1.1754944e-38, %v5706
    %v5708 = vsel %vm5705, %v5707, %v5703
    %v5709 = vmul.f32 1.0, %v5708
    %v5710 = vrcp.pop %v5660
    %v5711 = vmul.f32 %v5660, %v5710
    %v5712 = vsub.f32 1.0, %v5711
    %v5713 = vmul.f32 %v5710, %v5712
    %v5714 = vadd.f32 %v5710, %v5713
    %vm5715 = vweird.f32 %v5660
    %vm5716 = vweird.f32 %v5710
    %vm5717 = vmor %vm5715, %vm5716
    %v5718 = vsel %vm5717, %v5710, %v5714
    %v5719 = vand.u32 2147483647, %v5660
    %vm5720 = vcmp.eq.f32.partialorder %v5719, 8.507059e+37
    %v5721 = vand.u32 %v5660, 2147483648
    %v5722 = vor.u32 1.1754944e-38, %v5721
    %v5723 = vsel %vm5720, %v5722, %v5718
    %v5724 = vmul.f32 1.0, %v5723
    %v5725 = vrcp.pop %v5661
    %v5726 = vmul.f32 %v5661, %v5725
    %v5727 = vsub.f32 1.0, %v5726
    %v5728 = vmul.f32 %v5725, %v5727
    %v5729 = vadd.f32 %v5725, %v5728
    %vm5730 = vweird.f32 %v5661
    %vm5731 = vweird.f32 %v5725
    %vm5732 = vmor %vm5730, %vm5731
    %v5733 = vsel %vm5732, %v5725, %v5729
    %v5734 = vand.u32 2147483647, %v5661
    %vm5735 = vcmp.eq.f32.partialorder %v5734, 8.507059e+37
    %v5736 = vand.u32 %v5661, 2147483648
    %v5737 = vor.u32 1.1754944e-38, %v5736
    %v5738 = vsel %vm5735, %v5737, %v5733
    %v5739 = vmul.f32 1.0, %v5738
    %v5740 = vrcp.pop %v5662
    %v5741 = vmul.f32 %v5662, %v5740
    %v5742 = vsub.f32 1.0, %v5741
    %v5743 = vmul.f32 %v5740, %v5742
    %v5744 = vadd.f32 %v5740, %v5743
    %vm5745 = vweird.f32 %v5662
    %vm5746 = vweird.f32 %v5740
    %vm5747 = vmor %vm5745, %vm5746
    %v5748 = vsel %vm5747, %v5740, %v5744
    %v5749 = vand.u32 2147483647, %v5662
    %vm5750 = vcmp.eq.f32.partialorder %v5749, 8.507059e+37
    %v5751 = vand.u32 %v5662, 2147483648
    %v5752 = vor.u32 1.1754944e-38, %v5751
    %v5753 = vsel %vm5750, %v5752, %v5748
    %v5754 = vmul.f32 1.0, %v5753
    %v5755 = vrcp.pop %v5663
    %v5756 = vmul.f32 %v5663, %v5755
    %v5757 = vsub.f32 1.0, %v5756
    %v5758 = vmul.f32 %v5755, %v5757
    %v5759 = vadd.f32 %v5755, %v5758
    %vm5760 = vweird.f32 %v5663
    %vm5761 = vweird.f32 %v5755
    %vm5762 = vmor %vm5760, %vm5761
    %v5763 = vsel %vm5762, %v5755, %v5759
    %v5764 = vand.u32 2147483647, %v5663
    %vm5765 = vcmp.eq.f32.partialorder %v5764, 8.507059e+37
    %v5766 = vand.u32 %v5663, 2147483648
    %v5767 = vor.u32 1.1754944e-38, %v5766
    %v5768 = vsel %vm5765, %v5767, %v5763
    %v5769 = vmul.f32 1.0, %v5768
    %v5770 = vrcp.pop %v5664
    %v5771 = vmul.f32 %v5664, %v5770
    %v5772 = vsub.f32 1.0, %v5771
    %v5773 = vmul.f32 %v5770, %v5772
    %v5774 = vadd.f32 %v5770, %v5773
    %vm5775 = vweird.f32 %v5664
    %vm5776 = vweird.f32 %v5770
    %vm5777 = vmor %vm5775, %vm5776
    %v5778 = vsel %vm5777, %v5770, %v5774
    %v5779 = vand.u32 2147483647, %v5664
    %vm5780 = vcmp.eq.f32.partialorder %v5779, 8.507059e+37
    %v5781 = vand.u32 %v5664, 2147483648
    %v5782 = vor.u32 1.1754944e-38, %v5781
    %v5783 = vsel %vm5780, %v5782, %v5778
    %v5784 = vmul.f32 1.0, %v5783
    %v5785 = vxor.u32 %v5602, 2147483648
    %v5786 = vxor.u32 %v5606, 2147483648
    %v5787 = vxor.u32 %v5610, 2147483648
    %v5788 = vxor.u32 %v5614, 2147483648
    %v5789 = vxor.u32 %v5618, 2147483648
    %v5790 = vxor.u32 %v5622, 2147483648
    %v5791 = vxor.u32 %v5626, 2147483648
    %v5792 = vxor.u32 %v5630, 2147483648
    %v5793 = vmul.f32 %v5785, 1.442695
    %v5794 = vpow.pop %v5793
    %v5795 = vmul.f32 %v5786, 1.442695
    %v5796 = vpow.pop %v5795
    %v5797 = vmul.f32 %v5787, 1.442695
    %v5798 = vpow.pop %v5797
    %v5799 = vmul.f32 %v5788, 1.442695
    %v5800 = vpow.pop %v5799
    %v5801 = vmul.f32 %v5789, 1.442695
    %v5802 = vpow.pop %v5801
    %v5803 = vmul.f32 %v5790, 1.442695
    %v5804 = vpow.pop %v5803
    %v5805 = vmul.f32 %v5791, 1.442695
    %v5806 = vpow.pop %v5805
    %v5807 = vmul.f32 %v5792, 1.442695
    %v5808 = vpow.pop %v5807
    %v5809 = vadd.f32 %v5794, 1.0
    %v5810 = vadd.f32 %v5796, 1.0
    %v5811 = vadd.f32 %v5798, 1.0
    %v5812 = vadd.f32 %v5800, 1.0
    %v5813 = vadd.f32 %v5802, 1.0
    %v5814 = vadd.f32 %v5804, 1.0
    %v5815 = vadd.f32 %v5806, 1.0
    %v5816 = vadd.f32 %v5808, 1.0
    %v5817 = vrcp.pop %v5809
    %v5818 = vmul.f32 %v5809, %v5817
    %v5819 = vsub.f32 1.0, %v5818
    %v5820 = vmul.f32 %v5817, %v5819
    %v5821 = vadd.f32 %v5817, %v5820
    %vm5822 = vweird.f32 %v5809
    %vm5823 = vweird.f32 %v5817
    %vm5824 = vmor %vm5822, %vm5823
    %v5825 = vsel %vm5824, %v5817, %v5821
    %v5826 = vand.u32 2147483647, %v5809
    %vm5827 = vcmp.eq.f32.partialorder %v5826, 8.507059e+37
    %v5828 = vand.u32 %v5809, 2147483648
    %v5829 = vor.u32 1.1754944e-38, %v5828
    %v5830 = vsel %vm5827, %v5829, %v5825
    %v5831 = vmul.f32 1.0, %v5830
    %v5832 = vrcp.pop %v5810
    %v5833 = vmul.f32 %v5810, %v5832
    %v5834 = vsub.f32 1.0, %v5833
    %v5835 = vmul.f32 %v5832, %v5834
    %v5836 = vadd.f32 %v5832, %v5835
    %vm5837 = vweird.f32 %v5810
    %vm5838 = vweird.f32 %v5832
    %vm5839 = vmor %vm5837, %vm5838
    %v5840 = vsel %vm5839, %v5832, %v5836
    %v5841 = vand.u32 2147483647, %v5810
    %vm5842 = vcmp.eq.f32.partialorder %v5841, 8.507059e+37
    %v5843 = vand.u32 %v5810, 2147483648
    %v5844 = vor.u32 1.1754944e-38, %v5843
    %v5845 = vsel %vm5842, %v5844, %v5840
    %v5846 = vmul.f32 1.0, %v5845
    %v5847 = vrcp.pop %v5811
    %v5848 = vmul.f32 %v5811, %v5847
    %v5849 = vsub.f32 1.0, %v5848
    %v5850 = vmul.f32 %v5847, %v5849
    %v5851 = vadd.f32 %v5847, %v5850
    %vm5852 = vweird.f32 %v5811
    %vm5853 = vweird.f32 %v5847
    %vm5854 = vmor %vm5852, %vm5853
    %v5855 = vsel %vm5854, %v5847, %v5851
    %v5856 = vand.u32 2147483647, %v5811
    %vm5857 = vcmp.eq.f32.partialorder %v5856, 8.507059e+37
    %v5858 = vand.u32 %v5811, 2147483648
    %v5859 = vor.u32 1.1754944e-38, %v5858
    %v5860 = vsel %vm5857, %v5859, %v5855
    %v5861 = vmul.f32 1.0, %v5860
    %v5862 = vrcp.pop %v5812
    %v5863 = vmul.f32 %v5812, %v5862
    %v5864 = vsub.f32 1.0, %v5863
    %v5865 = vmul.f32 %v5862, %v5864
    %v5866 = vadd.f32 %v5862, %v5865
    %vm5867 = vweird.f32 %v5812
    %vm5868 = vweird.f32 %v5862
    %vm5869 = vmor %vm5867, %vm5868
    %v5870 = vsel %vm5869, %v5862, %v5866
    %v5871 = vand.u32 2147483647, %v5812
    %vm5872 = vcmp.eq.f32.partialorder %v5871, 8.507059e+37
    %v5873 = vand.u32 %v5812, 2147483648
    %v5874 = vor.u32 1.1754944e-38, %v5873
    %v5875 = vsel %vm5872, %v5874, %v5870
    %v5876 = vmul.f32 1.0, %v5875
    %v5877 = vrcp.pop %v5813
    %v5878 = vmul.f32 %v5813, %v5877
    %v5879 = vsub.f32 1.0, %v5878
    %v5880 = vmul.f32 %v5877, %v5879
    %v5881 = vadd.f32 %v5877, %v5880
    %vm5882 = vweird.f32 %v5813
    %vm5883 = vweird.f32 %v5877
    %vm5884 = vmor %vm5882, %vm5883
    %v5885 = vsel %vm5884, %v5877, %v5881
    %v5886 = vand.u32 2147483647, %v5813
    %vm5887 = vcmp.eq.f32.partialorder %v5886, 8.507059e+37
    %v5888 = vand.u32 %v5813, 2147483648
    %v5889 = vor.u32 1.1754944e-38, %v5888
    %v5890 = vsel %vm5887, %v5889, %v5885
    %v5891 = vmul.f32 1.0, %v5890
    %v5892 = vrcp.pop %v5814
    %v5893 = vmul.f32 %v5814, %v5892
    %v5894 = vsub.f32 1.0, %v5893
    %v5895 = vmul.f32 %v5892, %v5894
    %v5896 = vadd.f32 %v5892, %v5895
    %vm5897 = vweird.f32 %v5814
    %vm5898 = vweird.f32 %v5892
    %vm5899 = vmor %vm5897, %vm5898
    %v5900 = vsel %vm5899, %v5892, %v5896
    %v5901 = vand.u32 2147483647, %v5814
    %vm5902 = vcmp.eq.f32.partialorder %v5901, 8.507059e+37
    %v5903 = vand.u32 %v5814, 2147483648
    %v5904 = vor.u32 1.1754944e-38, %v5903
    %v5905 = vsel %vm5902, %v5904, %v5900
    %v5906 = vmul.f32 1.0, %v5905
    %v5907 = vrcp.pop %v5815
    %v5908 = vmul.f32 %v5815, %v5907
    %v5909 = vsub.f32 1.0, %v5908
    %v5910 = vmul.f32 %v5907, %v5909
    %v5911 = vadd.f32 %v5907, %v5910
    %vm5912 = vweird.f32 %v5815
    %vm5913 = vweird.f32 %v5907
    %vm5914 = vmor %vm5912, %vm5913
    %v5915 = vsel %vm5914, %v5907, %v5911
    %v5916 = vand.u32 2147483647, %v5815
    %vm5917 = vcmp.eq.f32.partialorder %v5916, 8.507059e+37
    %v5918 = vand.u32 %v5815, 2147483648
    %v5919 = vor.u32 1.1754944e-38, %v5918
    %v5920 = vsel %vm5917, %v5919, %v5915
    %v5921 = vmul.f32 1.0, %v5920
    %v5922 = vrcp.pop %v5816
    %v5923 = vmul.f32 %v5816, %v5922
    %v5924 = vsub.f32 1.0, %v5923
    %v5925 = vmul.f32 %v5922, %v5924
    %v5926 = vadd.f32 %v5922, %v5925
    %vm5927 = vweird.f32 %v5816
    %vm5928 = vweird.f32 %v5922
    %vm5929 = vmor %vm5927, %vm5928
    %v5930 = vsel %vm5929, %v5922, %v5926
    %v5931 = vand.u32 2147483647, %v5816
    %vm5932 = vcmp.eq.f32.partialorder %v5931, 8.507059e+37
    %v5933 = vand.u32 %v5816, 2147483648
    %v5934 = vor.u32 1.1754944e-38, %v5933
    %v5935 = vsel %vm5932, %v5934, %v5930
    %v5936 = vmul.f32 1.0, %v5935
    %v5937 = vtanh.pop %v5603
    %v5938 = vtanh.pop %v5607
    %v5939 = vtanh.pop %v5611
    %v5940 = vtanh.pop %v5615
    %v5941 = vtanh.pop %v5619
    %v5942 = vtanh.pop %v5623
    %v5943 = vtanh.pop %v5627
    %v5944 = vtanh.pop %v5631
    %v5945 = vxor.u32 %v5604, 2147483648
    %v5946 = vxor.u32 %v5608, 2147483648
    %v5947 = vxor.u32 %v5612, 2147483648
    %v5948 = vxor.u32 %v5616, 2147483648
    %v5949 = vxor.u32 %v5620, 2147483648
    %v5950 = vxor.u32 %v5624, 2147483648
    %v5951 = vxor.u32 %v5628, 2147483648
    %v5952 = vxor.u32 %v5632, 2147483648
    %v5953 = vmul.f32 %v5945, 1.442695
    %v5954 = vpow.pop %v5953
    %v5955 = vmul.f32 %v5946, 1.442695
    %v5956 = vpow.pop %v5955
    %v5957 = vmul.f32 %v5947, 1.442695
    %v5958 = vpow.pop %v5957
    %v5959 = vmul.f32 %v5948, 1.442695
    %v5960 = vpow.pop %v5959
    %v5961 = vmul.f32 %v5949, 1.442695
    %v5962 = vpow.pop %v5961
    %v5963 = vmul.f32 %v5950, 1.442695
    %v5964 = vpow.pop %v5963
    %v5965 = vmul.f32 %v5951, 1.442695
    %v5966 = vpow.pop %v5965
    %v5967 = vmul.f32 %v5952, 1.442695
    %v5968 = vpow.pop %v5967
    %v5969 = vadd.f32 %v5954, 1.0
    %v5970 = vadd.f32 %v5956, 1.0
    %v5971 = vadd.f32 %v5958, 1.0
    %v5972 = vadd.f32 %v5960, 1.0
    %v5973 = vadd.f32 %v5962, 1.0
    %v5974 = vadd.f32 %v5964, 1.0
    %v5975 = vadd.f32 %v5966, 1.0
    %v5976 = vadd.f32 %v5968, 1.0
    %v5977 = vrcp.pop %v5969
    %v5978 = vmul.f32 %v5969, %v5977
    %v5979 = vsub.f32 1.0, %v5978
    %v5980 = vmul.f32 %v5977, %v5979
    %v5981 = vadd.f32 %v5977, %v5980
    %vm5982 = vweird.f32 %v5969
    %vm5983 = vweird.f32 %v5977
    %vm5984 = vmor %vm5982, %vm5983
    %v5985 = vsel %vm5984, %v5977, %v5981
    %v5986 = vand.u32 2147483647, %v5969
    %vm5987 = vcmp.eq.f32.partialorder %v5986, 8.507059e+37
    %v5988 = vand.u32 %v5969, 2147483648
    %v5989 = vor.u32 1.1754944e-38, %v5988
    %v5990 = vsel %vm5987, %v5989, %v5985
    %v5991 = vmul.f32 1.0, %v5990
    %v5992 = vrcp.pop %v5970
    %v5993 = vmul.f32 %v5970, %v5992
    %v5994 = vsub.f32 1.0, %v5993
    %v5995 = vmul.f32 %v5992, %v5994
    %v5996 = vadd.f32 %v5992, %v5995
    %vm5997 = vweird.f32 %v5970
    %vm5998 = vweird.f32 %v5992
    %vm5999 = vmor %vm5997, %vm5998
    %v6000 = vsel %vm5999, %v5992, %v5996
    %v6001 = vand.u32 2147483647, %v5970
    %vm6002 = vcmp.eq.f32.partialorder %v6001, 8.507059e+37
    %v6003 = vand.u32 %v5970, 2147483648
    %v6004 = vor.u32 1.1754944e-38, %v6003
    %v6005 = vsel %vm6002, %v6004, %v6000
    %v6006 = vmul.f32 1.0, %v6005
    %v6007 = vrcp.pop %v5971
    %v6008 = vmul.f32 %v5971, %v6007
    %v6009 = vsub.f32 1.0, %v6008
    %v6010 = vmul.f32 %v6007, %v6009
    %v6011 = vadd.f32 %v6007, %v6010
    %vm6012 = vweird.f32 %v5971
    %vm6013 = vweird.f32 %v6007
    %vm6014 = vmor %vm6012, %vm6013
    %v6015 = vsel %vm6014, %v6007, %v6011
    %v6016 = vand.u32 2147483647, %v5971
    %vm6017 = vcmp.eq.f32.partialorder %v6016, 8.507059e+37
    %v6018 = vand.u32 %v5971, 2147483648
    %v6019 = vor.u32 1.1754944e-38, %v6018
    %v6020 = vsel %vm6017, %v6019, %v6015
    %v6021 = vmul.f32 1.0, %v6020
    %v6022 = vrcp.pop %v5972
    %v6023 = vmul.f32 %v5972, %v6022
    %v6024 = vsub.f32 1.0, %v6023
    %v6025 = vmul.f32 %v6022, %v6024
    %v6026 = vadd.f32 %v6022, %v6025
    %vm6027 = vweird.f32 %v5972
    %vm6028 = vweird.f32 %v6022
    %vm6029 = vmor %vm6027, %vm6028
    %v6030 = vsel %vm6029, %v6022, %v6026
    %v6031 = vand.u32 2147483647, %v5972
    %vm6032 = vcmp.eq.f32.partialorder %v6031, 8.507059e+37
    %v6033 = vand.u32 %v5972, 2147483648
    %v6034 = vor.u32 1.1754944e-38, %v6033
    %v6035 = vsel %vm6032, %v6034, %v6030
    %v6036 = vmul.f32 1.0, %v6035
    %v6037 = vrcp.pop %v5973
    %v6038 = vmul.f32 %v5973, %v6037
    %v6039 = vsub.f32 1.0, %v6038
    %v6040 = vmul.f32 %v6037, %v6039
    %v6041 = vadd.f32 %v6037, %v6040
    %vm6042 = vweird.f32 %v5973
    %vm6043 = vweird.f32 %v6037
    %vm6044 = vmor %vm6042, %vm6043
    %v6045 = vsel %vm6044, %v6037, %v6041
    %v6046 = vand.u32 2147483647, %v5973
    %vm6047 = vcmp.eq.f32.partialorder %v6046, 8.507059e+37
    %v6048 = vand.u32 %v5973, 2147483648
    %v6049 = vor.u32 1.1754944e-38, %v6048
    %v6050 = vsel %vm6047, %v6049, %v6045
    %v6051 = vmul.f32 1.0, %v6050
    %v6052 = vrcp.pop %v5974
    %v6053 = vmul.f32 %v5974, %v6052
    %v6054 = vsub.f32 1.0, %v6053
    %v6055 = vmul.f32 %v6052, %v6054
    %v6056 = vadd.f32 %v6052, %v6055
    %vm6057 = vweird.f32 %v5974
    %vm6058 = vweird.f32 %v6052
    %vm6059 = vmor %vm6057, %vm6058
    %v6060 = vsel %vm6059, %v6052, %v6056
    %v6061 = vand.u32 2147483647, %v5974
    %vm6062 = vcmp.eq.f32.partialorder %v6061, 8.507059e+37
    %v6063 = vand.u32 %v5974, 2147483648
    %v6064 = vor.u32 1.1754944e-38, %v6063
    %v6065 = vsel %vm6062, %v6064, %v6060
    %v6066 = vmul.f32 1.0, %v6065
    %v6067 = vrcp.pop %v5975
    %v6068 = vmul.f32 %v5975, %v6067
    %v6069 = vsub.f32 1.0, %v6068
    %v6070 = vmul.f32 %v6067, %v6069
    %v6071 = vadd.f32 %v6067, %v6070
    %vm6072 = vweird.f32 %v5975
    %vm6073 = vweird.f32 %v6067
    %vm6074 = vmor %vm6072, %vm6073
    %v6075 = vsel %vm6074, %v6067, %v6071
    %v6076 = vand.u32 2147483647, %v5975
    %vm6077 = vcmp.eq.f32.partialorder %v6076, 8.507059e+37
    %v6078 = vand.u32 %v5975, 2147483648
    %v6079 = vor.u32 1.1754944e-38, %v6078
    %v6080 = vsel %vm6077, %v6079, %v6075
    %v6081 = vmul.f32 1.0, %v6080
    %v6082 = vrcp.pop %v5976
    %v6083 = vmul.f32 %v5976, %v6082
    %v6084 = vsub.f32 1.0, %v6083
    %v6085 = vmul.f32 %v6082, %v6084
    %v6086 = vadd.f32 %v6082, %v6085
    %vm6087 = vweird.f32 %v5976
    %vm6088 = vweird.f32 %v6082
    %vm6089 = vmor %vm6087, %vm6088
    %v6090 = vsel %vm6089, %v6082, %v6086
    %v6091 = vand.u32 2147483647, %v5976
    %vm6092 = vcmp.eq.f32.partialorder %v6091, 8.507059e+37
    %v6093 = vand.u32 %v5976, 2147483648
    %v6094 = vor.u32 1.1754944e-38, %v6093
    %v6095 = vsel %vm6092, %v6094, %v6090
    %v6096 = vmul.f32 1.0, %v6095
    %v6105 = vrot.slane %v5410, 7
    %v6106 = vrot.slane %v5411, 7
    %v6107 = vrot.slane %v5412, 7
    %v6108 = vrot.slane %v5413, 7
    %v6109 = vrot.slane %v5414, 7
    %v6110 = vrot.slane %v5415, 7
    %v6111 = vrot.slane %v5416, 7
    %v6112 = vrot.slane %v5417, 7
    %v6121 = vmul.f32 %v5831, %v6105
    %v6122 = vmul.f32 %v5846, %v6106
    %v6123 = vmul.f32 %v5861, %v6107
    %v6124 = vmul.f32 %v5876, %v6108
    %v6125 = vmul.f32 %v5891, %v6109
    %v6126 = vmul.f32 %v5906, %v6110
    %v6127 = vmul.f32 %v5921, %v6111
    %v6128 = vmul.f32 %v5936, %v6112
    %v6129 = vmul.f32 %v5679, %v5937
    %v6130 = vmul.f32 %v5694, %v5938
    %v6131 = vmul.f32 %v5709, %v5939
    %v6132 = vmul.f32 %v5724, %v5940
    %v6133 = vmul.f32 %v5739, %v5941
    %v6134 = vmul.f32 %v5754, %v5942
    %v6135 = vmul.f32 %v5769, %v5943
    %v6136 = vmul.f32 %v5784, %v5944
    %v6137 = vadd.f32 %v6121, %v6129
    %v6138 = vadd.f32 %v6122, %v6130
    %v6139 = vadd.f32 %v6123, %v6131
    %v6140 = vadd.f32 %v6124, %v6132
    %v6141 = vadd.f32 %v6125, %v6133
    %v6142 = vadd.f32 %v6126, %v6134
    %v6143 = vadd.f32 %v6127, %v6135
    %v6144 = vadd.f32 %v6128, %v6136
    %v6145 = vtanh.pop %v6137
    %v6146 = vtanh.pop %v6138
    %v6147 = vtanh.pop %v6139
    %v6148 = vtanh.pop %v6140
    %v6149 = vtanh.pop %v6141
    %v6150 = vtanh.pop %v6142
    %v6151 = vtanh.pop %v6143
    %v6152 = vtanh.pop %v6144
    %v6153 = vmul.f32 %v5991, %v6145
    %v6154 = vmul.f32 %v6006, %v6146
    %v6155 = vmul.f32 %v6021, %v6147
    %v6156 = vmul.f32 %v6036, %v6148
    %v6157 = vmul.f32 %v6051, %v6149
    %v6158 = vmul.f32 %v6066, %v6150
    %v6159 = vmul.f32 %v6081, %v6151
    %v6160 = vmul.f32 %v6096, %v6152
    %v6169 = vrot.slane %v6154, 7
    %v6170 = vrot.slane %v6155, 6
    %v6171 = vsel %vm1074, %v6170, %v6169
    %v6172 = vrot.slane %v6156, 5
    %v6173 = vsel %vm1077, %v6172, %v6171
    %v6174 = vrot.slane %v6157, 4
    %v6175 = vsel %vm1080, %v6174, %v6173
    %v6176 = vrot.slane %v6158, 3
    %v6177 = vsel %vm1083, %v6176, %v6175
    %v6178 = vrot.slane %v6159, 2
    %v6179 = vsel %vm1086, %v6178, %v6177
    %v6180 = vrot.slane %v6160, 1
    %v6181 = vsel %vm1089, %v6180, %v6179
    %6184 = vst [vmem:[#allocation2 - $0x7] sm:$0x80] %v6153
    %6185 = vst [vmem:[#allocation2 + $0x1] sm:$0x7f] %v6181
    %v6194 = vrot.slane %v6138, 7
    %v6195 = vrot.slane %v6139, 6
    %v6196 = vsel %vm1074, %v6195, %v6194
    %v6197 = vrot.slane %v6140, 5
    %v6198 = vsel %vm1077, %v6197, %v6196
    %v6199 = vrot.slane %v6141, 4
    %v6200 = vsel %vm1080, %v6199, %v6198
    %v6201 = vrot.slane %v6142, 3
    %v6202 = vsel %vm1083, %v6201, %v6200
    %v6203 = vrot.slane %v6143, 2
    %v6204 = vsel %vm1086, %v6203, %v6202
    %v6205 = vrot.slane %v6144, 1
    %v6206 = vsel %vm1089, %v6205, %v6204
    %6209 = vst [vmem:[#allocation3 - $0x7] sm:$0x80] %v6137
    %6210 = vst [vmem:[#allocation3 + $0x1] sm:$0x7f] %v6206
    // Predicated region
    $region30: #{lstmvae_forward.2} parent=1 // pred_check
      %p6211 = pneg %p51
    $region31: #{lstmvae_forward.2} parent=1 // pred_check_branch
      %6213 = sbr.rel (%p6211) target = $region33
    $region32: #{lstmvae_forward.2} parent=1 // pred_region
      %6214 = vst [vmem:[%s4 - $0x7] sm:$0x80] %v6153
      %6215 = vst [vmem:[%s4 + $0x1] sm:$0x7f] %v6181
      %6216 = vst [vmem:[%s5 - $0x7] sm:$0x80] %v6137
      %6217 = vst [vmem:[%s5 + $0x1] sm:$0x7f] %v6206
    $region33: #{lstmvae_forward.2} parent=1 // pred_fallthru
      _
    // Predicated region
    $region34: #{lstmvae_forward.2} parent=1 // pred_check
      _
    $region35: #{lstmvae_forward.2} parent=1 // pred_check_branch
      %6219 = sbr.rel (0) target = $region37
    $region36: #{lstmvae_forward.2} parent=1 // pred_region
      _
    $region37: #{lstmvae_forward.2} parent=1 // pred_fallthru
      _
    // Predicated region
    $region38: #{lstmvae_forward.2} parent=1 // pred_check
      _
    $region39: #{lstmvae_forward.2} parent=1 // pred_check_branch
      %6221 = sbr.rel (0) target = $region41
    $region40: #{lstmvae_forward.2} parent=1 // pred_region
      _
    $region41: #{lstmvae_forward.2} parent=1 // pred_fallthru
      _
    // Predicated region
    $region42: #{lstmvae_forward.2} parent=1 // pred_check
      _
    $region43: #{lstmvae_forward.2} parent=1 // pred_check_branch
      %6223 = sbr.rel (0) target = $region45
    $region44: #{lstmvae_forward.2} parent=1 // pred_region
      _
    $region45: #{lstmvae_forward.2} parent=1 // pred_fallthru
      _
    // Predicated region
    $region46: #{lstmvae_forward.2} parent=1 // pred_check
      _
    $region47: #{lstmvae_forward.2} parent=1 // pred_check_branch
      %6225 = sbr.rel (0) target = $region49
    $region48: #{lstmvae_forward.2} parent=1 // pred_region
      _
    $region49: #{lstmvae_forward.2} parent=1 // pred_fallthru
      _
    %6226 = vsyncpa [#allocation5], 1
    %6227 = vsyncpa [#allocation7], 1

// kernel: lstmvae_forward.3
$region0: #{lstmvae_forward.3}
  #allocation0 [shape = 'u32[]', space=smem, size = 0x4, offset = 0x4, fixed_abs, tag = 'smem constant byte address 0x4 - core index']
  #allocation1 [shape = 'u32[72,128]{1,0:T(1,128)}', space=vmem, size = 0x9000, scoped, tag = 'internal scratch']
  #allocation2 [shape = 'f32[8,128]{1,0:T(8,128)}', space=vmem, size = 0x1000, scoped, tag = 'scratch operand']
  #allocation3 [shape = 'f32[8,128]{1,0:T(8,128)}', space=vmem, size = 0x1000, scoped, tag = 'scratch operand']
  #allocation4 [shape = 'f32[8,512]{1,0:T(8,128)}', space=vmem, size = 0x4000, scoped, tag = 'scratch operand']
  #allocation5 [shape = 'f32[8,8,128]{2,1,0:T(8,128)}', space=vmem, size = 0x8000, scoped, tag = 'scratch operand']
  %s0 = inlined_call_operand.vmem [shape: f32[8,128], index: 0, kind: input, shape index: {}]
  %s1 = inlined_call_operand.vmem [shape: f32[8,128], index: 1, kind: input, shape index: {}]
  %s2 = inlined_call_operand.vmem [shape: f32[8,128], index: 2, kind: input, shape index: {}]
  %s3 = inlined_call_operand.hbm [shape: f32[128,128], index: 3, kind: input, shape index: {}]
  %s4 = inlined_call_operand.vmem [shape: f32[1,128], index: 4, kind: input, shape index: {}]
  %s5 = inlined_call_operand.hbm [shape: f32[128,128], index: 5, kind: input, shape index: {}]
  %s6 = inlined_call_operand.vmem [shape: f32[1,128], index: 6, kind: input, shape index: {}]
  %s7 = inlined_call_operand.hbm [shape: f32[128,128], index: 7, kind: input, shape index: {}]
  %s8 = inlined_call_operand.vmem [shape: f32[1,128], index: 8, kind: input, shape index: {}]
  %s9 = inlined_call_operand.hbm [shape: f32[128,512], index: 9, kind: input, shape index: {}]
  %s10 = inlined_call_operand.hbm [shape: f32[128,512], index: 10, kind: input, shape index: {}]
  %s11 = inlined_call_operand.vmem [shape: f32[1,512], index: 11, kind: input, shape index: {}]
  %s12 = inlined_call_operand.hbm [shape: f32[128,128], index: 12, kind: input, shape index: {}]
  %s13 = inlined_call_operand.vmem [shape: f32[1,128], index: 13, kind: input, shape index: {}]
  %s14 = inlined_call_operand.vmem [shape: f32[8,8,128], index: 14, kind: output, shape index: {0}]
  %s15 = inlined_call_operand.vmem [shape: f32[8,128], index: 15, kind: output, shape index: {1}]
  %s16 = inlined_call_operand.vmem [shape: f32[8,128], index: 16, kind: output, shape index: {2}]
  %17 = xla_tuple %s14, %s15, %s16
  %s18 = sld [smem:[#allocation0]]
  $region110: #{lstmvae_forward.3} parent=0
    _
  %s20 = ssub.s32 1, %s18
  %s21 = scalar_select 0, %s20, %s18
  $region1: #{lstmvae_forward.3} parent=0
    #allocation6 [shape = 'u8[65536]{0}', space=vmem, size = 0x10000, scoped, tag = 'input window, operand 3, single buffered']
    #allocation7 [shape = 's32[1]{0}', space=sflag, size = 0x4, scoped, tag = 'scoped memory for lstmvae_forward.3']
    #allocation8 [shape = 'u8[65536]{0}', space=vmem, size = 0x10000, scoped, tag = 'input window, operand 5, single buffered']
    #allocation9 [shape = 's32[1]{0}', space=sflag, size = 0x4, scoped, tag = 'scoped memory for lstmvae_forward.3']
    #allocation10 [shape = 'u8[65536]{0}', space=vmem, size = 0x10000, scoped, tag = 'input window, operand 7, single buffered']
    #allocation11 [shape = 'u8[262144]{0}', space=vmem, size = 0x40000, scoped, tag = 'input window, operand 9, single buffered']
    #allocation12 [shape = 's32[1]{0}', space=sflag, size = 0x4, scoped, tag = 'scoped memory for lstmvae_forward.3']
    #allocation13 [shape = 'u8[262144]{0}', space=vmem, size = 0x40000, scoped, tag = 'input window, operand 10, single buffered']
    #allocation14 [shape = 'u8[65536]{0}', space=vmem, size = 0x10000, scoped, tag = 'input window, operand 12, single buffered']
    #allocation15 [shape = 's32[1]{0}', space=sflag, size = 0x4, scoped, tag = 'scoped memory for lstmvae_forward.3']
    %22 = vsyncpa [#allocation7], 0
    %23 = vsyncpa [#allocation9], 0
    %24 = vsyncpa [#allocation12], 0
    %25 = vsyncpa [#allocation15], 0
    // Predicated region
    $region2: #{lstmvae_forward.3} parent=1 // pred_check
      _
    $region3: #{lstmvae_forward.3} parent=1 // pred_check_branch
      %27 = sbr.rel (0) target = $region5
    $region4: #{lstmvae_forward.3} parent=1 // pred_region
      _
    $region5: #{lstmvae_forward.3} parent=1 // pred_fallthru
      _
    // Predicated region
    $region6: #{lstmvae_forward.3} parent=1 // pred_check
      _
    $region7: #{lstmvae_forward.3} parent=1 // pred_check_branch
      %29 = sbr.rel (0) target = $region9
    $region8: #{lstmvae_forward.3} parent=1 // pred_region
      _
    $region9: #{lstmvae_forward.3} parent=1 // pred_fallthru
      _
    // Predicated region
    $region10: #{lstmvae_forward.3} parent=1 // pred_check
      _
    $region11: #{lstmvae_forward.3} parent=1 // pred_check_branch
      %31 = sbr.rel (0) target = $region13
    $region12: #{lstmvae_forward.3} parent=1 // pred_region
      _
    $region13: #{lstmvae_forward.3} parent=1 // pred_fallthru
      _
    // Predicated region
    $region14: #{lstmvae_forward.3} parent=1 // pred_check
      _
    $region15: #{lstmvae_forward.3} parent=1 // pred_check_branch
      %33 = sbr.rel (0) target = $region17
    $region16: #{lstmvae_forward.3} parent=1 // pred_region
      %35 = vsyncadd [#allocation7], 0
      %s36 = sshll.u32 %s3, 4
      %s37 = int_to_ptr.hbm [resolvable:$true] %s36
      %s38 = sshll.u32 [#allocation6], 4
      %s39 = int_to_ptr.vmem [resolvable:$true] %s38
      %44 = dma.hbm_to_vmem [thread:$0]  %s37, 2048, %s39, [#allocation7], 128, 128, 8
    $region17: #{lstmvae_forward.3} parent=1 // pred_fallthru
      _
    // Predicated region
    $region18: #{lstmvae_forward.3} parent=1 // pred_check
      _
    $region19: #{lstmvae_forward.3} parent=1 // pred_check_branch
      %46 = sbr.rel (0) target = $region21
    $region20: #{lstmvae_forward.3} parent=1 // pred_region
      _
    $region21: #{lstmvae_forward.3} parent=1 // pred_fallthru
      _
    // Predicated region
    $region22: #{lstmvae_forward.3} parent=1 // pred_check
      _
    $region23: #{lstmvae_forward.3} parent=1 // pred_check_branch
      %48 = sbr.rel (0) target = $region25
    $region24: #{lstmvae_forward.3} parent=1 // pred_region
      %50 = vsyncadd [#allocation9], 0
      %s51 = sshll.u32 %s5, 4
      %s52 = int_to_ptr.hbm [resolvable:$true] %s51
      %s53 = sshll.u32 [#allocation8], 4
      %s54 = int_to_ptr.vmem [resolvable:$true] %s53
      %59 = dma.hbm_to_vmem [thread:$0]  %s52, 2048, %s54, [#allocation9], 128, 128, 8
    $region25: #{lstmvae_forward.3} parent=1 // pred_fallthru
      _
    // Predicated region
    $region26: #{lstmvae_forward.3} parent=1 // pred_check
      _
    $region27: #{lstmvae_forward.3} parent=1 // pred_check_branch
      %61 = sbr.rel (0) target = $region29
    $region28: #{lstmvae_forward.3} parent=1 // pred_region
      _
    $region29: #{lstmvae_forward.3} parent=1 // pred_fallthru
      _
    // Predicated region
    $region30: #{lstmvae_forward.3} parent=1 // pred_check
      _
    $region31: #{lstmvae_forward.3} parent=1 // pred_check_branch
      %63 = sbr.rel (0) target = $region33
    $region32: #{lstmvae_forward.3} parent=1 // pred_region
      %65 = vsyncadd [#allocation9], 0
      %s66 = sshll.u32 %s7, 4
      %s67 = int_to_ptr.hbm [resolvable:$true] %s66
      %s68 = sshll.u32 [#allocation10], 4
      %s69 = int_to_ptr.vmem [resolvable:$true] %s68
      %74 = dma.hbm_to_vmem [thread:$0]  %s67, 2048, %s69, [#allocation9], 128, 128, 8
    $region33: #{lstmvae_forward.3} parent=1 // pred_fallthru
      _
    // Predicated region
    $region34: #{lstmvae_forward.3} parent=1 // pred_check
      _
    $region35: #{lstmvae_forward.3} parent=1 // pred_check_branch
      %76 = sbr.rel (0) target = $region37
    $region36: #{lstmvae_forward.3} parent=1 // pred_region
      _
    $region37: #{lstmvae_forward.3} parent=1 // pred_fallthru
      _
    // Predicated region
    $region38: #{lstmvae_forward.3} parent=1 // pred_check
      _
    $region39: #{lstmvae_forward.3} parent=1 // pred_check_branch
      %78 = sbr.rel (0) target = $region41
    $region40: #{lstmvae_forward.3} parent=1 // pred_region
      %80 = vsyncadd [#allocation12], 0
      %s81 = sshll.u32 %s9, 4
      %s82 = int_to_ptr.hbm [resolvable:$true] %s81
      %s83 = sshll.u32 [#allocation11], 4
      %s84 = int_to_ptr.vmem [resolvable:$true] %s83
      %89 = dma.hbm_to_vmem [thread:$0]  %s82, 8192, %s84, [#allocation12], 512, 512, 32
    $region41: #{lstmvae_forward.3} parent=1 // pred_fallthru
      _
    // Predicated region
    $region42: #{lstmvae_forward.3} parent=1 // pred_check
      _
    $region43: #{lstmvae_forward.3} parent=1 // pred_check_branch
      %91 = sbr.rel (0) target = $region45
    $region44: #{lstmvae_forward.3} parent=1 // pred_region
      %93 = vsyncadd [#allocation12], 0
      %s94 = sshll.u32 %s10, 4
      %s95 = int_to_ptr.hbm [resolvable:$true] %s94
      %s96 = sshll.u32 [#allocation13], 4
      %s97 = int_to_ptr.vmem [resolvable:$true] %s96
      %102 = dma.hbm_to_vmem [thread:$0]  %s95, 8192, %s97, [#allocation12], 512, 512, 32
    $region45: #{lstmvae_forward.3} parent=1 // pred_fallthru
      _
    // Predicated region
    $region46: #{lstmvae_forward.3} parent=1 // pred_check
      _
    $region47: #{lstmvae_forward.3} parent=1 // pred_check_branch
      %104 = sbr.rel (0) target = $region49
    $region48: #{lstmvae_forward.3} parent=1 // pred_region
      _
    $region49: #{lstmvae_forward.3} parent=1 // pred_fallthru
      _
    // Predicated region
    $region50: #{lstmvae_forward.3} parent=1 // pred_check
      _
    $region51: #{lstmvae_forward.3} parent=1 // pred_check_branch
      %106 = sbr.rel (0) target = $region53
    $region52: #{lstmvae_forward.3} parent=1 // pred_region
      %108 = vsyncadd [#allocation15], 0
      %s109 = sshll.u32 %s12, 4
      %s110 = int_to_ptr.hbm [resolvable:$true] %s109
      %s111 = sshll.u32 [#allocation14], 4
      %s112 = int_to_ptr.vmem [resolvable:$true] %s111
      %117 = dma.hbm_to_vmem [thread:$0]  %s110, 2048, %s112, [#allocation15], 128, 128, 8
    $region53: #{lstmvae_forward.3} parent=1 // pred_fallthru
      _
    // Predicated region
    $region54: #{lstmvae_forward.3} parent=1 // pred_check
      _
    $region55: #{lstmvae_forward.3} parent=1 // pred_check_branch
      %119 = sbr.rel (0) target = $region57
    $region56: #{lstmvae_forward.3} parent=1 // pred_region
      _
    $region57: #{lstmvae_forward.3} parent=1 // pred_fallthru
      _
    // Predicated region
    $region58: #{lstmvae_forward.3} parent=1 // pred_check
      _
    $region59: #{lstmvae_forward.3} parent=1 // pred_check_branch
      %121 = sbr.rel (0) target = $region61
    $region60: #{lstmvae_forward.3} parent=1 // pred_region
      %123 = dma.done [#allocation7], 2048
    $region61: #{lstmvae_forward.3} parent=1 // pred_fallthru
      _
    // Predicated region
    $region62: #{lstmvae_forward.3} parent=1 // pred_check
      _
    $region63: #{lstmvae_forward.3} parent=1 // pred_check_branch
      %125 = sbr.rel (0) target = $region65
    $region64: #{lstmvae_forward.3} parent=1 // pred_region
      %127 = dma.done [#allocation9], 2048
    $region65: #{lstmvae_forward.3} parent=1 // pred_fallthru
      _
    // Predicated region
    $region66: #{lstmvae_forward.3} parent=1 // pred_check
      _
    $region67: #{lstmvae_forward.3} parent=1 // pred_check_branch
      %129 = sbr.rel (0) target = $region69
    $region68: #{lstmvae_forward.3} parent=1 // pred_region
      %131 = dma.done [#allocation9], 2048
    $region69: #{lstmvae_forward.3} parent=1 // pred_fallthru
      _
    // Predicated region
    $region70: #{lstmvae_forward.3} parent=1 // pred_check
      _
    $region71: #{lstmvae_forward.3} parent=1 // pred_check_branch
      %133 = sbr.rel (0) target = $region73
    $region72: #{lstmvae_forward.3} parent=1 // pred_region
      %135 = dma.done [#allocation12], 8192
    $region73: #{lstmvae_forward.3} parent=1 // pred_fallthru
      _
    // Predicated region
    $region74: #{lstmvae_forward.3} parent=1 // pred_check
      _
    $region75: #{lstmvae_forward.3} parent=1 // pred_check_branch
      %137 = sbr.rel (0) target = $region77
    $region76: #{lstmvae_forward.3} parent=1 // pred_region
      %139 = dma.done [#allocation12], 8192
    $region77: #{lstmvae_forward.3} parent=1 // pred_fallthru
      _
    // Predicated region
    $region78: #{lstmvae_forward.3} parent=1 // pred_check
      _
    $region79: #{lstmvae_forward.3} parent=1 // pred_check_branch
      %141 = sbr.rel (0) target = $region81
    $region80: #{lstmvae_forward.3} parent=1 // pred_region
      %143 = dma.done [#allocation15], 2048
    $region81: #{lstmvae_forward.3} parent=1 // pred_fallthru
      _
    %p144 = scmp.eq.s32.totalorder 0, 0
    // Predicated region
    $region82: #{lstmvae_forward.3} parent=1 // pred_check
      %p145 = pneg %p144
    $region83: #{lstmvae_forward.3} parent=1 // pred_check_branch
      %147 = sbr.rel (%p145) target = $region85
    $region84: #{lstmvae_forward.3} parent=1 // pred_region
      %v148 = vld [vmem:[%s0] sm:$0xff]
      %v149 = vld [vmem:[#allocation6] sm:$0xff]
      %v150 = vld [vmem:[#allocation6 + $0x8] sm:$0xff]
      %v151 = vld [vmem:[#allocation6 + $0x10] sm:$0xff]
      %v152 = vld [vmem:[#allocation6 + $0x18] sm:$0xff]
      %v153 = vld [vmem:[#allocation6 + $0x20] sm:$0xff]
      %v154 = vld [vmem:[#allocation6 + $0x28] sm:$0xff]
      %v155 = vld [vmem:[#allocation6 + $0x30] sm:$0xff]
      %v156 = vld [vmem:[#allocation6 + $0x38] sm:$0xff]
      %v157 = vld [vmem:[#allocation6 + $0x40] sm:$0xff]
      %v158 = vld [vmem:[#allocation6 + $0x48] sm:$0xff]
      %v159 = vld [vmem:[#allocation6 + $0x50] sm:$0xff]
      %v160 = vld [vmem:[#allocation6 + $0x58] sm:$0xff]
      %v161 = vld [vmem:[#allocation6 + $0x60] sm:$0xff]
      %v162 = vld [vmem:[#allocation6 + $0x68] sm:$0xff]
      %v163 = vld [vmem:[#allocation6 + $0x70] sm:$0xff]
      %v164 = vld [vmem:[#allocation6 + $0x78] sm:$0xff]
      %v165 = vld [vmem:[%s4] sm:$0x1]
      %v167 = vperm.slane %v165, 0
      %169 = vmatpush.msra.mxu0 %v164
      %170 = vmatpush.msra.mxu0 %v163
      %171 = vmatpush.msra.mxu0 %v162
      %172 = vmatpush.msra.mxu0 %v161
      %173 = vmatpush.msra.mxu0 %v160
      %174 = vmatpush.msra.mxu0 %v159
      %175 = vmatpush.msra.mxu0 %v158
      %176 = vmatpush.msra.mxu0 %v157
      %177 = vmatpush.msra.mxu0 %v156
      %178 = vmatpush.msra.mxu0 %v155
      %179 = vmatpush.msra.mxu0 %v154
      %180 = vmatpush.msra.mxu0 %v153
      %181 = vmatpush.msra.mxu0 %v152
      %182 = vmatpush.msra.mxu0 %v151
      %183 = vmatpush.msra.mxu0 %v150
      %184 = vmatpush.msra.mxu0 %v149
      %185 = vmatmul.f32.gmra.mxu0 %v148
      %v186 = vpop.f32.mrf.mxu0
      %v187 = vadd.f32 %v167, %v186
      %188 = vdwg.mxu0
      %v189 = vld [vmem:[#allocation8] sm:$0xff]
      %v190 = vld [vmem:[#allocation8 + $0x8] sm:$0xff]
      %v191 = vld [vmem:[#allocation8 + $0x10] sm:$0xff]
      %v192 = vld [vmem:[#allocation8 + $0x18] sm:$0xff]
      %v193 = vld [vmem:[#allocation8 + $0x20] sm:$0xff]
      %v194 = vld [vmem:[#allocation8 + $0x28] sm:$0xff]
      %v195 = vld [vmem:[#allocation8 + $0x30] sm:$0xff]
      %v196 = vld [vmem:[#allocation8 + $0x38] sm:$0xff]
      %v197 = vld [vmem:[#allocation8 + $0x40] sm:$0xff]
      %v198 = vld [vmem:[#allocation8 + $0x48] sm:$0xff]
      %v199 = vld [vmem:[#allocation8 + $0x50] sm:$0xff]
      %v200 = vld [vmem:[#allocation8 + $0x58] sm:$0xff]
      %v201 = vld [vmem:[#allocation8 + $0x60] sm:$0xff]
      %v202 = vld [vmem:[#allocation8 + $0x68] sm:$0xff]
      %v203 = vld [vmem:[#allocation8 + $0x70] sm:$0xff]
      %v204 = vld [vmem:[#allocation8 + $0x78] sm:$0xff]
      %v205 = vld [vmem:[%s6] sm:$0x1]
      %v207 = vperm.slane %v205, 0
      %209 = vmatpush.msra.mxu0 %v204
      %210 = vmatpush.msra.mxu0 %v203
      %211 = vmatpush.msra.mxu0 %v202
      %212 = vmatpush.msra.mxu0 %v201
      %213 = vmatpush.msra.mxu0 %v200
      %214 = vmatpush.msra.mxu0 %v199
      %215 = vmatpush.msra.mxu0 %v198
      %216 = vmatpush.msra.mxu0 %v197
      %217 = vmatpush.msra.mxu0 %v196
      %218 = vmatpush.msra.mxu0 %v195
      %219 = vmatpush.msra.mxu0 %v194
      %220 = vmatpush.msra.mxu0 %v193
      %221 = vmatpush.msra.mxu0 %v192
      %222 = vmatpush.msra.mxu0 %v191
      %223 = vmatpush.msra.mxu0 %v190
      %224 = vmatpush.msra.mxu0 %v189
      %225 = vmatmul.f32.gmra.mxu0 %v148
      %v226 = vpop.f32.mrf.mxu0
      %v227 = vadd.f32 %v207, %v226
      %228 = vdwg.mxu0
      %v229 = vld [vmem:[%s2] sm:$0xff]
      %v230 = vmul.f32 %v227, 0.5
      %v231 = vmul.f32 %v230, 1.442695
      %v232 = vpow.pop %v231
      %v233 = vmul.f32 %v229, %v232
      %v234 = vadd.f32 %v187, %v233
      %235 = vst [vmem:[%s15] sm:$0xff] %v187
      %236 = vst [vmem:[%s16] sm:$0xff] %v227
      %v237 = vld [vmem:[#allocation10] sm:$0xff]
      %v238 = vld [vmem:[#allocation10 + $0x8] sm:$0xff]
      %v239 = vld [vmem:[#allocation10 + $0x10] sm:$0xff]
      %v240 = vld [vmem:[#allocation10 + $0x18] sm:$0xff]
      %v241 = vld [vmem:[#allocation10 + $0x20] sm:$0xff]
      %v242 = vld [vmem:[#allocation10 + $0x28] sm:$0xff]
      %v243 = vld [vmem:[#allocation10 + $0x30] sm:$0xff]
      %v244 = vld [vmem:[#allocation10 + $0x38] sm:$0xff]
      %v245 = vld [vmem:[#allocation10 + $0x40] sm:$0xff]
      %v246 = vld [vmem:[#allocation10 + $0x48] sm:$0xff]
      %v247 = vld [vmem:[#allocation10 + $0x50] sm:$0xff]
      %v248 = vld [vmem:[#allocation10 + $0x58] sm:$0xff]
      %v249 = vld [vmem:[#allocation10 + $0x60] sm:$0xff]
      %v250 = vld [vmem:[#allocation10 + $0x68] sm:$0xff]
      %v251 = vld [vmem:[#allocation10 + $0x70] sm:$0xff]
      %v252 = vld [vmem:[#allocation10 + $0x78] sm:$0xff]
      %v253 = vld [vmem:[%s8] sm:$0x1]
      %v255 = vperm.slane %v253, 0
      %257 = vmatpush.msra.mxu0 %v252
      %258 = vmatpush.msra.mxu0 %v251
      %259 = vmatpush.msra.mxu0 %v250
      %260 = vmatpush.msra.mxu0 %v249
      %261 = vmatpush.msra.mxu0 %v248
      %262 = vmatpush.msra.mxu0 %v247
      %263 = vmatpush.msra.mxu0 %v246
      %264 = vmatpush.msra.mxu0 %v245
      %265 = vmatpush.msra.mxu0 %v244
      %266 = vmatpush.msra.mxu0 %v243
      %267 = vmatpush.msra.mxu0 %v242
      %268 = vmatpush.msra.mxu0 %v241
      %269 = vmatpush.msra.mxu0 %v240
      %270 = vmatpush.msra.mxu0 %v239
      %271 = vmatpush.msra.mxu0 %v238
      %272 = vmatpush.msra.mxu0 %v237
      %273 = vmatmul.f32.gmra.mxu0 %v234
      %v274 = vpop.f32.mrf.mxu0
      %v275 = vadd.f32 %v255, %v274
      %276 = vdwg.mxu0
      %277 = vst [vmem:[#allocation2] sm:$0xff] %v275
      %v278 = vld [vmem:[%s1] sm:$0xff]
      %279 = vst [vmem:[#allocation3] sm:$0xff] %v278
      %v280 = vld [vmem:[#allocation11] sm:$0xff]
      %v281 = vld [vmem:[#allocation11 + $0x8] sm:$0xff]
      %v282 = vld [vmem:[#allocation11 + $0x10] sm:$0xff]
      %v283 = vld [vmem:[#allocation11 + $0x18] sm:$0xff]
      %v284 = vld [vmem:[#allocation11 + $0x20] sm:$0xff]
      %v285 = vld [vmem:[#allocation11 + $0x28] sm:$0xff]
      %v286 = vld [vmem:[#allocation11 + $0x30] sm:$0xff]
      %v287 = vld [vmem:[#allocation11 + $0x38] sm:$0xff]
      %v288 = vld [vmem:[#allocation11 + $0x40] sm:$0xff]
      %v289 = vld [vmem:[#allocation11 + $0x48] sm:$0xff]
      %v290 = vld [vmem:[#allocation11 + $0x50] sm:$0xff]
      %v291 = vld [vmem:[#allocation11 + $0x58] sm:$0xff]
      %v292 = vld [vmem:[#allocation11 + $0x60] sm:$0xff]
      %v293 = vld [vmem:[#allocation11 + $0x68] sm:$0xff]
      %v294 = vld [vmem:[#allocation11 + $0x70] sm:$0xff]
      %v295 = vld [vmem:[#allocation11 + $0x78] sm:$0xff]
      %v296 = vld [vmem:[#allocation11 + $0x80] sm:$0xff]
      %v297 = vld [vmem:[#allocation11 + $0x88] sm:$0xff]
      %v298 = vld [vmem:[#allocation11 + $0x90] sm:$0xff]
      %v299 = vld [vmem:[#allocation11 + $0x98] sm:$0xff]
      %v300 = vld [vmem:[#allocation11 + $0xa0] sm:$0xff]
      %v301 = vld [vmem:[#allocation11 + $0xa8] sm:$0xff]
      %v302 = vld [vmem:[#allocation11 + $0xb0] sm:$0xff]
      %v303 = vld [vmem:[#allocation11 + $0xb8] sm:$0xff]
      %v304 = vld [vmem:[#allocation11 + $0xc0] sm:$0xff]
      %v305 = vld [vmem:[#allocation11 + $0xc8] sm:$0xff]
      %v306 = vld [vmem:[#allocation11 + $0xd0] sm:$0xff]
      %v307 = vld [vmem:[#allocation11 + $0xd8] sm:$0xff]
      %v308 = vld [vmem:[#allocation11 + $0xe0] sm:$0xff]
      %v309 = vld [vmem:[#allocation11 + $0xe8] sm:$0xff]
      %v310 = vld [vmem:[#allocation11 + $0xf0] sm:$0xff]
      %v311 = vld [vmem:[#allocation11 + $0xf8] sm:$0xff]
      %v312 = vld [vmem:[#allocation11 + $0x100] sm:$0xff]
      %v313 = vld [vmem:[#allocation11 + $0x108] sm:$0xff]
      %v314 = vld [vmem:[#allocation11 + $0x110] sm:$0xff]
      %v315 = vld [vmem:[#allocation11 + $0x118] sm:$0xff]
      %v316 = vld [vmem:[#allocation11 + $0x120] sm:$0xff]
      %v317 = vld [vmem:[#allocation11 + $0x128] sm:$0xff]
      %v318 = vld [vmem:[#allocation11 + $0x130] sm:$0xff]
      %v319 = vld [vmem:[#allocation11 + $0x138] sm:$0xff]
      %v320 = vld [vmem:[#allocation11 + $0x140] sm:$0xff]
      %v321 = vld [vmem:[#allocation11 + $0x148] sm:$0xff]
      %v322 = vld [vmem:[#allocation11 + $0x150] sm:$0xff]
      %v323 = vld [vmem:[#allocation11 + $0x158] sm:$0xff]
      %v324 = vld [vmem:[#allocation11 + $0x160] sm:$0xff]
      %v325 = vld [vmem:[#allocation11 + $0x168] sm:$0xff]
      %v326 = vld [vmem:[#allocation11 + $0x170] sm:$0xff]
      %v327 = vld [vmem:[#allocation11 + $0x178] sm:$0xff]
      %v328 = vld [vmem:[#allocation11 + $0x180] sm:$0xff]
      %v329 = vld [vmem:[#allocation11 + $0x188] sm:$0xff]
      %v330 = vld [vmem:[#allocation11 + $0x190] sm:$0xff]
      %v331 = vld [vmem:[#allocation11 + $0x198] sm:$0xff]
      %v332 = vld [vmem:[#allocation11 + $0x1a0] sm:$0xff]
      %v333 = vld [vmem:[#allocation11 + $0x1a8] sm:$0xff]
      %v334 = vld [vmem:[#allocation11 + $0x1b0] sm:$0xff]
      %v335 = vld [vmem:[#allocation11 + $0x1b8] sm:$0xff]
      %v336 = vld [vmem:[#allocation11 + $0x1c0] sm:$0xff]
      %v337 = vld [vmem:[#allocation11 + $0x1c8] sm:$0xff]
      %v338 = vld [vmem:[#allocation11 + $0x1d0] sm:$0xff]
      %v339 = vld [vmem:[#allocation11 + $0x1d8] sm:$0xff]
      %v340 = vld [vmem:[#allocation11 + $0x1e0] sm:$0xff]
      %v341 = vld [vmem:[#allocation11 + $0x1e8] sm:$0xff]
      %v342 = vld [vmem:[#allocation11 + $0x1f0] sm:$0xff]
      %v343 = vld [vmem:[#allocation11 + $0x1f8] sm:$0xff]
      %v344 = vld [vmem:[%s11] sm:$0xf]
      %v346 = vperm.slane %v344, 0
      %v347 = vperm.slane %v344, 1
      %v348 = vperm.slane %v344, 2
      %v349 = vperm.slane %v344, 3
      %354 = vmatpush.msra.mxu0 %v340
      %355 = vmatpush.msra.mxu0 %v336
      %356 = vmatpush.msra.mxu0 %v332
      %357 = vmatpush.msra.mxu0 %v328
      %358 = vmatpush.msra.mxu0 %v324
      %359 = vmatpush.msra.mxu0 %v320
      %360 = vmatpush.msra.mxu0 %v316
      %361 = vmatpush.msra.mxu0 %v312
      %362 = vmatpush.msra.mxu0 %v308
      %363 = vmatpush.msra.mxu0 %v304
      %364 = vmatpush.msra.mxu0 %v300
      %365 = vmatpush.msra.mxu0 %v296
      %366 = vmatpush.msra.mxu0 %v292
      %367 = vmatpush.msra.mxu0 %v288
      %368 = vmatpush.msra.mxu0 %v284
      %369 = vmatpush.msra.mxu0 %v280
      %370 = vmatmul.f32.gmra.mxu0 %v234
      %v371 = vpop.f32.mrf.mxu0
      %v372 = vadd.f32 %v346, %v371
      %373 = vdwg.mxu0
      %374 = vmatpush.msra.mxu0 %v341
      %375 = vmatpush.msra.mxu0 %v337
      %376 = vmatpush.msra.mxu0 %v333
      %377 = vmatpush.msra.mxu0 %v329
      %378 = vmatpush.msra.mxu0 %v325
      %379 = vmatpush.msra.mxu0 %v321
      %380 = vmatpush.msra.mxu0 %v317
      %381 = vmatpush.msra.mxu0 %v313
      %382 = vmatpush.msra.mxu0 %v309
      %383 = vmatpush.msra.mxu0 %v305
      %384 = vmatpush.msra.mxu0 %v301
      %385 = vmatpush.msra.mxu0 %v297
      %386 = vmatpush.msra.mxu0 %v293
      %387 = vmatpush.msra.mxu0 %v289
      %388 = vmatpush.msra.mxu0 %v285
      %389 = vmatpush.msra.mxu0 %v281
      %390 = vmatmul.f32.gmra.mxu0 %v234
      %v391 = vpop.f32.mrf.mxu0
      %v392 = vadd.f32 %v347, %v391
      %393 = vdwg.mxu0
      %394 = vmatpush.msra.mxu0 %v342
      %395 = vmatpush.msra.mxu0 %v338
      %396 = vmatpush.msra.mxu0 %v334
      %397 = vmatpush.msra.mxu0 %v330
      %398 = vmatpush.msra.mxu0 %v326
      %399 = vmatpush.msra.mxu0 %v322
      %400 = vmatpush.msra.mxu0 %v318
      %401 = vmatpush.msra.mxu0 %v314
      %402 = vmatpush.msra.mxu0 %v310
      %403 = vmatpush.msra.mxu0 %v306
      %404 = vmatpush.msra.mxu0 %v302
      %405 = vmatpush.msra.mxu0 %v298
      %406 = vmatpush.msra.mxu0 %v294
      %407 = vmatpush.msra.mxu0 %v290
      %408 = vmatpush.msra.mxu0 %v286
      %409 = vmatpush.msra.mxu0 %v282
      %410 = vmatmul.f32.gmra.mxu0 %v234
      %v411 = vpop.f32.mrf.mxu0
      %v412 = vadd.f32 %v348, %v411
      %413 = vdwg.mxu0
      %414 = vmatpush.msra.mxu0 %v343
      %415 = vmatpush.msra.mxu0 %v339
      %416 = vmatpush.msra.mxu0 %v335
      %417 = vmatpush.msra.mxu0 %v331
      %418 = vmatpush.msra.mxu0 %v327
      %419 = vmatpush.msra.mxu0 %v323
      %420 = vmatpush.msra.mxu0 %v319
      %421 = vmatpush.msra.mxu0 %v315
      %422 = vmatpush.msra.mxu0 %v311
      %423 = vmatpush.msra.mxu0 %v307
      %424 = vmatpush.msra.mxu0 %v303
      %425 = vmatpush.msra.mxu0 %v299
      %426 = vmatpush.msra.mxu0 %v295
      %427 = vmatpush.msra.mxu0 %v291
      %428 = vmatpush.msra.mxu0 %v287
      %429 = vmatpush.msra.mxu0 %v283
      %430 = vmatmul.f32.gmra.mxu0 %v234
      %v431 = vpop.f32.mrf.mxu0
      %v432 = vadd.f32 %v349, %v431
      %433 = vdwg.mxu0
      %434 = vst [vmem:[#allocation4] sm:$0xff] %v372
      %435 = vst [vmem:[#allocation4 + $0x8] sm:$0xff] %v392
      %436 = vst [vmem:[#allocation4 + $0x10] sm:$0xff] %v412
      %437 = vst [vmem:[#allocation4 + $0x18] sm:$0xff] %v432
    $region85: #{lstmvae_forward.3} parent=1 // pred_fallthru
      _
    %v438 = vld [vmem:[#allocation4] sm:$0xff]
    %v439 = vld [vmem:[#allocation4 + $0x8] sm:$0xff]
    %v440 = vld [vmem:[#allocation4 + $0x10] sm:$0xff]
    %v441 = vld [vmem:[#allocation4 + $0x18] sm:$0xff]
    %v442 = vld [vmem:[#allocation2] sm:$0xff]
    %v443 = vld [vmem:[#allocation3] sm:$0xff]
    %v444 = vld [vmem:[#allocation13] sm:$0xff]
    %v445 = vld [vmem:[#allocation13 + $0x8] sm:$0xff]
    %v446 = vld [vmem:[#allocation13 + $0x10] sm:$0xff]
    %v447 = vld [vmem:[#allocation13 + $0x18] sm:$0xff]
    %v448 = vld [vmem:[#allocation13 + $0x20] sm:$0xff]
    %v449 = vld [vmem:[#allocation13 + $0x28] sm:$0xff]
    %v450 = vld [vmem:[#allocation13 + $0x30] sm:$0xff]
    %v451 = vld [vmem:[#allocation13 + $0x38] sm:$0xff]
    %v452 = vld [vmem:[#allocation13 + $0x40] sm:$0xff]
    %v453 = vld [vmem:[#allocation13 + $0x48] sm:$0xff]
    %v454 = vld [vmem:[#allocation13 + $0x50] sm:$0xff]
    %v455 = vld [vmem:[#allocation13 + $0x58] sm:$0xff]
    %v456 = vld [vmem:[#allocation13 + $0x60] sm:$0xff]
    %v457 = vld [vmem:[#allocation13 + $0x68] sm:$0xff]
    %v458 = vld [vmem:[#allocation13 + $0x70] sm:$0xff]
    %v459 = vld [vmem:[#allocation13 + $0x78] sm:$0xff]
    %v460 = vld [vmem:[#allocation13 + $0x80] sm:$0xff]
    %v461 = vld [vmem:[#allocation13 + $0x88] sm:$0xff]
    %v462 = vld [vmem:[#allocation13 + $0x90] sm:$0xff]
    %v463 = vld [vmem:[#allocation13 + $0x98] sm:$0xff]
    %v464 = vld [vmem:[#allocation13 + $0xa0] sm:$0xff]
    %v465 = vld [vmem:[#allocation13 + $0xa8] sm:$0xff]
    %v466 = vld [vmem:[#allocation13 + $0xb0] sm:$0xff]
    %v467 = vld [vmem:[#allocation13 + $0xb8] sm:$0xff]
    %v468 = vld [vmem:[#allocation13 + $0xc0] sm:$0xff]
    %v469 = vld [vmem:[#allocation13 + $0xc8] sm:$0xff]
    %v470 = vld [vmem:[#allocation13 + $0xd0] sm:$0xff]
    %v471 = vld [vmem:[#allocation13 + $0xd8] sm:$0xff]
    %v472 = vld [vmem:[#allocation13 + $0xe0] sm:$0xff]
    %v473 = vld [vmem:[#allocation13 + $0xe8] sm:$0xff]
    %v474 = vld [vmem:[#allocation13 + $0xf0] sm:$0xff]
    %v475 = vld [vmem:[#allocation13 + $0xf8] sm:$0xff]
    %v476 = vld [vmem:[#allocation13 + $0x100] sm:$0xff]
    %v477 = vld [vmem:[#allocation13 + $0x108] sm:$0xff]
    %v478 = vld [vmem:[#allocation13 + $0x110] sm:$0xff]
    %v479 = vld [vmem:[#allocation13 + $0x118] sm:$0xff]
    %v480 = vld [vmem:[#allocation13 + $0x120] sm:$0xff]
    %v481 = vld [vmem:[#allocation13 + $0x128] sm:$0xff]
    %v482 = vld [vmem:[#allocation13 + $0x130] sm:$0xff]
    %v483 = vld [vmem:[#allocation13 + $0x138] sm:$0xff]
    %v484 = vld [vmem:[#allocation13 + $0x140] sm:$0xff]
    %v485 = vld [vmem:[#allocation13 + $0x148] sm:$0xff]
    %v486 = vld [vmem:[#allocation13 + $0x150] sm:$0xff]
    %v487 = vld [vmem:[#allocation13 + $0x158] sm:$0xff]
    %v488 = vld [vmem:[#allocation13 + $0x160] sm:$0xff]
    %v489 = vld [vmem:[#allocation13 + $0x168] sm:$0xff]
    %v490 = vld [vmem:[#allocation13 + $0x170] sm:$0xff]
    %v491 = vld [vmem:[#allocation13 + $0x178] sm:$0xff]
    %v492 = vld [vmem:[#allocation13 + $0x180] sm:$0xff]
    %v493 = vld [vmem:[#allocation13 + $0x188] sm:$0xff]
    %v494 = vld [vmem:[#allocation13 + $0x190] sm:$0xff]
    %v495 = vld [vmem:[#allocation13 + $0x198] sm:$0xff]
    %v496 = vld [vmem:[#allocation13 + $0x1a0] sm:$0xff]
    %v497 = vld [vmem:[#allocation13 + $0x1a8] sm:$0xff]
    %v498 = vld [vmem:[#allocation13 + $0x1b0] sm:$0xff]
    %v499 = vld [vmem:[#allocation13 + $0x1b8] sm:$0xff]
    %v500 = vld [vmem:[#allocation13 + $0x1c0] sm:$0xff]
    %v501 = vld [vmem:[#allocation13 + $0x1c8] sm:$0xff]
    %v502 = vld [vmem:[#allocation13 + $0x1d0] sm:$0xff]
    %v503 = vld [vmem:[#allocation13 + $0x1d8] sm:$0xff]
    %v504 = vld [vmem:[#allocation13 + $0x1e0] sm:$0xff]
    %v505 = vld [vmem:[#allocation13 + $0x1e8] sm:$0xff]
    %v506 = vld [vmem:[#allocation13 + $0x1f0] sm:$0xff]
    %v507 = vld [vmem:[#allocation13 + $0x1f8] sm:$0xff]
    %508 = vmatpush.msra.mxu0 %v504
    %509 = vmatpush.msra.mxu0 %v500
    %510 = vmatpush.msra.mxu0 %v496
    %511 = vmatpush.msra.mxu0 %v492
    %512 = vmatpush.msra.mxu0 %v488
    %513 = vmatpush.msra.mxu0 %v484
    %514 = vmatpush.msra.mxu0 %v480
    %515 = vmatpush.msra.mxu0 %v476
    %516 = vmatpush.msra.mxu0 %v472
    %517 = vmatpush.msra.mxu0 %v468
    %518 = vmatpush.msra.mxu0 %v464
    %519 = vmatpush.msra.mxu0 %v460
    %520 = vmatpush.msra.mxu0 %v456
    %521 = vmatpush.msra.mxu0 %v452
    %522 = vmatpush.msra.mxu0 %v448
    %523 = vmatpush.msra.mxu0 %v444
    %524 = vmatmul.f32.gmra.mxu0 %v442
    %v525 = vpop.f32.mrf.mxu0
    %v526 = vadd.f32 0.0, %v525
    %527 = vdwg.mxu0
    %528 = vmatpush.msra.mxu0 %v505
    %529 = vmatpush.msra.mxu0 %v501
    %530 = vmatpush.msra.mxu0 %v497
    %531 = vmatpush.msra.mxu0 %v493
    %532 = vmatpush.msra.mxu0 %v489
    %533 = vmatpush.msra.mxu0 %v485
    %534 = vmatpush.msra.mxu0 %v481
    %535 = vmatpush.msra.mxu0 %v477
    %536 = vmatpush.msra.mxu0 %v473
    %537 = vmatpush.msra.mxu0 %v469
    %538 = vmatpush.msra.mxu0 %v465
    %539 = vmatpush.msra.mxu0 %v461
    %540 = vmatpush.msra.mxu0 %v457
    %541 = vmatpush.msra.mxu0 %v453
    %542 = vmatpush.msra.mxu0 %v449
    %543 = vmatpush.msra.mxu0 %v445
    %544 = vmatmul.f32.gmra.mxu0 %v442
    %v545 = vpop.f32.mrf.mxu0
    %v546 = vadd.f32 0.0, %v545
    %547 = vdwg.mxu0
    %548 = vmatpush.msra.mxu0 %v506
    %549 = vmatpush.msra.mxu0 %v502
    %550 = vmatpush.msra.mxu0 %v498
    %551 = vmatpush.msra.mxu0 %v494
    %552 = vmatpush.msra.mxu0 %v490
    %553 = vmatpush.msra.mxu0 %v486
    %554 = vmatpush.msra.mxu0 %v482
    %555 = vmatpush.msra.mxu0 %v478
    %556 = vmatpush.msra.mxu0 %v474
    %557 = vmatpush.msra.mxu0 %v470
    %558 = vmatpush.msra.mxu0 %v466
    %559 = vmatpush.msra.mxu0 %v462
    %560 = vmatpush.msra.mxu0 %v458
    %561 = vmatpush.msra.mxu0 %v454
    %562 = vmatpush.msra.mxu0 %v450
    %563 = vmatpush.msra.mxu0 %v446
    %564 = vmatmul.f32.gmra.mxu0 %v442
    %v565 = vpop.f32.mrf.mxu0
    %v566 = vadd.f32 0.0, %v565
    %567 = vdwg.mxu0
    %568 = vmatpush.msra.mxu0 %v507
    %569 = vmatpush.msra.mxu0 %v503
    %570 = vmatpush.msra.mxu0 %v499
    %571 = vmatpush.msra.mxu0 %v495
    %572 = vmatpush.msra.mxu0 %v491
    %573 = vmatpush.msra.mxu0 %v487
    %574 = vmatpush.msra.mxu0 %v483
    %575 = vmatpush.msra.mxu0 %v479
    %576 = vmatpush.msra.mxu0 %v475
    %577 = vmatpush.msra.mxu0 %v471
    %578 = vmatpush.msra.mxu0 %v467
    %579 = vmatpush.msra.mxu0 %v463
    %580 = vmatpush.msra.mxu0 %v459
    %581 = vmatpush.msra.mxu0 %v455
    %582 = vmatpush.msra.mxu0 %v451
    %583 = vmatpush.msra.mxu0 %v447
    %584 = vmatmul.f32.gmra.mxu0 %v442
    %v585 = vpop.f32.mrf.mxu0
    %v586 = vadd.f32 0.0, %v585
    %587 = vdwg.mxu0
    %v588 = vadd.f32 %v438, %v526
    %v589 = vadd.f32 %v439, %v546
    %v590 = vadd.f32 %v440, %v566
    %v591 = vadd.f32 %v441, %v586
    %v592 = vxor.u32 %v588, 2147483648
    %v593 = vmul.f32 %v592, 1.442695
    %v594 = vpow.pop %v593
    %v595 = vadd.f32 %v594, 1.0
    %v596 = vrcp.pop %v595
    %v597 = vmul.f32 %v595, %v596
    %v598 = vsub.f32 1.0, %v597
    %v599 = vmul.f32 %v596, %v598
    %v600 = vadd.f32 %v596, %v599
    %vm601 = vweird.f32 %v595
    %vm602 = vweird.f32 %v596
    %vm603 = vmor %vm601, %vm602
    %v604 = vsel %vm603, %v596, %v600
    %v605 = vand.u32 2147483647, %v595
    %vm606 = vcmp.eq.f32.partialorder %v605, 8.507059e+37
    %v607 = vand.u32 %v595, 2147483648
    %v608 = vor.u32 1.1754944e-38, %v607
    %v609 = vsel %vm606, %v608, %v604
    %v610 = vmul.f32 1.0, %v609
    %v611 = vxor.u32 %v589, 2147483648
    %v612 = vmul.f32 %v611, 1.442695
    %v613 = vpow.pop %v612
    %v614 = vadd.f32 %v613, 1.0
    %v615 = vrcp.pop %v614
    %v616 = vmul.f32 %v614, %v615
    %v617 = vsub.f32 1.0, %v616
    %v618 = vmul.f32 %v615, %v617
    %v619 = vadd.f32 %v615, %v618
    %vm620 = vweird.f32 %v614
    %vm621 = vweird.f32 %v615
    %vm622 = vmor %vm620, %vm621
    %v623 = vsel %vm622, %v615, %v619
    %v624 = vand.u32 2147483647, %v614
    %vm625 = vcmp.eq.f32.partialorder %v624, 8.507059e+37
    %v626 = vand.u32 %v614, 2147483648
    %v627 = vor.u32 1.1754944e-38, %v626
    %v628 = vsel %vm625, %v627, %v623
    %v629 = vmul.f32 1.0, %v628
    %v630 = vtanh.pop %v590
    %v631 = vxor.u32 %v591, 2147483648
    %v632 = vmul.f32 %v631, 1.442695
    %v633 = vpow.pop %v632
    %v634 = vadd.f32 %v633, 1.0
    %v635 = vrcp.pop %v634
    %v636 = vmul.f32 %v634, %v635
    %v637 = vsub.f32 1.0, %v636
    %v638 = vmul.f32 %v635, %v637
    %v639 = vadd.f32 %v635, %v638
    %vm640 = vweird.f32 %v634
    %vm641 = vweird.f32 %v635
    %vm642 = vmor %vm640, %vm641
    %v643 = vsel %vm642, %v635, %v639
    %v644 = vand.u32 2147483647, %v634
    %vm645 = vcmp.eq.f32.partialorder %v644, 8.507059e+37
    %v646 = vand.u32 %v634, 2147483648
    %v647 = vor.u32 1.1754944e-38, %v646
    %v648 = vsel %vm645, %v647, %v643
    %v649 = vmul.f32 1.0, %v648
    %v650 = vmul.f32 %v629, %v443
    %v651 = vmul.f32 %v610, %v630
    %v652 = vadd.f32 %v650, %v651
    %v653 = vtanh.pop %v652
    %v654 = vmul.f32 %v649, %v653
    %655 = vst [vmem:[#allocation5] sm:$0xff] %v654
    %v656 = vld [vmem:[#allocation13] sm:$0xff]
    %v657 = vld [vmem:[#allocation13 + $0x8] sm:$0xff]
    %v658 = vld [vmem:[#allocation13 + $0x10] sm:$0xff]
    %v659 = vld [vmem:[#allocation13 + $0x18] sm:$0xff]
    %v660 = vld [vmem:[#allocation13 + $0x20] sm:$0xff]
    %v661 = vld [vmem:[#allocation13 + $0x28] sm:$0xff]
    %v662 = vld [vmem:[#allocation13 + $0x30] sm:$0xff]
    %v663 = vld [vmem:[#allocation13 + $0x38] sm:$0xff]
    %v664 = vld [vmem:[#allocation13 + $0x40] sm:$0xff]
    %v665 = vld [vmem:[#allocation13 + $0x48] sm:$0xff]
    %v666 = vld [vmem:[#allocation13 + $0x50] sm:$0xff]
    %v667 = vld [vmem:[#allocation13 + $0x58] sm:$0xff]
    %v668 = vld [vmem:[#allocation13 + $0x60] sm:$0xff]
    %v669 = vld [vmem:[#allocation13 + $0x68] sm:$0xff]
    %v670 = vld [vmem:[#allocation13 + $0x70] sm:$0xff]
    %v671 = vld [vmem:[#allocation13 + $0x78] sm:$0xff]
    %v672 = vld [vmem:[#allocation13 + $0x80] sm:$0xff]
    %v673 = vld [vmem:[#allocation13 + $0x88] sm:$0xff]
    %v674 = vld [vmem:[#allocation13 + $0x90] sm:$0xff]
    %v675 = vld [vmem:[#allocation13 + $0x98] sm:$0xff]
    %v676 = vld [vmem:[#allocation13 + $0xa0] sm:$0xff]
    %v677 = vld [vmem:[#allocation13 + $0xa8] sm:$0xff]
    %v678 = vld [vmem:[#allocation13 + $0xb0] sm:$0xff]
    %v679 = vld [vmem:[#allocation13 + $0xb8] sm:$0xff]
    %v680 = vld [vmem:[#allocation13 + $0xc0] sm:$0xff]
    %v681 = vld [vmem:[#allocation13 + $0xc8] sm:$0xff]
    %v682 = vld [vmem:[#allocation13 + $0xd0] sm:$0xff]
    %v683 = vld [vmem:[#allocation13 + $0xd8] sm:$0xff]
    %v684 = vld [vmem:[#allocation13 + $0xe0] sm:$0xff]
    %v685 = vld [vmem:[#allocation13 + $0xe8] sm:$0xff]
    %v686 = vld [vmem:[#allocation13 + $0xf0] sm:$0xff]
    %v687 = vld [vmem:[#allocation13 + $0xf8] sm:$0xff]
    %v688 = vld [vmem:[#allocation13 + $0x100] sm:$0xff]
    %v689 = vld [vmem:[#allocation13 + $0x108] sm:$0xff]
    %v690 = vld [vmem:[#allocation13 + $0x110] sm:$0xff]
    %v691 = vld [vmem:[#allocation13 + $0x118] sm:$0xff]
    %v692 = vld [vmem:[#allocation13 + $0x120] sm:$0xff]
    %v693 = vld [vmem:[#allocation13 + $0x128] sm:$0xff]
    %v694 = vld [vmem:[#allocation13 + $0x130] sm:$0xff]
    %v695 = vld [vmem:[#allocation13 + $0x138] sm:$0xff]
    %v696 = vld [vmem:[#allocation13 + $0x140] sm:$0xff]
    %v697 = vld [vmem:[#allocation13 + $0x148] sm:$0xff]
    %v698 = vld [vmem:[#allocation13 + $0x150] sm:$0xff]
    %v699 = vld [vmem:[#allocation13 + $0x158] sm:$0xff]
    %v700 = vld [vmem:[#allocation13 + $0x160] sm:$0xff]
    %v701 = vld [vmem:[#allocation13 + $0x168] sm:$0xff]
    %v702 = vld [vmem:[#allocation13 + $0x170] sm:$0xff]
    %v703 = vld [vmem:[#allocation13 + $0x178] sm:$0xff]
    %v704 = vld [vmem:[#allocation13 + $0x180] sm:$0xff]
    %v705 = vld [vmem:[#allocation13 + $0x188] sm:$0xff]
    %v706 = vld [vmem:[#allocation13 + $0x190] sm:$0xff]
    %v707 = vld [vmem:[#allocation13 + $0x198] sm:$0xff]
    %v708 = vld [vmem:[#allocation13 + $0x1a0] sm:$0xff]
    %v709 = vld [vmem:[#allocation13 + $0x1a8] sm:$0xff]
    %v710 = vld [vmem:[#allocation13 + $0x1b0] sm:$0xff]
    %v711 = vld [vmem:[#allocation13 + $0x1b8] sm:$0xff]
    %v712 = vld [vmem:[#allocation13 + $0x1c0] sm:$0xff]
    %v713 = vld [vmem:[#allocation13 + $0x1c8] sm:$0xff]
    %v714 = vld [vmem:[#allocation13 + $0x1d0] sm:$0xff]
    %v715 = vld [vmem:[#allocation13 + $0x1d8] sm:$0xff]
    %v716 = vld [vmem:[#allocation13 + $0x1e0] sm:$0xff]
    %v717 = vld [vmem:[#allocation13 + $0x1e8] sm:$0xff]
    %v718 = vld [vmem:[#allocation13 + $0x1f0] sm:$0xff]
    %v719 = vld [vmem:[#allocation13 + $0x1f8] sm:$0xff]
    %720 = vmatpush.msra.mxu0 %v716
    %721 = vmatpush.msra.mxu0 %v712
    %722 = vmatpush.msra.mxu0 %v708
    %723 = vmatpush.msra.mxu0 %v704
    %724 = vmatpush.msra.mxu0 %v700
    %725 = vmatpush.msra.mxu0 %v696
    %726 = vmatpush.msra.mxu0 %v692
    %727 = vmatpush.msra.mxu0 %v688
    %728 = vmatpush.msra.mxu0 %v684
    %729 = vmatpush.msra.mxu0 %v680
    %730 = vmatpush.msra.mxu0 %v676
    %731 = vmatpush.msra.mxu0 %v672
    %732 = vmatpush.msra.mxu0 %v668
    %733 = vmatpush.msra.mxu0 %v664
    %734 = vmatpush.msra.mxu0 %v660
    %735 = vmatpush.msra.mxu0 %v656
    %736 = vmatmul.f32.gmra.mxu0 %v654
    %v737 = vpop.f32.mrf.mxu0
    %v738 = vadd.f32 0.0, %v737
    %739 = vdwg.mxu0
    %740 = vmatpush.msra.mxu0 %v717
    %741 = vmatpush.msra.mxu0 %v713
    %742 = vmatpush.msra.mxu0 %v709
    %743 = vmatpush.msra.mxu0 %v705
    %744 = vmatpush.msra.mxu0 %v701
    %745 = vmatpush.msra.mxu0 %v697
    %746 = vmatpush.msra.mxu0 %v693
    %747 = vmatpush.msra.mxu0 %v689
    %748 = vmatpush.msra.mxu0 %v685
    %749 = vmatpush.msra.mxu0 %v681
    %750 = vmatpush.msra.mxu0 %v677
    %751 = vmatpush.msra.mxu0 %v673
    %752 = vmatpush.msra.mxu0 %v669
    %753 = vmatpush.msra.mxu0 %v665
    %754 = vmatpush.msra.mxu0 %v661
    %755 = vmatpush.msra.mxu0 %v657
    %756 = vmatmul.f32.gmra.mxu0 %v654
    %v757 = vpop.f32.mrf.mxu0
    %v758 = vadd.f32 0.0, %v757
    %759 = vdwg.mxu0
    %760 = vmatpush.msra.mxu0 %v718
    %761 = vmatpush.msra.mxu0 %v714
    %762 = vmatpush.msra.mxu0 %v710
    %763 = vmatpush.msra.mxu0 %v706
    %764 = vmatpush.msra.mxu0 %v702
    %765 = vmatpush.msra.mxu0 %v698
    %766 = vmatpush.msra.mxu0 %v694
    %767 = vmatpush.msra.mxu0 %v690
    %768 = vmatpush.msra.mxu0 %v686
    %769 = vmatpush.msra.mxu0 %v682
    %770 = vmatpush.msra.mxu0 %v678
    %771 = vmatpush.msra.mxu0 %v674
    %772 = vmatpush.msra.mxu0 %v670
    %773 = vmatpush.msra.mxu0 %v666
    %774 = vmatpush.msra.mxu0 %v662
    %775 = vmatpush.msra.mxu0 %v658
    %776 = vmatmul.f32.gmra.mxu0 %v654
    %v777 = vpop.f32.mrf.mxu0
    %v778 = vadd.f32 0.0, %v777
    %779 = vdwg.mxu0
    %780 = vmatpush.msra.mxu0 %v719
    %781 = vmatpush.msra.mxu0 %v715
    %782 = vmatpush.msra.mxu0 %v711
    %783 = vmatpush.msra.mxu0 %v707
    %784 = vmatpush.msra.mxu0 %v703
    %785 = vmatpush.msra.mxu0 %v699
    %786 = vmatpush.msra.mxu0 %v695
    %787 = vmatpush.msra.mxu0 %v691
    %788 = vmatpush.msra.mxu0 %v687
    %789 = vmatpush.msra.mxu0 %v683
    %790 = vmatpush.msra.mxu0 %v679
    %791 = vmatpush.msra.mxu0 %v675
    %792 = vmatpush.msra.mxu0 %v671
    %793 = vmatpush.msra.mxu0 %v667
    %794 = vmatpush.msra.mxu0 %v663
    %795 = vmatpush.msra.mxu0 %v659
    %796 = vmatmul.f32.gmra.mxu0 %v654
    %v797 = vpop.f32.mrf.mxu0
    %v798 = vadd.f32 0.0, %v797
    %799 = vdwg.mxu0
    %v800 = vadd.f32 %v438, %v738
    %v801 = vadd.f32 %v439, %v758
    %v802 = vadd.f32 %v440, %v778
    %v803 = vadd.f32 %v441, %v798
    %v804 = vxor.u32 %v800, 2147483648
    %v805 = vmul.f32 %v804, 1.442695
    %v806 = vpow.pop %v805
    %v807 = vadd.f32 %v806, 1.0
    %v808 = vrcp.pop %v807
    %v809 = vmul.f32 %v807, %v808
    %v810 = vsub.f32 1.0, %v809
    %v811 = vmul.f32 %v808, %v810
    %v812 = vadd.f32 %v808, %v811
    %vm813 = vweird.f32 %v807
    %vm814 = vweird.f32 %v808
    %vm815 = vmor %vm813, %vm814
    %v816 = vsel %vm815, %v808, %v812
    %v817 = vand.u32 2147483647, %v807
    %vm818 = vcmp.eq.f32.partialorder %v817, 8.507059e+37
    %v819 = vand.u32 %v807, 2147483648
    %v820 = vor.u32 1.1754944e-38, %v819
    %v821 = vsel %vm818, %v820, %v816
    %v822 = vmul.f32 1.0, %v821
    %v823 = vxor.u32 %v801, 2147483648
    %v824 = vmul.f32 %v823, 1.442695
    %v825 = vpow.pop %v824
    %v826 = vadd.f32 %v825, 1.0
    %v827 = vrcp.pop %v826
    %v828 = vmul.f32 %v826, %v827
    %v829 = vsub.f32 1.0, %v828
    %v830 = vmul.f32 %v827, %v829
    %v831 = vadd.f32 %v827, %v830
    %vm832 = vweird.f32 %v826
    %vm833 = vweird.f32 %v827
    %vm834 = vmor %vm832, %vm833
    %v835 = vsel %vm834, %v827, %v831
    %v836 = vand.u32 2147483647, %v826
    %vm837 = vcmp.eq.f32.partialorder %v836, 8.507059e+37
    %v838 = vand.u32 %v826, 2147483648
    %v839 = vor.u32 1.1754944e-38, %v838
    %v840 = vsel %vm837, %v839, %v835
    %v841 = vmul.f32 1.0, %v840
    %v842 = vtanh.pop %v802
    %v843 = vxor.u32 %v803, 2147483648
    %v844 = vmul.f32 %v843, 1.442695
    %v845 = vpow.pop %v844
    %v846 = vadd.f32 %v845, 1.0
    %v847 = vrcp.pop %v846
    %v848 = vmul.f32 %v846, %v847
    %v849 = vsub.f32 1.0, %v848
    %v850 = vmul.f32 %v847, %v849
    %v851 = vadd.f32 %v847, %v850
    %vm852 = vweird.f32 %v846
    %vm853 = vweird.f32 %v847
    %vm854 = vmor %vm852, %vm853
    %v855 = vsel %vm854, %v847, %v851
    %v856 = vand.u32 2147483647, %v846
    %vm857 = vcmp.eq.f32.partialorder %v856, 8.507059e+37
    %v858 = vand.u32 %v846, 2147483648
    %v859 = vor.u32 1.1754944e-38, %v858
    %v860 = vsel %vm857, %v859, %v855
    %v861 = vmul.f32 1.0, %v860
    %v862 = vmul.f32 %v841, %v652
    %v863 = vmul.f32 %v822, %v842
    %v864 = vadd.f32 %v862, %v863
    %v865 = vtanh.pop %v864
    %v866 = vmul.f32 %v861, %v865
    %s867 = scalar_lea.vmem [#allocation5], 8
    %868 = vst [vmem:[%s867] sm:$0xff] %v866
    %v869 = vld [vmem:[#allocation13] sm:$0xff]
    %v870 = vld [vmem:[#allocation13 + $0x8] sm:$0xff]
    %v871 = vld [vmem:[#allocation13 + $0x10] sm:$0xff]
    %v872 = vld [vmem:[#allocation13 + $0x18] sm:$0xff]
    %v873 = vld [vmem:[#allocation13 + $0x20] sm:$0xff]
    %v874 = vld [vmem:[#allocation13 + $0x28] sm:$0xff]
    %v875 = vld [vmem:[#allocation13 + $0x30] sm:$0xff]
    %v876 = vld [vmem:[#allocation13 + $0x38] sm:$0xff]
    %v877 = vld [vmem:[#allocation13 + $0x40] sm:$0xff]
    %v878 = vld [vmem:[#allocation13 + $0x48] sm:$0xff]
    %v879 = vld [vmem:[#allocation13 + $0x50] sm:$0xff]
    %v880 = vld [vmem:[#allocation13 + $0x58] sm:$0xff]
    %v881 = vld [vmem:[#allocation13 + $0x60] sm:$0xff]
    %v882 = vld [vmem:[#allocation13 + $0x68] sm:$0xff]
    %v883 = vld [vmem:[#allocation13 + $0x70] sm:$0xff]
    %v884 = vld [vmem:[#allocation13 + $0x78] sm:$0xff]
    %v885 = vld [vmem:[#allocation13 + $0x80] sm:$0xff]
    %v886 = vld [vmem:[#allocation13 + $0x88] sm:$0xff]
    %v887 = vld [vmem:[#allocation13 + $0x90] sm:$0xff]
    %v888 = vld [vmem:[#allocation13 + $0x98] sm:$0xff]
    %v889 = vld [vmem:[#allocation13 + $0xa0] sm:$0xff]
    %v890 = vld [vmem:[#allocation13 + $0xa8] sm:$0xff]
    %v891 = vld [vmem:[#allocation13 + $0xb0] sm:$0xff]
    %v892 = vld [vmem:[#allocation13 + $0xb8] sm:$0xff]
    %v893 = vld [vmem:[#allocation13 + $0xc0] sm:$0xff]
    %v894 = vld [vmem:[#allocation13 + $0xc8] sm:$0xff]
    %v895 = vld [vmem:[#allocation13 + $0xd0] sm:$0xff]
    %v896 = vld [vmem:[#allocation13 + $0xd8] sm:$0xff]
    %v897 = vld [vmem:[#allocation13 + $0xe0] sm:$0xff]
    %v898 = vld [vmem:[#allocation13 + $0xe8] sm:$0xff]
    %v899 = vld [vmem:[#allocation13 + $0xf0] sm:$0xff]
    %v900 = vld [vmem:[#allocation13 + $0xf8] sm:$0xff]
    %v901 = vld [vmem:[#allocation13 + $0x100] sm:$0xff]
    %v902 = vld [vmem:[#allocation13 + $0x108] sm:$0xff]
    %v903 = vld [vmem:[#allocation13 + $0x110] sm:$0xff]
    %v904 = vld [vmem:[#allocation13 + $0x118] sm:$0xff]
    %v905 = vld [vmem:[#allocation13 + $0x120] sm:$0xff]
    %v906 = vld [vmem:[#allocation13 + $0x128] sm:$0xff]
    %v907 = vld [vmem:[#allocation13 + $0x130] sm:$0xff]
    %v908 = vld [vmem:[#allocation13 + $0x138] sm:$0xff]
    %v909 = vld [vmem:[#allocation13 + $0x140] sm:$0xff]
    %v910 = vld [vmem:[#allocation13 + $0x148] sm:$0xff]
    %v911 = vld [vmem:[#allocation13 + $0x150] sm:$0xff]
    %v912 = vld [vmem:[#allocation13 + $0x158] sm:$0xff]
    %v913 = vld [vmem:[#allocation13 + $0x160] sm:$0xff]
    %v914 = vld [vmem:[#allocation13 + $0x168] sm:$0xff]
    %v915 = vld [vmem:[#allocation13 + $0x170] sm:$0xff]
    %v916 = vld [vmem:[#allocation13 + $0x178] sm:$0xff]
    %v917 = vld [vmem:[#allocation13 + $0x180] sm:$0xff]
    %v918 = vld [vmem:[#allocation13 + $0x188] sm:$0xff]
    %v919 = vld [vmem:[#allocation13 + $0x190] sm:$0xff]
    %v920 = vld [vmem:[#allocation13 + $0x198] sm:$0xff]
    %v921 = vld [vmem:[#allocation13 + $0x1a0] sm:$0xff]
    %v922 = vld [vmem:[#allocation13 + $0x1a8] sm:$0xff]
    %v923 = vld [vmem:[#allocation13 + $0x1b0] sm:$0xff]
    %v924 = vld [vmem:[#allocation13 + $0x1b8] sm:$0xff]
    %v925 = vld [vmem:[#allocation13 + $0x1c0] sm:$0xff]
    %v926 = vld [vmem:[#allocation13 + $0x1c8] sm:$0xff]
    %v927 = vld [vmem:[#allocation13 + $0x1d0] sm:$0xff]
    %v928 = vld [vmem:[#allocation13 + $0x1d8] sm:$0xff]
    %v929 = vld [vmem:[#allocation13 + $0x1e0] sm:$0xff]
    %v930 = vld [vmem:[#allocation13 + $0x1e8] sm:$0xff]
    %v931 = vld [vmem:[#allocation13 + $0x1f0] sm:$0xff]
    %v932 = vld [vmem:[#allocation13 + $0x1f8] sm:$0xff]
    %933 = vmatpush.msra.mxu0 %v929
    %934 = vmatpush.msra.mxu0 %v925
    %935 = vmatpush.msra.mxu0 %v921
    %936 = vmatpush.msra.mxu0 %v917
    %937 = vmatpush.msra.mxu0 %v913
    %938 = vmatpush.msra.mxu0 %v909
    %939 = vmatpush.msra.mxu0 %v905
    %940 = vmatpush.msra.mxu0 %v901
    %941 = vmatpush.msra.mxu0 %v897
    %942 = vmatpush.msra.mxu0 %v893
    %943 = vmatpush.msra.mxu0 %v889
    %944 = vmatpush.msra.mxu0 %v885
    %945 = vmatpush.msra.mxu0 %v881
    %946 = vmatpush.msra.mxu0 %v877
    %947 = vmatpush.msra.mxu0 %v873
    %948 = vmatpush.msra.mxu0 %v869
    %949 = vmatmul.f32.gmra.mxu0 %v866
    %v950 = vpop.f32.mrf.mxu0
    %v951 = vadd.f32 0.0, %v950
    %952 = vdwg.mxu0
    %953 = vmatpush.msra.mxu0 %v930
    %954 = vmatpush.msra.mxu0 %v926
    %955 = vmatpush.msra.mxu0 %v922
    %956 = vmatpush.msra.mxu0 %v918
    %957 = vmatpush.msra.mxu0 %v914
    %958 = vmatpush.msra.mxu0 %v910
    %959 = vmatpush.msra.mxu0 %v906
    %960 = vmatpush.msra.mxu0 %v902
    %961 = vmatpush.msra.mxu0 %v898
    %962 = vmatpush.msra.mxu0 %v894
    %963 = vmatpush.msra.mxu0 %v890
    %964 = vmatpush.msra.mxu0 %v886
    %965 = vmatpush.msra.mxu0 %v882
    %966 = vmatpush.msra.mxu0 %v878
    %967 = vmatpush.msra.mxu0 %v874
    %968 = vmatpush.msra.mxu0 %v870
    %969 = vmatmul.f32.gmra.mxu0 %v866
    %v970 = vpop.f32.mrf.mxu0
    %v971 = vadd.f32 0.0, %v970
    %972 = vdwg.mxu0
    %973 = vmatpush.msra.mxu0 %v931
    %974 = vmatpush.msra.mxu0 %v927
    %975 = vmatpush.msra.mxu0 %v923
    %976 = vmatpush.msra.mxu0 %v919
    %977 = vmatpush.msra.mxu0 %v915
    %978 = vmatpush.msra.mxu0 %v911
    %979 = vmatpush.msra.mxu0 %v907
    %980 = vmatpush.msra.mxu0 %v903
    %981 = vmatpush.msra.mxu0 %v899
    %982 = vmatpush.msra.mxu0 %v895
    %983 = vmatpush.msra.mxu0 %v891
    %984 = vmatpush.msra.mxu0 %v887
    %985 = vmatpush.msra.mxu0 %v883
    %986 = vmatpush.msra.mxu0 %v879
    %987 = vmatpush.msra.mxu0 %v875
    %988 = vmatpush.msra.mxu0 %v871
    %989 = vmatmul.f32.gmra.mxu0 %v866
    %v990 = vpop.f32.mrf.mxu0
    %v991 = vadd.f32 0.0, %v990
    %992 = vdwg.mxu0
    %993 = vmatpush.msra.mxu0 %v932
    %994 = vmatpush.msra.mxu0 %v928
    %995 = vmatpush.msra.mxu0 %v924
    %996 = vmatpush.msra.mxu0 %v920
    %997 = vmatpush.msra.mxu0 %v916
    %998 = vmatpush.msra.mxu0 %v912
    %999 = vmatpush.msra.mxu0 %v908
    %1000 = vmatpush.msra.mxu0 %v904
    %1001 = vmatpush.msra.mxu0 %v900
    %1002 = vmatpush.msra.mxu0 %v896
    %1003 = vmatpush.msra.mxu0 %v892
    %1004 = vmatpush.msra.mxu0 %v888
    %1005 = vmatpush.msra.mxu0 %v884
    %1006 = vmatpush.msra.mxu0 %v880
    %1007 = vmatpush.msra.mxu0 %v876
    %1008 = vmatpush.msra.mxu0 %v872
    %1009 = vmatmul.f32.gmra.mxu0 %v866
    %v1010 = vpop.f32.mrf.mxu0
    %v1011 = vadd.f32 0.0, %v1010
    %1012 = vdwg.mxu0
    %v1013 = vadd.f32 %v438, %v951
    %v1014 = vadd.f32 %v439, %v971
    %v1015 = vadd.f32 %v440, %v991
    %v1016 = vadd.f32 %v441, %v1011
    %v1017 = vxor.u32 %v1013, 2147483648
    %v1018 = vmul.f32 %v1017, 1.442695
    %v1019 = vpow.pop %v1018
    %v1020 = vadd.f32 %v1019, 1.0
    %v1021 = vrcp.pop %v1020
    %v1022 = vmul.f32 %v1020, %v1021
    %v1023 = vsub.f32 1.0, %v1022
    %v1024 = vmul.f32 %v1021, %v1023
    %v1025 = vadd.f32 %v1021, %v1024
    %vm1026 = vweird.f32 %v1020
    %vm1027 = vweird.f32 %v1021
    %vm1028 = vmor %vm1026, %vm1027
    %v1029 = vsel %vm1028, %v1021, %v1025
    %v1030 = vand.u32 2147483647, %v1020
    %vm1031 = vcmp.eq.f32.partialorder %v1030, 8.507059e+37
    %v1032 = vand.u32 %v1020, 2147483648
    %v1033 = vor.u32 1.1754944e-38, %v1032
    %v1034 = vsel %vm1031, %v1033, %v1029
    %v1035 = vmul.f32 1.0, %v1034
    %v1036 = vxor.u32 %v1014, 2147483648
    %v1037 = vmul.f32 %v1036, 1.442695
    %v1038 = vpow.pop %v1037
    %v1039 = vadd.f32 %v1038, 1.0
    %v1040 = vrcp.pop %v1039
    %v1041 = vmul.f32 %v1039, %v1040
    %v1042 = vsub.f32 1.0, %v1041
    %v1043 = vmul.f32 %v1040, %v1042
    %v1044 = vadd.f32 %v1040, %v1043
    %vm1045 = vweird.f32 %v1039
    %vm1046 = vweird.f32 %v1040
    %vm1047 = vmor %vm1045, %vm1046
    %v1048 = vsel %vm1047, %v1040, %v1044
    %v1049 = vand.u32 2147483647, %v1039
    %vm1050 = vcmp.eq.f32.partialorder %v1049, 8.507059e+37
    %v1051 = vand.u32 %v1039, 2147483648
    %v1052 = vor.u32 1.1754944e-38, %v1051
    %v1053 = vsel %vm1050, %v1052, %v1048
    %v1054 = vmul.f32 1.0, %v1053
    %v1055 = vtanh.pop %v1015
    %v1056 = vxor.u32 %v1016, 2147483648
    %v1057 = vmul.f32 %v1056, 1.442695
    %v1058 = vpow.pop %v1057
    %v1059 = vadd.f32 %v1058, 1.0
    %v1060 = vrcp.pop %v1059
    %v1061 = vmul.f32 %v1059, %v1060
    %v1062 = vsub.f32 1.0, %v1061
    %v1063 = vmul.f32 %v1060, %v1062
    %v1064 = vadd.f32 %v1060, %v1063
    %vm1065 = vweird.f32 %v1059
    %vm1066 = vweird.f32 %v1060
    %vm1067 = vmor %vm1065, %vm1066
    %v1068 = vsel %vm1067, %v1060, %v1064
    %v1069 = vand.u32 2147483647, %v1059
    %vm1070 = vcmp.eq.f32.partialorder %v1069, 8.507059e+37
    %v1071 = vand.u32 %v1059, 2147483648
    %v1072 = vor.u32 1.1754944e-38, %v1071
    %v1073 = vsel %vm1070, %v1072, %v1068
    %v1074 = vmul.f32 1.0, %v1073
    %v1075 = vmul.f32 %v1054, %v864
    %v1076 = vmul.f32 %v1035, %v1055
    %v1077 = vadd.f32 %v1075, %v1076
    %v1078 = vtanh.pop %v1077
    %v1079 = vmul.f32 %v1074, %v1078
    %s1080 = scalar_lea.vmem [#allocation5], 16
    %1081 = vst [vmem:[%s1080] sm:$0xff] %v1079
    %v1082 = vld [vmem:[#allocation13] sm:$0xff]
    %v1083 = vld [vmem:[#allocation13 + $0x8] sm:$0xff]
    %v1084 = vld [vmem:[#allocation13 + $0x10] sm:$0xff]
    %v1085 = vld [vmem:[#allocation13 + $0x18] sm:$0xff]
    %v1086 = vld [vmem:[#allocation13 + $0x20] sm:$0xff]
    %v1087 = vld [vmem:[#allocation13 + $0x28] sm:$0xff]
    %v1088 = vld [vmem:[#allocation13 + $0x30] sm:$0xff]
    %v1089 = vld [vmem:[#allocation13 + $0x38] sm:$0xff]
    %v1090 = vld [vmem:[#allocation13 + $0x40] sm:$0xff]
    %v1091 = vld [vmem:[#allocation13 + $0x48] sm:$0xff]
    %v1092 = vld [vmem:[#allocation13 + $0x50] sm:$0xff]
    %v1093 = vld [vmem:[#allocation13 + $0x58] sm:$0xff]
    %v1094 = vld [vmem:[#allocation13 + $0x60] sm:$0xff]
    %v1095 = vld [vmem:[#allocation13 + $0x68] sm:$0xff]
    %v1096 = vld [vmem:[#allocation13 + $0x70] sm:$0xff]
    %v1097 = vld [vmem:[#allocation13 + $0x78] sm:$0xff]
    %v1098 = vld [vmem:[#allocation13 + $0x80] sm:$0xff]
    %v1099 = vld [vmem:[#allocation13 + $0x88] sm:$0xff]
    %v1100 = vld [vmem:[#allocation13 + $0x90] sm:$0xff]
    %v1101 = vld [vmem:[#allocation13 + $0x98] sm:$0xff]
    %v1102 = vld [vmem:[#allocation13 + $0xa0] sm:$0xff]
    %v1103 = vld [vmem:[#allocation13 + $0xa8] sm:$0xff]
    %v1104 = vld [vmem:[#allocation13 + $0xb0] sm:$0xff]
    %v1105 = vld [vmem:[#allocation13 + $0xb8] sm:$0xff]
    %v1106 = vld [vmem:[#allocation13 + $0xc0] sm:$0xff]
    %v1107 = vld [vmem:[#allocation13 + $0xc8] sm:$0xff]
    %v1108 = vld [vmem:[#allocation13 + $0xd0] sm:$0xff]
    %v1109 = vld [vmem:[#allocation13 + $0xd8] sm:$0xff]
    %v1110 = vld [vmem:[#allocation13 + $0xe0] sm:$0xff]
    %v1111 = vld [vmem:[#allocation13 + $0xe8] sm:$0xff]
    %v1112 = vld [vmem:[#allocation13 + $0xf0] sm:$0xff]
    %v1113 = vld [vmem:[#allocation13 + $0xf8] sm:$0xff]
    %v1114 = vld [vmem:[#allocation13 + $0x100] sm:$0xff]
    %v1115 = vld [vmem:[#allocation13 + $0x108] sm:$0xff]
    %v1116 = vld [vmem:[#allocation13 + $0x110] sm:$0xff]
    %v1117 = vld [vmem:[#allocation13 + $0x118] sm:$0xff]
    %v1118 = vld [vmem:[#allocation13 + $0x120] sm:$0xff]
    %v1119 = vld [vmem:[#allocation13 + $0x128] sm:$0xff]
    %v1120 = vld [vmem:[#allocation13 + $0x130] sm:$0xff]
    %v1121 = vld [vmem:[#allocation13 + $0x138] sm:$0xff]
    %v1122 = vld [vmem:[#allocation13 + $0x140] sm:$0xff]
    %v1123 = vld [vmem:[#allocation13 + $0x148] sm:$0xff]
    %v1124 = vld [vmem:[#allocation13 + $0x150] sm:$0xff]
    %v1125 = vld [vmem:[#allocation13 + $0x158] sm:$0xff]
    %v1126 = vld [vmem:[#allocation13 + $0x160] sm:$0xff]
    %v1127 = vld [vmem:[#allocation13 + $0x168] sm:$0xff]
    %v1128 = vld [vmem:[#allocation13 + $0x170] sm:$0xff]
    %v1129 = vld [vmem:[#allocation13 + $0x178] sm:$0xff]
    %v1130 = vld [vmem:[#allocation13 + $0x180] sm:$0xff]
    %v1131 = vld [vmem:[#allocation13 + $0x188] sm:$0xff]
    %v1132 = vld [vmem:[#allocation13 + $0x190] sm:$0xff]
    %v1133 = vld [vmem:[#allocation13 + $0x198] sm:$0xff]
    %v1134 = vld [vmem:[#allocation13 + $0x1a0] sm:$0xff]
    %v1135 = vld [vmem:[#allocation13 + $0x1a8] sm:$0xff]
    %v1136 = vld [vmem:[#allocation13 + $0x1b0] sm:$0xff]
    %v1137 = vld [vmem:[#allocation13 + $0x1b8] sm:$0xff]
    %v1138 = vld [vmem:[#allocation13 + $0x1c0] sm:$0xff]
    %v1139 = vld [vmem:[#allocation13 + $0x1c8] sm:$0xff]
    %v1140 = vld [vmem:[#allocation13 + $0x1d0] sm:$0xff]
    %v1141 = vld [vmem:[#allocation13 + $0x1d8] sm:$0xff]
    %v1142 = vld [vmem:[#allocation13 + $0x1e0] sm:$0xff]
    %v1143 = vld [vmem:[#allocation13 + $0x1e8] sm:$0xff]
    %v1144 = vld [vmem:[#allocation13 + $0x1f0] sm:$0xff]
    %v1145 = vld [vmem:[#allocation13 + $0x1f8] sm:$0xff]
    %1146 = vmatpush.msra.mxu0 %v1142
    %1147 = vmatpush.msra.mxu0 %v1138
    %1148 = vmatpush.msra.mxu0 %v1134
    %1149 = vmatpush.msra.mxu0 %v1130
    %1150 = vmatpush.msra.mxu0 %v1126
    %1151 = vmatpush.msra.mxu0 %v1122
    %1152 = vmatpush.msra.mxu0 %v1118
    %1153 = vmatpush.msra.mxu0 %v1114
    %1154 = vmatpush.msra.mxu0 %v1110
    %1155 = vmatpush.msra.mxu0 %v1106
    %1156 = vmatpush.msra.mxu0 %v1102
    %1157 = vmatpush.msra.mxu0 %v1098
    %1158 = vmatpush.msra.mxu0 %v1094
    %1159 = vmatpush.msra.mxu0 %v1090
    %1160 = vmatpush.msra.mxu0 %v1086
    %1161 = vmatpush.msra.mxu0 %v1082
    %1162 = vmatmul.f32.gmra.mxu0 %v1079
    %v1163 = vpop.f32.mrf.mxu0
    %v1164 = vadd.f32 0.0, %v1163
    %1165 = vdwg.mxu0
    %1166 = vmatpush.msra.mxu0 %v1143
    %1167 = vmatpush.msra.mxu0 %v1139
    %1168 = vmatpush.msra.mxu0 %v1135
    %1169 = vmatpush.msra.mxu0 %v1131
    %1170 = vmatpush.msra.mxu0 %v1127
    %1171 = vmatpush.msra.mxu0 %v1123
    %1172 = vmatpush.msra.mxu0 %v1119
    %1173 = vmatpush.msra.mxu0 %v1115
    %1174 = vmatpush.msra.mxu0 %v1111
    %1175 = vmatpush.msra.mxu0 %v1107
    %1176 = vmatpush.msra.mxu0 %v1103
    %1177 = vmatpush.msra.mxu0 %v1099
    %1178 = vmatpush.msra.mxu0 %v1095
    %1179 = vmatpush.msra.mxu0 %v1091
    %1180 = vmatpush.msra.mxu0 %v1087
    %1181 = vmatpush.msra.mxu0 %v1083
    %1182 = vmatmul.f32.gmra.mxu0 %v1079
    %v1183 = vpop.f32.mrf.mxu0
    %v1184 = vadd.f32 0.0, %v1183
    %1185 = vdwg.mxu0
    %1186 = vmatpush.msra.mxu0 %v1144
    %1187 = vmatpush.msra.mxu0 %v1140
    %1188 = vmatpush.msra.mxu0 %v1136
    %1189 = vmatpush.msra.mxu0 %v1132
    %1190 = vmatpush.msra.mxu0 %v1128
    %1191 = vmatpush.msra.mxu0 %v1124
    %1192 = vmatpush.msra.mxu0 %v1120
    %1193 = vmatpush.msra.mxu0 %v1116
    %1194 = vmatpush.msra.mxu0 %v1112
    %1195 = vmatpush.msra.mxu0 %v1108
    %1196 = vmatpush.msra.mxu0 %v1104
    %1197 = vmatpush.msra.mxu0 %v1100
    %1198 = vmatpush.msra.mxu0 %v1096
    %1199 = vmatpush.msra.mxu0 %v1092
    %1200 = vmatpush.msra.mxu0 %v1088
    %1201 = vmatpush.msra.mxu0 %v1084
    %1202 = vmatmul.f32.gmra.mxu0 %v1079
    %v1203 = vpop.f32.mrf.mxu0
    %v1204 = vadd.f32 0.0, %v1203
    %1205 = vdwg.mxu0
    %1206 = vmatpush.msra.mxu0 %v1145
    %1207 = vmatpush.msra.mxu0 %v1141
    %1208 = vmatpush.msra.mxu0 %v1137
    %1209 = vmatpush.msra.mxu0 %v1133
    %1210 = vmatpush.msra.mxu0 %v1129
    %1211 = vmatpush.msra.mxu0 %v1125
    %1212 = vmatpush.msra.mxu0 %v1121
    %1213 = vmatpush.msra.mxu0 %v1117
    %1214 = vmatpush.msra.mxu0 %v1113
    %1215 = vmatpush.msra.mxu0 %v1109
    %1216 = vmatpush.msra.mxu0 %v1105
    %1217 = vmatpush.msra.mxu0 %v1101
    %1218 = vmatpush.msra.mxu0 %v1097
    %1219 = vmatpush.msra.mxu0 %v1093
    %1220 = vmatpush.msra.mxu0 %v1089
    %1221 = vmatpush.msra.mxu0 %v1085
    %1222 = vmatmul.f32.gmra.mxu0 %v1079
    %v1223 = vpop.f32.mrf.mxu0
    %v1224 = vadd.f32 0.0, %v1223
    %1225 = vdwg.mxu0
    %v1226 = vadd.f32 %v438, %v1164
    %v1227 = vadd.f32 %v439, %v1184
    %v1228 = vadd.f32 %v440, %v1204
    %v1229 = vadd.f32 %v441, %v1224
    %v1230 = vxor.u32 %v1226, 2147483648
    %v1231 = vmul.f32 %v1230, 1.442695
    %v1232 = vpow.pop %v1231
    %v1233 = vadd.f32 %v1232, 1.0
    %v1234 = vrcp.pop %v1233
    %v1235 = vmul.f32 %v1233, %v1234
    %v1236 = vsub.f32 1.0, %v1235
    %v1237 = vmul.f32 %v1234, %v1236
    %v1238 = vadd.f32 %v1234, %v1237
    %vm1239 = vweird.f32 %v1233
    %vm1240 = vweird.f32 %v1234
    %vm1241 = vmor %vm1239, %vm1240
    %v1242 = vsel %vm1241, %v1234, %v1238
    %v1243 = vand.u32 2147483647, %v1233
    %vm1244 = vcmp.eq.f32.partialorder %v1243, 8.507059e+37
    %v1245 = vand.u32 %v1233, 2147483648
    %v1246 = vor.u32 1.1754944e-38, %v1245
    %v1247 = vsel %vm1244, %v1246, %v1242
    %v1248 = vmul.f32 1.0, %v1247
    %v1249 = vxor.u32 %v1227, 2147483648
    %v1250 = vmul.f32 %v1249, 1.442695
    %v1251 = vpow.pop %v1250
    %v1252 = vadd.f32 %v1251, 1.0
    %v1253 = vrcp.pop %v1252
    %v1254 = vmul.f32 %v1252, %v1253
    %v1255 = vsub.f32 1.0, %v1254
    %v1256 = vmul.f32 %v1253, %v1255
    %v1257 = vadd.f32 %v1253, %v1256
    %vm1258 = vweird.f32 %v1252
    %vm1259 = vweird.f32 %v1253
    %vm1260 = vmor %vm1258, %vm1259
    %v1261 = vsel %vm1260, %v1253, %v1257
    %v1262 = vand.u32 2147483647, %v1252
    %vm1263 = vcmp.eq.f32.partialorder %v1262, 8.507059e+37
    %v1264 = vand.u32 %v1252, 2147483648
    %v1265 = vor.u32 1.1754944e-38, %v1264
    %v1266 = vsel %vm1263, %v1265, %v1261
    %v1267 = vmul.f32 1.0, %v1266
    %v1268 = vtanh.pop %v1228
    %v1269 = vxor.u32 %v1229, 2147483648
    %v1270 = vmul.f32 %v1269, 1.442695
    %v1271 = vpow.pop %v1270
    %v1272 = vadd.f32 %v1271, 1.0
    %v1273 = vrcp.pop %v1272
    %v1274 = vmul.f32 %v1272, %v1273
    %v1275 = vsub.f32 1.0, %v1274
    %v1276 = vmul.f32 %v1273, %v1275
    %v1277 = vadd.f32 %v1273, %v1276
    %vm1278 = vweird.f32 %v1272
    %vm1279 = vweird.f32 %v1273
    %vm1280 = vmor %vm1278, %vm1279
    %v1281 = vsel %vm1280, %v1273, %v1277
    %v1282 = vand.u32 2147483647, %v1272
    %vm1283 = vcmp.eq.f32.partialorder %v1282, 8.507059e+37
    %v1284 = vand.u32 %v1272, 2147483648
    %v1285 = vor.u32 1.1754944e-38, %v1284
    %v1286 = vsel %vm1283, %v1285, %v1281
    %v1287 = vmul.f32 1.0, %v1286
    %v1288 = vmul.f32 %v1267, %v1077
    %v1289 = vmul.f32 %v1248, %v1268
    %v1290 = vadd.f32 %v1288, %v1289
    %v1291 = vtanh.pop %v1290
    %v1292 = vmul.f32 %v1287, %v1291
    %s1293 = scalar_lea.vmem [#allocation5], 24
    %1294 = vst [vmem:[%s1293] sm:$0xff] %v1292
    %v1295 = vld [vmem:[#allocation13] sm:$0xff]
    %v1296 = vld [vmem:[#allocation13 + $0x8] sm:$0xff]
    %v1297 = vld [vmem:[#allocation13 + $0x10] sm:$0xff]
    %v1298 = vld [vmem:[#allocation13 + $0x18] sm:$0xff]
    %v1299 = vld [vmem:[#allocation13 + $0x20] sm:$0xff]
    %v1300 = vld [vmem:[#allocation13 + $0x28] sm:$0xff]
    %v1301 = vld [vmem:[#allocation13 + $0x30] sm:$0xff]
    %v1302 = vld [vmem:[#allocation13 + $0x38] sm:$0xff]
    %v1303 = vld [vmem:[#allocation13 + $0x40] sm:$0xff]
    %v1304 = vld [vmem:[#allocation13 + $0x48] sm:$0xff]
    %v1305 = vld [vmem:[#allocation13 + $0x50] sm:$0xff]
    %v1306 = vld [vmem:[#allocation13 + $0x58] sm:$0xff]
    %v1307 = vld [vmem:[#allocation13 + $0x60] sm:$0xff]
    %v1308 = vld [vmem:[#allocation13 + $0x68] sm:$0xff]
    %v1309 = vld [vmem:[#allocation13 + $0x70] sm:$0xff]
    %v1310 = vld [vmem:[#allocation13 + $0x78] sm:$0xff]
    %v1311 = vld [vmem:[#allocation13 + $0x80] sm:$0xff]
    %v1312 = vld [vmem:[#allocation13 + $0x88] sm:$0xff]
    %v1313 = vld [vmem:[#allocation13 + $0x90] sm:$0xff]
    %v1314 = vld [vmem:[#allocation13 + $0x98] sm:$0xff]
    %v1315 = vld [vmem:[#allocation13 + $0xa0] sm:$0xff]
    %v1316 = vld [vmem:[#allocation13 + $0xa8] sm:$0xff]
    %v1317 = vld [vmem:[#allocation13 + $0xb0] sm:$0xff]
    %v1318 = vld [vmem:[#allocation13 + $0xb8] sm:$0xff]
    %v1319 = vld [vmem:[#allocation13 + $0xc0] sm:$0xff]
    %v1320 = vld [vmem:[#allocation13 + $0xc8] sm:$0xff]
    %v1321 = vld [vmem:[#allocation13 + $0xd0] sm:$0xff]
    %v1322 = vld [vmem:[#allocation13 + $0xd8] sm:$0xff]
    %v1323 = vld [vmem:[#allocation13 + $0xe0] sm:$0xff]
    %v1324 = vld [vmem:[#allocation13 + $0xe8] sm:$0xff]
    %v1325 = vld [vmem:[#allocation13 + $0xf0] sm:$0xff]
    %v1326 = vld [vmem:[#allocation13 + $0xf8] sm:$0xff]
    %v1327 = vld [vmem:[#allocation13 + $0x100] sm:$0xff]
    %v1328 = vld [vmem:[#allocation13 + $0x108] sm:$0xff]
    %v1329 = vld [vmem:[#allocation13 + $0x110] sm:$0xff]
    %v1330 = vld [vmem:[#allocation13 + $0x118] sm:$0xff]
    %v1331 = vld [vmem:[#allocation13 + $0x120] sm:$0xff]
    %v1332 = vld [vmem:[#allocation13 + $0x128] sm:$0xff]
    %v1333 = vld [vmem:[#allocation13 + $0x130] sm:$0xff]
    %v1334 = vld [vmem:[#allocation13 + $0x138] sm:$0xff]
    %v1335 = vld [vmem:[#allocation13 + $0x140] sm:$0xff]
    %v1336 = vld [vmem:[#allocation13 + $0x148] sm:$0xff]
    %v1337 = vld [vmem:[#allocation13 + $0x150] sm:$0xff]
    %v1338 = vld [vmem:[#allocation13 + $0x158] sm:$0xff]
    %v1339 = vld [vmem:[#allocation13 + $0x160] sm:$0xff]
    %v1340 = vld [vmem:[#allocation13 + $0x168] sm:$0xff]
    %v1341 = vld [vmem:[#allocation13 + $0x170] sm:$0xff]
    %v1342 = vld [vmem:[#allocation13 + $0x178] sm:$0xff]
    %v1343 = vld [vmem:[#allocation13 + $0x180] sm:$0xff]
    %v1344 = vld [vmem:[#allocation13 + $0x188] sm:$0xff]
    %v1345 = vld [vmem:[#allocation13 + $0x190] sm:$0xff]
    %v1346 = vld [vmem:[#allocation13 + $0x198] sm:$0xff]
    %v1347 = vld [vmem:[#allocation13 + $0x1a0] sm:$0xff]
    %v1348 = vld [vmem:[#allocation13 + $0x1a8] sm:$0xff]
    %v1349 = vld [vmem:[#allocation13 + $0x1b0] sm:$0xff]
    %v1350 = vld [vmem:[#allocation13 + $0x1b8] sm:$0xff]
    %v1351 = vld [vmem:[#allocation13 + $0x1c0] sm:$0xff]
    %v1352 = vld [vmem:[#allocation13 + $0x1c8] sm:$0xff]
    %v1353 = vld [vmem:[#allocation13 + $0x1d0] sm:$0xff]
    %v1354 = vld [vmem:[#allocation13 + $0x1d8] sm:$0xff]
    %v1355 = vld [vmem:[#allocation13 + $0x1e0] sm:$0xff]
    %v1356 = vld [vmem:[#allocation13 + $0x1e8] sm:$0xff]
    %v1357 = vld [vmem:[#allocation13 + $0x1f0] sm:$0xff]
    %v1358 = vld [vmem:[#allocation13 + $0x1f8] sm:$0xff]
    %1359 = vmatpush.msra.mxu0 %v1355
    %1360 = vmatpush.msra.mxu0 %v1351
    %1361 = vmatpush.msra.mxu0 %v1347
    %1362 = vmatpush.msra.mxu0 %v1343
    %1363 = vmatpush.msra.mxu0 %v1339
    %1364 = vmatpush.msra.mxu0 %v1335
    %1365 = vmatpush.msra.mxu0 %v1331
    %1366 = vmatpush.msra.mxu0 %v1327
    %1367 = vmatpush.msra.mxu0 %v1323
    %1368 = vmatpush.msra.mxu0 %v1319
    %1369 = vmatpush.msra.mxu0 %v1315
    %1370 = vmatpush.msra.mxu0 %v1311
    %1371 = vmatpush.msra.mxu0 %v1307
    %1372 = vmatpush.msra.mxu0 %v1303
    %1373 = vmatpush.msra.mxu0 %v1299
    %1374 = vmatpush.msra.mxu0 %v1295
    %1375 = vmatmul.f32.gmra.mxu0 %v1292
    %v1376 = vpop.f32.mrf.mxu0
    %v1377 = vadd.f32 0.0, %v1376
    %1378 = vdwg.mxu0
    %1379 = vmatpush.msra.mxu0 %v1356
    %1380 = vmatpush.msra.mxu0 %v1352
    %1381 = vmatpush.msra.mxu0 %v1348
    %1382 = vmatpush.msra.mxu0 %v1344
    %1383 = vmatpush.msra.mxu0 %v1340
    %1384 = vmatpush.msra.mxu0 %v1336
    %1385 = vmatpush.msra.mxu0 %v1332
    %1386 = vmatpush.msra.mxu0 %v1328
    %1387 = vmatpush.msra.mxu0 %v1324
    %1388 = vmatpush.msra.mxu0 %v1320
    %1389 = vmatpush.msra.mxu0 %v1316
    %1390 = vmatpush.msra.mxu0 %v1312
    %1391 = vmatpush.msra.mxu0 %v1308
    %1392 = vmatpush.msra.mxu0 %v1304
    %1393 = vmatpush.msra.mxu0 %v1300
    %1394 = vmatpush.msra.mxu0 %v1296
    %1395 = vmatmul.f32.gmra.mxu0 %v1292
    %v1396 = vpop.f32.mrf.mxu0
    %v1397 = vadd.f32 0.0, %v1396
    %1398 = vdwg.mxu0
    %1399 = vmatpush.msra.mxu0 %v1357
    %1400 = vmatpush.msra.mxu0 %v1353
    %1401 = vmatpush.msra.mxu0 %v1349
    %1402 = vmatpush.msra.mxu0 %v1345
    %1403 = vmatpush.msra.mxu0 %v1341
    %1404 = vmatpush.msra.mxu0 %v1337
    %1405 = vmatpush.msra.mxu0 %v1333
    %1406 = vmatpush.msra.mxu0 %v1329
    %1407 = vmatpush.msra.mxu0 %v1325
    %1408 = vmatpush.msra.mxu0 %v1321
    %1409 = vmatpush.msra.mxu0 %v1317
    %1410 = vmatpush.msra.mxu0 %v1313
    %1411 = vmatpush.msra.mxu0 %v1309
    %1412 = vmatpush.msra.mxu0 %v1305
    %1413 = vmatpush.msra.mxu0 %v1301
    %1414 = vmatpush.msra.mxu0 %v1297
    %1415 = vmatmul.f32.gmra.mxu0 %v1292
    %v1416 = vpop.f32.mrf.mxu0
    %v1417 = vadd.f32 0.0, %v1416
    %1418 = vdwg.mxu0
    %1419 = vmatpush.msra.mxu0 %v1358
    %1420 = vmatpush.msra.mxu0 %v1354
    %1421 = vmatpush.msra.mxu0 %v1350
    %1422 = vmatpush.msra.mxu0 %v1346
    %1423 = vmatpush.msra.mxu0 %v1342
    %1424 = vmatpush.msra.mxu0 %v1338
    %1425 = vmatpush.msra.mxu0 %v1334
    %1426 = vmatpush.msra.mxu0 %v1330
    %1427 = vmatpush.msra.mxu0 %v1326
    %1428 = vmatpush.msra.mxu0 %v1322
    %1429 = vmatpush.msra.mxu0 %v1318
    %1430 = vmatpush.msra.mxu0 %v1314
    %1431 = vmatpush.msra.mxu0 %v1310
    %1432 = vmatpush.msra.mxu0 %v1306
    %1433 = vmatpush.msra.mxu0 %v1302
    %1434 = vmatpush.msra.mxu0 %v1298
    %1435 = vmatmul.f32.gmra.mxu0 %v1292
    %v1436 = vpop.f32.mrf.mxu0
    %v1437 = vadd.f32 0.0, %v1436
    %1438 = vdwg.mxu0
    %v1439 = vadd.f32 %v438, %v1377
    %v1440 = vadd.f32 %v439, %v1397
    %v1441 = vadd.f32 %v440, %v1417
    %v1442 = vadd.f32 %v441, %v1437
    %v1443 = vxor.u32 %v1439, 2147483648
    %v1444 = vmul.f32 %v1443, 1.442695
    %v1445 = vpow.pop %v1444
    %v1446 = vadd.f32 %v1445, 1.0
    %v1447 = vrcp.pop %v1446
    %v1448 = vmul.f32 %v1446, %v1447
    %v1449 = vsub.f32 1.0, %v1448
    %v1450 = vmul.f32 %v1447, %v1449
    %v1451 = vadd.f32 %v1447, %v1450
    %vm1452 = vweird.f32 %v1446
    %vm1453 = vweird.f32 %v1447
    %vm1454 = vmor %vm1452, %vm1453
    %v1455 = vsel %vm1454, %v1447, %v1451
    %v1456 = vand.u32 2147483647, %v1446
    %vm1457 = vcmp.eq.f32.partialorder %v1456, 8.507059e+37
    %v1458 = vand.u32 %v1446, 2147483648
    %v1459 = vor.u32 1.1754944e-38, %v1458
    %v1460 = vsel %vm1457, %v1459, %v1455
    %v1461 = vmul.f32 1.0, %v1460
    %v1462 = vxor.u32 %v1440, 2147483648
    %v1463 = vmul.f32 %v1462, 1.442695
    %v1464 = vpow.pop %v1463
    %v1465 = vadd.f32 %v1464, 1.0
    %v1466 = vrcp.pop %v1465
    %v1467 = vmul.f32 %v1465, %v1466
    %v1468 = vsub.f32 1.0, %v1467
    %v1469 = vmul.f32 %v1466, %v1468
    %v1470 = vadd.f32 %v1466, %v1469
    %vm1471 = vweird.f32 %v1465
    %vm1472 = vweird.f32 %v1466
    %vm1473 = vmor %vm1471, %vm1472
    %v1474 = vsel %vm1473, %v1466, %v1470
    %v1475 = vand.u32 2147483647, %v1465
    %vm1476 = vcmp.eq.f32.partialorder %v1475, 8.507059e+37
    %v1477 = vand.u32 %v1465, 2147483648
    %v1478 = vor.u32 1.1754944e-38, %v1477
    %v1479 = vsel %vm1476, %v1478, %v1474
    %v1480 = vmul.f32 1.0, %v1479
    %v1481 = vtanh.pop %v1441
    %v1482 = vxor.u32 %v1442, 2147483648
    %v1483 = vmul.f32 %v1482, 1.442695
    %v1484 = vpow.pop %v1483
    %v1485 = vadd.f32 %v1484, 1.0
    %v1486 = vrcp.pop %v1485
    %v1487 = vmul.f32 %v1485, %v1486
    %v1488 = vsub.f32 1.0, %v1487
    %v1489 = vmul.f32 %v1486, %v1488
    %v1490 = vadd.f32 %v1486, %v1489
    %vm1491 = vweird.f32 %v1485
    %vm1492 = vweird.f32 %v1486
    %vm1493 = vmor %vm1491, %vm1492
    %v1494 = vsel %vm1493, %v1486, %v1490
    %v1495 = vand.u32 2147483647, %v1485
    %vm1496 = vcmp.eq.f32.partialorder %v1495, 8.507059e+37
    %v1497 = vand.u32 %v1485, 2147483648
    %v1498 = vor.u32 1.1754944e-38, %v1497
    %v1499 = vsel %vm1496, %v1498, %v1494
    %v1500 = vmul.f32 1.0, %v1499
    %v1501 = vmul.f32 %v1480, %v1290
    %v1502 = vmul.f32 %v1461, %v1481
    %v1503 = vadd.f32 %v1501, %v1502
    %v1504 = vtanh.pop %v1503
    %v1505 = vmul.f32 %v1500, %v1504
    %s1506 = scalar_lea.vmem [#allocation5], 32
    %1507 = vst [vmem:[%s1506] sm:$0xff] %v1505
    %v1508 = vld [vmem:[#allocation13] sm:$0xff]
    %v1509 = vld [vmem:[#allocation13 + $0x8] sm:$0xff]
    %v1510 = vld [vmem:[#allocation13 + $0x10] sm:$0xff]
    %v1511 = vld [vmem:[#allocation13 + $0x18] sm:$0xff]
    %v1512 = vld [vmem:[#allocation13 + $0x20] sm:$0xff]
    %v1513 = vld [vmem:[#allocation13 + $0x28] sm:$0xff]
    %v1514 = vld [vmem:[#allocation13 + $0x30] sm:$0xff]
    %v1515 = vld [vmem:[#allocation13 + $0x38] sm:$0xff]
    %v1516 = vld [vmem:[#allocation13 + $0x40] sm:$0xff]
    %v1517 = vld [vmem:[#allocation13 + $0x48] sm:$0xff]
    %v1518 = vld [vmem:[#allocation13 + $0x50] sm:$0xff]
    %v1519 = vld [vmem:[#allocation13 + $0x58] sm:$0xff]
    %v1520 = vld [vmem:[#allocation13 + $0x60] sm:$0xff]
    %v1521 = vld [vmem:[#allocation13 + $0x68] sm:$0xff]
    %v1522 = vld [vmem:[#allocation13 + $0x70] sm:$0xff]
    %v1523 = vld [vmem:[#allocation13 + $0x78] sm:$0xff]
    %v1524 = vld [vmem:[#allocation13 + $0x80] sm:$0xff]
    %v1525 = vld [vmem:[#allocation13 + $0x88] sm:$0xff]
    %v1526 = vld [vmem:[#allocation13 + $0x90] sm:$0xff]
    %v1527 = vld [vmem:[#allocation13 + $0x98] sm:$0xff]
    %v1528 = vld [vmem:[#allocation13 + $0xa0] sm:$0xff]
    %v1529 = vld [vmem:[#allocation13 + $0xa8] sm:$0xff]
    %v1530 = vld [vmem:[#allocation13 + $0xb0] sm:$0xff]
    %v1531 = vld [vmem:[#allocation13 + $0xb8] sm:$0xff]
    %v1532 = vld [vmem:[#allocation13 + $0xc0] sm:$0xff]
    %v1533 = vld [vmem:[#allocation13 + $0xc8] sm:$0xff]
    %v1534 = vld [vmem:[#allocation13 + $0xd0] sm:$0xff]
    %v1535 = vld [vmem:[#allocation13 + $0xd8] sm:$0xff]
    %v1536 = vld [vmem:[#allocation13 + $0xe0] sm:$0xff]
    %v1537 = vld [vmem:[#allocation13 + $0xe8] sm:$0xff]
    %v1538 = vld [vmem:[#allocation13 + $0xf0] sm:$0xff]
    %v1539 = vld [vmem:[#allocation13 + $0xf8] sm:$0xff]
    %v1540 = vld [vmem:[#allocation13 + $0x100] sm:$0xff]
    %v1541 = vld [vmem:[#allocation13 + $0x108] sm:$0xff]
    %v1542 = vld [vmem:[#allocation13 + $0x110] sm:$0xff]
    %v1543 = vld [vmem:[#allocation13 + $0x118] sm:$0xff]
    %v1544 = vld [vmem:[#allocation13 + $0x120] sm:$0xff]
    %v1545 = vld [vmem:[#allocation13 + $0x128] sm:$0xff]
    %v1546 = vld [vmem:[#allocation13 + $0x130] sm:$0xff]
    %v1547 = vld [vmem:[#allocation13 + $0x138] sm:$0xff]
    %v1548 = vld [vmem:[#allocation13 + $0x140] sm:$0xff]
    %v1549 = vld [vmem:[#allocation13 + $0x148] sm:$0xff]
    %v1550 = vld [vmem:[#allocation13 + $0x150] sm:$0xff]
    %v1551 = vld [vmem:[#allocation13 + $0x158] sm:$0xff]
    %v1552 = vld [vmem:[#allocation13 + $0x160] sm:$0xff]
    %v1553 = vld [vmem:[#allocation13 + $0x168] sm:$0xff]
    %v1554 = vld [vmem:[#allocation13 + $0x170] sm:$0xff]
    %v1555 = vld [vmem:[#allocation13 + $0x178] sm:$0xff]
    %v1556 = vld [vmem:[#allocation13 + $0x180] sm:$0xff]
    %v1557 = vld [vmem:[#allocation13 + $0x188] sm:$0xff]
    %v1558 = vld [vmem:[#allocation13 + $0x190] sm:$0xff]
    %v1559 = vld [vmem:[#allocation13 + $0x198] sm:$0xff]
    %v1560 = vld [vmem:[#allocation13 + $0x1a0] sm:$0xff]
    %v1561 = vld [vmem:[#allocation13 + $0x1a8] sm:$0xff]
    %v1562 = vld [vmem:[#allocation13 + $0x1b0] sm:$0xff]
    %v1563 = vld [vmem:[#allocation13 + $0x1b8] sm:$0xff]
    %v1564 = vld [vmem:[#allocation13 + $0x1c0] sm:$0xff]
    %v1565 = vld [vmem:[#allocation13 + $0x1c8] sm:$0xff]
    %v1566 = vld [vmem:[#allocation13 + $0x1d0] sm:$0xff]
    %v1567 = vld [vmem:[#allocation13 + $0x1d8] sm:$0xff]
    %v1568 = vld [vmem:[#allocation13 + $0x1e0] sm:$0xff]
    %v1569 = vld [vmem:[#allocation13 + $0x1e8] sm:$0xff]
    %v1570 = vld [vmem:[#allocation13 + $0x1f0] sm:$0xff]
    %v1571 = vld [vmem:[#allocation13 + $0x1f8] sm:$0xff]
    %1572 = vmatpush.msra.mxu0 %v1568
    %1573 = vmatpush.msra.mxu0 %v1564
    %1574 = vmatpush.msra.mxu0 %v1560
    %1575 = vmatpush.msra.mxu0 %v1556
    %1576 = vmatpush.msra.mxu0 %v1552
    %1577 = vmatpush.msra.mxu0 %v1548
    %1578 = vmatpush.msra.mxu0 %v1544
    %1579 = vmatpush.msra.mxu0 %v1540
    %1580 = vmatpush.msra.mxu0 %v1536
    %1581 = vmatpush.msra.mxu0 %v1532
    %1582 = vmatpush.msra.mxu0 %v1528
    %1583 = vmatpush.msra.mxu0 %v1524
    %1584 = vmatpush.msra.mxu0 %v1520
    %1585 = vmatpush.msra.mxu0 %v1516
    %1586 = vmatpush.msra.mxu0 %v1512
    %1587 = vmatpush.msra.mxu0 %v1508
    %1588 = vmatmul.f32.gmra.mxu0 %v1505
    %v1589 = vpop.f32.mrf.mxu0
    %v1590 = vadd.f32 0.0, %v1589
    %1591 = vdwg.mxu0
    %1592 = vmatpush.msra.mxu0 %v1569
    %1593 = vmatpush.msra.mxu0 %v1565
    %1594 = vmatpush.msra.mxu0 %v1561
    %1595 = vmatpush.msra.mxu0 %v1557
    %1596 = vmatpush.msra.mxu0 %v1553
    %1597 = vmatpush.msra.mxu0 %v1549
    %1598 = vmatpush.msra.mxu0 %v1545
    %1599 = vmatpush.msra.mxu0 %v1541
    %1600 = vmatpush.msra.mxu0 %v1537
    %1601 = vmatpush.msra.mxu0 %v1533
    %1602 = vmatpush.msra.mxu0 %v1529
    %1603 = vmatpush.msra.mxu0 %v1525
    %1604 = vmatpush.msra.mxu0 %v1521
    %1605 = vmatpush.msra.mxu0 %v1517
    %1606 = vmatpush.msra.mxu0 %v1513
    %1607 = vmatpush.msra.mxu0 %v1509
    %1608 = vmatmul.f32.gmra.mxu0 %v1505
    %v1609 = vpop.f32.mrf.mxu0
    %v1610 = vadd.f32 0.0, %v1609
    %1611 = vdwg.mxu0
    %1612 = vmatpush.msra.mxu0 %v1570
    %1613 = vmatpush.msra.mxu0 %v1566
    %1614 = vmatpush.msra.mxu0 %v1562
    %1615 = vmatpush.msra.mxu0 %v1558
    %1616 = vmatpush.msra.mxu0 %v1554
    %1617 = vmatpush.msra.mxu0 %v1550
    %1618 = vmatpush.msra.mxu0 %v1546
    %1619 = vmatpush.msra.mxu0 %v1542
    %1620 = vmatpush.msra.mxu0 %v1538
    %1621 = vmatpush.msra.mxu0 %v1534
    %1622 = vmatpush.msra.mxu0 %v1530
    %1623 = vmatpush.msra.mxu0 %v1526
    %1624 = vmatpush.msra.mxu0 %v1522
    %1625 = vmatpush.msra.mxu0 %v1518
    %1626 = vmatpush.msra.mxu0 %v1514
    %1627 = vmatpush.msra.mxu0 %v1510
    %1628 = vmatmul.f32.gmra.mxu0 %v1505
    %v1629 = vpop.f32.mrf.mxu0
    %v1630 = vadd.f32 0.0, %v1629
    %1631 = vdwg.mxu0
    %1632 = vmatpush.msra.mxu0 %v1571
    %1633 = vmatpush.msra.mxu0 %v1567
    %1634 = vmatpush.msra.mxu0 %v1563
    %1635 = vmatpush.msra.mxu0 %v1559
    %1636 = vmatpush.msra.mxu0 %v1555
    %1637 = vmatpush.msra.mxu0 %v1551
    %1638 = vmatpush.msra.mxu0 %v1547
    %1639 = vmatpush.msra.mxu0 %v1543
    %1640 = vmatpush.msra.mxu0 %v1539
    %1641 = vmatpush.msra.mxu0 %v1535
    %1642 = vmatpush.msra.mxu0 %v1531
    %1643 = vmatpush.msra.mxu0 %v1527
    %1644 = vmatpush.msra.mxu0 %v1523
    %1645 = vmatpush.msra.mxu0 %v1519
    %1646 = vmatpush.msra.mxu0 %v1515
    %1647 = vmatpush.msra.mxu0 %v1511
    %1648 = vmatmul.f32.gmra.mxu0 %v1505
    %v1649 = vpop.f32.mrf.mxu0
    %v1650 = vadd.f32 0.0, %v1649
    %1651 = vdwg.mxu0
    %v1652 = vadd.f32 %v438, %v1590
    %v1653 = vadd.f32 %v439, %v1610
    %v1654 = vadd.f32 %v440, %v1630
    %v1655 = vadd.f32 %v441, %v1650
    %v1656 = vxor.u32 %v1652, 2147483648
    %v1657 = vmul.f32 %v1656, 1.442695
    %v1658 = vpow.pop %v1657
    %v1659 = vadd.f32 %v1658, 1.0
    %v1660 = vrcp.pop %v1659
    %v1661 = vmul.f32 %v1659, %v1660
    %v1662 = vsub.f32 1.0, %v1661
    %v1663 = vmul.f32 %v1660, %v1662
    %v1664 = vadd.f32 %v1660, %v1663
    %vm1665 = vweird.f32 %v1659
    %vm1666 = vweird.f32 %v1660
    %vm1667 = vmor %vm1665, %vm1666
    %v1668 = vsel %vm1667, %v1660, %v1664
    %v1669 = vand.u32 2147483647, %v1659
    %vm1670 = vcmp.eq.f32.partialorder %v1669, 8.507059e+37
    %v1671 = vand.u32 %v1659, 2147483648
    %v1672 = vor.u32 1.1754944e-38, %v1671
    %v1673 = vsel %vm1670, %v1672, %v1668
    %v1674 = vmul.f32 1.0, %v1673
    %v1675 = vxor.u32 %v1653, 2147483648
    %v1676 = vmul.f32 %v1675, 1.442695
    %v1677 = vpow.pop %v1676
    %v1678 = vadd.f32 %v1677, 1.0
    %v1679 = vrcp.pop %v1678
    %v1680 = vmul.f32 %v1678, %v1679
    %v1681 = vsub.f32 1.0, %v1680
    %v1682 = vmul.f32 %v1679, %v1681
    %v1683 = vadd.f32 %v1679, %v1682
    %vm1684 = vweird.f32 %v1678
    %vm1685 = vweird.f32 %v1679
    %vm1686 = vmor %vm1684, %vm1685
    %v1687 = vsel %vm1686, %v1679, %v1683
    %v1688 = vand.u32 2147483647, %v1678
    %vm1689 = vcmp.eq.f32.partialorder %v1688, 8.507059e+37
    %v1690 = vand.u32 %v1678, 2147483648
    %v1691 = vor.u32 1.1754944e-38, %v1690
    %v1692 = vsel %vm1689, %v1691, %v1687
    %v1693 = vmul.f32 1.0, %v1692
    %v1694 = vtanh.pop %v1654
    %v1695 = vxor.u32 %v1655, 2147483648
    %v1696 = vmul.f32 %v1695, 1.442695
    %v1697 = vpow.pop %v1696
    %v1698 = vadd.f32 %v1697, 1.0
    %v1699 = vrcp.pop %v1698
    %v1700 = vmul.f32 %v1698, %v1699
    %v1701 = vsub.f32 1.0, %v1700
    %v1702 = vmul.f32 %v1699, %v1701
    %v1703 = vadd.f32 %v1699, %v1702
    %vm1704 = vweird.f32 %v1698
    %vm1705 = vweird.f32 %v1699
    %vm1706 = vmor %vm1704, %vm1705
    %v1707 = vsel %vm1706, %v1699, %v1703
    %v1708 = vand.u32 2147483647, %v1698
    %vm1709 = vcmp.eq.f32.partialorder %v1708, 8.507059e+37
    %v1710 = vand.u32 %v1698, 2147483648
    %v1711 = vor.u32 1.1754944e-38, %v1710
    %v1712 = vsel %vm1709, %v1711, %v1707
    %v1713 = vmul.f32 1.0, %v1712
    %v1714 = vmul.f32 %v1693, %v1503
    %v1715 = vmul.f32 %v1674, %v1694
    %v1716 = vadd.f32 %v1714, %v1715
    %v1717 = vtanh.pop %v1716
    %v1718 = vmul.f32 %v1713, %v1717
    %s1719 = scalar_lea.vmem [#allocation5], 40
    %1720 = vst [vmem:[%s1719] sm:$0xff] %v1718
    %v1721 = vld [vmem:[#allocation13] sm:$0xff]
    %v1722 = vld [vmem:[#allocation13 + $0x8] sm:$0xff]
    %v1723 = vld [vmem:[#allocation13 + $0x10] sm:$0xff]
    %v1724 = vld [vmem:[#allocation13 + $0x18] sm:$0xff]
    %v1725 = vld [vmem:[#allocation13 + $0x20] sm:$0xff]
    %v1726 = vld [vmem:[#allocation13 + $0x28] sm:$0xff]
    %v1727 = vld [vmem:[#allocation13 + $0x30] sm:$0xff]
    %v1728 = vld [vmem:[#allocation13 + $0x38] sm:$0xff]
    %v1729 = vld [vmem:[#allocation13 + $0x40] sm:$0xff]
    %v1730 = vld [vmem:[#allocation13 + $0x48] sm:$0xff]
    %v1731 = vld [vmem:[#allocation13 + $0x50] sm:$0xff]
    %v1732 = vld [vmem:[#allocation13 + $0x58] sm:$0xff]
    %v1733 = vld [vmem:[#allocation13 + $0x60] sm:$0xff]
    %v1734 = vld [vmem:[#allocation13 + $0x68] sm:$0xff]
    %v1735 = vld [vmem:[#allocation13 + $0x70] sm:$0xff]
    %v1736 = vld [vmem:[#allocation13 + $0x78] sm:$0xff]
    %v1737 = vld [vmem:[#allocation13 + $0x80] sm:$0xff]
    %v1738 = vld [vmem:[#allocation13 + $0x88] sm:$0xff]
    %v1739 = vld [vmem:[#allocation13 + $0x90] sm:$0xff]
    %v1740 = vld [vmem:[#allocation13 + $0x98] sm:$0xff]
    %v1741 = vld [vmem:[#allocation13 + $0xa0] sm:$0xff]
    %v1742 = vld [vmem:[#allocation13 + $0xa8] sm:$0xff]
    %v1743 = vld [vmem:[#allocation13 + $0xb0] sm:$0xff]
    %v1744 = vld [vmem:[#allocation13 + $0xb8] sm:$0xff]
    %v1745 = vld [vmem:[#allocation13 + $0xc0] sm:$0xff]
    %v1746 = vld [vmem:[#allocation13 + $0xc8] sm:$0xff]
    %v1747 = vld [vmem:[#allocation13 + $0xd0] sm:$0xff]
    %v1748 = vld [vmem:[#allocation13 + $0xd8] sm:$0xff]
    %v1749 = vld [vmem:[#allocation13 + $0xe0] sm:$0xff]
    %v1750 = vld [vmem:[#allocation13 + $0xe8] sm:$0xff]
    %v1751 = vld [vmem:[#allocation13 + $0xf0] sm:$0xff]
    %v1752 = vld [vmem:[#allocation13 + $0xf8] sm:$0xff]
    %v1753 = vld [vmem:[#allocation13 + $0x100] sm:$0xff]
    %v1754 = vld [vmem:[#allocation13 + $0x108] sm:$0xff]
    %v1755 = vld [vmem:[#allocation13 + $0x110] sm:$0xff]
    %v1756 = vld [vmem:[#allocation13 + $0x118] sm:$0xff]
    %v1757 = vld [vmem:[#allocation13 + $0x120] sm:$0xff]
    %v1758 = vld [vmem:[#allocation13 + $0x128] sm:$0xff]
    %v1759 = vld [vmem:[#allocation13 + $0x130] sm:$0xff]
    %v1760 = vld [vmem:[#allocation13 + $0x138] sm:$0xff]
    %v1761 = vld [vmem:[#allocation13 + $0x140] sm:$0xff]
    %v1762 = vld [vmem:[#allocation13 + $0x148] sm:$0xff]
    %v1763 = vld [vmem:[#allocation13 + $0x150] sm:$0xff]
    %v1764 = vld [vmem:[#allocation13 + $0x158] sm:$0xff]
    %v1765 = vld [vmem:[#allocation13 + $0x160] sm:$0xff]
    %v1766 = vld [vmem:[#allocation13 + $0x168] sm:$0xff]
    %v1767 = vld [vmem:[#allocation13 + $0x170] sm:$0xff]
    %v1768 = vld [vmem:[#allocation13 + $0x178] sm:$0xff]
    %v1769 = vld [vmem:[#allocation13 + $0x180] sm:$0xff]
    %v1770 = vld [vmem:[#allocation13 + $0x188] sm:$0xff]
    %v1771 = vld [vmem:[#allocation13 + $0x190] sm:$0xff]
    %v1772 = vld [vmem:[#allocation13 + $0x198] sm:$0xff]
    %v1773 = vld [vmem:[#allocation13 + $0x1a0] sm:$0xff]
    %v1774 = vld [vmem:[#allocation13 + $0x1a8] sm:$0xff]
    %v1775 = vld [vmem:[#allocation13 + $0x1b0] sm:$0xff]
    %v1776 = vld [vmem:[#allocation13 + $0x1b8] sm:$0xff]
    %v1777 = vld [vmem:[#allocation13 + $0x1c0] sm:$0xff]
    %v1778 = vld [vmem:[#allocation13 + $0x1c8] sm:$0xff]
    %v1779 = vld [vmem:[#allocation13 + $0x1d0] sm:$0xff]
    %v1780 = vld [vmem:[#allocation13 + $0x1d8] sm:$0xff]
    %v1781 = vld [vmem:[#allocation13 + $0x1e0] sm:$0xff]
    %v1782 = vld [vmem:[#allocation13 + $0x1e8] sm:$0xff]
    %v1783 = vld [vmem:[#allocation13 + $0x1f0] sm:$0xff]
    %v1784 = vld [vmem:[#allocation13 + $0x1f8] sm:$0xff]
    %1785 = vmatpush.msra.mxu0 %v1781
    %1786 = vmatpush.msra.mxu0 %v1777
    %1787 = vmatpush.msra.mxu0 %v1773
    %1788 = vmatpush.msra.mxu0 %v1769
    %1789 = vmatpush.msra.mxu0 %v1765
    %1790 = vmatpush.msra.mxu0 %v1761
    %1791 = vmatpush.msra.mxu0 %v1757
    %1792 = vmatpush.msra.mxu0 %v1753
    %1793 = vmatpush.msra.mxu0 %v1749
    %1794 = vmatpush.msra.mxu0 %v1745
    %1795 = vmatpush.msra.mxu0 %v1741
    %1796 = vmatpush.msra.mxu0 %v1737
    %1797 = vmatpush.msra.mxu0 %v1733
    %1798 = vmatpush.msra.mxu0 %v1729
    %1799 = vmatpush.msra.mxu0 %v1725
    %1800 = vmatpush.msra.mxu0 %v1721
    %1801 = vmatmul.f32.gmra.mxu0 %v1718
    %v1802 = vpop.f32.mrf.mxu0
    %v1803 = vadd.f32 0.0, %v1802
    %1804 = vdwg.mxu0
    %1805 = vmatpush.msra.mxu0 %v1782
    %1806 = vmatpush.msra.mxu0 %v1778
    %1807 = vmatpush.msra.mxu0 %v1774
    %1808 = vmatpush.msra.mxu0 %v1770
    %1809 = vmatpush.msra.mxu0 %v1766
    %1810 = vmatpush.msra.mxu0 %v1762
    %1811 = vmatpush.msra.mxu0 %v1758
    %1812 = vmatpush.msra.mxu0 %v1754
    %1813 = vmatpush.msra.mxu0 %v1750
    %1814 = vmatpush.msra.mxu0 %v1746
    %1815 = vmatpush.msra.mxu0 %v1742
    %1816 = vmatpush.msra.mxu0 %v1738
    %1817 = vmatpush.msra.mxu0 %v1734
    %1818 = vmatpush.msra.mxu0 %v1730
    %1819 = vmatpush.msra.mxu0 %v1726
    %1820 = vmatpush.msra.mxu0 %v1722
    %1821 = vmatmul.f32.gmra.mxu0 %v1718
    %v1822 = vpop.f32.mrf.mxu0
    %v1823 = vadd.f32 0.0, %v1822
    %1824 = vdwg.mxu0
    %1825 = vmatpush.msra.mxu0 %v1783
    %1826 = vmatpush.msra.mxu0 %v1779
    %1827 = vmatpush.msra.mxu0 %v1775
    %1828 = vmatpush.msra.mxu0 %v1771
    %1829 = vmatpush.msra.mxu0 %v1767
    %1830 = vmatpush.msra.mxu0 %v1763
    %1831 = vmatpush.msra.mxu0 %v1759
    %1832 = vmatpush.msra.mxu0 %v1755
    %1833 = vmatpush.msra.mxu0 %v1751
    %1834 = vmatpush.msra.mxu0 %v1747
    %1835 = vmatpush.msra.mxu0 %v1743
    %1836 = vmatpush.msra.mxu0 %v1739
    %1837 = vmatpush.msra.mxu0 %v1735
    %1838 = vmatpush.msra.mxu0 %v1731
    %1839 = vmatpush.msra.mxu0 %v1727
    %1840 = vmatpush.msra.mxu0 %v1723
    %1841 = vmatmul.f32.gmra.mxu0 %v1718
    %v1842 = vpop.f32.mrf.mxu0
    %v1843 = vadd.f32 0.0, %v1842
    %1844 = vdwg.mxu0
    %1845 = vmatpush.msra.mxu0 %v1784
    %1846 = vmatpush.msra.mxu0 %v1780
    %1847 = vmatpush.msra.mxu0 %v1776
    %1848 = vmatpush.msra.mxu0 %v1772
    %1849 = vmatpush.msra.mxu0 %v1768
    %1850 = vmatpush.msra.mxu0 %v1764
    %1851 = vmatpush.msra.mxu0 %v1760
    %1852 = vmatpush.msra.mxu0 %v1756
    %1853 = vmatpush.msra.mxu0 %v1752
    %1854 = vmatpush.msra.mxu0 %v1748
    %1855 = vmatpush.msra.mxu0 %v1744
    %1856 = vmatpush.msra.mxu0 %v1740
    %1857 = vmatpush.msra.mxu0 %v1736
    %1858 = vmatpush.msra.mxu0 %v1732
    %1859 = vmatpush.msra.mxu0 %v1728
    %1860 = vmatpush.msra.mxu0 %v1724
    %1861 = vmatmul.f32.gmra.mxu0 %v1718
    %v1862 = vpop.f32.mrf.mxu0
    %v1863 = vadd.f32 0.0, %v1862
    %1864 = vdwg.mxu0
    %v1865 = vadd.f32 %v438, %v1803
    %v1866 = vadd.f32 %v439, %v1823
    %v1867 = vadd.f32 %v440, %v1843
    %v1868 = vadd.f32 %v441, %v1863
    %v1869 = vxor.u32 %v1865, 2147483648
    %v1870 = vmul.f32 %v1869, 1.442695
    %v1871 = vpow.pop %v1870
    %v1872 = vadd.f32 %v1871, 1.0
    %v1873 = vrcp.pop %v1872
    %v1874 = vmul.f32 %v1872, %v1873
    %v1875 = vsub.f32 1.0, %v1874
    %v1876 = vmul.f32 %v1873, %v1875
    %v1877 = vadd.f32 %v1873, %v1876
    %vm1878 = vweird.f32 %v1872
    %vm1879 = vweird.f32 %v1873
    %vm1880 = vmor %vm1878, %vm1879
    %v1881 = vsel %vm1880, %v1873, %v1877
    %v1882 = vand.u32 2147483647, %v1872
    %vm1883 = vcmp.eq.f32.partialorder %v1882, 8.507059e+37
    %v1884 = vand.u32 %v1872, 2147483648
    %v1885 = vor.u32 1.1754944e-38, %v1884
    %v1886 = vsel %vm1883, %v1885, %v1881
    %v1887 = vmul.f32 1.0, %v1886
    %v1888 = vxor.u32 %v1866, 2147483648
    %v1889 = vmul.f32 %v1888, 1.442695
    %v1890 = vpow.pop %v1889
    %v1891 = vadd.f32 %v1890, 1.0
    %v1892 = vrcp.pop %v1891
    %v1893 = vmul.f32 %v1891, %v1892
    %v1894 = vsub.f32 1.0, %v1893
    %v1895 = vmul.f32 %v1892, %v1894
    %v1896 = vadd.f32 %v1892, %v1895
    %vm1897 = vweird.f32 %v1891
    %vm1898 = vweird.f32 %v1892
    %vm1899 = vmor %vm1897, %vm1898
    %v1900 = vsel %vm1899, %v1892, %v1896
    %v1901 = vand.u32 2147483647, %v1891
    %vm1902 = vcmp.eq.f32.partialorder %v1901, 8.507059e+37
    %v1903 = vand.u32 %v1891, 2147483648
    %v1904 = vor.u32 1.1754944e-38, %v1903
    %v1905 = vsel %vm1902, %v1904, %v1900
    %v1906 = vmul.f32 1.0, %v1905
    %v1907 = vtanh.pop %v1867
    %v1908 = vxor.u32 %v1868, 2147483648
    %v1909 = vmul.f32 %v1908, 1.442695
    %v1910 = vpow.pop %v1909
    %v1911 = vadd.f32 %v1910, 1.0
    %v1912 = vrcp.pop %v1911
    %v1913 = vmul.f32 %v1911, %v1912
    %v1914 = vsub.f32 1.0, %v1913
    %v1915 = vmul.f32 %v1912, %v1914
    %v1916 = vadd.f32 %v1912, %v1915
    %vm1917 = vweird.f32 %v1911
    %vm1918 = vweird.f32 %v1912
    %vm1919 = vmor %vm1917, %vm1918
    %v1920 = vsel %vm1919, %v1912, %v1916
    %v1921 = vand.u32 2147483647, %v1911
    %vm1922 = vcmp.eq.f32.partialorder %v1921, 8.507059e+37
    %v1923 = vand.u32 %v1911, 2147483648
    %v1924 = vor.u32 1.1754944e-38, %v1923
    %v1925 = vsel %vm1922, %v1924, %v1920
    %v1926 = vmul.f32 1.0, %v1925
    %v1927 = vmul.f32 %v1906, %v1716
    %v1928 = vmul.f32 %v1887, %v1907
    %v1929 = vadd.f32 %v1927, %v1928
    %v1930 = vtanh.pop %v1929
    %v1931 = vmul.f32 %v1926, %v1930
    %s1932 = scalar_lea.vmem [#allocation5], 48
    %1933 = vst [vmem:[%s1932] sm:$0xff] %v1931
    %v1934 = vld [vmem:[#allocation13] sm:$0xff]
    %v1935 = vld [vmem:[#allocation13 + $0x8] sm:$0xff]
    %v1936 = vld [vmem:[#allocation13 + $0x10] sm:$0xff]
    %v1937 = vld [vmem:[#allocation13 + $0x18] sm:$0xff]
    %v1938 = vld [vmem:[#allocation13 + $0x20] sm:$0xff]
    %v1939 = vld [vmem:[#allocation13 + $0x28] sm:$0xff]
    %v1940 = vld [vmem:[#allocation13 + $0x30] sm:$0xff]
    %v1941 = vld [vmem:[#allocation13 + $0x38] sm:$0xff]
    %v1942 = vld [vmem:[#allocation13 + $0x40] sm:$0xff]
    %v1943 = vld [vmem:[#allocation13 + $0x48] sm:$0xff]
    %v1944 = vld [vmem:[#allocation13 + $0x50] sm:$0xff]
    %v1945 = vld [vmem:[#allocation13 + $0x58] sm:$0xff]
    %v1946 = vld [vmem:[#allocation13 + $0x60] sm:$0xff]
    %v1947 = vld [vmem:[#allocation13 + $0x68] sm:$0xff]
    %v1948 = vld [vmem:[#allocation13 + $0x70] sm:$0xff]
    %v1949 = vld [vmem:[#allocation13 + $0x78] sm:$0xff]
    %v1950 = vld [vmem:[#allocation13 + $0x80] sm:$0xff]
    %v1951 = vld [vmem:[#allocation13 + $0x88] sm:$0xff]
    %v1952 = vld [vmem:[#allocation13 + $0x90] sm:$0xff]
    %v1953 = vld [vmem:[#allocation13 + $0x98] sm:$0xff]
    %v1954 = vld [vmem:[#allocation13 + $0xa0] sm:$0xff]
    %v1955 = vld [vmem:[#allocation13 + $0xa8] sm:$0xff]
    %v1956 = vld [vmem:[#allocation13 + $0xb0] sm:$0xff]
    %v1957 = vld [vmem:[#allocation13 + $0xb8] sm:$0xff]
    %v1958 = vld [vmem:[#allocation13 + $0xc0] sm:$0xff]
    %v1959 = vld [vmem:[#allocation13 + $0xc8] sm:$0xff]
    %v1960 = vld [vmem:[#allocation13 + $0xd0] sm:$0xff]
    %v1961 = vld [vmem:[#allocation13 + $0xd8] sm:$0xff]
    %v1962 = vld [vmem:[#allocation13 + $0xe0] sm:$0xff]
    %v1963 = vld [vmem:[#allocation13 + $0xe8] sm:$0xff]
    %v1964 = vld [vmem:[#allocation13 + $0xf0] sm:$0xff]
    %v1965 = vld [vmem:[#allocation13 + $0xf8] sm:$0xff]
    %v1966 = vld [vmem:[#allocation13 + $0x100] sm:$0xff]
    %v1967 = vld [vmem:[#allocation13 + $0x108] sm:$0xff]
    %v1968 = vld [vmem:[#allocation13 + $0x110] sm:$0xff]
    %v1969 = vld [vmem:[#allocation13 + $0x118] sm:$0xff]
    %v1970 = vld [vmem:[#allocation13 + $0x120] sm:$0xff]
    %v1971 = vld [vmem:[#allocation13 + $0x128] sm:$0xff]
    %v1972 = vld [vmem:[#allocation13 + $0x130] sm:$0xff]
    %v1973 = vld [vmem:[#allocation13 + $0x138] sm:$0xff]
    %v1974 = vld [vmem:[#allocation13 + $0x140] sm:$0xff]
    %v1975 = vld [vmem:[#allocation13 + $0x148] sm:$0xff]
    %v1976 = vld [vmem:[#allocation13 + $0x150] sm:$0xff]
    %v1977 = vld [vmem:[#allocation13 + $0x158] sm:$0xff]
    %v1978 = vld [vmem:[#allocation13 + $0x160] sm:$0xff]
    %v1979 = vld [vmem:[#allocation13 + $0x168] sm:$0xff]
    %v1980 = vld [vmem:[#allocation13 + $0x170] sm:$0xff]
    %v1981 = vld [vmem:[#allocation13 + $0x178] sm:$0xff]
    %v1982 = vld [vmem:[#allocation13 + $0x180] sm:$0xff]
    %v1983 = vld [vmem:[#allocation13 + $0x188] sm:$0xff]
    %v1984 = vld [vmem:[#allocation13 + $0x190] sm:$0xff]
    %v1985 = vld [vmem:[#allocation13 + $0x198] sm:$0xff]
    %v1986 = vld [vmem:[#allocation13 + $0x1a0] sm:$0xff]
    %v1987 = vld [vmem:[#allocation13 + $0x1a8] sm:$0xff]
    %v1988 = vld [vmem:[#allocation13 + $0x1b0] sm:$0xff]
    %v1989 = vld [vmem:[#allocation13 + $0x1b8] sm:$0xff]
    %v1990 = vld [vmem:[#allocation13 + $0x1c0] sm:$0xff]
    %v1991 = vld [vmem:[#allocation13 + $0x1c8] sm:$0xff]
    %v1992 = vld [vmem:[#allocation13 + $0x1d0] sm:$0xff]
    %v1993 = vld [vmem:[#allocation13 + $0x1d8] sm:$0xff]
    %v1994 = vld [vmem:[#allocation13 + $0x1e0] sm:$0xff]
    %v1995 = vld [vmem:[#allocation13 + $0x1e8] sm:$0xff]
    %v1996 = vld [vmem:[#allocation13 + $0x1f0] sm:$0xff]
    %v1997 = vld [vmem:[#allocation13 + $0x1f8] sm:$0xff]
    %1998 = vmatpush.msra.mxu0 %v1994
    %1999 = vmatpush.msra.mxu0 %v1990
    %2000 = vmatpush.msra.mxu0 %v1986
    %2001 = vmatpush.msra.mxu0 %v1982
    %2002 = vmatpush.msra.mxu0 %v1978
    %2003 = vmatpush.msra.mxu0 %v1974
    %2004 = vmatpush.msra.mxu0 %v1970
    %2005 = vmatpush.msra.mxu0 %v1966
    %2006 = vmatpush.msra.mxu0 %v1962
    %2007 = vmatpush.msra.mxu0 %v1958
    %2008 = vmatpush.msra.mxu0 %v1954
    %2009 = vmatpush.msra.mxu0 %v1950
    %2010 = vmatpush.msra.mxu0 %v1946
    %2011 = vmatpush.msra.mxu0 %v1942
    %2012 = vmatpush.msra.mxu0 %v1938
    %2013 = vmatpush.msra.mxu0 %v1934
    %2014 = vmatmul.f32.gmra.mxu0 %v1931
    %v2015 = vpop.f32.mrf.mxu0
    %v2016 = vadd.f32 0.0, %v2015
    %2017 = vdwg.mxu0
    %2018 = vmatpush.msra.mxu0 %v1995
    %2019 = vmatpush.msra.mxu0 %v1991
    %2020 = vmatpush.msra.mxu0 %v1987
    %2021 = vmatpush.msra.mxu0 %v1983
    %2022 = vmatpush.msra.mxu0 %v1979
    %2023 = vmatpush.msra.mxu0 %v1975
    %2024 = vmatpush.msra.mxu0 %v1971
    %2025 = vmatpush.msra.mxu0 %v1967
    %2026 = vmatpush.msra.mxu0 %v1963
    %2027 = vmatpush.msra.mxu0 %v1959
    %2028 = vmatpush.msra.mxu0 %v1955
    %2029 = vmatpush.msra.mxu0 %v1951
    %2030 = vmatpush.msra.mxu0 %v1947
    %2031 = vmatpush.msra.mxu0 %v1943
    %2032 = vmatpush.msra.mxu0 %v1939
    %2033 = vmatpush.msra.mxu0 %v1935
    %2034 = vmatmul.f32.gmra.mxu0 %v1931
    %v2035 = vpop.f32.mrf.mxu0
    %v2036 = vadd.f32 0.0, %v2035
    %2037 = vdwg.mxu0
    %2038 = vmatpush.msra.mxu0 %v1996
    %2039 = vmatpush.msra.mxu0 %v1992
    %2040 = vmatpush.msra.mxu0 %v1988
    %2041 = vmatpush.msra.mxu0 %v1984
    %2042 = vmatpush.msra.mxu0 %v1980
    %2043 = vmatpush.msra.mxu0 %v1976
    %2044 = vmatpush.msra.mxu0 %v1972
    %2045 = vmatpush.msra.mxu0 %v1968
    %2046 = vmatpush.msra.mxu0 %v1964
    %2047 = vmatpush.msra.mxu0 %v1960
    %2048 = vmatpush.msra.mxu0 %v1956
    %2049 = vmatpush.msra.mxu0 %v1952
    %2050 = vmatpush.msra.mxu0 %v1948
    %2051 = vmatpush.msra.mxu0 %v1944
    %2052 = vmatpush.msra.mxu0 %v1940
    %2053 = vmatpush.msra.mxu0 %v1936
    %2054 = vmatmul.f32.gmra.mxu0 %v1931
    %v2055 = vpop.f32.mrf.mxu0
    %v2056 = vadd.f32 0.0, %v2055
    %2057 = vdwg.mxu0
    %2058 = vmatpush.msra.mxu0 %v1997
    %2059 = vmatpush.msra.mxu0 %v1993
    %2060 = vmatpush.msra.mxu0 %v1989
    %2061 = vmatpush.msra.mxu0 %v1985
    %2062 = vmatpush.msra.mxu0 %v1981
    %2063 = vmatpush.msra.mxu0 %v1977
    %2064 = vmatpush.msra.mxu0 %v1973
    %2065 = vmatpush.msra.mxu0 %v1969
    %2066 = vmatpush.msra.mxu0 %v1965
    %2067 = vmatpush.msra.mxu0 %v1961
    %2068 = vmatpush.msra.mxu0 %v1957
    %2069 = vmatpush.msra.mxu0 %v1953
    %2070 = vmatpush.msra.mxu0 %v1949
    %2071 = vmatpush.msra.mxu0 %v1945
    %2072 = vmatpush.msra.mxu0 %v1941
    %2073 = vmatpush.msra.mxu0 %v1937
    %2074 = vmatmul.f32.gmra.mxu0 %v1931
    %v2075 = vpop.f32.mrf.mxu0
    %v2076 = vadd.f32 0.0, %v2075
    %2077 = vdwg.mxu0
    %v2078 = vadd.f32 %v438, %v2016
    %v2079 = vadd.f32 %v439, %v2036
    %v2080 = vadd.f32 %v440, %v2056
    %v2081 = vadd.f32 %v441, %v2076
    %v2082 = vxor.u32 %v2078, 2147483648
    %v2083 = vmul.f32 %v2082, 1.442695
    %v2084 = vpow.pop %v2083
    %v2085 = vadd.f32 %v2084, 1.0
    %v2086 = vrcp.pop %v2085
    %v2087 = vmul.f32 %v2085, %v2086
    %v2088 = vsub.f32 1.0, %v2087
    %v2089 = vmul.f32 %v2086, %v2088
    %v2090 = vadd.f32 %v2086, %v2089
    %vm2091 = vweird.f32 %v2085
    %vm2092 = vweird.f32 %v2086
    %vm2093 = vmor %vm2091, %vm2092
    %v2094 = vsel %vm2093, %v2086, %v2090
    %v2095 = vand.u32 2147483647, %v2085
    %vm2096 = vcmp.eq.f32.partialorder %v2095, 8.507059e+37
    %v2097 = vand.u32 %v2085, 2147483648
    %v2098 = vor.u32 1.1754944e-38, %v2097
    %v2099 = vsel %vm2096, %v2098, %v2094
    %v2100 = vmul.f32 1.0, %v2099
    %v2101 = vxor.u32 %v2079, 2147483648
    %v2102 = vmul.f32 %v2101, 1.442695
    %v2103 = vpow.pop %v2102
    %v2104 = vadd.f32 %v2103, 1.0
    %v2105 = vrcp.pop %v2104
    %v2106 = vmul.f32 %v2104, %v2105
    %v2107 = vsub.f32 1.0, %v2106
    %v2108 = vmul.f32 %v2105, %v2107
    %v2109 = vadd.f32 %v2105, %v2108
    %vm2110 = vweird.f32 %v2104
    %vm2111 = vweird.f32 %v2105
    %vm2112 = vmor %vm2110, %vm2111
    %v2113 = vsel %vm2112, %v2105, %v2109
    %v2114 = vand.u32 2147483647, %v2104
    %vm2115 = vcmp.eq.f32.partialorder %v2114, 8.507059e+37
    %v2116 = vand.u32 %v2104, 2147483648
    %v2117 = vor.u32 1.1754944e-38, %v2116
    %v2118 = vsel %vm2115, %v2117, %v2113
    %v2119 = vmul.f32 1.0, %v2118
    %v2120 = vtanh.pop %v2080
    %v2121 = vxor.u32 %v2081, 2147483648
    %v2122 = vmul.f32 %v2121, 1.442695
    %v2123 = vpow.pop %v2122
    %v2124 = vadd.f32 %v2123, 1.0
    %v2125 = vrcp.pop %v2124
    %v2126 = vmul.f32 %v2124, %v2125
    %v2127 = vsub.f32 1.0, %v2126
    %v2128 = vmul.f32 %v2125, %v2127
    %v2129 = vadd.f32 %v2125, %v2128
    %vm2130 = vweird.f32 %v2124
    %vm2131 = vweird.f32 %v2125
    %vm2132 = vmor %vm2130, %vm2131
    %v2133 = vsel %vm2132, %v2125, %v2129
    %v2134 = vand.u32 2147483647, %v2124
    %vm2135 = vcmp.eq.f32.partialorder %v2134, 8.507059e+37
    %v2136 = vand.u32 %v2124, 2147483648
    %v2137 = vor.u32 1.1754944e-38, %v2136
    %v2138 = vsel %vm2135, %v2137, %v2133
    %v2139 = vmul.f32 1.0, %v2138
    %v2140 = vmul.f32 %v2119, %v1929
    %v2141 = vmul.f32 %v2100, %v2120
    %v2142 = vadd.f32 %v2140, %v2141
    %v2143 = vtanh.pop %v2142
    %v2144 = vmul.f32 %v2139, %v2143
    %s2145 = scalar_lea.vmem [#allocation5], 56
    %2146 = vst [vmem:[%s2145] sm:$0xff] %v2144
    %2147 = vst [vmem:[#allocation2] sm:$0xff] %v2144
    %2148 = vst [vmem:[#allocation3] sm:$0xff] %v2142
    %v2149 = vld [vmem:[#allocation5] sm:$0xff]
    %v2150 = vld [vmem:[#allocation5 + $0x8] sm:$0xff]
    %v2151 = vld [vmem:[#allocation5 + $0x10] sm:$0xff]
    %v2152 = vld [vmem:[#allocation5 + $0x18] sm:$0xff]
    %v2153 = vld [vmem:[#allocation5 + $0x20] sm:$0xff]
    %v2154 = vld [vmem:[#allocation5 + $0x28] sm:$0xff]
    %v2155 = vld [vmem:[#allocation5 + $0x30] sm:$0xff]
    %v2156 = vld [vmem:[#allocation5 + $0x38] sm:$0xff]
    %v2157 = vld [vmem:[#allocation14] sm:$0xff]
    %v2158 = vld [vmem:[#allocation14 + $0x8] sm:$0xff]
    %v2159 = vld [vmem:[#allocation14 + $0x10] sm:$0xff]
    %v2160 = vld [vmem:[#allocation14 + $0x18] sm:$0xff]
    %v2161 = vld [vmem:[#allocation14 + $0x20] sm:$0xff]
    %v2162 = vld [vmem:[#allocation14 + $0x28] sm:$0xff]
    %v2163 = vld [vmem:[#allocation14 + $0x30] sm:$0xff]
    %v2164 = vld [vmem:[#allocation14 + $0x38] sm:$0xff]
    %v2165 = vld [vmem:[#allocation14 + $0x40] sm:$0xff]
    %v2166 = vld [vmem:[#allocation14 + $0x48] sm:$0xff]
    %v2167 = vld [vmem:[#allocation14 + $0x50] sm:$0xff]
    %v2168 = vld [vmem:[#allocation14 + $0x58] sm:$0xff]
    %v2169 = vld [vmem:[#allocation14 + $0x60] sm:$0xff]
    %v2170 = vld [vmem:[#allocation14 + $0x68] sm:$0xff]
    %v2171 = vld [vmem:[#allocation14 + $0x70] sm:$0xff]
    %v2172 = vld [vmem:[#allocation14 + $0x78] sm:$0xff]
    %v2173 = vld [vmem:[%s13] sm:$0x1]
    %v2175 = vperm.slane %v2173, 0
    %2177 = vmatpush.msra.mxu0 %v2172
    %2178 = vmatpush.msra.mxu0 %v2171
    %2179 = vmatpush.msra.mxu0 %v2170
    %2180 = vmatpush.msra.mxu0 %v2169
    %2181 = vmatpush.msra.mxu0 %v2168
    %2182 = vmatpush.msra.mxu0 %v2167
    %2183 = vmatpush.msra.mxu0 %v2166
    %2184 = vmatpush.msra.mxu0 %v2165
    %2185 = vmatpush.msra.mxu0 %v2164
    %2186 = vmatpush.msra.mxu0 %v2163
    %2187 = vmatpush.msra.mxu0 %v2162
    %2188 = vmatpush.msra.mxu0 %v2161
    %2189 = vmatpush.msra.mxu0 %v2160
    %2190 = vmatpush.msra.mxu0 %v2159
    %2191 = vmatpush.msra.mxu0 %v2158
    %2192 = vmatpush.msra.mxu0 %v2157
    %2193 = vmatmul.f32.gmra.mxu0 %v2149
    %v2194 = vpop.f32.mrf.mxu0
    %v2195 = vadd.f32 %v2175, %v2194
    %2196 = vmatmul.f32.gmra.mxu0 %v2150
    %v2197 = vpop.f32.mrf.mxu0
    %v2198 = vadd.f32 %v2175, %v2197
    %2199 = vmatmul.f32.gmra.mxu0 %v2151
    %v2200 = vpop.f32.mrf.mxu0
    %v2201 = vadd.f32 %v2175, %v2200
    %2202 = vmatmul.f32.gmra.mxu0 %v2152
    %v2203 = vpop.f32.mrf.mxu0
    %v2204 = vadd.f32 %v2175, %v2203
    %2205 = vmatmul.f32.gmra.mxu0 %v2153
    %v2206 = vpop.f32.mrf.mxu0
    %v2207 = vadd.f32 %v2175, %v2206
    %2208 = vmatmul.f32.gmra.mxu0 %v2154
    %v2209 = vpop.f32.mrf.mxu0
    %v2210 = vadd.f32 %v2175, %v2209
    %2211 = vmatmul.f32.gmra.mxu0 %v2155
    %v2212 = vpop.f32.mrf.mxu0
    %v2213 = vadd.f32 %v2175, %v2212
    %2214 = vmatmul.f32.gmra.mxu0 %v2156
    %v2215 = vpop.f32.mrf.mxu0
    %v2216 = vadd.f32 %v2175, %v2215
    %2217 = vdwg.mxu0
    %2218 = vst [vmem:[%s14] sm:$0xff] %v2195
    %2219 = vst [vmem:[%s14 + $0x8] sm:$0xff] %v2198
    %2220 = vst [vmem:[%s14 + $0x10] sm:$0xff] %v2201
    %2221 = vst [vmem:[%s14 + $0x18] sm:$0xff] %v2204
    %2222 = vst [vmem:[%s14 + $0x20] sm:$0xff] %v2207
    %2223 = vst [vmem:[%s14 + $0x28] sm:$0xff] %v2210
    %2224 = vst [vmem:[%s14 + $0x30] sm:$0xff] %v2213
    %2225 = vst [vmem:[%s14 + $0x38] sm:$0xff] %v2216
    // Predicated region
    $region86: #{lstmvae_forward.3} parent=1 // pred_check
      _
    $region87: #{lstmvae_forward.3} parent=1 // pred_check_branch
      %2227 = sbr.rel (0) target = $region89
    $region88: #{lstmvae_forward.3} parent=1 // pred_region
      _
    $region89: #{lstmvae_forward.3} parent=1 // pred_fallthru
      _
    // Predicated region
    $region90: #{lstmvae_forward.3} parent=1 // pred_check
      _
    $region91: #{lstmvae_forward.3} parent=1 // pred_check_branch
      %2229 = sbr.rel (0) target = $region93
    $region92: #{lstmvae_forward.3} parent=1 // pred_region
      _
    $region93: #{lstmvae_forward.3} parent=1 // pred_fallthru
      _
    // Predicated region
    $region94: #{lstmvae_forward.3} parent=1 // pred_check
      _
    $region95: #{lstmvae_forward.3} parent=1 // pred_check_branch
      %2231 = sbr.rel (0) target = $region97
    $region96: #{lstmvae_forward.3} parent=1 // pred_region
      _
    $region97: #{lstmvae_forward.3} parent=1 // pred_fallthru
      _
    // Predicated region
    $region98: #{lstmvae_forward.3} parent=1 // pred_check
      _
    $region99: #{lstmvae_forward.3} parent=1 // pred_check_branch
      %2233 = sbr.rel (0) target = $region101
    $region100: #{lstmvae_forward.3} parent=1 // pred_region
      _
    $region101: #{lstmvae_forward.3} parent=1 // pred_fallthru
      _
    // Predicated region
    $region102: #{lstmvae_forward.3} parent=1 // pred_check
      _
    $region103: #{lstmvae_forward.3} parent=1 // pred_check_branch
      %2235 = sbr.rel (0) target = $region105
    $region104: #{lstmvae_forward.3} parent=1 // pred_region
      _
    $region105: #{lstmvae_forward.3} parent=1 // pred_fallthru
      _
    // Predicated region
    $region106: #{lstmvae_forward.3} parent=1 // pred_check
      _
    $region107: #{lstmvae_forward.3} parent=1 // pred_check_branch
      %2237 = sbr.rel (0) target = $region109
    $region108: #{lstmvae_forward.3} parent=1 // pred_region
      _
    $region109: #{lstmvae_forward.3} parent=1 // pred_fallthru
      _
    %2238 = vsyncpa [#allocation7], 1
    %2239 = vsyncpa [#allocation9], 1
    %2240 = vsyncpa [#allocation12], 1
    %2241 = vsyncpa [#allocation15], 1

</llo_original>
